<compile_context>
chip_gen: v7x
topology: tpu7x:2x2x1
jax: 0.10.0
libtpu: 0.0.40
codegen_flags: <defaults>
</compile_context>

<pallas_src>
import math
import numpy as np
import jax
import jax.numpy as jnp
from jax.experimental import pallas as pl
from jax.experimental.pallas import tpu as pltpu

# ---------------- model hyper-parameters (small, deterministic) ----------------
B = 2            # batch
IN_SEQ = 16      # in_seq_dim
OUT_SEQ = 1      # out_seq_dim
HID = 1024


def _out_len(lin, k, s, p):
    return (lin + 2 * p - k) // s + 1


L1 = _out_len(IN_SEQ, 3, 1, 1)   # 16
L2 = _out_len(L1, 5, 2, 2)       # 8
L3 = _out_len(L2, 7, 3, 3)       # 3
C3 = 524
C3P = 640                        # C3 zero-padded to next multiple of 128
FLAT = C3 * L3                   # 1572 (== flatten_size in the PyTorch module)
FLATP = C3P * L3                 # 1920 (lane-aligned flatten width used in-kernel)


# ---------------------------------- kernel ----------------------------------
def model_kernel(x_ref, w1_ref, b1_ref, w2_ref, b2_ref, w3_ref, b3_ref,
                 wcr1_ref, bcr1_ref, wcr2_ref, bcr2_ref, out_ref):
    f32, bf16 = jnp.float32, jnp.bfloat16

    x = x_ref[...]            # (B, IN_SEQ) f32
    w1 = w1_ref[...]          # (3, 32)     f32
    b1 = b1_ref[...]          # (1, 32)     f32

    # ---- ReplicationPad1d(1) + Conv1d(1->32, k=3, s=1) + ReLU (pure VPU MACs) ----
    conv1 = []
    for t in range(L1):
        acc = b1                                               # bias hoisted (read once)
        for k in range(3):
            idx = min(max(t + k - 1, 0), IN_SEQ - 1)           # replication pad = clamp
            acc = acc + x[:, idx:idx + 1] * w1[k:k + 1, :]
        conv1.append(jnp.maximum(acc, 0.0))                    # (B, 32)

    # ---- ReplicationPad1d(2) + Conv1d(32->128, k=5, s=2) + ReLU: one im2col dot ----
    rows2 = []
    for t in range(L2):
        parts = [conv1[min(max(2 * t + k - 2, 0), L1 - 1)] for k in range(5)]
        rows2.append(jnp.concatenate(parts, axis=1))           # (B, 5*32)
    lhs2 = jnp.concatenate(rows2, axis=0).astype(bf16)         # (L2*B, 160)
    a2 = jnp.maximum(
        jnp.dot(lhs2, w2_ref[...], preferred_element_type=f32) + b2_ref[...], 0.0)
    conv2 = [a2[t * B:(t + 1) * B, :] for t in range(L2)]      # (B, 128) each

    # ---- ReplicationPad1d(3) + Conv1d(128->524[pad 640], k=7, s=3) + ReLU ----
    rows3 = []
    for t in range(L3):
        parts = [conv2[min(max(3 * t + k - 3, 0), L2 - 1)] for k in range(7)]
        rows3.append(jnp.concatenate(parts, axis=1))           # (B, 7*128)
    lhs3 = jnp.concatenate(rows3, axis=0).astype(bf16)         # (L3*B, 896)
    a3 = jnp.maximum(
        jnp.dot(lhs3, w3_ref[...], preferred_element_type=f32) + b3_ref[...], 0.0)

    # ---- flatten, position-major (head rows were pre-permuted / zero-padded) ----
    flat = jnp.concatenate([a3[t * B:(t + 1) * B, :] for t in range(L3)], axis=1)

    # ---- this grid step's head slice (step 0 = clas, step 1 = reg) ----
    h = jnp.maximum(
        jnp.dot(flat.astype(bf16), wcr1_ref[...], preferred_element_type=f32)
        + bcr1_ref[...], 0.0)                                   # (B, HID)
    # OUT_SEQ == 1: second Linear done as a lane reduction (avoids an N=1 matmul
    # and a badly laid-out (HID, 1) weight tile).
    out = jnp.sum(h * wcr2_ref[0], axis=1, keepdims=True) + bcr2_ref[0]   # (B, 1)
    out_ref[0] = out


# ------------------------------- wrapper (glue) -------------------------------
def model_forward(x_ncl, kp):
    """x_ncl: (B, 1, IN_SEQ) float32, like the PyTorch module's input."""
    x2d = x_ncl[:, 0, :]                                        # (B, IN_SEQ)

    def full(shape):          # whole array, resident across all grid steps
        return pl.BlockSpec(shape, lambda n: (0,) * len(shape))

    in_specs = [
        full((B, IN_SEQ)),                                       # x
        full((3, 32)), full((1, 32)),                            # conv1
        full((5 * 32, 128)), full((1, 128)),                     # conv2
        full((7 * 128, C3P)), full((1, C3P)),                    # conv3 (padded)
        pl.BlockSpec((FLATP, HID), lambda n: (0, n)),            # fused head W1, N-split
        pl.BlockSpec((1, HID), lambda n: (0, n)),                # fused head b1
        pl.BlockSpec((1, 1, HID), lambda n: (n, 0, 0)),          # per-head W2 row vector
        pl.BlockSpec((1, 1, OUT_SEQ), lambda n: (n, 0, 0)),      # per-head b2
    ]
    out = pl.pallas_call(
        model_kernel,
        out_shape=jax.ShapeDtypeStruct((2, B, OUT_SEQ), jnp.float32),
        grid=(2,),                                               # step 0 = clas, 1 = reg
        in_specs=in_specs,
        out_specs=pl.BlockSpec((1, B, OUT_SEQ), lambda n: (n, 0, 0)),
        compiler_params=pltpu.CompilerParams(
            dimension_semantics=("parallel",),                   # v7x: one head slice per TC
            vmem_limit_bytes=32 * 1024 * 1024),                  # fits v7x's 64 MiB physical
    )(x2d, kp["w1"], kp["b1"], kp["w2"], kp["b2"], kp["w3"], kp["b3"],
      kp["wcr1"], kp["bcr1"], kp["wcr2"], kp["bcr2"])
    return out[0], out[1]                                        # (clas, reg), each (B, OUT_SEQ)


# ---------------------- deterministic parameter construction ----------------------
def init_pytorch_params(key):
    """Parameters in PyTorch conventions: Conv1d weight (Cout, Cin, K), Linear (out, in)."""
    ks = jax.random.split(key, 14)

    def rnd(k, shape, fan_in):
        return jax.random.normal(k, shape, jnp.float32) / math.sqrt(fan_in)

    return dict(
        c1w=rnd(ks[0], (32, 1, 3), 3),         c1b=rnd(ks[1], (32,), 3),
        c2w=rnd(ks[2], (128, 32, 5), 160),     c2b=rnd(ks[3], (128,), 160),
        c3w=rnd(ks[4], (C3, 128, 7), 896),     c3b=rnd(ks[5], (C3,), 896),
        lc1w=rnd(ks[6], (HID, FLAT), FLAT),    lc1b=rnd(ks[7], (HID,), FLAT),
        lc2w=rnd(ks[8], (OUT_SEQ, HID), HID),  lc2b=rnd(ks[9], (OUT_SEQ,), HID),
        lr1w=rnd(ks[10], (HID, FLAT), FLAT),   lr1b=rnd(ks[11], (HID,), FLAT),
        lr2w=rnd(ks[12], (OUT_SEQ, HID), HID), lr2b=rnd(ks[13], (OUT_SEQ,), HID),
    )


def to_kernel_params(p):
    bf16 = jnp.bfloat16

    def conv_w(w_oik):                            # (Cout, Cin, K) -> (K*Cin, Cout)
        cout, cin, k = w_oik.shape
        return jnp.transpose(w_oik, (2, 1, 0)).reshape(k * cin, cout)

    def head_w1(w_pt):                            # (HID, FLAT) -> (FLATP, HID)
        wt = w_pt.T.reshape(C3, L3, HID)          # PyTorch flat index = c*L3 + l
        wt = jnp.transpose(wt, (1, 0, 2))         # (L3, C3, HID)
        wt = jnp.pad(wt, ((0, 0), (0, C3P - C3), (0, 0)))   # zero rows for padded channels
        return wt.reshape(FLATP, HID)             # kernel flat index = l*C3P + c

    w3 = jnp.pad(conv_w(p["c3w"]), ((0, 0), (0, C3P - C3)))          # (896, 640)
    b3 = jnp.pad(p["c3b"], (0, C3P - C3)).reshape(1, -1)             # (1, 640)

    assert OUT_SEQ == 1  # second-layer head weights stored as (2, 1, HID) row vectors

    return dict(
        w1=conv_w(p["c1w"]),               b1=p["c1b"].reshape(1, -1),
        w2=conv_w(p["c2w"]).astype(bf16),  b2=p["c2b"].reshape(1, -1),
        w3=w3.astype(bf16),                b3=b3,
        # fused heads: columns [0:HID] = clas head, [HID:2*HID] = reg head
        wcr1=jnp.concatenate([head_w1(p["lc1w"]), head_w1(p["lr1w"])],
                             axis=1).astype(bf16),                    # (1920, 2048) bf16
        bcr1=jnp.concatenate([p["lc1b"], p["lr1b"]]).reshape(1, 2 * HID),
        wcr2=jnp.stack([p["lc2w"], p["lr2w"]], axis=0),               # (2, 1, HID) f32
        bcr2=jnp.stack([p["lc2b"], p["lr2b"]], axis=0).reshape(2, 1, OUT_SEQ),
    )


# ------------------- pure-JAX reference (PyTorch Model_MTL semantics) -------------------
def reference_forward(x_ncl, p):
    def rpad(x, pad):
        return jnp.pad(x, ((0, 0), (0, 0), (pad, pad)), mode="edge")

    def conv1d(x, w, b, stride):
        y = jax.lax.conv_general_dilated(
            x, w, window_strides=(stride,), padding="VALID",
            dimension_numbers=("NCH", "OIH", "NCH"))
        return y + b[None, :, None]

    h = jax.nn.relu(conv1d(rpad(x_ncl, 1), p["c1w"], p["c1b"], 1))
    h = jax.nn.relu(conv1d(rpad(h, 2), p["c2w"], p["c2b"], 2))
    h = jax.nn.relu(conv1d(rpad(h, 3), p["c3w"], p["c3b"], 3))
    flat = h.reshape(h.shape[0], -1)                   # channel-major flatten (NCL view)
    hc = jax.nn.relu(flat @ p["lc1w"].T + p["lc1b"])
    clas = hc @ p["lc2w"].T + p["lc2b"]
    hr = jax.nn.relu(flat @ p["lr1w"].T + p["lr1b"])
    reg = hr @ p["lr2w"].T + p["lr2b"]
    return clas, reg                                   # Model_MTL.forward: no sigmoid applied


# ------------------------------------- main -------------------------------------
if __name__ == "__main__":
    key = jax.random.PRNGKey(0)
    kx, kparam = jax.random.split(key)

    x = jax.random.normal(kx, (B, 1, IN_SEQ), jnp.float32)   # PyTorch NCL input
    pt_params = init_pytorch_params(kparam)
    kernel_params = to_kernel_params(pt_params)

    clas, reg = jax.jit(model_forward)(x, kernel_params)
    jax.block_until_ready((clas, reg))

    clas_ref, reg_ref = reference_forward(x, pt_params)
    jax.block_until_ready((clas_ref, reg_ref))

    # Tolerance covers bf16 weight storage + TPU default (bf16-pass) matmul precision.
    err_c = float(np.max(np.abs(np.asarray(clas) - np.asarray(clas_ref))))
    err_r = float(np.max(np.abs(np.asarray(reg) - np.asarray(reg_ref))))
    ok = (np.allclose(np.asarray(clas), np.asarray(clas_ref), rtol=5e-2, atol=5e-2) and
          np.allclose(np.asarray(reg), np.asarray(reg_ref), rtol=5e-2, atol=5e-2))
    assert ok, (err_c, err_r)
    print("KERNEL_OK")
</pallas_src>

<mosaic_0001>
module attributes {stable_mosaic.version = 11 : i64} {
  func.func @model_kernel(%arg0: i32, %arg1: memref<2x16xf32, #tpu.memory_space<vmem>>, %arg2: memref<3x32xf32, #tpu.memory_space<vmem>>, %arg3: memref<1x32xf32, #tpu.memory_space<vmem>>, %arg4: memref<160x128xbf16, #tpu.memory_space<vmem>>, %arg5: memref<1x128xf32, #tpu.memory_space<vmem>>, %arg6: memref<896x640xbf16, #tpu.memory_space<vmem>>, %arg7: memref<1x640xf32, #tpu.memory_space<vmem>>, %arg8: memref<1920x1024xbf16, #tpu.memory_space<vmem>>, %arg9: memref<1x1024xf32, #tpu.memory_space<vmem>>, %arg10: memref<1x1x1024xf32, #tpu.memory_space<vmem>>, %arg11: memref<1x1x1xf32, #tpu.memory_space<vmem>>, %arg12: memref<1x2x1xf32, #tpu.memory_space<vmem>>) attributes {dimension_semantics = [#tpu.dimension_semantics<parallel>], iteration_bounds = array<i64: 2>, scalar_prefetch = 0 : i64, scratch_operands = 0 : i64, tpu.core_type = #tpu.core_type<tc>, window_params = [{pipeline_mode = #tpu.pipeline_mode<synchronous>, transform_indices = @transform_0, window_bounds = array<i64: 2, 16>}, {pipeline_mode = #tpu.pipeline_mode<synchronous>, transform_indices = @transform_1, window_bounds = array<i64: 3, 32>}, {pipeline_mode = #tpu.pipeline_mode<synchronous>, transform_indices = @transform_2, window_bounds = array<i64: 1, 32>}, {pipeline_mode = #tpu.pipeline_mode<synchronous>, transform_indices = @transform_3, window_bounds = array<i64: 160, 128>}, {pipeline_mode = #tpu.pipeline_mode<synchronous>, transform_indices = @transform_4, window_bounds = array<i64: 1, 128>}, {pipeline_mode = #tpu.pipeline_mode<synchronous>, transform_indices = @transform_5, window_bounds = array<i64: 896, 640>}, {pipeline_mode = #tpu.pipeline_mode<synchronous>, transform_indices = @transform_6, window_bounds = array<i64: 1, 640>}, {transform_indices = @transform_7, window_bounds = array<i64: 1920, 1024>}, {transform_indices = @transform_8, window_bounds = array<i64: 1, 1024>}, {transform_indices = @transform_9, window_bounds = array<i64: 1, 1, 1024>}, {transform_indices = @transform_10, window_bounds = array<i64: 1, 1, 1>}, {transform_indices = @transform_11, window_bounds = array<i64: 1, 2, 1>}]} {
    %c0 = arith.constant 0 : index
    %c0_0 = arith.constant 0 : index
    %0 = vector.load %arg1[%c0, %c0_0] : memref<2x16xf32, #tpu.memory_space<vmem>>, vector<2x16xf32>
    %c0_1 = arith.constant 0 : index
    %c0_2 = arith.constant 0 : index
    %1 = vector.load %arg2[%c0_1, %c0_2] : memref<3x32xf32, #tpu.memory_space<vmem>>, vector<3x32xf32>
    %c0_3 = arith.constant 0 : index
    %c0_4 = arith.constant 0 : index
    %2 = vector.load %arg3[%c0_3, %c0_4] : memref<1x32xf32, #tpu.memory_space<vmem>>, vector<1x32xf32>
    %3 = vector.extract_strided_slice %0 {offsets = [0, 0], sizes = [2, 1], strides = [1, 1]} : vector<2x16xf32> to vector<2x1xf32>
    %4 = vector.extract_strided_slice %1 {offsets = [0, 0], sizes = [1, 32], strides = [1, 1]} : vector<3x32xf32> to vector<1x32xf32>
    %5 = vector.broadcast %3 : vector<2x1xf32> to vector<2x32xf32>
    %6 = vector.broadcast %4 : vector<1x32xf32> to vector<2x32xf32>
    %7 = arith.mulf %5, %6 : vector<2x32xf32>
    %8 = vector.broadcast %2 : vector<1x32xf32> to vector<2x32xf32>
    %9 = arith.addf %8, %7 : vector<2x32xf32>
    %10 = vector.extract_strided_slice %0 {offsets = [0, 0], sizes = [2, 1], strides = [1, 1]} : vector<2x16xf32> to vector<2x1xf32>
    %11 = vector.extract_strided_slice %1 {offsets = [1, 0], sizes = [1, 32], strides = [1, 1]} : vector<3x32xf32> to vector<1x32xf32>
    %12 = vector.broadcast %10 : vector<2x1xf32> to vector<2x32xf32>
    %13 = vector.broadcast %11 : vector<1x32xf32> to vector<2x32xf32>
    %14 = arith.mulf %12, %13 : vector<2x32xf32>
    %15 = arith.addf %9, %14 : vector<2x32xf32>
    %16 = vector.extract_strided_slice %0 {offsets = [0, 1], sizes = [2, 1], strides = [1, 1]} : vector<2x16xf32> to vector<2x1xf32>
    %17 = vector.extract_strided_slice %1 {offsets = [2, 0], sizes = [1, 32], strides = [1, 1]} : vector<3x32xf32> to vector<1x32xf32>
    %18 = vector.broadcast %16 : vector<2x1xf32> to vector<2x32xf32>
    %19 = vector.broadcast %17 : vector<1x32xf32> to vector<2x32xf32>
    %20 = arith.mulf %18, %19 : vector<2x32xf32>
    %21 = arith.addf %15, %20 : vector<2x32xf32>
    %cst = arith.constant 0.000000e+00 : f32
    %22 = vector.broadcast %cst : f32 to vector<2x32xf32>
    %23 = arith.maximumf %21, %22 : vector<2x32xf32>
    %24 = vector.extract_strided_slice %0 {offsets = [0, 0], sizes = [2, 1], strides = [1, 1]} : vector<2x16xf32> to vector<2x1xf32>
    %25 = vector.extract_strided_slice %1 {offsets = [0, 0], sizes = [1, 32], strides = [1, 1]} : vector<3x32xf32> to vector<1x32xf32>
    %26 = vector.broadcast %24 : vector<2x1xf32> to vector<2x32xf32>
    %27 = vector.broadcast %25 : vector<1x32xf32> to vector<2x32xf32>
    %28 = arith.mulf %26, %27 : vector<2x32xf32>
    %29 = vector.broadcast %2 : vector<1x32xf32> to vector<2x32xf32>
    %30 = arith.addf %29, %28 : vector<2x32xf32>
    %31 = vector.extract_strided_slice %0 {offsets = [0, 1], sizes = [2, 1], strides = [1, 1]} : vector<2x16xf32> to vector<2x1xf32>
    %32 = vector.extract_strided_slice %1 {offsets = [1, 0], sizes = [1, 32], strides = [1, 1]} : vector<3x32xf32> to vector<1x32xf32>
    %33 = vector.broadcast %31 : vector<2x1xf32> to vector<2x32xf32>
    %34 = vector.broadcast %32 : vector<1x32xf32> to vector<2x32xf32>
    %35 = arith.mulf %33, %34 : vector<2x32xf32>
    %36 = arith.addf %30, %35 : vector<2x32xf32>
    %37 = vector.extract_strided_slice %0 {offsets = [0, 2], sizes = [2, 1], strides = [1, 1]} : vector<2x16xf32> to vector<2x1xf32>
    %38 = vector.extract_strided_slice %1 {offsets = [2, 0], sizes = [1, 32], strides = [1, 1]} : vector<3x32xf32> to vector<1x32xf32>
    %39 = vector.broadcast %37 : vector<2x1xf32> to vector<2x32xf32>
    %40 = vector.broadcast %38 : vector<1x32xf32> to vector<2x32xf32>
    %41 = arith.mulf %39, %40 : vector<2x32xf32>
    %42 = arith.addf %36, %41 : vector<2x32xf32>
    %cst_5 = arith.constant 0.000000e+00 : f32
    %43 = vector.broadcast %cst_5 : f32 to vector<2x32xf32>
    %44 = arith.maximumf %42, %43 : vector<2x32xf32>
    %45 = vector.extract_strided_slice %0 {offsets = [0, 1], sizes = [2, 1], strides = [1, 1]} : vector<2x16xf32> to vector<2x1xf32>
    %46 = vector.extract_strided_slice %1 {offsets = [0, 0], sizes = [1, 32], strides = [1, 1]} : vector<3x32xf32> to vector<1x32xf32>
    %47 = vector.broadcast %45 : vector<2x1xf32> to vector<2x32xf32>
    %48 = vector.broadcast %46 : vector<1x32xf32> to vector<2x32xf32>
    %49 = arith.mulf %47, %48 : vector<2x32xf32>
    %50 = vector.broadcast %2 : vector<1x32xf32> to vector<2x32xf32>
    %51 = arith.addf %50, %49 : vector<2x32xf32>
    %52 = vector.extract_strided_slice %0 {offsets = [0, 2], sizes = [2, 1], strides = [1, 1]} : vector<2x16xf32> to vector<2x1xf32>
    %53 = vector.extract_strided_slice %1 {offsets = [1, 0], sizes = [1, 32], strides = [1, 1]} : vector<3x32xf32> to vector<1x32xf32>
    %54 = vector.broadcast %52 : vector<2x1xf32> to vector<2x32xf32>
    %55 = vector.broadcast %53 : vector<1x32xf32> to vector<2x32xf32>
    %56 = arith.mulf %54, %55 : vector<2x32xf32>
    %57 = arith.addf %51, %56 : vector<2x32xf32>
    %58 = vector.extract_strided_slice %0 {offsets = [0, 3], sizes = [2, 1], strides = [1, 1]} : vector<2x16xf32> to vector<2x1xf32>
    %59 = vector.extract_strided_slice %1 {offsets = [2, 0], sizes = [1, 32], strides = [1, 1]} : vector<3x32xf32> to vector<1x32xf32>
    %60 = vector.broadcast %58 : vector<2x1xf32> to vector<2x32xf32>
    %61 = vector.broadcast %59 : vector<1x32xf32> to vector<2x32xf32>
    %62 = arith.mulf %60, %61 : vector<2x32xf32>
    %63 = arith.addf %57, %62 : vector<2x32xf32>
    %cst_6 = arith.constant 0.000000e+00 : f32
    %64 = vector.broadcast %cst_6 : f32 to vector<2x32xf32>
    %65 = arith.maximumf %63, %64 : vector<2x32xf32>
    %66 = vector.extract_strided_slice %0 {offsets = [0, 2], sizes = [2, 1], strides = [1, 1]} : vector<2x16xf32> to vector<2x1xf32>
    %67 = vector.extract_strided_slice %1 {offsets = [0, 0], sizes = [1, 32], strides = [1, 1]} : vector<3x32xf32> to vector<1x32xf32>
    %68 = vector.broadcast %66 : vector<2x1xf32> to vector<2x32xf32>
    %69 = vector.broadcast %67 : vector<1x32xf32> to vector<2x32xf32>
    %70 = arith.mulf %68, %69 : vector<2x32xf32>
    %71 = vector.broadcast %2 : vector<1x32xf32> to vector<2x32xf32>
    %72 = arith.addf %71, %70 : vector<2x32xf32>
    %73 = vector.extract_strided_slice %0 {offsets = [0, 3], sizes = [2, 1], strides = [1, 1]} : vector<2x16xf32> to vector<2x1xf32>
    %74 = vector.extract_strided_slice %1 {offsets = [1, 0], sizes = [1, 32], strides = [1, 1]} : vector<3x32xf32> to vector<1x32xf32>
    %75 = vector.broadcast %73 : vector<2x1xf32> to vector<2x32xf32>
    %76 = vector.broadcast %74 : vector<1x32xf32> to vector<2x32xf32>
    %77 = arith.mulf %75, %76 : vector<2x32xf32>
    %78 = arith.addf %72, %77 : vector<2x32xf32>
    %79 = vector.extract_strided_slice %0 {offsets = [0, 4], sizes = [2, 1], strides = [1, 1]} : vector<2x16xf32> to vector<2x1xf32>
    %80 = vector.extract_strided_slice %1 {offsets = [2, 0], sizes = [1, 32], strides = [1, 1]} : vector<3x32xf32> to vector<1x32xf32>
    %81 = vector.broadcast %79 : vector<2x1xf32> to vector<2x32xf32>
    %82 = vector.broadcast %80 : vector<1x32xf32> to vector<2x32xf32>
    %83 = arith.mulf %81, %82 : vector<2x32xf32>
    %84 = arith.addf %78, %83 : vector<2x32xf32>
    %cst_7 = arith.constant 0.000000e+00 : f32
    %85 = vector.broadcast %cst_7 : f32 to vector<2x32xf32>
    %86 = arith.maximumf %84, %85 : vector<2x32xf32>
    %87 = vector.extract_strided_slice %0 {offsets = [0, 3], sizes = [2, 1], strides = [1, 1]} : vector<2x16xf32> to vector<2x1xf32>
    %88 = vector.extract_strided_slice %1 {offsets = [0, 0], sizes = [1, 32], strides = [1, 1]} : vector<3x32xf32> to vector<1x32xf32>
    %89 = vector.broadcast %87 : vector<2x1xf32> to vector<2x32xf32>
    %90 = vector.broadcast %88 : vector<1x32xf32> to vector<2x32xf32>
    %91 = arith.mulf %89, %90 : vector<2x32xf32>
    %92 = vector.broadcast %2 : vector<1x32xf32> to vector<2x32xf32>
    %93 = arith.addf %92, %91 : vector<2x32xf32>
    %94 = vector.extract_strided_slice %0 {offsets = [0, 4], sizes = [2, 1], strides = [1, 1]} : vector<2x16xf32> to vector<2x1xf32>
    %95 = vector.extract_strided_slice %1 {offsets = [1, 0], sizes = [1, 32], strides = [1, 1]} : vector<3x32xf32> to vector<1x32xf32>
    %96 = vector.broadcast %94 : vector<2x1xf32> to vector<2x32xf32>
    %97 = vector.broadcast %95 : vector<1x32xf32> to vector<2x32xf32>
    %98 = arith.mulf %96, %97 : vector<2x32xf32>
    %99 = arith.addf %93, %98 : vector<2x32xf32>
    %100 = vector.extract_strided_slice %0 {offsets = [0, 5], sizes = [2, 1], strides = [1, 1]} : vector<2x16xf32> to vector<2x1xf32>
    %101 = vector.extract_strided_slice %1 {offsets = [2, 0], sizes = [1, 32], strides = [1, 1]} : vector<3x32xf32> to vector<1x32xf32>
    %102 = vector.broadcast %100 : vector<2x1xf32> to vector<2x32xf32>
    %103 = vector.broadcast %101 : vector<1x32xf32> to vector<2x32xf32>
    %104 = arith.mulf %102, %103 : vector<2x32xf32>
    %105 = arith.addf %99, %104 : vector<2x32xf32>
    %cst_8 = arith.constant 0.000000e+00 : f32
    %106 = vector.broadcast %cst_8 : f32 to vector<2x32xf32>
    %107 = arith.maximumf %105, %106 : vector<2x32xf32>
    %108 = vector.extract_strided_slice %0 {offsets = [0, 4], sizes = [2, 1], strides = [1, 1]} : vector<2x16xf32> to vector<2x1xf32>
    %109 = vector.extract_strided_slice %1 {offsets = [0, 0], sizes = [1, 32], strides = [1, 1]} : vector<3x32xf32> to vector<1x32xf32>
    %110 = vector.broadcast %108 : vector<2x1xf32> to vector<2x32xf32>
    %111 = vector.broadcast %109 : vector<1x32xf32> to vector<2x32xf32>
    %112 = arith.mulf %110, %111 : vector<2x32xf32>
    %113 = vector.broadcast %2 : vector<1x32xf32> to vector<2x32xf32>
    %114 = arith.addf %113, %112 : vector<2x32xf32>
    %115 = vector.extract_strided_slice %0 {offsets = [0, 5], sizes = [2, 1], strides = [1, 1]} : vector<2x16xf32> to vector<2x1xf32>
    %116 = vector.extract_strided_slice %1 {offsets = [1, 0], sizes = [1, 32], strides = [1, 1]} : vector<3x32xf32> to vector<1x32xf32>
    %117 = vector.broadcast %115 : vector<2x1xf32> to vector<2x32xf32>
    %118 = vector.broadcast %116 : vector<1x32xf32> to vector<2x32xf32>
    %119 = arith.mulf %117, %118 : vector<2x32xf32>
    %120 = arith.addf %114, %119 : vector<2x32xf32>
    %121 = vector.extract_strided_slice %0 {offsets = [0, 6], sizes = [2, 1], strides = [1, 1]} : vector<2x16xf32> to vector<2x1xf32>
    %122 = vector.extract_strided_slice %1 {offsets = [2, 0], sizes = [1, 32], strides = [1, 1]} : vector<3x32xf32> to vector<1x32xf32>
    %123 = vector.broadcast %121 : vector<2x1xf32> to vector<2x32xf32>
    %124 = vector.broadcast %122 : vector<1x32xf32> to vector<2x32xf32>
    %125 = arith.mulf %123, %124 : vector<2x32xf32>
    %126 = arith.addf %120, %125 : vector<2x32xf32>
    %cst_9 = arith.constant 0.000000e+00 : f32
    %127 = vector.broadcast %cst_9 : f32 to vector<2x32xf32>
    %128 = arith.maximumf %126, %127 : vector<2x32xf32>
    %129 = vector.extract_strided_slice %0 {offsets = [0, 5], sizes = [2, 1], strides = [1, 1]} : vector<2x16xf32> to vector<2x1xf32>
    %130 = vector.extract_strided_slice %1 {offsets = [0, 0], sizes = [1, 32], strides = [1, 1]} : vector<3x32xf32> to vector<1x32xf32>
    %131 = vector.broadcast %129 : vector<2x1xf32> to vector<2x32xf32>
    %132 = vector.broadcast %130 : vector<1x32xf32> to vector<2x32xf32>
    %133 = arith.mulf %131, %132 : vector<2x32xf32>
    %134 = vector.broadcast %2 : vector<1x32xf32> to vector<2x32xf32>
    %135 = arith.addf %134, %133 : vector<2x32xf32>
    %136 = vector.extract_strided_slice %0 {offsets = [0, 6], sizes = [2, 1], strides = [1, 1]} : vector<2x16xf32> to vector<2x1xf32>
    %137 = vector.extract_strided_slice %1 {offsets = [1, 0], sizes = [1, 32], strides = [1, 1]} : vector<3x32xf32> to vector<1x32xf32>
    %138 = vector.broadcast %136 : vector<2x1xf32> to vector<2x32xf32>
    %139 = vector.broadcast %137 : vector<1x32xf32> to vector<2x32xf32>
    %140 = arith.mulf %138, %139 : vector<2x32xf32>
    %141 = arith.addf %135, %140 : vector<2x32xf32>
    %142 = vector.extract_strided_slice %0 {offsets = [0, 7], sizes = [2, 1], strides = [1, 1]} : vector<2x16xf32> to vector<2x1xf32>
    %143 = vector.extract_strided_slice %1 {offsets = [2, 0], sizes = [1, 32], strides = [1, 1]} : vector<3x32xf32> to vector<1x32xf32>
    %144 = vector.broadcast %142 : vector<2x1xf32> to vector<2x32xf32>
    %145 = vector.broadcast %143 : vector<1x32xf32> to vector<2x32xf32>
    %146 = arith.mulf %144, %145 : vector<2x32xf32>
    %147 = arith.addf %141, %146 : vector<2x32xf32>
    %cst_10 = arith.constant 0.000000e+00 : f32
    %148 = vector.broadcast %cst_10 : f32 to vector<2x32xf32>
    %149 = arith.maximumf %147, %148 : vector<2x32xf32>
    %150 = vector.extract_strided_slice %0 {offsets = [0, 6], sizes = [2, 1], strides = [1, 1]} : vector<2x16xf32> to vector<2x1xf32>
    %151 = vector.extract_strided_slice %1 {offsets = [0, 0], sizes = [1, 32], strides = [1, 1]} : vector<3x32xf32> to vector<1x32xf32>
    %152 = vector.broadcast %150 : vector<2x1xf32> to vector<2x32xf32>
    %153 = vector.broadcast %151 : vector<1x32xf32> to vector<2x32xf32>
    %154 = arith.mulf %152, %153 : vector<2x32xf32>
    %155 = vector.broadcast %2 : vector<1x32xf32> to vector<2x32xf32>
    %156 = arith.addf %155, %154 : vector<2x32xf32>
    %157 = vector.extract_strided_slice %0 {offsets = [0, 7], sizes = [2, 1], strides = [1, 1]} : vector<2x16xf32> to vector<2x1xf32>
    %158 = vector.extract_strided_slice %1 {offsets = [1, 0], sizes = [1, 32], strides = [1, 1]} : vector<3x32xf32> to vector<1x32xf32>
    %159 = vector.broadcast %157 : vector<2x1xf32> to vector<2x32xf32>
    %160 = vector.broadcast %158 : vector<1x32xf32> to vector<2x32xf32>
    %161 = arith.mulf %159, %160 : vector<2x32xf32>
    %162 = arith.addf %156, %161 : vector<2x32xf32>
    %163 = vector.extract_strided_slice %0 {offsets = [0, 8], sizes = [2, 1], strides = [1, 1]} : vector<2x16xf32> to vector<2x1xf32>
    %164 = vector.extract_strided_slice %1 {offsets = [2, 0], sizes = [1, 32], strides = [1, 1]} : vector<3x32xf32> to vector<1x32xf32>
    %165 = vector.broadcast %163 : vector<2x1xf32> to vector<2x32xf32>
    %166 = vector.broadcast %164 : vector<1x32xf32> to vector<2x32xf32>
    %167 = arith.mulf %165, %166 : vector<2x32xf32>
    %168 = arith.addf %162, %167 : vector<2x32xf32>
    %cst_11 = arith.constant 0.000000e+00 : f32
    %169 = vector.broadcast %cst_11 : f32 to vector<2x32xf32>
    %170 = arith.maximumf %168, %169 : vector<2x32xf32>
    %171 = vector.extract_strided_slice %0 {offsets = [0, 7], sizes = [2, 1], strides = [1, 1]} : vector<2x16xf32> to vector<2x1xf32>
    %172 = vector.extract_strided_slice %1 {offsets = [0, 0], sizes = [1, 32], strides = [1, 1]} : vector<3x32xf32> to vector<1x32xf32>
    %173 = vector.broadcast %171 : vector<2x1xf32> to vector<2x32xf32>
    %174 = vector.broadcast %172 : vector<1x32xf32> to vector<2x32xf32>
    %175 = arith.mulf %173, %174 : vector<2x32xf32>
    %176 = vector.broadcast %2 : vector<1x32xf32> to vector<2x32xf32>
    %177 = arith.addf %176, %175 : vector<2x32xf32>
    %178 = vector.extract_strided_slice %0 {offsets = [0, 8], sizes = [2, 1], strides = [1, 1]} : vector<2x16xf32> to vector<2x1xf32>
    %179 = vector.extract_strided_slice %1 {offsets = [1, 0], sizes = [1, 32], strides = [1, 1]} : vector<3x32xf32> to vector<1x32xf32>
    %180 = vector.broadcast %178 : vector<2x1xf32> to vector<2x32xf32>
    %181 = vector.broadcast %179 : vector<1x32xf32> to vector<2x32xf32>
    %182 = arith.mulf %180, %181 : vector<2x32xf32>
    %183 = arith.addf %177, %182 : vector<2x32xf32>
    %184 = vector.extract_strided_slice %0 {offsets = [0, 9], sizes = [2, 1], strides = [1, 1]} : vector<2x16xf32> to vector<2x1xf32>
    %185 = vector.extract_strided_slice %1 {offsets = [2, 0], sizes = [1, 32], strides = [1, 1]} : vector<3x32xf32> to vector<1x32xf32>
    %186 = vector.broadcast %184 : vector<2x1xf32> to vector<2x32xf32>
    %187 = vector.broadcast %185 : vector<1x32xf32> to vector<2x32xf32>
    %188 = arith.mulf %186, %187 : vector<2x32xf32>
    %189 = arith.addf %183, %188 : vector<2x32xf32>
    %cst_12 = arith.constant 0.000000e+00 : f32
    %190 = vector.broadcast %cst_12 : f32 to vector<2x32xf32>
    %191 = arith.maximumf %189, %190 : vector<2x32xf32>
    %192 = vector.extract_strided_slice %0 {offsets = [0, 8], sizes = [2, 1], strides = [1, 1]} : vector<2x16xf32> to vector<2x1xf32>
    %193 = vector.extract_strided_slice %1 {offsets = [0, 0], sizes = [1, 32], strides = [1, 1]} : vector<3x32xf32> to vector<1x32xf32>
    %194 = vector.broadcast %192 : vector<2x1xf32> to vector<2x32xf32>
    %195 = vector.broadcast %193 : vector<1x32xf32> to vector<2x32xf32>
    %196 = arith.mulf %194, %195 : vector<2x32xf32>
    %197 = vector.broadcast %2 : vector<1x32xf32> to vector<2x32xf32>
    %198 = arith.addf %197, %196 : vector<2x32xf32>
    %199 = vector.extract_strided_slice %0 {offsets = [0, 9], sizes = [2, 1], strides = [1, 1]} : vector<2x16xf32> to vector<2x1xf32>
    %200 = vector.extract_strided_slice %1 {offsets = [1, 0], sizes = [1, 32], strides = [1, 1]} : vector<3x32xf32> to vector<1x32xf32>
    %201 = vector.broadcast %199 : vector<2x1xf32> to vector<2x32xf32>
    %202 = vector.broadcast %200 : vector<1x32xf32> to vector<2x32xf32>
    %203 = arith.mulf %201, %202 : vector<2x32xf32>
    %204 = arith.addf %198, %203 : vector<2x32xf32>
    %205 = vector.extract_strided_slice %0 {offsets = [0, 10], sizes = [2, 1], strides = [1, 1]} : vector<2x16xf32> to vector<2x1xf32>
    %206 = vector.extract_strided_slice %1 {offsets = [2, 0], sizes = [1, 32], strides = [1, 1]} : vector<3x32xf32> to vector<1x32xf32>
    %207 = vector.broadcast %205 : vector<2x1xf32> to vector<2x32xf32>
    %208 = vector.broadcast %206 : vector<1x32xf32> to vector<2x32xf32>
    %209 = arith.mulf %207, %208 : vector<2x32xf32>
    %210 = arith.addf %204, %209 : vector<2x32xf32>
    %cst_13 = arith.constant 0.000000e+00 : f32
    %211 = vector.broadcast %cst_13 : f32 to vector<2x32xf32>
    %212 = arith.maximumf %210, %211 : vector<2x32xf32>
    %213 = vector.extract_strided_slice %0 {offsets = [0, 9], sizes = [2, 1], strides = [1, 1]} : vector<2x16xf32> to vector<2x1xf32>
    %214 = vector.extract_strided_slice %1 {offsets = [0, 0], sizes = [1, 32], strides = [1, 1]} : vector<3x32xf32> to vector<1x32xf32>
    %215 = vector.broadcast %213 : vector<2x1xf32> to vector<2x32xf32>
    %216 = vector.broadcast %214 : vector<1x32xf32> to vector<2x32xf32>
    %217 = arith.mulf %215, %216 : vector<2x32xf32>
    %218 = vector.broadcast %2 : vector<1x32xf32> to vector<2x32xf32>
    %219 = arith.addf %218, %217 : vector<2x32xf32>
    %220 = vector.extract_strided_slice %0 {offsets = [0, 10], sizes = [2, 1], strides = [1, 1]} : vector<2x16xf32> to vector<2x1xf32>
    %221 = vector.extract_strided_slice %1 {offsets = [1, 0], sizes = [1, 32], strides = [1, 1]} : vector<3x32xf32> to vector<1x32xf32>
    %222 = vector.broadcast %220 : vector<2x1xf32> to vector<2x32xf32>
    %223 = vector.broadcast %221 : vector<1x32xf32> to vector<2x32xf32>
    %224 = arith.mulf %222, %223 : vector<2x32xf32>
    %225 = arith.addf %219, %224 : vector<2x32xf32>
    %226 = vector.extract_strided_slice %0 {offsets = [0, 11], sizes = [2, 1], strides = [1, 1]} : vector<2x16xf32> to vector<2x1xf32>
    %227 = vector.extract_strided_slice %1 {offsets = [2, 0], sizes = [1, 32], strides = [1, 1]} : vector<3x32xf32> to vector<1x32xf32>
    %228 = vector.broadcast %226 : vector<2x1xf32> to vector<2x32xf32>
    %229 = vector.broadcast %227 : vector<1x32xf32> to vector<2x32xf32>
    %230 = arith.mulf %228, %229 : vector<2x32xf32>
    %231 = arith.addf %225, %230 : vector<2x32xf32>
    %cst_14 = arith.constant 0.000000e+00 : f32
    %232 = vector.broadcast %cst_14 : f32 to vector<2x32xf32>
    %233 = arith.maximumf %231, %232 : vector<2x32xf32>
    %234 = vector.extract_strided_slice %0 {offsets = [0, 10], sizes = [2, 1], strides = [1, 1]} : vector<2x16xf32> to vector<2x1xf32>
    %235 = vector.extract_strided_slice %1 {offsets = [0, 0], sizes = [1, 32], strides = [1, 1]} : vector<3x32xf32> to vector<1x32xf32>
    %236 = vector.broadcast %234 : vector<2x1xf32> to vector<2x32xf32>
    %237 = vector.broadcast %235 : vector<1x32xf32> to vector<2x32xf32>
    %238 = arith.mulf %236, %237 : vector<2x32xf32>
    %239 = vector.broadcast %2 : vector<1x32xf32> to vector<2x32xf32>
    %240 = arith.addf %239, %238 : vector<2x32xf32>
    %241 = vector.extract_strided_slice %0 {offsets = [0, 11], sizes = [2, 1], strides = [1, 1]} : vector<2x16xf32> to vector<2x1xf32>
    %242 = vector.extract_strided_slice %1 {offsets = [1, 0], sizes = [1, 32], strides = [1, 1]} : vector<3x32xf32> to vector<1x32xf32>
    %243 = vector.broadcast %241 : vector<2x1xf32> to vector<2x32xf32>
    %244 = vector.broadcast %242 : vector<1x32xf32> to vector<2x32xf32>
    %245 = arith.mulf %243, %244 : vector<2x32xf32>
    %246 = arith.addf %240, %245 : vector<2x32xf32>
    %247 = vector.extract_strided_slice %0 {offsets = [0, 12], sizes = [2, 1], strides = [1, 1]} : vector<2x16xf32> to vector<2x1xf32>
    %248 = vector.extract_strided_slice %1 {offsets = [2, 0], sizes = [1, 32], strides = [1, 1]} : vector<3x32xf32> to vector<1x32xf32>
    %249 = vector.broadcast %247 : vector<2x1xf32> to vector<2x32xf32>
    %250 = vector.broadcast %248 : vector<1x32xf32> to vector<2x32xf32>
    %251 = arith.mulf %249, %250 : vector<2x32xf32>
    %252 = arith.addf %246, %251 : vector<2x32xf32>
    %cst_15 = arith.constant 0.000000e+00 : f32
    %253 = vector.broadcast %cst_15 : f32 to vector<2x32xf32>
    %254 = arith.maximumf %252, %253 : vector<2x32xf32>
    %255 = vector.extract_strided_slice %0 {offsets = [0, 11], sizes = [2, 1], strides = [1, 1]} : vector<2x16xf32> to vector<2x1xf32>
    %256 = vector.extract_strided_slice %1 {offsets = [0, 0], sizes = [1, 32], strides = [1, 1]} : vector<3x32xf32> to vector<1x32xf32>
    %257 = vector.broadcast %255 : vector<2x1xf32> to vector<2x32xf32>
    %258 = vector.broadcast %256 : vector<1x32xf32> to vector<2x32xf32>
    %259 = arith.mulf %257, %258 : vector<2x32xf32>
    %260 = vector.broadcast %2 : vector<1x32xf32> to vector<2x32xf32>
    %261 = arith.addf %260, %259 : vector<2x32xf32>
    %262 = vector.extract_strided_slice %0 {offsets = [0, 12], sizes = [2, 1], strides = [1, 1]} : vector<2x16xf32> to vector<2x1xf32>
    %263 = vector.extract_strided_slice %1 {offsets = [1, 0], sizes = [1, 32], strides = [1, 1]} : vector<3x32xf32> to vector<1x32xf32>
    %264 = vector.broadcast %262 : vector<2x1xf32> to vector<2x32xf32>
    %265 = vector.broadcast %263 : vector<1x32xf32> to vector<2x32xf32>
    %266 = arith.mulf %264, %265 : vector<2x32xf32>
    %267 = arith.addf %261, %266 : vector<2x32xf32>
    %268 = vector.extract_strided_slice %0 {offsets = [0, 13], sizes = [2, 1], strides = [1, 1]} : vector<2x16xf32> to vector<2x1xf32>
    %269 = vector.extract_strided_slice %1 {offsets = [2, 0], sizes = [1, 32], strides = [1, 1]} : vector<3x32xf32> to vector<1x32xf32>
    %270 = vector.broadcast %268 : vector<2x1xf32> to vector<2x32xf32>
    %271 = vector.broadcast %269 : vector<1x32xf32> to vector<2x32xf32>
    %272 = arith.mulf %270, %271 : vector<2x32xf32>
    %273 = arith.addf %267, %272 : vector<2x32xf32>
    %cst_16 = arith.constant 0.000000e+00 : f32
    %274 = vector.broadcast %cst_16 : f32 to vector<2x32xf32>
    %275 = arith.maximumf %273, %274 : vector<2x32xf32>
    %276 = vector.extract_strided_slice %0 {offsets = [0, 12], sizes = [2, 1], strides = [1, 1]} : vector<2x16xf32> to vector<2x1xf32>
    %277 = vector.extract_strided_slice %1 {offsets = [0, 0], sizes = [1, 32], strides = [1, 1]} : vector<3x32xf32> to vector<1x32xf32>
    %278 = vector.broadcast %276 : vector<2x1xf32> to vector<2x32xf32>
    %279 = vector.broadcast %277 : vector<1x32xf32> to vector<2x32xf32>
    %280 = arith.mulf %278, %279 : vector<2x32xf32>
    %281 = vector.broadcast %2 : vector<1x32xf32> to vector<2x32xf32>
    %282 = arith.addf %281, %280 : vector<2x32xf32>
    %283 = vector.extract_strided_slice %0 {offsets = [0, 13], sizes = [2, 1], strides = [1, 1]} : vector<2x16xf32> to vector<2x1xf32>
    %284 = vector.extract_strided_slice %1 {offsets = [1, 0], sizes = [1, 32], strides = [1, 1]} : vector<3x32xf32> to vector<1x32xf32>
    %285 = vector.broadcast %283 : vector<2x1xf32> to vector<2x32xf32>
    %286 = vector.broadcast %284 : vector<1x32xf32> to vector<2x32xf32>
    %287 = arith.mulf %285, %286 : vector<2x32xf32>
    %288 = arith.addf %282, %287 : vector<2x32xf32>
    %289 = vector.extract_strided_slice %0 {offsets = [0, 14], sizes = [2, 1], strides = [1, 1]} : vector<2x16xf32> to vector<2x1xf32>
    %290 = vector.extract_strided_slice %1 {offsets = [2, 0], sizes = [1, 32], strides = [1, 1]} : vector<3x32xf32> to vector<1x32xf32>
    %291 = vector.broadcast %289 : vector<2x1xf32> to vector<2x32xf32>
    %292 = vector.broadcast %290 : vector<1x32xf32> to vector<2x32xf32>
    %293 = arith.mulf %291, %292 : vector<2x32xf32>
    %294 = arith.addf %288, %293 : vector<2x32xf32>
    %cst_17 = arith.constant 0.000000e+00 : f32
    %295 = vector.broadcast %cst_17 : f32 to vector<2x32xf32>
    %296 = arith.maximumf %294, %295 : vector<2x32xf32>
    %297 = vector.extract_strided_slice %0 {offsets = [0, 13], sizes = [2, 1], strides = [1, 1]} : vector<2x16xf32> to vector<2x1xf32>
    %298 = vector.extract_strided_slice %1 {offsets = [0, 0], sizes = [1, 32], strides = [1, 1]} : vector<3x32xf32> to vector<1x32xf32>
    %299 = vector.broadcast %297 : vector<2x1xf32> to vector<2x32xf32>
    %300 = vector.broadcast %298 : vector<1x32xf32> to vector<2x32xf32>
    %301 = arith.mulf %299, %300 : vector<2x32xf32>
    %302 = vector.broadcast %2 : vector<1x32xf32> to vector<2x32xf32>
    %303 = arith.addf %302, %301 : vector<2x32xf32>
    %304 = vector.extract_strided_slice %0 {offsets = [0, 14], sizes = [2, 1], strides = [1, 1]} : vector<2x16xf32> to vector<2x1xf32>
    %305 = vector.extract_strided_slice %1 {offsets = [1, 0], sizes = [1, 32], strides = [1, 1]} : vector<3x32xf32> to vector<1x32xf32>
    %306 = vector.broadcast %304 : vector<2x1xf32> to vector<2x32xf32>
    %307 = vector.broadcast %305 : vector<1x32xf32> to vector<2x32xf32>
    %308 = arith.mulf %306, %307 : vector<2x32xf32>
    %309 = arith.addf %303, %308 : vector<2x32xf32>
    %310 = vector.extract_strided_slice %0 {offsets = [0, 15], sizes = [2, 1], strides = [1, 1]} : vector<2x16xf32> to vector<2x1xf32>
    %311 = vector.extract_strided_slice %1 {offsets = [2, 0], sizes = [1, 32], strides = [1, 1]} : vector<3x32xf32> to vector<1x32xf32>
    %312 = vector.broadcast %310 : vector<2x1xf32> to vector<2x32xf32>
    %313 = vector.broadcast %311 : vector<1x32xf32> to vector<2x32xf32>
    %314 = arith.mulf %312, %313 : vector<2x32xf32>
    %315 = arith.addf %309, %314 : vector<2x32xf32>
    %cst_18 = arith.constant 0.000000e+00 : f32
    %316 = vector.broadcast %cst_18 : f32 to vector<2x32xf32>
    %317 = arith.maximumf %315, %316 : vector<2x32xf32>
    %318 = vector.extract_strided_slice %0 {offsets = [0, 14], sizes = [2, 1], strides = [1, 1]} : vector<2x16xf32> to vector<2x1xf32>
    %319 = vector.extract_strided_slice %1 {offsets = [0, 0], sizes = [1, 32], strides = [1, 1]} : vector<3x32xf32> to vector<1x32xf32>
    %320 = vector.broadcast %318 : vector<2x1xf32> to vector<2x32xf32>
    %321 = vector.broadcast %319 : vector<1x32xf32> to vector<2x32xf32>
    %322 = arith.mulf %320, %321 : vector<2x32xf32>
    %323 = vector.broadcast %2 : vector<1x32xf32> to vector<2x32xf32>
    %324 = arith.addf %323, %322 : vector<2x32xf32>
    %325 = vector.extract_strided_slice %0 {offsets = [0, 15], sizes = [2, 1], strides = [1, 1]} : vector<2x16xf32> to vector<2x1xf32>
    %326 = vector.extract_strided_slice %1 {offsets = [1, 0], sizes = [1, 32], strides = [1, 1]} : vector<3x32xf32> to vector<1x32xf32>
    %327 = vector.broadcast %325 : vector<2x1xf32> to vector<2x32xf32>
    %328 = vector.broadcast %326 : vector<1x32xf32> to vector<2x32xf32>
    %329 = arith.mulf %327, %328 : vector<2x32xf32>
    %330 = arith.addf %324, %329 : vector<2x32xf32>
    %331 = vector.extract_strided_slice %0 {offsets = [0, 15], sizes = [2, 1], strides = [1, 1]} : vector<2x16xf32> to vector<2x1xf32>
    %332 = vector.extract_strided_slice %1 {offsets = [2, 0], sizes = [1, 32], strides = [1, 1]} : vector<3x32xf32> to vector<1x32xf32>
    %333 = vector.broadcast %331 : vector<2x1xf32> to vector<2x32xf32>
    %334 = vector.broadcast %332 : vector<1x32xf32> to vector<2x32xf32>
    %335 = arith.mulf %333, %334 : vector<2x32xf32>
    %336 = arith.addf %330, %335 : vector<2x32xf32>
    %cst_19 = arith.constant 0.000000e+00 : f32
    %337 = vector.broadcast %cst_19 : f32 to vector<2x32xf32>
    %338 = arith.maximumf %336, %337 : vector<2x32xf32>
    %339 = tpu.concatenate %23, %23, %23, %44, %65 in 1 : vector<2x32xf32>, vector<2x32xf32>, vector<2x32xf32>, vector<2x32xf32>, vector<2x32xf32> -> vector<2x160xf32>
    %340 = tpu.concatenate %23, %44, %65, %86, %107 in 1 : vector<2x32xf32>, vector<2x32xf32>, vector<2x32xf32>, vector<2x32xf32>, vector<2x32xf32> -> vector<2x160xf32>
    %341 = tpu.concatenate %65, %86, %107, %128, %149 in 1 : vector<2x32xf32>, vector<2x32xf32>, vector<2x32xf32>, vector<2x32xf32>, vector<2x32xf32> -> vector<2x160xf32>
    %342 = tpu.concatenate %107, %128, %149, %170, %191 in 1 : vector<2x32xf32>, vector<2x32xf32>, vector<2x32xf32>, vector<2x32xf32>, vector<2x32xf32> -> vector<2x160xf32>
    %343 = tpu.concatenate %149, %170, %191, %212, %233 in 1 : vector<2x32xf32>, vector<2x32xf32>, vector<2x32xf32>, vector<2x32xf32>, vector<2x32xf32> -> vector<2x160xf32>
    %344 = tpu.concatenate %191, %212, %233, %254, %275 in 1 : vector<2x32xf32>, vector<2x32xf32>, vector<2x32xf32>, vector<2x32xf32>, vector<2x32xf32> -> vector<2x160xf32>
    %345 = tpu.concatenate %233, %254, %275, %296, %317 in 1 : vector<2x32xf32>, vector<2x32xf32>, vector<2x32xf32>, vector<2x32xf32>, vector<2x32xf32> -> vector<2x160xf32>
    %346 = tpu.concatenate %275, %296, %317, %338, %338 in 1 : vector<2x32xf32>, vector<2x32xf32>, vector<2x32xf32>, vector<2x32xf32>, vector<2x32xf32> -> vector<2x160xf32>
    %347 = tpu.concatenate %339, %340, %341, %342, %343, %344, %345, %346 in 0 : vector<2x160xf32>, vector<2x160xf32>, vector<2x160xf32>, vector<2x160xf32>, vector<2x160xf32>, vector<2x160xf32>, vector<2x160xf32>, vector<2x160xf32> -> vector<16x160xf32>
    %348 = arith.truncf %347 : vector<16x160xf32> to vector<16x160xbf16>
    %c0_20 = arith.constant 0 : index
    %c0_21 = arith.constant 0 : index
    %349 = vector.load %arg4[%c0_20, %c0_21] : memref<160x128xbf16, #tpu.memory_space<vmem>>, vector<160x128xbf16>
    %cst_22 = arith.constant dense<0.000000e+00> : vector<16x128xf32>
    %350 = tpu.matmul %348, %349, %cst_22 {dimension_numbers = #tpu.dot_dimension_numbers<[1], [0], [0], [1], [0, 0, 1, 1], [], []>} : vector<16x160xbf16>, vector<160x128xbf16>, vector<16x128xf32> -> vector<16x128xf32>
    %c0_23 = arith.constant 0 : index
    %c0_24 = arith.constant 0 : index
    %351 = vector.load %arg5[%c0_23, %c0_24] : memref<1x128xf32, #tpu.memory_space<vmem>>, vector<1x128xf32>
    %352 = vector.broadcast %351 : vector<1x128xf32> to vector<16x128xf32>
    %353 = arith.addf %350, %352 : vector<16x128xf32>
    %cst_25 = arith.constant 0.000000e+00 : f32
    %354 = vector.broadcast %cst_25 : f32 to vector<16x128xf32>
    %355 = arith.maximumf %353, %354 : vector<16x128xf32>
    %356 = vector.extract_strided_slice %355 {offsets = [0, 0], sizes = [2, 128], strides = [1, 1]} : vector<16x128xf32> to vector<2x128xf32>
    %357 = vector.extract_strided_slice %355 {offsets = [2, 0], sizes = [2, 128], strides = [1, 1]} : vector<16x128xf32> to vector<2x128xf32>
    %358 = vector.extract_strided_slice %355 {offsets = [4, 0], sizes = [2, 128], strides = [1, 1]} : vector<16x128xf32> to vector<2x128xf32>
    %359 = vector.extract_strided_slice %355 {offsets = [6, 0], sizes = [2, 128], strides = [1, 1]} : vector<16x128xf32> to vector<2x128xf32>
    %360 = vector.extract_strided_slice %355 {offsets = [8, 0], sizes = [2, 128], strides = [1, 1]} : vector<16x128xf32> to vector<2x128xf32>
    %361 = vector.extract_strided_slice %355 {offsets = [10, 0], sizes = [2, 128], strides = [1, 1]} : vector<16x128xf32> to vector<2x128xf32>
    %362 = vector.extract_strided_slice %355 {offsets = [12, 0], sizes = [2, 128], strides = [1, 1]} : vector<16x128xf32> to vector<2x128xf32>
    %363 = vector.extract_strided_slice %355 {offsets = [14, 0], sizes = [2, 128], strides = [1, 1]} : vector<16x128xf32> to vector<2x128xf32>
    %364 = tpu.concatenate %356, %356, %356, %356, %357, %358, %359 in 1 : vector<2x128xf32>, vector<2x128xf32>, vector<2x128xf32>, vector<2x128xf32>, vector<2x128xf32>, vector<2x128xf32>, vector<2x128xf32> -> vector<2x896xf32>
    %365 = tpu.concatenate %356, %357, %358, %359, %360, %361, %362 in 1 : vector<2x128xf32>, vector<2x128xf32>, vector<2x128xf32>, vector<2x128xf32>, vector<2x128xf32>, vector<2x128xf32>, vector<2x128xf32> -> vector<2x896xf32>
    %366 = tpu.concatenate %359, %360, %361, %362, %363, %363, %363 in 1 : vector<2x128xf32>, vector<2x128xf32>, vector<2x128xf32>, vector<2x128xf32>, vector<2x128xf32>, vector<2x128xf32>, vector<2x128xf32> -> vector<2x896xf32>
    %367 = tpu.concatenate %364, %365, %366 in 0 : vector<2x896xf32>, vector<2x896xf32>, vector<2x896xf32> -> vector<6x896xf32>
    %368 = arith.truncf %367 : vector<6x896xf32> to vector<6x896xbf16>
    %c0_26 = arith.constant 0 : index
    %c0_27 = arith.constant 0 : index
    %369 = vector.load %arg6[%c0_26, %c0_27] : memref<896x640xbf16, #tpu.memory_space<vmem>>, vector<896x640xbf16>
    %cst_28 = arith.constant dense<0.000000e+00> : vector<6x640xf32>
    %370 = tpu.matmul %368, %369, %cst_28 {dimension_numbers = #tpu.dot_dimension_numbers<[1], [0], [0], [1], [0, 0, 1, 1], [], []>} : vector<6x896xbf16>, vector<896x640xbf16>, vector<6x640xf32> -> vector<6x640xf32>
    %c0_29 = arith.constant 0 : index
    %c0_30 = arith.constant 0 : index
    %371 = vector.load %arg7[%c0_29, %c0_30] : memref<1x640xf32, #tpu.memory_space<vmem>>, vector<1x640xf32>
    %372 = vector.broadcast %371 : vector<1x640xf32> to vector<6x640xf32>
    %373 = arith.addf %370, %372 : vector<6x640xf32>
    %cst_31 = arith.constant 0.000000e+00 : f32
    %374 = vector.broadcast %cst_31 : f32 to vector<6x640xf32>
    %375 = arith.maximumf %373, %374 : vector<6x640xf32>
    %376 = vector.extract_strided_slice %375 {offsets = [0, 0], sizes = [2, 640], strides = [1, 1]} : vector<6x640xf32> to vector<2x640xf32>
    %377 = vector.extract_strided_slice %375 {offsets = [2, 0], sizes = [2, 640], strides = [1, 1]} : vector<6x640xf32> to vector<2x640xf32>
    %378 = vector.extract_strided_slice %375 {offsets = [4, 0], sizes = [2, 640], strides = [1, 1]} : vector<6x640xf32> to vector<2x640xf32>
    %379 = tpu.concatenate %376, %377, %378 in 1 : vector<2x640xf32>, vector<2x640xf32>, vector<2x640xf32> -> vector<2x1920xf32>
    %380 = arith.truncf %379 : vector<2x1920xf32> to vector<2x1920xbf16>
    %c0_32 = arith.constant 0 : index
    %c0_33 = arith.constant 0 : index
    %381 = vector.load %arg8[%c0_32, %c0_33] : memref<1920x1024xbf16, #tpu.memory_space<vmem>>, vector<1920x1024xbf16>
    %cst_34 = arith.constant dense<0.000000e+00> : vector<2x1024xf32>
    %382 = tpu.matmul %380, %381, %cst_34 {dimension_numbers = #tpu.dot_dimension_numbers<[1], [0], [0], [1], [0, 0, 1, 1], [], []>} : vector<2x1920xbf16>, vector<1920x1024xbf16>, vector<2x1024xf32> -> vector<2x1024xf32>
    %c0_35 = arith.constant 0 : index
    %c0_36 = arith.constant 0 : index
    %383 = vector.load %arg9[%c0_35, %c0_36] : memref<1x1024xf32, #tpu.memory_space<vmem>>, vector<1x1024xf32>
    %384 = vector.broadcast %383 : vector<1x1024xf32> to vector<2x1024xf32>
    %385 = arith.addf %382, %384 : vector<2x1024xf32>
    %cst_37 = arith.constant 0.000000e+00 : f32
    %386 = vector.broadcast %cst_37 : f32 to vector<2x1024xf32>
    %387 = arith.maximumf %385, %386 : vector<2x1024xf32>
    %c0_38 = arith.constant 0 : index
    %c0_39 = arith.constant 0 : index
    %c0_40 = arith.constant 0 : index
    %388 = vector.load %arg10[%c0_38, %c0_39, %c0_40] : memref<1x1x1024xf32, #tpu.memory_space<vmem>>, vector<1x1x1024xf32>
    %389 = vector.shape_cast %388 : vector<1x1x1024xf32> to vector<1x1024xf32>
    %390 = vector.broadcast %389 : vector<1x1024xf32> to vector<2x1024xf32>
    %391 = arith.mulf %387, %390 : vector<2x1024xf32>
    %cst_41 = arith.constant dense<0.000000e+00> : vector<2xf32>
    %392 = vector.multi_reduction <add>, %391, %cst_41 [1] : vector<2x1024xf32> to vector<2xf32>
    %393 = vector.shape_cast %392 : vector<2xf32> to vector<2x1xf32>
    %c0_42 = arith.constant 0 : index
    %c0_43 = arith.constant 0 : index
    %c0_44 = arith.constant 0 : index
    %394 = vector.load %arg11[%c0_42, %c0_43, %c0_44] : memref<1x1x1xf32, #tpu.memory_space<vmem>>, vector<1x1x1xf32>
    %395 = vector.shape_cast %394 : vector<1x1x1xf32> to vector<1x1xf32>
    %396 = vector.broadcast %395 : vector<1x1xf32> to vector<2x1xf32>
    %397 = arith.addf %393, %396 : vector<2x1xf32>
    %c0_45 = arith.constant 0 : index
    %c0_46 = arith.constant 0 : index
    %c0_47 = arith.constant 0 : index
    %398 = vector.load %arg12[%c0_45, %c0_46, %c0_47] : memref<1x2x1xf32, #tpu.memory_space<vmem>>, vector<1x2x1xf32>
    %399 = vector.shape_cast %398 : vector<1x2x1xf32> to vector<2x1xf32>
    %400 = vector.shape_cast %397 : vector<2x1xf32> to vector<1x2x1xf32>
    tpu.vector_store %arg12[%c0_45, %c0_46, %c0_47], %400 {strides = array<i32>} : memref<1x2x1xf32, #tpu.memory_space<vmem>>, vector<1x2x1xf32>,
    return
  }
  func.func @transform_0(%arg0: i32) -> (i32, i32) {
    %c0_i32 = arith.constant 0 : i32
    %c0_i32_0 = arith.constant 0 : i32
    %c0_i32_1 = arith.constant 0 : i32
    return %c0_i32, %c0_i32_0 : i32, i32
  }
  func.func @transform_1(%arg0: i32) -> (i32, i32) {
    %c0_i32 = arith.constant 0 : i32
    %c0_i32_0 = arith.constant 0 : i32
    %c0_i32_1 = arith.constant 0 : i32
    return %c0_i32, %c0_i32_0 : i32, i32
  }
  func.func @transform_2(%arg0: i32) -> (i32, i32) {
    %c0_i32 = arith.constant 0 : i32
    %c0_i32_0 = arith.constant 0 : i32
    %c0_i32_1 = arith.constant 0 : i32
    return %c0_i32, %c0_i32_0 : i32, i32
  }
  func.func @transform_3(%arg0: i32) -> (i32, i32) {
    %c0_i32 = arith.constant 0 : i32
    %c0_i32_0 = arith.constant 0 : i32
    %c0_i32_1 = arith.constant 0 : i32
    return %c0_i32, %c0_i32_0 : i32, i32
  }
  func.func @transform_4(%arg0: i32) -> (i32, i32) {
    %c0_i32 = arith.constant 0 : i32
    %c0_i32_0 = arith.constant 0 : i32
    %c0_i32_1 = arith.constant 0 : i32
    return %c0_i32, %c0_i32_0 : i32, i32
  }
  func.func @transform_5(%arg0: i32) -> (i32, i32) {
    %c0_i32 = arith.constant 0 : i32
    %c0_i32_0 = arith.constant 0 : i32
    %c0_i32_1 = arith.constant 0 : i32
    return %c0_i32, %c0_i32_0 : i32, i32
  }
  func.func @transform_6(%arg0: i32) -> (i32, i32) {
    %c0_i32 = arith.constant 0 : i32
    %c0_i32_0 = arith.constant 0 : i32
    %c0_i32_1 = arith.constant 0 : i32
    return %c0_i32, %c0_i32_0 : i32, i32
  }
  func.func @transform_7(%arg0: i32) -> (i32, i32) {
    %c0_i32 = arith.constant 0 : i32
    %c0_i32_0 = arith.constant 0 : i32
    return %c0_i32, %arg0 : i32, i32
  }
  func.func @transform_8(%arg0: i32) -> (i32, i32) {
    %c0_i32 = arith.constant 0 : i32
    %c0_i32_0 = arith.constant 0 : i32
    return %c0_i32, %arg0 : i32, i32
  }
  func.func @transform_9(%arg0: i32) -> (i32, i32, i32) {
    %c0_i32 = arith.constant 0 : i32
    %c0_i32_0 = arith.constant 0 : i32
    %c0_i32_1 = arith.constant 0 : i32
    return %arg0, %c0_i32, %c0_i32_0 : i32, i32, i32
  }
  func.func @transform_10(%arg0: i32) -> (i32, i32, i32) {
    %c0_i32 = arith.constant 0 : i32
    %c0_i32_0 = arith.constant 0 : i32
    %c0_i32_1 = arith.constant 0 : i32
    return %arg0, %c0_i32, %c0_i32_0 : i32, i32, i32
  }
  func.func @transform_11(%arg0: i32) -> (i32, i32, i32) {
    %c0_i32 = arith.constant 0 : i32
    %c0_i32_0 = arith.constant 0 : i32
    %c0_i32_1 = arith.constant 0 : i32
    return %arg0, %c0_i32, %c0_i32_0 : i32, i32, i32
  }
}

</mosaic_0001>

<llo_original>
// kernel: model_forward.1
$region0: #{model_forward.1}
  #allocation0 [shape = 'u32[]', space=smem, size = 0x4, offset = 0x4, fixed_abs, tag = 'smem constant byte address 0x4 - core index']
  #allocation1 [shape = 'u32[144,128]{1,0:T(1,128)}', space=vmem, size = 0x12000, scoped, tag = 'internal scratch']
  %s0 = inlined_call_operand.hbm [shape: f32[2,16], index: 0, kind: input, shape index: {}]
  %s1 = inlined_call_operand.hbm [shape: f32[3,32], index: 1, kind: input, shape index: {}]
  %s2 = inlined_call_operand.hbm [shape: f32[1,32], index: 2, kind: input, shape index: {}]
  %s3 = inlined_call_operand.hbm [shape: bf16[160,128], index: 3, kind: input, shape index: {}]
  %s4 = inlined_call_operand.hbm [shape: f32[1,128], index: 4, kind: input, shape index: {}]
  %s5 = inlined_call_operand.hbm [shape: bf16[896,640], index: 5, kind: input, shape index: {}]
  %s6 = inlined_call_operand.hbm [shape: f32[1,640], index: 6, kind: input, shape index: {}]
  %s7 = inlined_call_operand.hbm [shape: bf16[1920,2048], index: 7, kind: input, shape index: {}]
  %s8 = inlined_call_operand.hbm [shape: f32[1,2048], index: 8, kind: input, shape index: {}]
  %s9 = inlined_call_operand.hbm [shape: f32[2,1,1024], index: 9, kind: input, shape index: {}]
  %s10 = inlined_call_operand.vmem [shape: f32[2,1,1], index: 10, kind: input, shape index: {}]
  %s11 = inlined_call_operand.vmem [shape: f32[2,2,1], index: 11, kind: output, shape index: {}]
  %s12 = sld [smem:[#allocation0]]
  $region117: #{model_forward.1} parent=0
    _
  %s14 = ssub.s32 1, %s12
  %s15 = scalar_select 0, %s14, %s12
  $region1: #{model_forward.1} parent=0
    #allocation2 [shape = 'u8[1024]{0}', space=vmem, size = 0x400, scoped, tag = 'input window, operand 0, single buffered']
    #allocation3 [shape = 's32[2]{0}', space=sflag, size = 0x8, scoped, tag = 'scoped memory for model_forward.1']
    #allocation4 [shape = 'u8[2048]{0}', space=vmem, size = 0x800, scoped, tag = 'input window, operand 1, single buffered']
    #allocation5 [shape = 's32[1]{0}', space=sflag, size = 0x4, scoped, tag = 'scoped memory for model_forward.1']
    #allocation6 [shape = 'u8[512]{0}', space=vmem, size = 0x400, scoped, tag = 'input window, operand 2, single buffered']
    #allocation7 [shape = 'u8[40960]{0}', space=vmem, size = 0xa000, scoped, tag = 'input window, operand 3, single buffered']
    #allocation8 [shape = 's32[1]{0}', space=sflag, size = 0x4, scoped, tag = 'scoped memory for model_forward.1']
    #allocation9 [shape = 'u8[512]{0}', space=vmem, size = 0x400, scoped, tag = 'input window, operand 4, single buffered']
    #allocation10 [shape = 'u8[1146880]{0}', space=vmem, size = 0x118000, scoped, tag = 'input window, operand 5, single buffered']
    #allocation11 [shape = 's32[1]{0}', space=sflag, size = 0x4, scoped, tag = 'scoped memory for model_forward.1']
    #allocation12 [shape = 'u8[2560]{0}', space=vmem, size = 0xc00, scoped, tag = 'input window, operand 6, single buffered']
    #allocation13 [shape = 'u8[7864320]{0}', space=vmem, size = 0x780000, scoped, tag = 'input window, operand 7']
    #allocation14 [shape = 's32[2]{0}', space=sflag, size = 0x8, scoped, tag = 'scoped memory for model_forward.1']
    #allocation15 [shape = 'u8[8192]{0}', space=vmem, size = 0x2000, scoped, tag = 'input window, operand 8']
    #allocation16 [shape = 'u8[8192]{0}', space=vmem, size = 0x2000, scoped, tag = 'input window, operand 9']
    #allocation17 [shape = 's32[2]{0}', space=sflag, size = 0x8, scoped, tag = 'scoped memory for model_forward.1']
    %16 = vsyncpa [#allocation3], 0
    %17 = vsyncpa [#allocation5], 0
    %18 = vsyncpa [#allocation8], 0
    %19 = vsyncpa [#allocation11], 0
    %20 = vsyncpa [#allocation14], 0
    %s21 = scalar_lea.sflag [#allocation14], 1
    %22 = vsyncpa %s21, 0
    %23 = vsyncpa [#allocation17], 0
    %s24 = scalar_lea.sflag [#allocation17], 1
    %25 = vsyncpa %s24, 0
    loop: start=0, step=1, limit=4
    $region2: #{model_forward.1} parent=1 // loop_pre_header
      _
    $region3: #{model_forward.1} parent=1 // loop_header
      %s27 = sphi 0, %s31
      %p28 = scmp.ge.s32.totalorder %s27, 4
      %s35 = sphi 0, %s35
      %s37 = sphi 0, %s35
      %s38 = sphi 0, %s37
      %s52 = sphi 0, %s38
      %s56 = sphi 0, %s56
      %s58 = sphi 0, %s56
      %s59 = sphi 0, %s58
      %s73 = sphi 0, %s59
      %s77 = sphi 0, %s77
      %s79 = sphi 0, %s77
      %s80 = sphi 0, %s79
      %s94 = sphi 0, %s80
      %s98 = sphi 0, %s98
      %s100 = sphi 0, %s98
      %s101 = sphi 0, %s100
      %s115 = sphi 0, %s101
      %s119 = sphi 0, %s119
      %s121 = sphi 0, %s119
      %s122 = sphi 0, %s121
      %s136 = sphi 0, %s122
      %s140 = sphi 0, %s140
      %s142 = sphi 0, %s140
      %s143 = sphi 0, %s142
      %s157 = sphi 0, %s143
      %s161 = sphi 0, %s161
      %s163 = sphi 0, %s161
      %s164 = sphi 0, %s163
      %s178 = sphi 0, %s164
      %s184 = sphi 0, %s186
      %s187 = sphi 0, %s184
      %s188 = sphi 0, %s187
      %s204 = sphi 0, %s188
      %s210 = sphi 0, %s212
      %s213 = sphi 0, %s210
      %s214 = sphi 0, %s213
      %s230 = sphi 0, %s214
      %s236 = sphi 0, %s238
      %s239 = sphi 0, %s236
      %s240 = sphi 0, %s239
      %s256 = sphi 0, %s240
      %s262 = sphi 0, %s264
      %s265 = sphi 0, %s262
      %s266 = sphi 0, %s265
      %s282 = sphi 0, %s266
      %s288 = sphi 0, %s290
      %s291 = sphi 0, %s288
      %s292 = sphi 0, %s291
      %s308 = sphi 0, %s292
    $region4: #{model_forward.1} parent=1 // loop_header_branch
      %30 = sbr.rel (%p28) target = $region8
    $region5: #{model_forward.1} parent=1 // loop_body
      %s32 = ssub.s32 %s27, 1
      %s33 = ssub.s32 %s27, 2
      %s34 = sadd.s32 %s27, 1
      %s36 = sadd.s32 %s35, 1
      %p39 = scmp.eq.s32.totalorder %s27, 1
      %p40 = scmp.ne.s32.totalorder %s35, %s37
      %p41 = scmp.eq.s32.totalorder %s27, 0
      %p42 = por %p40, %p41
      %p43 = scmp.ne.s32.totalorder %s35, %s37
      %p44 = scmp.eq.s32.totalorder %s32, 1
      %p45 = por %p43, %p44
      %p46 = scmp.ne.s32.totalorder %s37, %s38
      %p47 = scmp.eq.s32.totalorder %s32, 0
      %p48 = por %p46, %p47
      %p49 = scmp.ne.s32.totalorder %s37, %s38
      %p50 = scmp.eq.s32.totalorder %s33, 1
      %p51 = por %p49, %p50
      %p53 = scmp.ne.s32.totalorder %s38, %s52
      %p54 = scmp.eq.s32.totalorder %s33, 0
      %p55 = por %p53, %p54
      %s57 = sadd.s32 %s56, 1
      %p60 = scmp.eq.s32.totalorder %s27, 1
      %p61 = scmp.ne.s32.totalorder %s56, %s58
      %p62 = scmp.eq.s32.totalorder %s27, 0
      %p63 = por %p61, %p62
      %p64 = scmp.ne.s32.totalorder %s56, %s58
      %p65 = scmp.eq.s32.totalorder %s32, 1
      %p66 = por %p64, %p65
      %p67 = scmp.ne.s32.totalorder %s58, %s59
      %p68 = scmp.eq.s32.totalorder %s32, 0
      %p69 = por %p67, %p68
      %p70 = scmp.ne.s32.totalorder %s58, %s59
      %p71 = scmp.eq.s32.totalorder %s33, 1
      %p72 = por %p70, %p71
      %p74 = scmp.ne.s32.totalorder %s59, %s73
      %p75 = scmp.eq.s32.totalorder %s33, 0
      %p76 = por %p74, %p75
      %s78 = sadd.s32 %s77, 1
      %p81 = scmp.eq.s32.totalorder %s27, 1
      %p82 = scmp.ne.s32.totalorder %s77, %s79
      %p83 = scmp.eq.s32.totalorder %s27, 0
      %p84 = por %p82, %p83
      %p85 = scmp.ne.s32.totalorder %s77, %s79
      %p86 = scmp.eq.s32.totalorder %s32, 1
      %p87 = por %p85, %p86
      %p88 = scmp.ne.s32.totalorder %s79, %s80
      %p89 = scmp.eq.s32.totalorder %s32, 0
      %p90 = por %p88, %p89
      %p91 = scmp.ne.s32.totalorder %s79, %s80
      %p92 = scmp.eq.s32.totalorder %s33, 1
      %p93 = por %p91, %p92
      %p95 = scmp.ne.s32.totalorder %s80, %s94
      %p96 = scmp.eq.s32.totalorder %s33, 0
      %p97 = por %p95, %p96
      %s99 = sadd.s32 %s98, 1
      %p102 = scmp.eq.s32.totalorder %s27, 1
      %p103 = scmp.ne.s32.totalorder %s98, %s100
      %p104 = scmp.eq.s32.totalorder %s27, 0
      %p105 = por %p103, %p104
      %p106 = scmp.ne.s32.totalorder %s98, %s100
      %p107 = scmp.eq.s32.totalorder %s32, 1
      %p108 = por %p106, %p107
      %p109 = scmp.ne.s32.totalorder %s100, %s101
      %p110 = scmp.eq.s32.totalorder %s32, 0
      %p111 = por %p109, %p110
      %p112 = scmp.ne.s32.totalorder %s100, %s101
      %p113 = scmp.eq.s32.totalorder %s33, 1
      %p114 = por %p112, %p113
      %p116 = scmp.ne.s32.totalorder %s101, %s115
      %p117 = scmp.eq.s32.totalorder %s33, 0
      %p118 = por %p116, %p117
      %s120 = sadd.s32 %s119, 1
      %p123 = scmp.eq.s32.totalorder %s27, 1
      %p124 = scmp.ne.s32.totalorder %s119, %s121
      %p125 = scmp.eq.s32.totalorder %s27, 0
      %p126 = por %p124, %p125
      %p127 = scmp.ne.s32.totalorder %s119, %s121
      %p128 = scmp.eq.s32.totalorder %s32, 1
      %p129 = por %p127, %p128
      %p130 = scmp.ne.s32.totalorder %s121, %s122
      %p131 = scmp.eq.s32.totalorder %s32, 0
      %p132 = por %p130, %p131
      %p133 = scmp.ne.s32.totalorder %s121, %s122
      %p134 = scmp.eq.s32.totalorder %s33, 1
      %p135 = por %p133, %p134
      %p137 = scmp.ne.s32.totalorder %s122, %s136
      %p138 = scmp.eq.s32.totalorder %s33, 0
      %p139 = por %p137, %p138
      %s141 = sadd.s32 %s140, 1
      %p144 = scmp.eq.s32.totalorder %s27, 1
      %p145 = scmp.ne.s32.totalorder %s140, %s142
      %p146 = scmp.eq.s32.totalorder %s27, 0
      %p147 = por %p145, %p146
      %p148 = scmp.ne.s32.totalorder %s140, %s142
      %p149 = scmp.eq.s32.totalorder %s32, 1
      %p150 = por %p148, %p149
      %p151 = scmp.ne.s32.totalorder %s142, %s143
      %p152 = scmp.eq.s32.totalorder %s32, 0
      %p153 = por %p151, %p152
      %p154 = scmp.ne.s32.totalorder %s142, %s143
      %p155 = scmp.eq.s32.totalorder %s33, 1
      %p156 = por %p154, %p155
      %p158 = scmp.ne.s32.totalorder %s143, %s157
      %p159 = scmp.eq.s32.totalorder %s33, 0
      %p160 = por %p158, %p159
      %s162 = sadd.s32 %s161, 1
      %p165 = scmp.eq.s32.totalorder %s27, 1
      %p166 = scmp.ne.s32.totalorder %s161, %s163
      %p167 = scmp.eq.s32.totalorder %s27, 0
      %p168 = por %p166, %p167
      %p169 = scmp.ne.s32.totalorder %s161, %s163
      %p170 = scmp.eq.s32.totalorder %s32, 1
      %p171 = por %p169, %p170
      %p172 = scmp.ne.s32.totalorder %s163, %s164
      %p173 = scmp.eq.s32.totalorder %s32, 0
      %p174 = por %p172, %p173
      %p175 = scmp.ne.s32.totalorder %s163, %s164
      %p176 = scmp.eq.s32.totalorder %s33, 1
      %p177 = por %p175, %p176
      %p179 = scmp.ne.s32.totalorder %s164, %s178
      %p180 = scmp.eq.s32.totalorder %s33, 0
      %p181 = por %p179, %p180
      %s182 = ssub.s32 %s27, %s34
      %p183 = scmp.eq.s32.totalorder %s182, 0
      %s185 = sadd.s32 %s184, 1
      %s186 = scalar_select %p183, %s184, %s185
      %p189 = pneg %p183
      %p190 = scmp.eq.s32.totalorder %s27, 1
      %p191 = por %p189, %p190
      %p192 = scmp.ne.s32.totalorder %s184, %s187
      %p193 = scmp.eq.s32.totalorder %s27, 0
      %p194 = por %p192, %p193
      %p195 = scmp.ne.s32.totalorder %s184, %s187
      %p196 = scmp.eq.s32.totalorder %s32, 1
      %p197 = por %p195, %p196
      %p198 = scmp.ne.s32.totalorder %s187, %s188
      %p199 = scmp.eq.s32.totalorder %s32, 0
      %p200 = por %p198, %p199
      %p201 = scmp.ne.s32.totalorder %s187, %s188
      %p202 = scmp.eq.s32.totalorder %s33, 1
      %p203 = por %p201, %p202
      %p205 = scmp.ne.s32.totalorder %s188, %s204
      %p206 = scmp.eq.s32.totalorder %s33, 0
      %p207 = por %p205, %p206
      %s208 = ssub.s32 %s27, %s34
      %p209 = scmp.eq.s32.totalorder %s208, 0
      %s211 = sadd.s32 %s210, 1
      %s212 = scalar_select %p209, %s210, %s211
      %p215 = pneg %p209
      %p216 = scmp.eq.s32.totalorder %s27, 1
      %p217 = por %p215, %p216
      %p218 = scmp.ne.s32.totalorder %s210, %s213
      %p219 = scmp.eq.s32.totalorder %s27, 0
      %p220 = por %p218, %p219
      %p221 = scmp.ne.s32.totalorder %s210, %s213
      %p222 = scmp.eq.s32.totalorder %s32, 1
      %p223 = por %p221, %p222
      %p224 = scmp.ne.s32.totalorder %s213, %s214
      %p225 = scmp.eq.s32.totalorder %s32, 0
      %p226 = por %p224, %p225
      %p227 = scmp.ne.s32.totalorder %s213, %s214
      %p228 = scmp.eq.s32.totalorder %s33, 1
      %p229 = por %p227, %p228
      %p231 = scmp.ne.s32.totalorder %s214, %s230
      %p232 = scmp.eq.s32.totalorder %s33, 0
      %p233 = por %p231, %p232
      %s234 = ssub.s32 %s27, %s34
      %p235 = scmp.eq.s32.totalorder %s234, 0
      %s237 = sadd.s32 %s236, 1
      %s238 = scalar_select %p235, %s236, %s237
      %p241 = pneg %p235
      %p242 = scmp.eq.s32.totalorder %s27, 1
      %p243 = por %p241, %p242
      %p244 = scmp.ne.s32.totalorder %s236, %s239
      %p245 = scmp.eq.s32.totalorder %s27, 0
      %p246 = por %p244, %p245
      %p247 = scmp.ne.s32.totalorder %s236, %s239
      %p248 = scmp.eq.s32.totalorder %s32, 1
      %p249 = por %p247, %p248
      %p250 = scmp.ne.s32.totalorder %s239, %s240
      %p251 = scmp.eq.s32.totalorder %s32, 0
      %p252 = por %p250, %p251
      %p253 = scmp.ne.s32.totalorder %s239, %s240
      %p254 = scmp.eq.s32.totalorder %s33, 1
      %p255 = por %p253, %p254
      %p257 = scmp.ne.s32.totalorder %s240, %s256
      %p258 = scmp.eq.s32.totalorder %s33, 0
      %p259 = por %p257, %p258
      %s260 = ssub.s32 %s27, %s34
      %p261 = scmp.eq.s32.totalorder %s260, 0
      %s263 = sadd.s32 %s262, 1
      %s264 = scalar_select %p261, %s262, %s263
      %p267 = pneg %p261
      %p268 = scmp.eq.s32.totalorder %s27, 1
      %p269 = por %p267, %p268
      %p270 = scmp.ne.s32.totalorder %s262, %s265
      %p271 = scmp.eq.s32.totalorder %s27, 0
      %p272 = por %p270, %p271
      %p273 = scmp.ne.s32.totalorder %s262, %s265
      %p274 = scmp.eq.s32.totalorder %s32, 1
      %p275 = por %p273, %p274
      %p276 = scmp.ne.s32.totalorder %s265, %s266
      %p277 = scmp.eq.s32.totalorder %s32, 0
      %p278 = por %p276, %p277
      %p279 = scmp.ne.s32.totalorder %s265, %s266
      %p280 = scmp.eq.s32.totalorder %s33, 1
      %p281 = por %p279, %p280
      %p283 = scmp.ne.s32.totalorder %s266, %s282
      %p284 = scmp.eq.s32.totalorder %s33, 0
      %p285 = por %p283, %p284
      %s286 = ssub.s32 %s27, %s34
      %p287 = scmp.eq.s32.totalorder %s286, 0
      %s289 = sadd.s32 %s288, 1
      %s290 = scalar_select %p287, %s288, %s289
      %p293 = pneg %p287
      %p294 = scmp.eq.s32.totalorder %s27, 1
      %p295 = por %p293, %p294
      %p296 = scmp.ne.s32.totalorder %s288, %s291
      %p297 = scmp.eq.s32.totalorder %s27, 0
      %p298 = por %p296, %p297
      %p299 = scmp.ne.s32.totalorder %s288, %s291
      %p300 = scmp.eq.s32.totalorder %s32, 1
      %p301 = por %p299, %p300
      %p302 = scmp.ne.s32.totalorder %s291, %s292
      %p303 = scmp.eq.s32.totalorder %s32, 0
      %p304 = por %p302, %p303
      %p305 = scmp.ne.s32.totalorder %s291, %s292
      %p306 = scmp.eq.s32.totalorder %s33, 1
      %p307 = por %p305, %p306
      %p309 = scmp.ne.s32.totalorder %s292, %s308
      %p310 = scmp.eq.s32.totalorder %s33, 0
      %p311 = por %p309, %p310
      %p312 = scmp.le.s32.totalorder 1, %s27
      %p313 = scmp.lt.s32.totalorder %s27, 3
      %p314 = pnand %p312, %p313
      %p315 = pneg %p314
      // Predicated region
      $region9: #{model_forward.1} parent=5 // pred_check
        _
      $region10: #{model_forward.1} parent=5 // pred_check_branch
        %317 = sbr.rel (%p314) target = $region12
      $region11: #{model_forward.1} parent=5 // pred_region
        %s318 = ssub.s32 %s27, 1
        // Predicated region
        $region13: #{model_forward.1} parent=11 // pred_check
          %p319 = pneg %p48
        $region14: #{model_forward.1} parent=11 // pred_check_branch
          %321 = sbr.rel (%p319) target = $region16
        $region15: #{model_forward.1} parent=11 // pred_region
          %s323 = ssub.s32 32, 32
          %324 = vsyncadd [#allocation3], %s323
          %s326 = sshll.u32 [#allocation2], 4
          %s327 = int_to_ptr.vmem [resolvable:$true] %s326
          %329 = dma.hbm_to_vmem [thread:$0]  %s0, 32, %s327, [#allocation3]
        $region16: #{model_forward.1} parent=11 // pred_fallthru
          _
        // Predicated region
        $region17: #{model_forward.1} parent=11 // pred_check
          %p330 = pneg %p69
        $region18: #{model_forward.1} parent=11 // pred_check_branch
          %332 = sbr.rel (%p330) target = $region20
        $region19: #{model_forward.1} parent=11 // pred_region
          %s334 = ssub.s32 64, 64
          %335 = vsyncadd [#allocation5], %s334
          %s337 = sshll.u32 [#allocation4], 4
          %s338 = int_to_ptr.vmem [resolvable:$true] %s337
          %340 = dma.hbm_to_vmem [thread:$0]  %s1, 64, %s338, [#allocation5]
        $region20: #{model_forward.1} parent=11 // pred_fallthru
          _
        // Predicated region
        $region21: #{model_forward.1} parent=11 // pred_check
          %p341 = pneg %p90
        $region22: #{model_forward.1} parent=11 // pred_check_branch
          %343 = sbr.rel (%p341) target = $region24
        $region23: #{model_forward.1} parent=11 // pred_region
          %s345 = ssub.s32 16, 16
          %346 = vsyncadd [#allocation5], %s345
          %s348 = sshll.u32 [#allocation6], 4
          %s349 = int_to_ptr.vmem [resolvable:$true] %s348
          %351 = dma.hbm_to_vmem [thread:$0]  %s2, 16, %s349, [#allocation5]
        $region24: #{model_forward.1} parent=11 // pred_fallthru
          _
        // Predicated region
        $region25: #{model_forward.1} parent=11 // pred_check
          %p352 = pneg %p111
        $region26: #{model_forward.1} parent=11 // pred_check_branch
          %354 = sbr.rel (%p352) target = $region28
        $region27: #{model_forward.1} parent=11 // pred_region
          %s356 = ssub.s32 1280, 1280
          %357 = vsyncadd [#allocation8], %s356
          %s358 = sshll.u32 [#allocation7], 4
          %s359 = int_to_ptr.vmem [resolvable:$true] %s358
          %364 = dma.hbm_to_vmem [thread:$0]  %s3, 1280, %s359, [#allocation8], 64, 64, 4
        $region28: #{model_forward.1} parent=11 // pred_fallthru
          _
        // Predicated region
        $region29: #{model_forward.1} parent=11 // pred_check
          %p365 = pneg %p132
        $region30: #{model_forward.1} parent=11 // pred_check_branch
          %367 = sbr.rel (%p365) target = $region32
        $region31: #{model_forward.1} parent=11 // pred_region
          %s369 = ssub.s32 16, 16
          %370 = vsyncadd [#allocation8], %s369
          %s372 = sshll.u32 [#allocation9], 4
          %s373 = int_to_ptr.vmem [resolvable:$true] %s372
          %375 = dma.hbm_to_vmem [thread:$0]  %s4, 16, %s373, [#allocation8]
        $region32: #{model_forward.1} parent=11 // pred_fallthru
          _
        // Predicated region
        $region33: #{model_forward.1} parent=11 // pred_check
          %p376 = pneg %p153
        $region34: #{model_forward.1} parent=11 // pred_check_branch
          %378 = sbr.rel (%p376) target = $region36
        $region35: #{model_forward.1} parent=11 // pred_region
          %s380 = ssub.s32 35840, 35840
          %381 = vsyncadd [#allocation11], %s380
          %s382 = sshll.u32 [#allocation10], 4
          %s383 = int_to_ptr.vmem [resolvable:$true] %s382
          %388 = dma.hbm_to_vmem [thread:$0]  %s5, 35840, %s383, [#allocation11], 320, 320, 20
        $region36: #{model_forward.1} parent=11 // pred_fallthru
          _
        // Predicated region
        $region37: #{model_forward.1} parent=11 // pred_check
          %p389 = pneg %p174
        $region38: #{model_forward.1} parent=11 // pred_check_branch
          %391 = sbr.rel (%p389) target = $region40
        $region39: #{model_forward.1} parent=11 // pred_region
          %s393 = ssub.s32 80, 80
          %394 = vsyncadd [#allocation11], %s393
          %s396 = sshll.u32 [#allocation12], 4
          %s397 = int_to_ptr.vmem [resolvable:$true] %s396
          %399 = dma.hbm_to_vmem [thread:$0]  %s6, 80, %s397, [#allocation11]
        $region40: #{model_forward.1} parent=11 // pred_fallthru
          _
      $region12: #{model_forward.1} parent=5 // pred_fallthru
        _
      %p400 = scmp.lt.s32.totalorder %s27, 2
      // Predicated region
      $region41: #{model_forward.1} parent=5 // pred_check
        %p401 = pneg %p400
      $region42: #{model_forward.1} parent=5 // pred_check_branch
        %403 = sbr.rel (%p401) target = $region44
      $region43: #{model_forward.1} parent=5 // pred_region
        // Predicated region
        $region45: #{model_forward.1} parent=43 // pred_check
          %p404 = pneg %p194
        $region46: #{model_forward.1} parent=43 // pred_check_branch
          %406 = sbr.rel (%p404) target = $region48
        $region47: #{model_forward.1} parent=43 // pred_region
          %s407 = sand.u32 %s27, 1
          %s408 = scalar_lea.sflag [#allocation14], %s407
          %s409 = sand.u32 %s184, 1
          %s410 = smul.addr %s409, 7680
          %s411 = scalar_lea.vmem [#allocation13], %s410
          %s412 = smul.u32 8, %s27
          %s414 = ssub.s32 122880, 122880
          %415 = vsyncadd %s408, %s414
          %s416 = smul.addr %s412, 64
          %s417 = scalar_lea.hbm %s7, %s416
          %s418 = sshll.u32 %s411, 4
          %s419 = int_to_ptr.vmem [resolvable:$true] %s418
          %424 = dma.hbm_to_vmem [thread:$0]  %s417, 122880, %s419, %s408, 1024, 512, 32
        $region48: #{model_forward.1} parent=43 // pred_fallthru
          _
        // Predicated region
        $region49: #{model_forward.1} parent=43 // pred_check
          %p425 = pneg %p220
        $region50: #{model_forward.1} parent=43 // pred_check_branch
          %427 = sbr.rel (%p425) target = $region52
        $region51: #{model_forward.1} parent=43 // pred_region
          %s428 = sand.u32 %s27, 1
          %s429 = scalar_lea.sflag [#allocation14], %s428
          %s430 = sand.u32 %s210, 1
          %s431 = smul.addr %s430, 8
          %s432 = scalar_lea.vmem [#allocation15], %s431
          %s433 = smul.u32 8, %s27
          %s435 = ssub.s32 128, 128
          %436 = vsyncadd %s429, %s435
          %s437 = smul.addr %s433, 16
          %s438 = scalar_lea.hbm %s8, %s437
          %s440 = sshll.u32 %s432, 4
          %s441 = int_to_ptr.vmem [resolvable:$true] %s440
          %443 = dma.hbm_to_vmem [thread:$0]  %s438, 128, %s441, %s429
        $region52: #{model_forward.1} parent=43 // pred_fallthru
          _
        // Predicated region
        $region53: #{model_forward.1} parent=43 // pred_check
          %p444 = pneg %p246
        $region54: #{model_forward.1} parent=43 // pred_check_branch
          %446 = sbr.rel (%p444) target = $region56
        $region55: #{model_forward.1} parent=43 // pred_region
          %s447 = sand.u32 %s236, 1
          %s448 = scalar_lea.sflag [#allocation17], %s447
          %s449 = sand.u32 %s236, 1
          %s450 = smul.addr %s449, 8
          %s451 = scalar_lea.vmem [#allocation16], %s450
          %s453 = ssub.s32 128, 128
          %454 = vsyncadd %s448, %s453
          %s455 = smul.addr %s27, 8
          %s456 = smul.addr %s455, 16
          %s457 = scalar_lea.hbm %s9, %s456
          %s459 = sshll.u32 %s451, 4
          %s460 = int_to_ptr.vmem [resolvable:$true] %s459
          %462 = dma.hbm_to_vmem [thread:$0]  %s457, 128, %s460, %s448
        $region56: #{model_forward.1} parent=43 // pred_fallthru
          _
        // Predicated region
        $region57: #{model_forward.1} parent=43 // pred_check
          %p463 = pneg %p272
        $region58: #{model_forward.1} parent=43 // pred_check_branch
          %465 = sbr.rel (%p463) target = $region60
        $region59: #{model_forward.1} parent=43 // pred_region
          %p466 = scmp.lt.s32.totalorder %s27, 1
          %s467 = scalar_select %p466, %s27, 1
          %s468 = scalar_lea.vmem %s10, %s467
        $region60: #{model_forward.1} parent=43 // pred_fallthru
          _
      $region44: #{model_forward.1} parent=5 // pred_fallthru
        _
      %p469 = scmp.le.s32.totalorder 1, %s27
      %p470 = scmp.lt.s32.totalorder %s27, 3
      %p471 = pnand %p469, %p470
      %p472 = pneg %p471
      // Predicated region
      $region61: #{model_forward.1} parent=5 // pred_check
        _
      $region62: #{model_forward.1} parent=5 // pred_check_branch
        %474 = sbr.rel (%p471) target = $region64
      $region63: #{model_forward.1} parent=5 // pred_region
        %s475 = ssub.s32 %s27, 1
        // Predicated region
        $region65: #{model_forward.1} parent=63 // pred_check
          %p476 = pneg %p48
        $region66: #{model_forward.1} parent=63 // pred_check_branch
          %478 = sbr.rel (%p476) target = $region68
        $region67: #{model_forward.1} parent=63 // pred_region
          %479 = dma.done [#allocation3], 32
        $region68: #{model_forward.1} parent=63 // pred_fallthru
          _
        // Predicated region
        $region69: #{model_forward.1} parent=63 // pred_check
          %p480 = pneg %p69
        $region70: #{model_forward.1} parent=63 // pred_check_branch
          %482 = sbr.rel (%p480) target = $region72
        $region71: #{model_forward.1} parent=63 // pred_region
          %483 = dma.done [#allocation5], 64
        $region72: #{model_forward.1} parent=63 // pred_fallthru
          _
        // Predicated region
        $region73: #{model_forward.1} parent=63 // pred_check
          %p484 = pneg %p90
        $region74: #{model_forward.1} parent=63 // pred_check_branch
          %486 = sbr.rel (%p484) target = $region76
        $region75: #{model_forward.1} parent=63 // pred_region
          %487 = dma.done [#allocation5], 16
        $region76: #{model_forward.1} parent=63 // pred_fallthru
          _
        // Predicated region
        $region77: #{model_forward.1} parent=63 // pred_check
          %p488 = pneg %p111
        $region78: #{model_forward.1} parent=63 // pred_check_branch
          %490 = sbr.rel (%p488) target = $region80
        $region79: #{model_forward.1} parent=63 // pred_region
          %491 = dma.done [#allocation8], 1280
        $region80: #{model_forward.1} parent=63 // pred_fallthru
          _
        // Predicated region
        $region81: #{model_forward.1} parent=63 // pred_check
          %p492 = pneg %p132
        $region82: #{model_forward.1} parent=63 // pred_check_branch
          %494 = sbr.rel (%p492) target = $region84
        $region83: #{model_forward.1} parent=63 // pred_region
          %495 = dma.done [#allocation8], 16
        $region84: #{model_forward.1} parent=63 // pred_fallthru
          _
        // Predicated region
        $region85: #{model_forward.1} parent=63 // pred_check
          %p496 = pneg %p153
        $region86: #{model_forward.1} parent=63 // pred_check_branch
          %498 = sbr.rel (%p496) target = $region88
        $region87: #{model_forward.1} parent=63 // pred_region
          %499 = dma.done [#allocation11], 35840
        $region88: #{model_forward.1} parent=63 // pred_fallthru
          _
        // Predicated region
        $region89: #{model_forward.1} parent=63 // pred_check
          %p500 = pneg %p174
        $region90: #{model_forward.1} parent=63 // pred_check_branch
          %502 = sbr.rel (%p500) target = $region92
        $region91: #{model_forward.1} parent=63 // pred_region
          %503 = dma.done [#allocation11], 80
        $region92: #{model_forward.1} parent=63 // pred_fallthru
          _
        %s504 = sand.u32 %s32, 1
        %s505 = scalar_lea.sflag [#allocation14], %s504
        %s506 = sand.u32 %s187, 1
        %s507 = smul.addr %s506, 7680
        %s508 = scalar_lea.vmem [#allocation13], %s507
        // Predicated region
        $region93: #{model_forward.1} parent=63 // pred_check
          %p509 = pneg %p200
        $region94: #{model_forward.1} parent=63 // pred_check_branch
          %511 = sbr.rel (%p509) target = $region96
        $region95: #{model_forward.1} parent=63 // pred_region
          %512 = dma.done %s505, 122880
        $region96: #{model_forward.1} parent=63 // pred_fallthru
          _
        %s513 = sand.u32 %s32, 1
        %s514 = scalar_lea.sflag [#allocation14], %s513
        %s515 = sand.u32 %s213, 1
        %s516 = smul.addr %s515, 8
        %s517 = scalar_lea.vmem [#allocation15], %s516
        // Predicated region
        $region97: #{model_forward.1} parent=63 // pred_check
          %p518 = pneg %p226
        $region98: #{model_forward.1} parent=63 // pred_check_branch
          %520 = sbr.rel (%p518) target = $region100
        $region99: #{model_forward.1} parent=63 // pred_region
          %521 = dma.done %s514, 128
        $region100: #{model_forward.1} parent=63 // pred_fallthru
          _
        %s522 = sand.u32 %s239, 1
        %s523 = scalar_lea.sflag [#allocation17], %s522
        %s524 = sand.u32 %s239, 1
        %s525 = smul.addr %s524, 8
        %s526 = scalar_lea.vmem [#allocation16], %s525
        // Predicated region
        $region101: #{model_forward.1} parent=63 // pred_check
          %p527 = pneg %p252
        $region102: #{model_forward.1} parent=63 // pred_check_branch
          %529 = sbr.rel (%p527) target = $region104
        $region103: #{model_forward.1} parent=63 // pred_region
          %530 = dma.done %s523, 128
        $region104: #{model_forward.1} parent=63 // pred_fallthru
          _
        %p531 = pneg %p48
        %p532 = pneg %p45
        %p533 = pneg %p69
        %p534 = pneg %p66
        %p535 = pneg %p90
        %p536 = pneg %p87
        %p537 = pneg %p111
        %p538 = pneg %p108
        %p539 = pneg %p132
        %p540 = pneg %p129
        %p541 = pneg %p153
        %p542 = pneg %p150
        %p543 = pneg %p174
        %p544 = pneg %p171
        %s545 = sand.u32 %s32, 1
        %s546 = scalar_lea.sflag [#allocation14], %s545
        %s547 = sand.u32 %s187, 1
        %s548 = smul.addr %s547, 7680
        %s549 = scalar_lea.vmem [#allocation13], %s548
        %p550 = pneg %p200
        %p551 = pneg %p197
        %s552 = sand.u32 %s32, 1
        %s553 = scalar_lea.sflag [#allocation14], %s552
        %s554 = sand.u32 %s213, 1
        %s555 = smul.addr %s554, 8
        %s556 = scalar_lea.vmem [#allocation15], %s555
        %p557 = pneg %p226
        %p558 = pneg %p223
        %s559 = sand.u32 %s239, 1
        %s560 = scalar_lea.sflag [#allocation17], %s559
        %s561 = sand.u32 %s239, 1
        %s562 = smul.addr %s561, 8
        %s563 = scalar_lea.vmem [#allocation16], %s562
        %p564 = pneg %p252
        %p565 = pneg %p249
        %p566 = scmp.lt.s32.totalorder %s32, 1
        %s567 = scalar_select %p566, %s32, 1
        %s568 = scalar_lea.vmem %s10, %s567
        %p569 = pneg %p278
        %p570 = pneg %p275
        %p571 = pneg %p304
        %p572 = pneg %p301
        %p573 = scmp.lt.s32.totalorder %s32, 1
        %s574 = scalar_select %p573, %s32, 1
        %s575 = smul.addr %s574, 2
        %s576 = scalar_lea.vmem %s11, %s575
        %s577 = smul.u32 8, %s32
        %s578 = smul.u32 8, %s32
        %p579 = scmp.lt.s32.totalorder %s32, 1
        %s580 = scalar_select %p579, %s32, 1
        %s581 = scalar_lea.vmem %s10, %s580
        %p582 = scmp.lt.s32.totalorder %s32, 1
        %s583 = scalar_select %p582, %s32, 1
        %s584 = smul.addr %s583, 2
        %s585 = scalar_lea.vmem %s11, %s584
        %v587 = vld [vmem:[#allocation2] sm:$0x3]
        %v588 = vld [vmem:[#allocation4] sm:$0x7]
        %v589 = vld [vmem:[#allocation6] sm:$0x1]
        %591 = vset.pattern.permute.xlu0 0
        %592 = vperm.xlu0 %591, %v587
        %v593 = vpop.permute.xlu0 %592
        %v595 = vlaneseq
        %v596 = vshrl.u32 %v595, 7
        %v597 = vsub.s32 0, %v596
        %v598 = vrot.slane %v588, %v597
        %v599 = vmul.f32 %v593, %v598
        %v601 = vlaneseq
        %v602 = vshrl.u32 %v601, 7
        %v603 = vsub.s32 0, %v602
        %v604 = vrot.slane %v589, %v603
        %v606 = vadd.f32 %v604, %v599
        %v607 = vlaneseq
        %v608 = vshrl.u32 %v607, 7
        %v609 = vsub.s32 1, %v608
        %v610 = vrot.slane %v588, %v609
        %v611 = vmul.f32 %v593, %v610
        %v612 = vadd.f32 %v606, %v611
        %613 = vset.pattern.permute.xlu0 1
        %614 = vperm.xlu0 %613, %v587
        %v615 = vpop.permute.xlu0 %614
        %v617 = vlaneseq
        %v618 = vshrl.u32 %v617, 7
        %v619 = vsub.s32 2, %v618
        %v620 = vrot.slane %v588, %v619
        %v621 = vmul.f32 %v615, %v620
        %v622 = vadd.f32 %v612, %v621
        %v623 = vmax.f32 %v622, 0.0
        %v624 = vmul.f32 %v615, %v610
        %v625 = vadd.f32 %v606, %v624
        %626 = vset.pattern.permute.xlu0 2
        %627 = vperm.xlu0 %626, %v587
        %v628 = vpop.permute.xlu0 %627
        %v630 = vmul.f32 %v628, %v620
        %v631 = vadd.f32 %v625, %v630
        %v632 = vmax.f32 %v631, 0.0
        %v633 = vmul.f32 %v615, %v598
        %v634 = vadd.f32 %v604, %v633
        %v635 = vmul.f32 %v628, %v610
        %v636 = vadd.f32 %v634, %v635
        %637 = vset.pattern.permute.xlu0 3
        %638 = vperm.xlu0 %637, %v587
        %v639 = vpop.permute.xlu0 %638
        %v641 = vmul.f32 %v639, %v620
        %v642 = vadd.f32 %v636, %v641
        %v643 = vmax.f32 %v642, 0.0
        %v644 = vmul.f32 %v628, %v598
        %v645 = vadd.f32 %v604, %v644
        %v646 = vmul.f32 %v639, %v610
        %v647 = vadd.f32 %v645, %v646
        %648 = vset.pattern.permute.xlu0 4
        %649 = vperm.xlu0 %648, %v587
        %v650 = vpop.permute.xlu0 %649
        %v652 = vmul.f32 %v650, %v620
        %v653 = vadd.f32 %v647, %v652
        %v654 = vmax.f32 %v653, 0.0
        %v655 = vmul.f32 %v639, %v598
        %v656 = vadd.f32 %v604, %v655
        %v657 = vmul.f32 %v650, %v610
        %v658 = vadd.f32 %v656, %v657
        %659 = vset.pattern.permute.xlu0 5
        %660 = vperm.xlu0 %659, %v587
        %v661 = vpop.permute.xlu0 %660
        %v663 = vmul.f32 %v661, %v620
        %v664 = vadd.f32 %v658, %v663
        %v665 = vmax.f32 %v664, 0.0
        %v666 = vmul.f32 %v650, %v598
        %v667 = vadd.f32 %v604, %v666
        %v668 = vmul.f32 %v661, %v610
        %v669 = vadd.f32 %v667, %v668
        %670 = vset.pattern.permute.xlu0 6
        %671 = vperm.xlu0 %670, %v587
        %v672 = vpop.permute.xlu0 %671
        %v674 = vmul.f32 %v672, %v620
        %v675 = vadd.f32 %v669, %v674
        %v676 = vmax.f32 %v675, 0.0
        %v677 = vmul.f32 %v661, %v598
        %v678 = vadd.f32 %v604, %v677
        %v679 = vmul.f32 %v672, %v610
        %v680 = vadd.f32 %v678, %v679
        %681 = vset.pattern.permute.xlu0 7
        %682 = vperm.xlu0 %681, %v587
        %v683 = vpop.permute.xlu0 %682
        %v685 = vmul.f32 %v683, %v620
        %v686 = vadd.f32 %v680, %v685
        %v687 = vmax.f32 %v686, 0.0
        %v688 = vmul.f32 %v672, %v598
        %v689 = vadd.f32 %v604, %v688
        %v690 = vmul.f32 %v683, %v610
        %v691 = vadd.f32 %v689, %v690
        %692 = vset.pattern.permute.xlu0 8
        %693 = vperm.xlu0 %692, %v587
        %v694 = vpop.permute.xlu0 %693
        %v696 = vmul.f32 %v694, %v620
        %v697 = vadd.f32 %v691, %v696
        %v698 = vmax.f32 %v697, 0.0
        %v699 = vmul.f32 %v683, %v598
        %v700 = vadd.f32 %v604, %v699
        %v701 = vmul.f32 %v694, %v610
        %v702 = vadd.f32 %v700, %v701
        %703 = vset.pattern.permute.xlu0 9
        %704 = vperm.xlu0 %703, %v587
        %v705 = vpop.permute.xlu0 %704
        %v707 = vmul.f32 %v705, %v620
        %v708 = vadd.f32 %v702, %v707
        %v709 = vmax.f32 %v708, 0.0
        %v710 = vmul.f32 %v694, %v598
        %v711 = vadd.f32 %v604, %v710
        %v712 = vmul.f32 %v705, %v610
        %v713 = vadd.f32 %v711, %v712
        %714 = vset.pattern.permute.xlu0 10
        %715 = vperm.xlu0 %714, %v587
        %v716 = vpop.permute.xlu0 %715
        %v718 = vmul.f32 %v716, %v620
        %v719 = vadd.f32 %v713, %v718
        %v720 = vmax.f32 %v719, 0.0
        %v721 = vmul.f32 %v705, %v598
        %v722 = vadd.f32 %v604, %v721
        %v723 = vmul.f32 %v716, %v610
        %v724 = vadd.f32 %v722, %v723
        %725 = vset.pattern.permute.xlu0 11
        %726 = vperm.xlu0 %725, %v587
        %v727 = vpop.permute.xlu0 %726
        %v729 = vmul.f32 %v727, %v620
        %v730 = vadd.f32 %v724, %v729
        %v731 = vmax.f32 %v730, 0.0
        %v732 = vmul.f32 %v716, %v598
        %v733 = vadd.f32 %v604, %v732
        %v734 = vmul.f32 %v727, %v610
        %v735 = vadd.f32 %v733, %v734
        %736 = vset.pattern.permute.xlu0 12
        %737 = vperm.xlu0 %736, %v587
        %v738 = vpop.permute.xlu0 %737
        %v740 = vmul.f32 %v738, %v620
        %v741 = vadd.f32 %v735, %v740
        %v742 = vmax.f32 %v741, 0.0
        %v743 = vmul.f32 %v727, %v598
        %v744 = vadd.f32 %v604, %v743
        %v745 = vmul.f32 %v738, %v610
        %v746 = vadd.f32 %v744, %v745
        %747 = vset.pattern.permute.xlu0 13
        %748 = vperm.xlu0 %747, %v587
        %v749 = vpop.permute.xlu0 %748
        %v751 = vmul.f32 %v749, %v620
        %v752 = vadd.f32 %v746, %v751
        %v753 = vmax.f32 %v752, 0.0
        %v754 = vmul.f32 %v738, %v598
        %v755 = vadd.f32 %v604, %v754
        %v756 = vmul.f32 %v749, %v610
        %v757 = vadd.f32 %v755, %v756
        %758 = vset.pattern.permute.xlu0 14
        %759 = vperm.xlu0 %758, %v587
        %v760 = vpop.permute.xlu0 %759
        %v762 = vmul.f32 %v760, %v620
        %v763 = vadd.f32 %v757, %v762
        %v764 = vmax.f32 %v763, 0.0
        %v765 = vmul.f32 %v749, %v598
        %v766 = vadd.f32 %v604, %v765
        %v767 = vmul.f32 %v760, %v610
        %v768 = vadd.f32 %v766, %v767
        %769 = vset.pattern.permute.xlu0 15
        %770 = vperm.xlu0 %769, %v587
        %v771 = vpop.permute.xlu0 %770
        %v773 = vmul.f32 %v771, %v620
        %v774 = vadd.f32 %v768, %v773
        %v775 = vmax.f32 %v774, 0.0
        %v776 = vmul.f32 %v760, %v598
        %v777 = vadd.f32 %v604, %v776
        %v778 = vmul.f32 %v771, %v610
        %v779 = vadd.f32 %v777, %v778
        %v780 = vadd.f32 %v779, %v773
        %v781 = vmax.f32 %v780, 0.0
        %783 = vrot.lane.b32.xlu0 %v623, 32
        %v784 = vpop.permute.xlu0 %783
        %786 = vrot.lane.b32.xlu0 %v623, 64
        %v787 = vpop.permute.xlu0 %786
        %790 = vrot.lane.b32.xlu0 %v632, 96
        %v791 = vpop.permute.xlu0 %790
        %vm793 = vcmask 261120
        %v794 = vsel %vm793, %v623, %v784
        %vm795 = vcmask 523264
        %v796 = vsel %vm795, %v794, %v787
        %vm797 = vcmask 785408
        %v798 = vsel %vm797, %v796, %v791
        %799 = vrot.lane.b32.xlu0 %v632, 32
        %v800 = vpop.permute.xlu0 %799
        %803 = vrot.lane.b32.xlu0 %v643, 64
        %v804 = vpop.permute.xlu0 %803
        %807 = vrot.lane.b32.xlu0 %v654, 96
        %v808 = vpop.permute.xlu0 %807
        %v810 = vsel %vm793, %v623, %v800
        %v811 = vsel %vm795, %v810, %v804
        %v812 = vsel %vm797, %v811, %v808
        %813 = vrot.lane.b32.xlu0 %v654, 32
        %v814 = vpop.permute.xlu0 %813
        %817 = vrot.lane.b32.xlu0 %v665, 64
        %v818 = vpop.permute.xlu0 %817
        %821 = vrot.lane.b32.xlu0 %v676, 96
        %v822 = vpop.permute.xlu0 %821
        %v824 = vsel %vm793, %v643, %v814
        %v825 = vsel %vm795, %v824, %v818
        %v826 = vsel %vm797, %v825, %v822
        %827 = vrot.lane.b32.xlu0 %v676, 32
        %v828 = vpop.permute.xlu0 %827
        %831 = vrot.lane.b32.xlu0 %v687, 64
        %v832 = vpop.permute.xlu0 %831
        %835 = vrot.lane.b32.xlu0 %v698, 96
        %v836 = vpop.permute.xlu0 %835
        %v838 = vsel %vm793, %v665, %v828
        %v839 = vsel %vm795, %v838, %v832
        %v840 = vsel %vm797, %v839, %v836
        %841 = vrot.lane.b32.xlu0 %v698, 32
        %v842 = vpop.permute.xlu0 %841
        %845 = vrot.lane.b32.xlu0 %v709, 64
        %v846 = vpop.permute.xlu0 %845
        %849 = vrot.lane.b32.xlu0 %v720, 96
        %v850 = vpop.permute.xlu0 %849
        %v852 = vsel %vm793, %v687, %v842
        %v853 = vsel %vm795, %v852, %v846
        %v854 = vsel %vm797, %v853, %v850
        %855 = vrot.lane.b32.xlu0 %v720, 32
        %v856 = vpop.permute.xlu0 %855
        %859 = vrot.lane.b32.xlu0 %v731, 64
        %v860 = vpop.permute.xlu0 %859
        %863 = vrot.lane.b32.xlu0 %v742, 96
        %v864 = vpop.permute.xlu0 %863
        %v866 = vsel %vm793, %v709, %v856
        %v867 = vsel %vm795, %v866, %v860
        %v868 = vsel %vm797, %v867, %v864
        %869 = vrot.lane.b32.xlu0 %v742, 32
        %v870 = vpop.permute.xlu0 %869
        %873 = vrot.lane.b32.xlu0 %v753, 64
        %v874 = vpop.permute.xlu0 %873
        %877 = vrot.lane.b32.xlu0 %v764, 96
        %v878 = vpop.permute.xlu0 %877
        %v880 = vsel %vm793, %v731, %v870
        %v881 = vsel %vm795, %v880, %v874
        %v882 = vsel %vm797, %v881, %v878
        %883 = vrot.lane.b32.xlu0 %v764, 32
        %v884 = vpop.permute.xlu0 %883
        %887 = vrot.lane.b32.xlu0 %v775, 64
        %v888 = vpop.permute.xlu0 %887
        %891 = vrot.lane.b32.xlu0 %v781, 96
        %v892 = vpop.permute.xlu0 %891
        %v894 = vsel %vm793, %v753, %v884
        %v895 = vsel %vm795, %v894, %v888
        %v896 = vsel %vm797, %v895, %v892
        %v898 = vrot.slane %v812, 6
        %v899 = vrot.slane %v665, 6
        %v903 = vrot.slane %v826, 4
        %v904 = vrot.slane %v687, 4
        %v908 = vrot.slane %v840, 2
        %v909 = vrot.slane %v709, 2
        %v913 = vrot.slane %v868, 6
        %v914 = vrot.slane %v753, 6
        %v918 = vrot.slane %v882, 4
        %v919 = vrot.slane %v775, 4
        %v923 = vrot.slane %v896, 2
        %v924 = vrot.slane %v781, 2
        %vm927 = vcmask 1041408
        %v928 = vsel %vm927, %v798, %v898
        %v929 = vsel %vm927, %v643, %v899
        %vm930 = vcmask 1043456
        %v931 = vsel %vm930, %v928, %v903
        %v932 = vsel %vm930, %v929, %v904
        %vm933 = vcmask 1045504
        %v934 = vsel %vm933, %v931, %v908
        %v935 = vsel %vm933, %v932, %v909
        %v936 = vsel %vm927, %v854, %v913
        %v937 = vsel %vm927, %v731, %v914
        %v938 = vsel %vm930, %v936, %v918
        %v939 = vsel %vm930, %v937, %v919
        %v940 = vsel %vm933, %v938, %v923
        %v941 = vsel %vm933, %v939, %v924
        %v942 = vpack.c.bf16 %v940, %v934
        %v943 = vpack.c.bf16 %v941, %v935
        %v944 = vld [vmem:[#allocation7] sm:$0xf]
        %v945 = vld [vmem:[#allocation7 + $0x4] sm:$0xf]
        %v946 = vld [vmem:[#allocation7 + $0x8] sm:$0xf]
        %v947 = vld [vmem:[#allocation7 + $0xc] sm:$0xf]
        %v948 = vld [vmem:[#allocation7 + $0x10] sm:$0xf]
        %v949 = vld [vmem:[#allocation7 + $0x14] sm:$0xf]
        %v950 = vld [vmem:[#allocation7 + $0x18] sm:$0xf]
        %v951 = vld [vmem:[#allocation7 + $0x1c] sm:$0xf]
        %v952 = vld [vmem:[#allocation7 + $0x20] sm:$0xf]
        %v953 = vld [vmem:[#allocation7 + $0x24] sm:$0xf]
        %v954 = vld [vmem:[#allocation7 + $0x28] sm:$0xf]
        %v955 = vld [vmem:[#allocation7 + $0x2c] sm:$0xf]
        %v956 = vld [vmem:[#allocation7 + $0x30] sm:$0xf]
        %v957 = vld [vmem:[#allocation7 + $0x34] sm:$0xf]
        %v958 = vld [vmem:[#allocation7 + $0x38] sm:$0xf]
        %v959 = vld [vmem:[#allocation7 + $0x3c] sm:$0xf]
        %v960 = vld [vmem:[#allocation7 + $0x40] sm:$0xf]
        %v961 = vld [vmem:[#allocation7 + $0x44] sm:$0xf]
        %v962 = vld [vmem:[#allocation7 + $0x48] sm:$0xf]
        %v963 = vld [vmem:[#allocation7 + $0x4c] sm:$0xf]
        %v964 = vld [vmem:[#allocation9] sm:$0x1]
        %v966 = vlaneseq
        %v967 = vshrl.u32 %v966, 7
        %v968 = vsub.s32 0, %v967
        %v969 = vrot.slane %v964, %v968
        %v991 = vunpack.c.l.b16 %v944
        %v992 = vunpack.c.l.b16 %v945
        %v993 = vunpack.c.l.b16 %v946
        %v994 = vunpack.c.l.b16 %v947
        %v995 = vunpack.c.l.b16 %v948
        %v996 = vunpack.c.l.b16 %v949
        %v997 = vunpack.c.l.b16 %v950
        %v998 = vunpack.c.l.b16 %v951
        %v999 = vunpack.c.l.b16 %v952
        %v1000 = vunpack.c.l.b16 %v953
        %v1001 = vunpack.c.l.b16 %v954
        %v1002 = vunpack.c.l.b16 %v955
        %v1003 = vunpack.c.l.b16 %v956
        %v1004 = vunpack.c.l.b16 %v957
        %v1005 = vunpack.c.l.b16 %v958
        %v1006 = vunpack.c.l.b16 %v959
        %v1007 = vunpack.c.l.b16 %v960
        %v1008 = vunpack.c.l.b16 %v961
        %v1009 = vunpack.c.l.b16 %v962
        %v1010 = vunpack.c.l.b16 %v963
        %v1011 = vpack.c.b16 %v992, %v991
        %v1012 = vpack.c.b16 %v994, %v993
        %v1013 = vpack.c.b16 %v996, %v995
        %v1014 = vpack.c.b16 %v998, %v997
        %v1015 = vpack.c.b16 %v1000, %v999
        %v1016 = vpack.c.b16 %v1002, %v1001
        %v1017 = vpack.c.b16 %v1004, %v1003
        %v1018 = vpack.c.b16 %v1006, %v1005
        %v1019 = vpack.c.b16 %v1008, %v1007
        %v1020 = vpack.c.b16 %v1010, %v1009
        %v1032 = vsel %vm793, %v943, 0
        %1034 = vmatprep.subr.bf16.mxu0 0
        %1035 = vmatpush1.bf16.msra.mxu0 %v1011
        %1036 = vmatprep.subr.bf16.mxu0 0
        %1037 = vmatpush1.bf16.msra.mxu0 %v1012
        %1038 = vmatprep.subr.bf16.mxu0 0
        %1039 = vmatpush1.bf16.msra.mxu0 %v1013
        %1040 = vmatprep.subr.bf16.mxu0 0
        %1041 = vmatpush1.bf16.msra.mxu0 %v1014
        %1042 = vmatprep.subr.bf16.mxu0 0
        %1043 = vmatpush1.bf16.msra.mxu0 %v1015
        %1044 = vmatprep.subr.bf16.mxu0 0
        %1045 = vmatpush1.bf16.msra.mxu0 %v1016
        %1046 = vmatprep.subr.bf16.mxu0 0
        %1047 = vmatpush1.bf16.msra.mxu0 %v1017
        %1048 = vmatprep.subr.bf16.mxu0 0
        %1049 = vmatpush1.bf16.msra.mxu0 %v1018
        %1050 = vmatprep.subr.bf16.mxu0 0
        %1051 = vmatpush1.bf16.msra.mxu0 %v1019
        %1052 = vmatprep.subr.bf16.mxu0 0
        %1053 = vmatpush1.bf16.msra.mxu0 %v1020
        %1054 = vmatprep.subr.bf16.mxu0 0
        %1055 = vmatpush1.bf16.msra.mxu0 0
        %1056 = vmatprep.subr.bf16.mxu0 0
        %1057 = vmatpush1.bf16.msra.mxu0 0
        %1058 = vmatprep.subr.bf16.mxu0 0
        %1059 = vmatpush1.bf16.msra.mxu0 0
        %1060 = vmatprep.subr.bf16.mxu0 0
        %1061 = vmatpush1.bf16.msra.mxu0 0
        %1062 = vmatprep.subr.bf16.mxu0 0
        %1063 = vmatpush1.bf16.msra.mxu0 0
        %1064 = vmatprep.subr.bf16.mxu0 0
        %1065 = vmatpush1.bf16.msra.mxu0 0
        %1066 = vmatprep.mubr.bf16.mxu0 %v1032
        %1067 = vmatmul.mubr.bf16.gmra.mrb[0].mxu0 %v942
        %v1068 = vpop.f32.mrb[0].mxu0
        %v1069 = vadd.f32 %v969, %v1068
        %v1070 = vpop.f32.mrb[0].mxu0
        %v1071 = vpop.f32.mrb[0].mxu0
        %v1072 = vadd.f32 %v969, %v1071
        %v1073 = vpop.f32.mrb[0].mxu0
        %1074 = vdwg.mxu0
        %v1075 = vmax.f32 %v1069, 0.0
        %v1076 = vmax.f32 %v1072, 0.0
        %v1078 = vrot.slane %v1075, 2
        %v1080 = vrot.slane %v1075, 4
        %v1082 = vrot.slane %v1075, 6
        %v1085 = vrot.slane %v1076, 2
        %v1086 = vrot.slane %v1076, 4
        %v1087 = vrot.slane %v1076, 6
        %v1088 = vrot.slane %v1078, 6
        %v1089 = vrot.slane %v1080, 6
        %v1090 = vrot.slane %v1082, 6
        %v1091 = vrot.slane %v1085, 6
        %v1092 = vrot.slane %v1086, 6
        %v1099 = vrot.slane %v1085, 2
        %v1100 = vrot.slane %v1086, 2
        %v1101 = vrot.slane %v1087, 2
        %v1106 = vsel %vm927, %v1075, %v1082
        %v1107 = vsel %vm927, %v1075, %v1088
        %v1108 = vsel %vm927, %v1075, %v1089
        %v1109 = vsel %vm927, %v1075, %v1090
        %v1110 = vsel %vm927, %v1078, %v1087
        %v1111 = vsel %vm927, %v1080, %v1091
        %v1112 = vsel %vm927, %v1082, %v1092
        %v1113 = vsel %vm930, %v1106, %v1078
        %v1114 = vsel %vm930, %v1107, %v1099
        %v1115 = vsel %vm930, %v1108, %v1100
        %v1116 = vsel %vm930, %v1109, %v1101
        %v1117 = vsel %vm930, %v1110, %v1085
        %v1118 = vsel %vm930, %v1111, %v1085
        %v1119 = vsel %vm930, %v1112, %v1085
        %v1120 = vpack.c.bf16 %v1113, %v1113
        %v1121 = vpack.c.bf16 %v1114, %v1114
        %v1122 = vpack.c.bf16 %v1115, %v1115
        %v1123 = vpack.c.bf16 %v1116, %v1116
        %v1124 = vpack.c.bf16 %v1117, %v1117
        %v1125 = vpack.c.bf16 %v1118, %v1118
        %v1126 = vpack.c.bf16 %v1119, %v1119
        %v1127 = vld [vmem:[#allocation10] sm:$0xff]
        %v1128 = vld [vmem:[#allocation10 + $0x8] sm:$0xff]
        %v1129 = vld [vmem:[#allocation10 + $0x10] sm:$0xf]
        %v1130 = vld [vmem:[#allocation10 + $0x14] sm:$0xff]
        %v1131 = vld [vmem:[#allocation10 + $0x1c] sm:$0xff]
        %v1132 = vld [vmem:[#allocation10 + $0x24] sm:$0xf]
        %v1133 = vld [vmem:[#allocation10 + $0x28] sm:$0xff]
        %v1134 = vld [vmem:[#allocation10 + $0x30] sm:$0xff]
        %v1135 = vld [vmem:[#allocation10 + $0x38] sm:$0xf]
        %v1136 = vld [vmem:[#allocation10 + $0x3c] sm:$0xff]
        %v1137 = vld [vmem:[#allocation10 + $0x44] sm:$0xff]
        %v1138 = vld [vmem:[#allocation10 + $0x4c] sm:$0xf]
        %v1139 = vld [vmem:[#allocation10 + $0x50] sm:$0xff]
        %v1140 = vld [vmem:[#allocation10 + $0x58] sm:$0xff]
        %v1141 = vld [vmem:[#allocation10 + $0x60] sm:$0xf]
        %v1142 = vld [vmem:[#allocation10 + $0x64] sm:$0xff]
        %v1143 = vld [vmem:[#allocation10 + $0x6c] sm:$0xff]
        %v1144 = vld [vmem:[#allocation10 + $0x74] sm:$0xf]
        %v1145 = vld [vmem:[#allocation10 + $0x78] sm:$0xff]
        %v1146 = vld [vmem:[#allocation10 + $0x80] sm:$0xff]
        %v1147 = vld [vmem:[#allocation10 + $0x88] sm:$0xf]
        %v1148 = vld [vmem:[#allocation10 + $0x8c] sm:$0xff]
        %v1149 = vld [vmem:[#allocation10 + $0x94] sm:$0xff]
        %v1150 = vld [vmem:[#allocation10 + $0x9c] sm:$0xf]
        %v1151 = vld [vmem:[#allocation10 + $0xa0] sm:$0xff]
        %v1152 = vld [vmem:[#allocation10 + $0xa8] sm:$0xff]
        %v1153 = vld [vmem:[#allocation10 + $0xb0] sm:$0xf]
        %v1154 = vld [vmem:[#allocation10 + $0xb4] sm:$0xff]
        %v1155 = vld [vmem:[#allocation10 + $0xbc] sm:$0xff]
        %v1156 = vld [vmem:[#allocation10 + $0xc4] sm:$0xf]
        %v1157 = vld [vmem:[#allocation10 + $0xc8] sm:$0xff]
        %v1158 = vld [vmem:[#allocation10 + $0xd0] sm:$0xff]
        %v1159 = vld [vmem:[#allocation10 + $0xd8] sm:$0xf]
        %v1160 = vld [vmem:[#allocation10 + $0xdc] sm:$0xff]
        %v1161 = vld [vmem:[#allocation10 + $0xe4] sm:$0xff]
        %v1162 = vld [vmem:[#allocation10 + $0xec] sm:$0xf]
        %v1163 = vld [vmem:[#allocation10 + $0xf0] sm:$0xff]
        %v1164 = vld [vmem:[#allocation10 + $0xf8] sm:$0xff]
        %v1165 = vld [vmem:[#allocation10 + $0x100] sm:$0xf]
        %v1166 = vld [vmem:[#allocation10 + $0x104] sm:$0xff]
        %v1167 = vld [vmem:[#allocation10 + $0x10c] sm:$0xff]
        %v1168 = vld [vmem:[#allocation10 + $0x114] sm:$0xf]
        %v1169 = vld [vmem:[#allocation10 + $0x118] sm:$0xff]
        %v1170 = vld [vmem:[#allocation10 + $0x120] sm:$0xff]
        %v1171 = vld [vmem:[#allocation10 + $0x128] sm:$0xf]
        %v1172 = vld [vmem:[#allocation10 + $0x12c] sm:$0xff]
        %v1173 = vld [vmem:[#allocation10 + $0x134] sm:$0xff]
        %v1174 = vld [vmem:[#allocation10 + $0x13c] sm:$0xf]
        %v1175 = vld [vmem:[#allocation10 + $0x140] sm:$0xff]
        %v1176 = vld [vmem:[#allocation10 + $0x148] sm:$0xff]
        %v1177 = vld [vmem:[#allocation10 + $0x150] sm:$0xf]
        %v1178 = vld [vmem:[#allocation10 + $0x154] sm:$0xff]
        %v1179 = vld [vmem:[#allocation10 + $0x15c] sm:$0xff]
        %v1180 = vld [vmem:[#allocation10 + $0x164] sm:$0xf]
        %v1181 = vld [vmem:[#allocation10 + $0x168] sm:$0xff]
        %v1182 = vld [vmem:[#allocation10 + $0x170] sm:$0xff]
        %v1183 = vld [vmem:[#allocation10 + $0x178] sm:$0xf]
        %v1184 = vld [vmem:[#allocation10 + $0x17c] sm:$0xff]
        %v1185 = vld [vmem:[#allocation10 + $0x184] sm:$0xff]
        %v1186 = vld [vmem:[#allocation10 + $0x18c] sm:$0xf]
        %v1187 = vld [vmem:[#allocation10 + $0x190] sm:$0xff]
        %v1188 = vld [vmem:[#allocation10 + $0x198] sm:$0xff]
        %v1189 = vld [vmem:[#allocation10 + $0x1a0] sm:$0xf]
        %v1190 = vld [vmem:[#allocation10 + $0x1a4] sm:$0xff]
        %v1191 = vld [vmem:[#allocation10 + $0x1ac] sm:$0xff]
        %v1192 = vld [vmem:[#allocation10 + $0x1b4] sm:$0xf]
        %v1193 = vld [vmem:[#allocation10 + $0x1b8] sm:$0xff]
        %v1194 = vld [vmem:[#allocation10 + $0x1c0] sm:$0xff]
        %v1195 = vld [vmem:[#allocation10 + $0x1c8] sm:$0xf]
        %v1196 = vld [vmem:[#allocation10 + $0x1cc] sm:$0xff]
        %v1197 = vld [vmem:[#allocation10 + $0x1d4] sm:$0xff]
        %v1198 = vld [vmem:[#allocation10 + $0x1dc] sm:$0xf]
        %v1199 = vld [vmem:[#allocation10 + $0x1e0] sm:$0xff]
        %v1200 = vld [vmem:[#allocation10 + $0x1e8] sm:$0xff]
        %v1201 = vld [vmem:[#allocation10 + $0x1f0] sm:$0xf]
        %v1202 = vld [vmem:[#allocation10 + $0x1f4] sm:$0xff]
        %v1203 = vld [vmem:[#allocation10 + $0x1fc] sm:$0xff]
        %v1204 = vld [vmem:[#allocation10 + $0x204] sm:$0xf]
        %v1205 = vld [vmem:[#allocation10 + $0x208] sm:$0xff]
        %v1206 = vld [vmem:[#allocation10 + $0x210] sm:$0xff]
        %v1207 = vld [vmem:[#allocation10 + $0x218] sm:$0xf]
        %v1208 = vld [vmem:[#allocation10 + $0x21c] sm:$0xff]
        %v1209 = vld [vmem:[#allocation10 + $0x224] sm:$0xff]
        %v1210 = vld [vmem:[#allocation10 + $0x22c] sm:$0xf]
        %v1211 = vld [vmem:[#allocation10 + $0x230] sm:$0xff]
        %v1212 = vld [vmem:[#allocation10 + $0x238] sm:$0xff]
        %v1213 = vld [vmem:[#allocation10 + $0x240] sm:$0xf]
        %v1214 = vld [vmem:[#allocation10 + $0x244] sm:$0xff]
        %v1215 = vld [vmem:[#allocation10 + $0x24c] sm:$0xff]
        %v1216 = vld [vmem:[#allocation10 + $0x254] sm:$0xf]
        %v1217 = vld [vmem:[#allocation10 + $0x258] sm:$0xff]
        %v1218 = vld [vmem:[#allocation10 + $0x260] sm:$0xff]
        %v1219 = vld [vmem:[#allocation10 + $0x268] sm:$0xf]
        %v1220 = vld [vmem:[#allocation10 + $0x26c] sm:$0xff]
        %v1221 = vld [vmem:[#allocation10 + $0x274] sm:$0xff]
        %v1222 = vld [vmem:[#allocation10 + $0x27c] sm:$0xf]
        %v1223 = vld [vmem:[#allocation10 + $0x280] sm:$0xff]
        %v1224 = vld [vmem:[#allocation10 + $0x288] sm:$0xff]
        %v1225 = vld [vmem:[#allocation10 + $0x290] sm:$0xf]
        %v1226 = vld [vmem:[#allocation10 + $0x294] sm:$0xff]
        %v1227 = vld [vmem:[#allocation10 + $0x29c] sm:$0xff]
        %v1228 = vld [vmem:[#allocation10 + $0x2a4] sm:$0xf]
        %v1229 = vld [vmem:[#allocation10 + $0x2a8] sm:$0xff]
        %v1230 = vld [vmem:[#allocation10 + $0x2b0] sm:$0xff]
        %v1231 = vld [vmem:[#allocation10 + $0x2b8] sm:$0xf]
        %v1232 = vld [vmem:[#allocation10 + $0x2bc] sm:$0xff]
        %v1233 = vld [vmem:[#allocation10 + $0x2c4] sm:$0xff]
        %v1234 = vld [vmem:[#allocation10 + $0x2cc] sm:$0xf]
        %v1235 = vld [vmem:[#allocation10 + $0x2d0] sm:$0xff]
        %v1236 = vld [vmem:[#allocation10 + $0x2d8] sm:$0xff]
        %v1237 = vld [vmem:[#allocation10 + $0x2e0] sm:$0xf]
        %v1238 = vld [vmem:[#allocation10 + $0x2e4] sm:$0xff]
        %v1239 = vld [vmem:[#allocation10 + $0x2ec] sm:$0xff]
        %v1240 = vld [vmem:[#allocation10 + $0x2f4] sm:$0xf]
        %v1241 = vld [vmem:[#allocation10 + $0x2f8] sm:$0xff]
        %v1242 = vld [vmem:[#allocation10 + $0x300] sm:$0xff]
        %v1243 = vld [vmem:[#allocation10 + $0x308] sm:$0xf]
        %v1244 = vld [vmem:[#allocation10 + $0x30c] sm:$0xff]
        %v1245 = vld [vmem:[#allocation10 + $0x314] sm:$0xff]
        %v1246 = vld [vmem:[#allocation10 + $0x31c] sm:$0xf]
        %v1247 = vld [vmem:[#allocation10 + $0x320] sm:$0xff]
        %v1248 = vld [vmem:[#allocation10 + $0x328] sm:$0xff]
        %v1249 = vld [vmem:[#allocation10 + $0x330] sm:$0xf]
        %v1250 = vld [vmem:[#allocation10 + $0x334] sm:$0xff]
        %v1251 = vld [vmem:[#allocation10 + $0x33c] sm:$0xff]
        %v1252 = vld [vmem:[#allocation10 + $0x344] sm:$0xf]
        %v1253 = vld [vmem:[#allocation10 + $0x348] sm:$0xff]
        %v1254 = vld [vmem:[#allocation10 + $0x350] sm:$0xff]
        %v1255 = vld [vmem:[#allocation10 + $0x358] sm:$0xf]
        %v1256 = vld [vmem:[#allocation10 + $0x35c] sm:$0xff]
        %v1257 = vld [vmem:[#allocation10 + $0x364] sm:$0xff]
        %v1258 = vld [vmem:[#allocation10 + $0x36c] sm:$0xf]
        %v1259 = vld [vmem:[#allocation10 + $0x370] sm:$0xff]
        %v1260 = vld [vmem:[#allocation10 + $0x378] sm:$0xff]
        %v1261 = vld [vmem:[#allocation10 + $0x380] sm:$0xf]
        %v1262 = vld [vmem:[#allocation10 + $0x384] sm:$0xff]
        %v1263 = vld [vmem:[#allocation10 + $0x38c] sm:$0xff]
        %v1264 = vld [vmem:[#allocation10 + $0x394] sm:$0xf]
        %v1265 = vld [vmem:[#allocation10 + $0x398] sm:$0xff]
        %v1266 = vld [vmem:[#allocation10 + $0x3a0] sm:$0xff]
        %v1267 = vld [vmem:[#allocation10 + $0x3a8] sm:$0xf]
        %v1268 = vld [vmem:[#allocation10 + $0x3ac] sm:$0xff]
        %v1269 = vld [vmem:[#allocation10 + $0x3b4] sm:$0xff]
        %v1270 = vld [vmem:[#allocation10 + $0x3bc] sm:$0xf]
        %v1271 = vld [vmem:[#allocation10 + $0x3c0] sm:$0xff]
        %v1272 = vld [vmem:[#allocation10 + $0x3c8] sm:$0xff]
        %v1273 = vld [vmem:[#allocation10 + $0x3d0] sm:$0xf]
        %v1274 = vld [vmem:[#allocation10 + $0x3d4] sm:$0xff]
        %v1275 = vld [vmem:[#allocation10 + $0x3dc] sm:$0xff]
        %v1276 = vld [vmem:[#allocation10 + $0x3e4] sm:$0xf]
        %v1277 = vld [vmem:[#allocation10 + $0x3e8] sm:$0xff]
        %v1278 = vld [vmem:[#allocation10 + $0x3f0] sm:$0xff]
        %v1279 = vld [vmem:[#allocation10 + $0x3f8] sm:$0xf]
        %v1280 = vld [vmem:[#allocation10 + $0x3fc] sm:$0xff]
        %v1281 = vld [vmem:[#allocation10 + $0x404] sm:$0xff]
        %v1282 = vld [vmem:[#allocation10 + $0x40c] sm:$0xf]
        %v1283 = vld [vmem:[#allocation10 + $0x410] sm:$0xff]
        %v1284 = vld [vmem:[#allocation10 + $0x418] sm:$0xff]
        %v1285 = vld [vmem:[#allocation10 + $0x420] sm:$0xf]
        %v1286 = vld [vmem:[#allocation10 + $0x424] sm:$0xff]
        %v1287 = vld [vmem:[#allocation10 + $0x42c] sm:$0xff]
        %v1288 = vld [vmem:[#allocation10 + $0x434] sm:$0xf]
        %v1289 = vld [vmem:[#allocation10 + $0x438] sm:$0xff]
        %v1290 = vld [vmem:[#allocation10 + $0x440] sm:$0xff]
        %v1291 = vld [vmem:[#allocation10 + $0x448] sm:$0xf]
        %v1292 = vld [vmem:[#allocation10 + $0x44c] sm:$0xff]
        %v1293 = vld [vmem:[#allocation10 + $0x454] sm:$0xff]
        %v1294 = vld [vmem:[#allocation10 + $0x45c] sm:$0xf]
        %v1295 = vld [vmem:[#allocation10 + $0x460] sm:$0xff]
        %v1296 = vld [vmem:[#allocation10 + $0x468] sm:$0xff]
        %v1297 = vld [vmem:[#allocation10 + $0x470] sm:$0xf]
        %v1298 = vld [vmem:[#allocation10 + $0x474] sm:$0xff]
        %v1299 = vld [vmem:[#allocation10 + $0x47c] sm:$0xff]
        %v1300 = vld [vmem:[#allocation10 + $0x484] sm:$0xf]
        %v1301 = vld [vmem:[#allocation10 + $0x488] sm:$0xff]
        %v1302 = vld [vmem:[#allocation10 + $0x490] sm:$0xff]
        %v1303 = vld [vmem:[#allocation10 + $0x498] sm:$0xf]
        %v1304 = vld [vmem:[#allocation10 + $0x49c] sm:$0xff]
        %v1305 = vld [vmem:[#allocation10 + $0x4a4] sm:$0xff]
        %v1306 = vld [vmem:[#allocation10 + $0x4ac] sm:$0xf]
        %v1307 = vld [vmem:[#allocation10 + $0x4b0] sm:$0xff]
        %v1308 = vld [vmem:[#allocation10 + $0x4b8] sm:$0xff]
        %v1309 = vld [vmem:[#allocation10 + $0x4c0] sm:$0xf]
        %v1310 = vld [vmem:[#allocation10 + $0x4c4] sm:$0xff]
        %v1311 = vld [vmem:[#allocation10 + $0x4cc] sm:$0xff]
        %v1312 = vld [vmem:[#allocation10 + $0x4d4] sm:$0xf]
        %v1313 = vld [vmem:[#allocation10 + $0x4d8] sm:$0xff]
        %v1314 = vld [vmem:[#allocation10 + $0x4e0] sm:$0xff]
        %v1315 = vld [vmem:[#allocation10 + $0x4e8] sm:$0xf]
        %v1316 = vld [vmem:[#allocation10 + $0x4ec] sm:$0xff]
        %v1317 = vld [vmem:[#allocation10 + $0x4f4] sm:$0xff]
        %v1318 = vld [vmem:[#allocation10 + $0x4fc] sm:$0xf]
        %v1319 = vld [vmem:[#allocation10 + $0x500] sm:$0xff]
        %v1320 = vld [vmem:[#allocation10 + $0x508] sm:$0xff]
        %v1321 = vld [vmem:[#allocation10 + $0x510] sm:$0xf]
        %v1322 = vld [vmem:[#allocation10 + $0x514] sm:$0xff]
        %v1323 = vld [vmem:[#allocation10 + $0x51c] sm:$0xff]
        %v1324 = vld [vmem:[#allocation10 + $0x524] sm:$0xf]
        %v1325 = vld [vmem:[#allocation10 + $0x528] sm:$0xff]
        %v1326 = vld [vmem:[#allocation10 + $0x530] sm:$0xff]
        %v1327 = vld [vmem:[#allocation10 + $0x538] sm:$0xf]
        %v1328 = vld [vmem:[#allocation10 + $0x53c] sm:$0xff]
        %v1329 = vld [vmem:[#allocation10 + $0x544] sm:$0xff]
        %v1330 = vld [vmem:[#allocation10 + $0x54c] sm:$0xf]
        %v1331 = vld [vmem:[#allocation10 + $0x550] sm:$0xff]
        %v1332 = vld [vmem:[#allocation10 + $0x558] sm:$0xff]
        %v1333 = vld [vmem:[#allocation10 + $0x560] sm:$0xf]
        %v1334 = vld [vmem:[#allocation10 + $0x564] sm:$0xff]
        %v1335 = vld [vmem:[#allocation10 + $0x56c] sm:$0xff]
        %v1336 = vld [vmem:[#allocation10 + $0x574] sm:$0xf]
        %v1337 = vld [vmem:[#allocation10 + $0x578] sm:$0xff]
        %v1338 = vld [vmem:[#allocation10 + $0x580] sm:$0xff]
        %v1339 = vld [vmem:[#allocation10 + $0x588] sm:$0xf]
        %v1340 = vld [vmem:[#allocation10 + $0x58c] sm:$0xff]
        %v1341 = vld [vmem:[#allocation10 + $0x594] sm:$0xff]
        %v1342 = vld [vmem:[#allocation10 + $0x59c] sm:$0xf]
        %v1343 = vld [vmem:[#allocation10 + $0x5a0] sm:$0xff]
        %v1344 = vld [vmem:[#allocation10 + $0x5a8] sm:$0xff]
        %v1345 = vld [vmem:[#allocation10 + $0x5b0] sm:$0xf]
        %v1346 = vld [vmem:[#allocation10 + $0x5b4] sm:$0xff]
        %v1347 = vld [vmem:[#allocation10 + $0x5bc] sm:$0xff]
        %v1348 = vld [vmem:[#allocation10 + $0x5c4] sm:$0xf]
        %v1349 = vld [vmem:[#allocation10 + $0x5c8] sm:$0xff]
        %v1350 = vld [vmem:[#allocation10 + $0x5d0] sm:$0xff]
        %v1351 = vld [vmem:[#allocation10 + $0x5d8] sm:$0xf]
        %v1352 = vld [vmem:[#allocation10 + $0x5dc] sm:$0xff]
        %v1353 = vld [vmem:[#allocation10 + $0x5e4] sm:$0xff]
        %v1354 = vld [vmem:[#allocation10 + $0x5ec] sm:$0xf]
        %v1355 = vld [vmem:[#allocation10 + $0x5f0] sm:$0xff]
        %v1356 = vld [vmem:[#allocation10 + $0x5f8] sm:$0xff]
        %v1357 = vld [vmem:[#allocation10 + $0x600] sm:$0xf]
        %v1358 = vld [vmem:[#allocation10 + $0x604] sm:$0xff]
        %v1359 = vld [vmem:[#allocation10 + $0x60c] sm:$0xff]
        %v1360 = vld [vmem:[#allocation10 + $0x614] sm:$0xf]
        %v1361 = vld [vmem:[#allocation10 + $0x618] sm:$0xff]
        %v1362 = vld [vmem:[#allocation10 + $0x620] sm:$0xff]
        %v1363 = vld [vmem:[#allocation10 + $0x628] sm:$0xf]
        %v1364 = vld [vmem:[#allocation10 + $0x62c] sm:$0xff]
        %v1365 = vld [vmem:[#allocation10 + $0x634] sm:$0xff]
        %v1366 = vld [vmem:[#allocation10 + $0x63c] sm:$0xf]
        %v1367 = vld [vmem:[#allocation10 + $0x640] sm:$0xff]
        %v1368 = vld [vmem:[#allocation10 + $0x648] sm:$0xff]
        %v1369 = vld [vmem:[#allocation10 + $0x650] sm:$0xf]
        %v1370 = vld [vmem:[#allocation10 + $0x654] sm:$0xff]
        %v1371 = vld [vmem:[#allocation10 + $0x65c] sm:$0xff]
        %v1372 = vld [vmem:[#allocation10 + $0x664] sm:$0xf]
        %v1373 = vld [vmem:[#allocation10 + $0x668] sm:$0xff]
        %v1374 = vld [vmem:[#allocation10 + $0x670] sm:$0xff]
        %v1375 = vld [vmem:[#allocation10 + $0x678] sm:$0xf]
        %v1376 = vld [vmem:[#allocation10 + $0x67c] sm:$0xff]
        %v1377 = vld [vmem:[#allocation10 + $0x684] sm:$0xff]
        %v1378 = vld [vmem:[#allocation10 + $0x68c] sm:$0xf]
        %v1379 = vld [vmem:[#allocation10 + $0x690] sm:$0xff]
        %v1380 = vld [vmem:[#allocation10 + $0x698] sm:$0xff]
        %v1381 = vld [vmem:[#allocation10 + $0x6a0] sm:$0xf]
        %v1382 = vld [vmem:[#allocation10 + $0x6a4] sm:$0xff]
        %v1383 = vld [vmem:[#allocation10 + $0x6ac] sm:$0xff]
        %v1384 = vld [vmem:[#allocation10 + $0x6b4] sm:$0xf]
        %v1385 = vld [vmem:[#allocation10 + $0x6b8] sm:$0xff]
        %v1386 = vld [vmem:[#allocation10 + $0x6c0] sm:$0xff]
        %v1387 = vld [vmem:[#allocation10 + $0x6c8] sm:$0xf]
        %v1388 = vld [vmem:[#allocation10 + $0x6cc] sm:$0xff]
        %v1389 = vld [vmem:[#allocation10 + $0x6d4] sm:$0xff]
        %v1390 = vld [vmem:[#allocation10 + $0x6dc] sm:$0xf]
        %v1391 = vld [vmem:[#allocation10 + $0x6e0] sm:$0xff]
        %v1392 = vld [vmem:[#allocation10 + $0x6e8] sm:$0xff]
        %v1393 = vld [vmem:[#allocation10 + $0x6f0] sm:$0xf]
        %v1394 = vld [vmem:[#allocation10 + $0x6f4] sm:$0xff]
        %v1395 = vld [vmem:[#allocation10 + $0x6fc] sm:$0xff]
        %v1396 = vld [vmem:[#allocation10 + $0x704] sm:$0xf]
        %v1397 = vld [vmem:[#allocation10 + $0x708] sm:$0xff]
        %v1398 = vld [vmem:[#allocation10 + $0x710] sm:$0xff]
        %v1399 = vld [vmem:[#allocation10 + $0x718] sm:$0xf]
        %v1400 = vld [vmem:[#allocation10 + $0x71c] sm:$0xff]
        %v1401 = vld [vmem:[#allocation10 + $0x724] sm:$0xff]
        %v1402 = vld [vmem:[#allocation10 + $0x72c] sm:$0xf]
        %v1403 = vld [vmem:[#allocation10 + $0x730] sm:$0xff]
        %v1404 = vld [vmem:[#allocation10 + $0x738] sm:$0xff]
        %v1405 = vld [vmem:[#allocation10 + $0x740] sm:$0xf]
        %v1406 = vld [vmem:[#allocation10 + $0x744] sm:$0xff]
        %v1407 = vld [vmem:[#allocation10 + $0x74c] sm:$0xff]
        %v1408 = vld [vmem:[#allocation10 + $0x754] sm:$0xf]
        %v1409 = vld [vmem:[#allocation10 + $0x758] sm:$0xff]
        %v1410 = vld [vmem:[#allocation10 + $0x760] sm:$0xff]
        %v1411 = vld [vmem:[#allocation10 + $0x768] sm:$0xf]
        %v1412 = vld [vmem:[#allocation10 + $0x76c] sm:$0xff]
        %v1413 = vld [vmem:[#allocation10 + $0x774] sm:$0xff]
        %v1414 = vld [vmem:[#allocation10 + $0x77c] sm:$0xf]
        %v1415 = vld [vmem:[#allocation10 + $0x780] sm:$0xff]
        %v1416 = vld [vmem:[#allocation10 + $0x788] sm:$0xff]
        %v1417 = vld [vmem:[#allocation10 + $0x790] sm:$0xf]
        %v1418 = vld [vmem:[#allocation10 + $0x794] sm:$0xff]
        %v1419 = vld [vmem:[#allocation10 + $0x79c] sm:$0xff]
        %v1420 = vld [vmem:[#allocation10 + $0x7a4] sm:$0xf]
        %v1421 = vld [vmem:[#allocation10 + $0x7a8] sm:$0xff]
        %v1422 = vld [vmem:[#allocation10 + $0x7b0] sm:$0xff]
        %v1423 = vld [vmem:[#allocation10 + $0x7b8] sm:$0xf]
        %v1424 = vld [vmem:[#allocation10 + $0x7bc] sm:$0xff]
        %v1425 = vld [vmem:[#allocation10 + $0x7c4] sm:$0xff]
        %v1426 = vld [vmem:[#allocation10 + $0x7cc] sm:$0xf]
        %v1427 = vld [vmem:[#allocation10 + $0x7d0] sm:$0xff]
        %v1428 = vld [vmem:[#allocation10 + $0x7d8] sm:$0xff]
        %v1429 = vld [vmem:[#allocation10 + $0x7e0] sm:$0xf]
        %v1430 = vld [vmem:[#allocation10 + $0x7e4] sm:$0xff]
        %v1431 = vld [vmem:[#allocation10 + $0x7ec] sm:$0xff]
        %v1432 = vld [vmem:[#allocation10 + $0x7f4] sm:$0xf]
        %v1433 = vld [vmem:[#allocation10 + $0x7f8] sm:$0xff]
        %v1434 = vld [vmem:[#allocation10 + $0x800] sm:$0xff]
        %v1435 = vld [vmem:[#allocation10 + $0x808] sm:$0xf]
        %v1436 = vld [vmem:[#allocation10 + $0x80c] sm:$0xff]
        %v1437 = vld [vmem:[#allocation10 + $0x814] sm:$0xff]
        %v1438 = vld [vmem:[#allocation10 + $0x81c] sm:$0xf]
        %v1439 = vld [vmem:[#allocation10 + $0x820] sm:$0xff]
        %v1440 = vld [vmem:[#allocation10 + $0x828] sm:$0xff]
        %v1441 = vld [vmem:[#allocation10 + $0x830] sm:$0xf]
        %v1442 = vld [vmem:[#allocation10 + $0x834] sm:$0xff]
        %v1443 = vld [vmem:[#allocation10 + $0x83c] sm:$0xff]
        %v1444 = vld [vmem:[#allocation10 + $0x844] sm:$0xf]
        %v1445 = vld [vmem:[#allocation10 + $0x848] sm:$0xff]
        %v1446 = vld [vmem:[#allocation10 + $0x850] sm:$0xff]
        %v1447 = vld [vmem:[#allocation10 + $0x858] sm:$0xf]
        %v1448 = vld [vmem:[#allocation10 + $0x85c] sm:$0xff]
        %v1449 = vld [vmem:[#allocation10 + $0x864] sm:$0xff]
        %v1450 = vld [vmem:[#allocation10 + $0x86c] sm:$0xf]
        %v1451 = vld [vmem:[#allocation10 + $0x870] sm:$0xff]
        %v1452 = vld [vmem:[#allocation10 + $0x878] sm:$0xff]
        %v1453 = vld [vmem:[#allocation10 + $0x880] sm:$0xf]
        %v1454 = vld [vmem:[#allocation10 + $0x884] sm:$0xff]
        %v1455 = vld [vmem:[#allocation10 + $0x88c] sm:$0xff]
        %v1456 = vld [vmem:[#allocation10 + $0x894] sm:$0xf]
        %v1457 = vld [vmem:[#allocation10 + $0x898] sm:$0xff]
        %v1458 = vld [vmem:[#allocation10 + $0x8a0] sm:$0xff]
        %v1459 = vld [vmem:[#allocation10 + $0x8a8] sm:$0xf]
        %v1460 = vld [vmem:[#allocation10 + $0x8ac] sm:$0xff]
        %v1461 = vld [vmem:[#allocation10 + $0x8b4] sm:$0xff]
        %v1462 = vld [vmem:[#allocation10 + $0x8bc] sm:$0xf]
        %v1463 = vld [vmem:[#allocation12] sm:$0x1f]
        %v1465 = vlaneseq
        %v1466 = vshrl.u32 %v1465, 7
        %v1467 = vsub.s32 0, %v1466
        %v1468 = vrot.slane %v1463, %v1467
        %v1469 = vlaneseq
        %v1470 = vshrl.u32 %v1469, 7
        %v1471 = vsub.s32 1, %v1470
        %v1472 = vrot.slane %v1463, %v1471
        %v1473 = vlaneseq
        %v1474 = vshrl.u32 %v1473, 7
        %v1475 = vsub.s32 2, %v1474
        %v1476 = vrot.slane %v1463, %v1475
        %v1477 = vlaneseq
        %v1478 = vshrl.u32 %v1477, 7
        %v1479 = vsub.s32 3, %v1478
        %v1480 = vrot.slane %v1463, %v1479
        %v1481 = vlaneseq
        %v1482 = vshrl.u32 %v1481, 7
        %v1483 = vsub.s32 4, %v1482
        %v1484 = vrot.slane %v1463, %v1483
        %v1826 = vunpack.c.l.b16 %v1127
        %v1827 = vunpack.c.h.b16 %v1127
        %v1828 = vunpack.c.l.b16 %v1128
        %v1829 = vunpack.c.h.b16 %v1128
        %v1830 = vunpack.c.l.b16 %v1129
        %v1831 = vunpack.c.l.b16 %v1130
        %v1832 = vunpack.c.h.b16 %v1130
        %v1833 = vunpack.c.l.b16 %v1131
        %v1834 = vunpack.c.h.b16 %v1131
        %v1835 = vunpack.c.l.b16 %v1132
        %v1836 = vunpack.c.l.b16 %v1133
        %v1837 = vunpack.c.h.b16 %v1133
        %v1838 = vunpack.c.l.b16 %v1134
        %v1839 = vunpack.c.h.b16 %v1134
        %v1840 = vunpack.c.l.b16 %v1135
        %v1841 = vunpack.c.l.b16 %v1136
        %v1842 = vunpack.c.h.b16 %v1136
        %v1843 = vunpack.c.l.b16 %v1137
        %v1844 = vunpack.c.h.b16 %v1137
        %v1845 = vunpack.c.l.b16 %v1138
        %v1846 = vunpack.c.l.b16 %v1139
        %v1847 = vunpack.c.h.b16 %v1139
        %v1848 = vunpack.c.l.b16 %v1140
        %v1849 = vunpack.c.h.b16 %v1140
        %v1850 = vunpack.c.l.b16 %v1141
        %v1851 = vunpack.c.l.b16 %v1142
        %v1852 = vunpack.c.h.b16 %v1142
        %v1853 = vunpack.c.l.b16 %v1143
        %v1854 = vunpack.c.h.b16 %v1143
        %v1855 = vunpack.c.l.b16 %v1144
        %v1856 = vunpack.c.l.b16 %v1145
        %v1857 = vunpack.c.h.b16 %v1145
        %v1858 = vunpack.c.l.b16 %v1146
        %v1859 = vunpack.c.h.b16 %v1146
        %v1860 = vunpack.c.l.b16 %v1147
        %v1861 = vunpack.c.l.b16 %v1148
        %v1862 = vunpack.c.h.b16 %v1148
        %v1863 = vunpack.c.l.b16 %v1149
        %v1864 = vunpack.c.h.b16 %v1149
        %v1865 = vunpack.c.l.b16 %v1150
        %v1866 = vunpack.c.l.b16 %v1151
        %v1867 = vunpack.c.h.b16 %v1151
        %v1868 = vunpack.c.l.b16 %v1152
        %v1869 = vunpack.c.h.b16 %v1152
        %v1870 = vunpack.c.l.b16 %v1153
        %v1871 = vunpack.c.l.b16 %v1154
        %v1872 = vunpack.c.h.b16 %v1154
        %v1873 = vunpack.c.l.b16 %v1155
        %v1874 = vunpack.c.h.b16 %v1155
        %v1875 = vunpack.c.l.b16 %v1156
        %v1876 = vunpack.c.l.b16 %v1157
        %v1877 = vunpack.c.h.b16 %v1157
        %v1878 = vunpack.c.l.b16 %v1158
        %v1879 = vunpack.c.h.b16 %v1158
        %v1880 = vunpack.c.l.b16 %v1159
        %v1881 = vunpack.c.l.b16 %v1160
        %v1882 = vunpack.c.h.b16 %v1160
        %v1883 = vunpack.c.l.b16 %v1161
        %v1884 = vunpack.c.h.b16 %v1161
        %v1885 = vunpack.c.l.b16 %v1162
        %v1886 = vunpack.c.l.b16 %v1163
        %v1887 = vunpack.c.h.b16 %v1163
        %v1888 = vunpack.c.l.b16 %v1164
        %v1889 = vunpack.c.h.b16 %v1164
        %v1890 = vunpack.c.l.b16 %v1165
        %v1891 = vunpack.c.l.b16 %v1166
        %v1892 = vunpack.c.h.b16 %v1166
        %v1893 = vunpack.c.l.b16 %v1167
        %v1894 = vunpack.c.h.b16 %v1167
        %v1895 = vunpack.c.l.b16 %v1168
        %v1896 = vunpack.c.l.b16 %v1169
        %v1897 = vunpack.c.h.b16 %v1169
        %v1898 = vunpack.c.l.b16 %v1170
        %v1899 = vunpack.c.h.b16 %v1170
        %v1900 = vunpack.c.l.b16 %v1171
        %v1901 = vunpack.c.l.b16 %v1172
        %v1902 = vunpack.c.h.b16 %v1172
        %v1903 = vunpack.c.l.b16 %v1173
        %v1904 = vunpack.c.h.b16 %v1173
        %v1905 = vunpack.c.l.b16 %v1174
        %v1906 = vunpack.c.l.b16 %v1175
        %v1907 = vunpack.c.h.b16 %v1175
        %v1908 = vunpack.c.l.b16 %v1176
        %v1909 = vunpack.c.h.b16 %v1176
        %v1910 = vunpack.c.l.b16 %v1177
        %v1911 = vunpack.c.l.b16 %v1178
        %v1912 = vunpack.c.h.b16 %v1178
        %v1913 = vunpack.c.l.b16 %v1179
        %v1914 = vunpack.c.h.b16 %v1179
        %v1915 = vunpack.c.l.b16 %v1180
        %v1916 = vunpack.c.l.b16 %v1181
        %v1917 = vunpack.c.h.b16 %v1181
        %v1918 = vunpack.c.l.b16 %v1182
        %v1919 = vunpack.c.h.b16 %v1182
        %v1920 = vunpack.c.l.b16 %v1183
        %v1921 = vunpack.c.l.b16 %v1184
        %v1922 = vunpack.c.h.b16 %v1184
        %v1923 = vunpack.c.l.b16 %v1185
        %v1924 = vunpack.c.h.b16 %v1185
        %v1925 = vunpack.c.l.b16 %v1186
        %v1926 = vunpack.c.l.b16 %v1187
        %v1927 = vunpack.c.h.b16 %v1187
        %v1928 = vunpack.c.l.b16 %v1188
        %v1929 = vunpack.c.h.b16 %v1188
        %v1930 = vunpack.c.l.b16 %v1189
        %v1931 = vunpack.c.l.b16 %v1190
        %v1932 = vunpack.c.h.b16 %v1190
        %v1933 = vunpack.c.l.b16 %v1191
        %v1934 = vunpack.c.h.b16 %v1191
        %v1935 = vunpack.c.l.b16 %v1192
        %v1936 = vunpack.c.l.b16 %v1193
        %v1937 = vunpack.c.h.b16 %v1193
        %v1938 = vunpack.c.l.b16 %v1194
        %v1939 = vunpack.c.h.b16 %v1194
        %v1940 = vunpack.c.l.b16 %v1195
        %v1941 = vunpack.c.l.b16 %v1196
        %v1942 = vunpack.c.h.b16 %v1196
        %v1943 = vunpack.c.l.b16 %v1197
        %v1944 = vunpack.c.h.b16 %v1197
        %v1945 = vunpack.c.l.b16 %v1198
        %v1946 = vunpack.c.l.b16 %v1199
        %v1947 = vunpack.c.h.b16 %v1199
        %v1948 = vunpack.c.l.b16 %v1200
        %v1949 = vunpack.c.h.b16 %v1200
        %v1950 = vunpack.c.l.b16 %v1201
        %v1951 = vunpack.c.l.b16 %v1202
        %v1952 = vunpack.c.h.b16 %v1202
        %v1953 = vunpack.c.l.b16 %v1203
        %v1954 = vunpack.c.h.b16 %v1203
        %v1955 = vunpack.c.l.b16 %v1204
        %v1956 = vunpack.c.l.b16 %v1205
        %v1957 = vunpack.c.h.b16 %v1205
        %v1958 = vunpack.c.l.b16 %v1206
        %v1959 = vunpack.c.h.b16 %v1206
        %v1960 = vunpack.c.l.b16 %v1207
        %v1961 = vunpack.c.l.b16 %v1208
        %v1962 = vunpack.c.h.b16 %v1208
        %v1963 = vunpack.c.l.b16 %v1209
        %v1964 = vunpack.c.h.b16 %v1209
        %v1965 = vunpack.c.l.b16 %v1210
        %v1966 = vunpack.c.l.b16 %v1211
        %v1967 = vunpack.c.h.b16 %v1211
        %v1968 = vunpack.c.l.b16 %v1212
        %v1969 = vunpack.c.h.b16 %v1212
        %v1970 = vunpack.c.l.b16 %v1213
        %v1971 = vunpack.c.l.b16 %v1214
        %v1972 = vunpack.c.h.b16 %v1214
        %v1973 = vunpack.c.l.b16 %v1215
        %v1974 = vunpack.c.h.b16 %v1215
        %v1975 = vunpack.c.l.b16 %v1216
        %v1976 = vunpack.c.l.b16 %v1217
        %v1977 = vunpack.c.h.b16 %v1217
        %v1978 = vunpack.c.l.b16 %v1218
        %v1979 = vunpack.c.h.b16 %v1218
        %v1980 = vunpack.c.l.b16 %v1219
        %v1981 = vunpack.c.l.b16 %v1220
        %v1982 = vunpack.c.h.b16 %v1220
        %v1983 = vunpack.c.l.b16 %v1221
        %v1984 = vunpack.c.h.b16 %v1221
        %v1985 = vunpack.c.l.b16 %v1222
        %v1986 = vunpack.c.l.b16 %v1223
        %v1987 = vunpack.c.h.b16 %v1223
        %v1988 = vunpack.c.l.b16 %v1224
        %v1989 = vunpack.c.h.b16 %v1224
        %v1990 = vunpack.c.l.b16 %v1225
        %v1991 = vunpack.c.l.b16 %v1226
        %v1992 = vunpack.c.h.b16 %v1226
        %v1993 = vunpack.c.l.b16 %v1227
        %v1994 = vunpack.c.h.b16 %v1227
        %v1995 = vunpack.c.l.b16 %v1228
        %v1996 = vunpack.c.l.b16 %v1229
        %v1997 = vunpack.c.h.b16 %v1229
        %v1998 = vunpack.c.l.b16 %v1230
        %v1999 = vunpack.c.h.b16 %v1230
        %v2000 = vunpack.c.l.b16 %v1231
        %v2001 = vunpack.c.l.b16 %v1232
        %v2002 = vunpack.c.h.b16 %v1232
        %v2003 = vunpack.c.l.b16 %v1233
        %v2004 = vunpack.c.h.b16 %v1233
        %v2005 = vunpack.c.l.b16 %v1234
        %v2006 = vunpack.c.l.b16 %v1235
        %v2007 = vunpack.c.h.b16 %v1235
        %v2008 = vunpack.c.l.b16 %v1236
        %v2009 = vunpack.c.h.b16 %v1236
        %v2010 = vunpack.c.l.b16 %v1237
        %v2011 = vunpack.c.l.b16 %v1238
        %v2012 = vunpack.c.h.b16 %v1238
        %v2013 = vunpack.c.l.b16 %v1239
        %v2014 = vunpack.c.h.b16 %v1239
        %v2015 = vunpack.c.l.b16 %v1240
        %v2016 = vunpack.c.l.b16 %v1241
        %v2017 = vunpack.c.h.b16 %v1241
        %v2018 = vunpack.c.l.b16 %v1242
        %v2019 = vunpack.c.h.b16 %v1242
        %v2020 = vunpack.c.l.b16 %v1243
        %v2021 = vunpack.c.l.b16 %v1244
        %v2022 = vunpack.c.h.b16 %v1244
        %v2023 = vunpack.c.l.b16 %v1245
        %v2024 = vunpack.c.h.b16 %v1245
        %v2025 = vunpack.c.l.b16 %v1246
        %v2026 = vunpack.c.l.b16 %v1247
        %v2027 = vunpack.c.h.b16 %v1247
        %v2028 = vunpack.c.l.b16 %v1248
        %v2029 = vunpack.c.h.b16 %v1248
        %v2030 = vunpack.c.l.b16 %v1249
        %v2031 = vunpack.c.l.b16 %v1250
        %v2032 = vunpack.c.h.b16 %v1250
        %v2033 = vunpack.c.l.b16 %v1251
        %v2034 = vunpack.c.h.b16 %v1251
        %v2035 = vunpack.c.l.b16 %v1252
        %v2036 = vunpack.c.l.b16 %v1253
        %v2037 = vunpack.c.h.b16 %v1253
        %v2038 = vunpack.c.l.b16 %v1254
        %v2039 = vunpack.c.h.b16 %v1254
        %v2040 = vunpack.c.l.b16 %v1255
        %v2041 = vunpack.c.l.b16 %v1256
        %v2042 = vunpack.c.h.b16 %v1256
        %v2043 = vunpack.c.l.b16 %v1257
        %v2044 = vunpack.c.h.b16 %v1257
        %v2045 = vunpack.c.l.b16 %v1258
        %v2046 = vunpack.c.l.b16 %v1259
        %v2047 = vunpack.c.h.b16 %v1259
        %v2048 = vunpack.c.l.b16 %v1260
        %v2049 = vunpack.c.h.b16 %v1260
        %v2050 = vunpack.c.l.b16 %v1261
        %v2051 = vunpack.c.l.b16 %v1262
        %v2052 = vunpack.c.h.b16 %v1262
        %v2053 = vunpack.c.l.b16 %v1263
        %v2054 = vunpack.c.h.b16 %v1263
        %v2055 = vunpack.c.l.b16 %v1264
        %v2056 = vunpack.c.l.b16 %v1265
        %v2057 = vunpack.c.h.b16 %v1265
        %v2058 = vunpack.c.l.b16 %v1266
        %v2059 = vunpack.c.h.b16 %v1266
        %v2060 = vunpack.c.l.b16 %v1267
        %v2061 = vunpack.c.l.b16 %v1268
        %v2062 = vunpack.c.h.b16 %v1268
        %v2063 = vunpack.c.l.b16 %v1269
        %v2064 = vunpack.c.h.b16 %v1269
        %v2065 = vunpack.c.l.b16 %v1270
        %v2066 = vunpack.c.l.b16 %v1271
        %v2067 = vunpack.c.h.b16 %v1271
        %v2068 = vunpack.c.l.b16 %v1272
        %v2069 = vunpack.c.h.b16 %v1272
        %v2070 = vunpack.c.l.b16 %v1273
        %v2071 = vunpack.c.l.b16 %v1274
        %v2072 = vunpack.c.h.b16 %v1274
        %v2073 = vunpack.c.l.b16 %v1275
        %v2074 = vunpack.c.h.b16 %v1275
        %v2075 = vunpack.c.l.b16 %v1276
        %v2076 = vunpack.c.l.b16 %v1277
        %v2077 = vunpack.c.h.b16 %v1277
        %v2078 = vunpack.c.l.b16 %v1278
        %v2079 = vunpack.c.h.b16 %v1278
        %v2080 = vunpack.c.l.b16 %v1279
        %v2081 = vunpack.c.l.b16 %v1280
        %v2082 = vunpack.c.h.b16 %v1280
        %v2083 = vunpack.c.l.b16 %v1281
        %v2084 = vunpack.c.h.b16 %v1281
        %v2085 = vunpack.c.l.b16 %v1282
        %v2086 = vunpack.c.l.b16 %v1283
        %v2087 = vunpack.c.h.b16 %v1283
        %v2088 = vunpack.c.l.b16 %v1284
        %v2089 = vunpack.c.h.b16 %v1284
        %v2090 = vunpack.c.l.b16 %v1285
        %v2091 = vunpack.c.l.b16 %v1286
        %v2092 = vunpack.c.h.b16 %v1286
        %v2093 = vunpack.c.l.b16 %v1287
        %v2094 = vunpack.c.h.b16 %v1287
        %v2095 = vunpack.c.l.b16 %v1288
        %v2096 = vunpack.c.l.b16 %v1289
        %v2097 = vunpack.c.h.b16 %v1289
        %v2098 = vunpack.c.l.b16 %v1290
        %v2099 = vunpack.c.h.b16 %v1290
        %v2100 = vunpack.c.l.b16 %v1291
        %v2101 = vunpack.c.l.b16 %v1292
        %v2102 = vunpack.c.h.b16 %v1292
        %v2103 = vunpack.c.l.b16 %v1293
        %v2104 = vunpack.c.h.b16 %v1293
        %v2105 = vunpack.c.l.b16 %v1294
        %v2106 = vunpack.c.l.b16 %v1295
        %v2107 = vunpack.c.h.b16 %v1295
        %v2108 = vunpack.c.l.b16 %v1296
        %v2109 = vunpack.c.h.b16 %v1296
        %v2110 = vunpack.c.l.b16 %v1297
        %v2111 = vunpack.c.l.b16 %v1298
        %v2112 = vunpack.c.h.b16 %v1298
        %v2113 = vunpack.c.l.b16 %v1299
        %v2114 = vunpack.c.h.b16 %v1299
        %v2115 = vunpack.c.l.b16 %v1300
        %v2116 = vunpack.c.l.b16 %v1301
        %v2117 = vunpack.c.h.b16 %v1301
        %v2118 = vunpack.c.l.b16 %v1302
        %v2119 = vunpack.c.h.b16 %v1302
        %v2120 = vunpack.c.l.b16 %v1303
        %v2121 = vunpack.c.l.b16 %v1304
        %v2122 = vunpack.c.h.b16 %v1304
        %v2123 = vunpack.c.l.b16 %v1305
        %v2124 = vunpack.c.h.b16 %v1305
        %v2125 = vunpack.c.l.b16 %v1306
        %v2126 = vunpack.c.l.b16 %v1307
        %v2127 = vunpack.c.h.b16 %v1307
        %v2128 = vunpack.c.l.b16 %v1308
        %v2129 = vunpack.c.h.b16 %v1308
        %v2130 = vunpack.c.l.b16 %v1309
        %v2131 = vunpack.c.l.b16 %v1310
        %v2132 = vunpack.c.h.b16 %v1310
        %v2133 = vunpack.c.l.b16 %v1311
        %v2134 = vunpack.c.h.b16 %v1311
        %v2135 = vunpack.c.l.b16 %v1312
        %v2136 = vunpack.c.l.b16 %v1313
        %v2137 = vunpack.c.h.b16 %v1313
        %v2138 = vunpack.c.l.b16 %v1314
        %v2139 = vunpack.c.h.b16 %v1314
        %v2140 = vunpack.c.l.b16 %v1315
        %v2141 = vunpack.c.l.b16 %v1316
        %v2142 = vunpack.c.h.b16 %v1316
        %v2143 = vunpack.c.l.b16 %v1317
        %v2144 = vunpack.c.h.b16 %v1317
        %v2145 = vunpack.c.l.b16 %v1318
        %v2146 = vunpack.c.l.b16 %v1319
        %v2147 = vunpack.c.h.b16 %v1319
        %v2148 = vunpack.c.l.b16 %v1320
        %v2149 = vunpack.c.h.b16 %v1320
        %v2150 = vunpack.c.l.b16 %v1321
        %v2151 = vunpack.c.l.b16 %v1322
        %v2152 = vunpack.c.h.b16 %v1322
        %v2153 = vunpack.c.l.b16 %v1323
        %v2154 = vunpack.c.h.b16 %v1323
        %v2155 = vunpack.c.l.b16 %v1324
        %v2156 = vunpack.c.l.b16 %v1325
        %v2157 = vunpack.c.h.b16 %v1325
        %v2158 = vunpack.c.l.b16 %v1326
        %v2159 = vunpack.c.h.b16 %v1326
        %v2160 = vunpack.c.l.b16 %v1327
        %v2161 = vunpack.c.l.b16 %v1328
        %v2162 = vunpack.c.h.b16 %v1328
        %v2163 = vunpack.c.l.b16 %v1329
        %v2164 = vunpack.c.h.b16 %v1329
        %v2165 = vunpack.c.l.b16 %v1330
        %v2166 = vunpack.c.l.b16 %v1331
        %v2167 = vunpack.c.h.b16 %v1331
        %v2168 = vunpack.c.l.b16 %v1332
        %v2169 = vunpack.c.h.b16 %v1332
        %v2170 = vunpack.c.l.b16 %v1333
        %v2171 = vunpack.c.l.b16 %v1334
        %v2172 = vunpack.c.h.b16 %v1334
        %v2173 = vunpack.c.l.b16 %v1335
        %v2174 = vunpack.c.h.b16 %v1335
        %v2175 = vunpack.c.l.b16 %v1336
        %v2176 = vunpack.c.l.b16 %v1337
        %v2177 = vunpack.c.h.b16 %v1337
        %v2178 = vunpack.c.l.b16 %v1338
        %v2179 = vunpack.c.h.b16 %v1338
        %v2180 = vunpack.c.l.b16 %v1339
        %v2181 = vunpack.c.l.b16 %v1340
        %v2182 = vunpack.c.h.b16 %v1340
        %v2183 = vunpack.c.l.b16 %v1341
        %v2184 = vunpack.c.h.b16 %v1341
        %v2185 = vunpack.c.l.b16 %v1342
        %v2186 = vunpack.c.l.b16 %v1343
        %v2187 = vunpack.c.h.b16 %v1343
        %v2188 = vunpack.c.l.b16 %v1344
        %v2189 = vunpack.c.h.b16 %v1344
        %v2190 = vunpack.c.l.b16 %v1345
        %v2191 = vunpack.c.l.b16 %v1346
        %v2192 = vunpack.c.h.b16 %v1346
        %v2193 = vunpack.c.l.b16 %v1347
        %v2194 = vunpack.c.h.b16 %v1347
        %v2195 = vunpack.c.l.b16 %v1348
        %v2196 = vunpack.c.l.b16 %v1349
        %v2197 = vunpack.c.h.b16 %v1349
        %v2198 = vunpack.c.l.b16 %v1350
        %v2199 = vunpack.c.h.b16 %v1350
        %v2200 = vunpack.c.l.b16 %v1351
        %v2201 = vunpack.c.l.b16 %v1352
        %v2202 = vunpack.c.h.b16 %v1352
        %v2203 = vunpack.c.l.b16 %v1353
        %v2204 = vunpack.c.h.b16 %v1353
        %v2205 = vunpack.c.l.b16 %v1354
        %v2206 = vunpack.c.l.b16 %v1355
        %v2207 = vunpack.c.h.b16 %v1355
        %v2208 = vunpack.c.l.b16 %v1356
        %v2209 = vunpack.c.h.b16 %v1356
        %v2210 = vunpack.c.l.b16 %v1357
        %v2211 = vunpack.c.l.b16 %v1358
        %v2212 = vunpack.c.h.b16 %v1358
        %v2213 = vunpack.c.l.b16 %v1359
        %v2214 = vunpack.c.h.b16 %v1359
        %v2215 = vunpack.c.l.b16 %v1360
        %v2216 = vunpack.c.l.b16 %v1361
        %v2217 = vunpack.c.h.b16 %v1361
        %v2218 = vunpack.c.l.b16 %v1362
        %v2219 = vunpack.c.h.b16 %v1362
        %v2220 = vunpack.c.l.b16 %v1363
        %v2221 = vunpack.c.l.b16 %v1364
        %v2222 = vunpack.c.h.b16 %v1364
        %v2223 = vunpack.c.l.b16 %v1365
        %v2224 = vunpack.c.h.b16 %v1365
        %v2225 = vunpack.c.l.b16 %v1366
        %v2226 = vunpack.c.l.b16 %v1367
        %v2227 = vunpack.c.h.b16 %v1367
        %v2228 = vunpack.c.l.b16 %v1368
        %v2229 = vunpack.c.h.b16 %v1368
        %v2230 = vunpack.c.l.b16 %v1369
        %v2231 = vunpack.c.l.b16 %v1370
        %v2232 = vunpack.c.h.b16 %v1370
        %v2233 = vunpack.c.l.b16 %v1371
        %v2234 = vunpack.c.h.b16 %v1371
        %v2235 = vunpack.c.l.b16 %v1372
        %v2236 = vunpack.c.l.b16 %v1373
        %v2237 = vunpack.c.h.b16 %v1373
        %v2238 = vunpack.c.l.b16 %v1374
        %v2239 = vunpack.c.h.b16 %v1374
        %v2240 = vunpack.c.l.b16 %v1375
        %v2241 = vunpack.c.l.b16 %v1376
        %v2242 = vunpack.c.h.b16 %v1376
        %v2243 = vunpack.c.l.b16 %v1377
        %v2244 = vunpack.c.h.b16 %v1377
        %v2245 = vunpack.c.l.b16 %v1378
        %v2246 = vunpack.c.l.b16 %v1379
        %v2247 = vunpack.c.h.b16 %v1379
        %v2248 = vunpack.c.l.b16 %v1380
        %v2249 = vunpack.c.h.b16 %v1380
        %v2250 = vunpack.c.l.b16 %v1381
        %v2251 = vunpack.c.l.b16 %v1382
        %v2252 = vunpack.c.h.b16 %v1382
        %v2253 = vunpack.c.l.b16 %v1383
        %v2254 = vunpack.c.h.b16 %v1383
        %v2255 = vunpack.c.l.b16 %v1384
        %v2256 = vunpack.c.l.b16 %v1385
        %v2257 = vunpack.c.h.b16 %v1385
        %v2258 = vunpack.c.l.b16 %v1386
        %v2259 = vunpack.c.h.b16 %v1386
        %v2260 = vunpack.c.l.b16 %v1387
        %v2261 = vunpack.c.l.b16 %v1388
        %v2262 = vunpack.c.h.b16 %v1388
        %v2263 = vunpack.c.l.b16 %v1389
        %v2264 = vunpack.c.h.b16 %v1389
        %v2265 = vunpack.c.l.b16 %v1390
        %v2266 = vunpack.c.l.b16 %v1391
        %v2267 = vunpack.c.h.b16 %v1391
        %v2268 = vunpack.c.l.b16 %v1392
        %v2269 = vunpack.c.h.b16 %v1392
        %v2270 = vunpack.c.l.b16 %v1393
        %v2271 = vunpack.c.l.b16 %v1394
        %v2272 = vunpack.c.h.b16 %v1394
        %v2273 = vunpack.c.l.b16 %v1395
        %v2274 = vunpack.c.h.b16 %v1395
        %v2275 = vunpack.c.l.b16 %v1396
        %v2276 = vunpack.c.l.b16 %v1397
        %v2277 = vunpack.c.h.b16 %v1397
        %v2278 = vunpack.c.l.b16 %v1398
        %v2279 = vunpack.c.h.b16 %v1398
        %v2280 = vunpack.c.l.b16 %v1399
        %v2281 = vunpack.c.l.b16 %v1400
        %v2282 = vunpack.c.h.b16 %v1400
        %v2283 = vunpack.c.l.b16 %v1401
        %v2284 = vunpack.c.h.b16 %v1401
        %v2285 = vunpack.c.l.b16 %v1402
        %v2286 = vunpack.c.l.b16 %v1403
        %v2287 = vunpack.c.h.b16 %v1403
        %v2288 = vunpack.c.l.b16 %v1404
        %v2289 = vunpack.c.h.b16 %v1404
        %v2290 = vunpack.c.l.b16 %v1405
        %v2291 = vunpack.c.l.b16 %v1406
        %v2292 = vunpack.c.h.b16 %v1406
        %v2293 = vunpack.c.l.b16 %v1407
        %v2294 = vunpack.c.h.b16 %v1407
        %v2295 = vunpack.c.l.b16 %v1408
        %v2296 = vunpack.c.l.b16 %v1409
        %v2297 = vunpack.c.h.b16 %v1409
        %v2298 = vunpack.c.l.b16 %v1410
        %v2299 = vunpack.c.h.b16 %v1410
        %v2300 = vunpack.c.l.b16 %v1411
        %v2301 = vunpack.c.l.b16 %v1412
        %v2302 = vunpack.c.h.b16 %v1412
        %v2303 = vunpack.c.l.b16 %v1413
        %v2304 = vunpack.c.h.b16 %v1413
        %v2305 = vunpack.c.l.b16 %v1414
        %v2306 = vunpack.c.l.b16 %v1415
        %v2307 = vunpack.c.h.b16 %v1415
        %v2308 = vunpack.c.l.b16 %v1416
        %v2309 = vunpack.c.h.b16 %v1416
        %v2310 = vunpack.c.l.b16 %v1417
        %v2311 = vunpack.c.l.b16 %v1418
        %v2312 = vunpack.c.h.b16 %v1418
        %v2313 = vunpack.c.l.b16 %v1419
        %v2314 = vunpack.c.h.b16 %v1419
        %v2315 = vunpack.c.l.b16 %v1420
        %v2316 = vunpack.c.l.b16 %v1421
        %v2317 = vunpack.c.h.b16 %v1421
        %v2318 = vunpack.c.l.b16 %v1422
        %v2319 = vunpack.c.h.b16 %v1422
        %v2320 = vunpack.c.l.b16 %v1423
        %v2321 = vunpack.c.l.b16 %v1424
        %v2322 = vunpack.c.h.b16 %v1424
        %v2323 = vunpack.c.l.b16 %v1425
        %v2324 = vunpack.c.h.b16 %v1425
        %v2325 = vunpack.c.l.b16 %v1426
        %v2326 = vunpack.c.l.b16 %v1427
        %v2327 = vunpack.c.h.b16 %v1427
        %v2328 = vunpack.c.l.b16 %v1428
        %v2329 = vunpack.c.h.b16 %v1428
        %v2330 = vunpack.c.l.b16 %v1429
        %v2331 = vunpack.c.l.b16 %v1430
        %v2332 = vunpack.c.h.b16 %v1430
        %v2333 = vunpack.c.l.b16 %v1431
        %v2334 = vunpack.c.h.b16 %v1431
        %v2335 = vunpack.c.l.b16 %v1432
        %v2336 = vunpack.c.l.b16 %v1433
        %v2337 = vunpack.c.h.b16 %v1433
        %v2338 = vunpack.c.l.b16 %v1434
        %v2339 = vunpack.c.h.b16 %v1434
        %v2340 = vunpack.c.l.b16 %v1435
        %v2341 = vunpack.c.l.b16 %v1436
        %v2342 = vunpack.c.h.b16 %v1436
        %v2343 = vunpack.c.l.b16 %v1437
        %v2344 = vunpack.c.h.b16 %v1437
        %v2345 = vunpack.c.l.b16 %v1438
        %v2346 = vunpack.c.l.b16 %v1439
        %v2347 = vunpack.c.h.b16 %v1439
        %v2348 = vunpack.c.l.b16 %v1440
        %v2349 = vunpack.c.h.b16 %v1440
        %v2350 = vunpack.c.l.b16 %v1441
        %v2351 = vunpack.c.l.b16 %v1442
        %v2352 = vunpack.c.h.b16 %v1442
        %v2353 = vunpack.c.l.b16 %v1443
        %v2354 = vunpack.c.h.b16 %v1443
        %v2355 = vunpack.c.l.b16 %v1444
        %v2356 = vunpack.c.l.b16 %v1445
        %v2357 = vunpack.c.h.b16 %v1445
        %v2358 = vunpack.c.l.b16 %v1446
        %v2359 = vunpack.c.h.b16 %v1446
        %v2360 = vunpack.c.l.b16 %v1447
        %v2361 = vunpack.c.l.b16 %v1448
        %v2362 = vunpack.c.h.b16 %v1448
        %v2363 = vunpack.c.l.b16 %v1449
        %v2364 = vunpack.c.h.b16 %v1449
        %v2365 = vunpack.c.l.b16 %v1450
        %v2366 = vunpack.c.l.b16 %v1451
        %v2367 = vunpack.c.h.b16 %v1451
        %v2368 = vunpack.c.l.b16 %v1452
        %v2369 = vunpack.c.h.b16 %v1452
        %v2370 = vunpack.c.l.b16 %v1453
        %v2371 = vunpack.c.l.b16 %v1454
        %v2372 = vunpack.c.h.b16 %v1454
        %v2373 = vunpack.c.l.b16 %v1455
        %v2374 = vunpack.c.h.b16 %v1455
        %v2375 = vunpack.c.l.b16 %v1456
        %v2376 = vunpack.c.l.b16 %v1457
        %v2377 = vunpack.c.h.b16 %v1457
        %v2378 = vunpack.c.l.b16 %v1458
        %v2379 = vunpack.c.h.b16 %v1458
        %v2380 = vunpack.c.l.b16 %v1459
        %v2381 = vunpack.c.l.b16 %v1460
        %v2382 = vunpack.c.h.b16 %v1460
        %v2383 = vunpack.c.l.b16 %v1461
        %v2384 = vunpack.c.h.b16 %v1461
        %v2385 = vunpack.c.l.b16 %v1462
        %v2386 = vpack.c.b16 %v1831, %v1826
        %v2387 = vpack.c.b16 %v1832, %v1827
        %v2388 = vpack.c.b16 %v1833, %v1828
        %v2389 = vpack.c.b16 %v1834, %v1829
        %v2390 = vpack.c.b16 %v1835, %v1830
        %v2391 = vpack.c.b16 %v1841, %v1836
        %v2392 = vpack.c.b16 %v1842, %v1837
        %v2393 = vpack.c.b16 %v1843, %v1838
        %v2394 = vpack.c.b16 %v1844, %v1839
        %v2395 = vpack.c.b16 %v1845, %v1840
        %v2396 = vpack.c.b16 %v1851, %v1846
        %v2397 = vpack.c.b16 %v1852, %v1847
        %v2398 = vpack.c.b16 %v1853, %v1848
        %v2399 = vpack.c.b16 %v1854, %v1849
        %v2400 = vpack.c.b16 %v1855, %v1850
        %v2401 = vpack.c.b16 %v1861, %v1856
        %v2402 = vpack.c.b16 %v1862, %v1857
        %v2403 = vpack.c.b16 %v1863, %v1858
        %v2404 = vpack.c.b16 %v1864, %v1859
        %v2405 = vpack.c.b16 %v1865, %v1860
        %v2406 = vpack.c.b16 %v1871, %v1866
        %v2407 = vpack.c.b16 %v1872, %v1867
        %v2408 = vpack.c.b16 %v1873, %v1868
        %v2409 = vpack.c.b16 %v1874, %v1869
        %v2410 = vpack.c.b16 %v1875, %v1870
        %v2411 = vpack.c.b16 %v1881, %v1876
        %v2412 = vpack.c.b16 %v1882, %v1877
        %v2413 = vpack.c.b16 %v1883, %v1878
        %v2414 = vpack.c.b16 %v1884, %v1879
        %v2415 = vpack.c.b16 %v1885, %v1880
        %v2416 = vpack.c.b16 %v1891, %v1886
        %v2417 = vpack.c.b16 %v1892, %v1887
        %v2418 = vpack.c.b16 %v1893, %v1888
        %v2419 = vpack.c.b16 %v1894, %v1889
        %v2420 = vpack.c.b16 %v1895, %v1890
        %v2421 = vpack.c.b16 %v1901, %v1896
        %v2422 = vpack.c.b16 %v1902, %v1897
        %v2423 = vpack.c.b16 %v1903, %v1898
        %v2424 = vpack.c.b16 %v1904, %v1899
        %v2425 = vpack.c.b16 %v1905, %v1900
        %v2426 = vpack.c.b16 %v1911, %v1906
        %v2427 = vpack.c.b16 %v1912, %v1907
        %v2428 = vpack.c.b16 %v1913, %v1908
        %v2429 = vpack.c.b16 %v1914, %v1909
        %v2430 = vpack.c.b16 %v1915, %v1910
        %v2431 = vpack.c.b16 %v1921, %v1916
        %v2432 = vpack.c.b16 %v1922, %v1917
        %v2433 = vpack.c.b16 %v1923, %v1918
        %v2434 = vpack.c.b16 %v1924, %v1919
        %v2435 = vpack.c.b16 %v1925, %v1920
        %v2436 = vpack.c.b16 %v1931, %v1926
        %v2437 = vpack.c.b16 %v1932, %v1927
        %v2438 = vpack.c.b16 %v1933, %v1928
        %v2439 = vpack.c.b16 %v1934, %v1929
        %v2440 = vpack.c.b16 %v1935, %v1930
        %v2441 = vpack.c.b16 %v1941, %v1936
        %v2442 = vpack.c.b16 %v1942, %v1937
        %v2443 = vpack.c.b16 %v1943, %v1938
        %v2444 = vpack.c.b16 %v1944, %v1939
        %v2445 = vpack.c.b16 %v1945, %v1940
        %v2446 = vpack.c.b16 %v1951, %v1946
        %v2447 = vpack.c.b16 %v1952, %v1947
        %v2448 = vpack.c.b16 %v1953, %v1948
        %v2449 = vpack.c.b16 %v1954, %v1949
        %v2450 = vpack.c.b16 %v1955, %v1950
        %v2451 = vpack.c.b16 %v1961, %v1956
        %v2452 = vpack.c.b16 %v1962, %v1957
        %v2453 = vpack.c.b16 %v1963, %v1958
        %v2454 = vpack.c.b16 %v1964, %v1959
        %v2455 = vpack.c.b16 %v1965, %v1960
        %v2456 = vpack.c.b16 %v1971, %v1966
        %v2457 = vpack.c.b16 %v1972, %v1967
        %v2458 = vpack.c.b16 %v1973, %v1968
        %v2459 = vpack.c.b16 %v1974, %v1969
        %v2460 = vpack.c.b16 %v1975, %v1970
        %v2461 = vpack.c.b16 %v1981, %v1976
        %v2462 = vpack.c.b16 %v1982, %v1977
        %v2463 = vpack.c.b16 %v1983, %v1978
        %v2464 = vpack.c.b16 %v1984, %v1979
        %v2465 = vpack.c.b16 %v1985, %v1980
        %v2466 = vpack.c.b16 %v1991, %v1986
        %v2467 = vpack.c.b16 %v1992, %v1987
        %v2468 = vpack.c.b16 %v1993, %v1988
        %v2469 = vpack.c.b16 %v1994, %v1989
        %v2470 = vpack.c.b16 %v1995, %v1990
        %v2471 = vpack.c.b16 %v2001, %v1996
        %v2472 = vpack.c.b16 %v2002, %v1997
        %v2473 = vpack.c.b16 %v2003, %v1998
        %v2474 = vpack.c.b16 %v2004, %v1999
        %v2475 = vpack.c.b16 %v2005, %v2000
        %v2476 = vpack.c.b16 %v2011, %v2006
        %v2477 = vpack.c.b16 %v2012, %v2007
        %v2478 = vpack.c.b16 %v2013, %v2008
        %v2479 = vpack.c.b16 %v2014, %v2009
        %v2480 = vpack.c.b16 %v2015, %v2010
        %v2481 = vpack.c.b16 %v2021, %v2016
        %v2482 = vpack.c.b16 %v2022, %v2017
        %v2483 = vpack.c.b16 %v2023, %v2018
        %v2484 = vpack.c.b16 %v2024, %v2019
        %v2485 = vpack.c.b16 %v2025, %v2020
        %v2486 = vpack.c.b16 %v2031, %v2026
        %v2487 = vpack.c.b16 %v2032, %v2027
        %v2488 = vpack.c.b16 %v2033, %v2028
        %v2489 = vpack.c.b16 %v2034, %v2029
        %v2490 = vpack.c.b16 %v2035, %v2030
        %v2491 = vpack.c.b16 %v2041, %v2036
        %v2492 = vpack.c.b16 %v2042, %v2037
        %v2493 = vpack.c.b16 %v2043, %v2038
        %v2494 = vpack.c.b16 %v2044, %v2039
        %v2495 = vpack.c.b16 %v2045, %v2040
        %v2496 = vpack.c.b16 %v2051, %v2046
        %v2497 = vpack.c.b16 %v2052, %v2047
        %v2498 = vpack.c.b16 %v2053, %v2048
        %v2499 = vpack.c.b16 %v2054, %v2049
        %v2500 = vpack.c.b16 %v2055, %v2050
        %v2501 = vpack.c.b16 %v2061, %v2056
        %v2502 = vpack.c.b16 %v2062, %v2057
        %v2503 = vpack.c.b16 %v2063, %v2058
        %v2504 = vpack.c.b16 %v2064, %v2059
        %v2505 = vpack.c.b16 %v2065, %v2060
        %v2506 = vpack.c.b16 %v2071, %v2066
        %v2507 = vpack.c.b16 %v2072, %v2067
        %v2508 = vpack.c.b16 %v2073, %v2068
        %v2509 = vpack.c.b16 %v2074, %v2069
        %v2510 = vpack.c.b16 %v2075, %v2070
        %v2511 = vpack.c.b16 %v2081, %v2076
        %v2512 = vpack.c.b16 %v2082, %v2077
        %v2513 = vpack.c.b16 %v2083, %v2078
        %v2514 = vpack.c.b16 %v2084, %v2079
        %v2515 = vpack.c.b16 %v2085, %v2080
        %v2516 = vpack.c.b16 %v2091, %v2086
        %v2517 = vpack.c.b16 %v2092, %v2087
        %v2518 = vpack.c.b16 %v2093, %v2088
        %v2519 = vpack.c.b16 %v2094, %v2089
        %v2520 = vpack.c.b16 %v2095, %v2090
        %v2521 = vpack.c.b16 %v2101, %v2096
        %v2522 = vpack.c.b16 %v2102, %v2097
        %v2523 = vpack.c.b16 %v2103, %v2098
        %v2524 = vpack.c.b16 %v2104, %v2099
        %v2525 = vpack.c.b16 %v2105, %v2100
        %v2526 = vpack.c.b16 %v2111, %v2106
        %v2527 = vpack.c.b16 %v2112, %v2107
        %v2528 = vpack.c.b16 %v2113, %v2108
        %v2529 = vpack.c.b16 %v2114, %v2109
        %v2530 = vpack.c.b16 %v2115, %v2110
        %v2531 = vpack.c.b16 %v2121, %v2116
        %v2532 = vpack.c.b16 %v2122, %v2117
        %v2533 = vpack.c.b16 %v2123, %v2118
        %v2534 = vpack.c.b16 %v2124, %v2119
        %v2535 = vpack.c.b16 %v2125, %v2120
        %v2536 = vpack.c.b16 %v2131, %v2126
        %v2537 = vpack.c.b16 %v2132, %v2127
        %v2538 = vpack.c.b16 %v2133, %v2128
        %v2539 = vpack.c.b16 %v2134, %v2129
        %v2540 = vpack.c.b16 %v2135, %v2130
        %v2541 = vpack.c.b16 %v2141, %v2136
        %v2542 = vpack.c.b16 %v2142, %v2137
        %v2543 = vpack.c.b16 %v2143, %v2138
        %v2544 = vpack.c.b16 %v2144, %v2139
        %v2545 = vpack.c.b16 %v2145, %v2140
        %v2546 = vpack.c.b16 %v2151, %v2146
        %v2547 = vpack.c.b16 %v2152, %v2147
        %v2548 = vpack.c.b16 %v2153, %v2148
        %v2549 = vpack.c.b16 %v2154, %v2149
        %v2550 = vpack.c.b16 %v2155, %v2150
        %v2551 = vpack.c.b16 %v2161, %v2156
        %v2552 = vpack.c.b16 %v2162, %v2157
        %v2553 = vpack.c.b16 %v2163, %v2158
        %v2554 = vpack.c.b16 %v2164, %v2159
        %v2555 = vpack.c.b16 %v2165, %v2160
        %v2556 = vpack.c.b16 %v2171, %v2166
        %v2557 = vpack.c.b16 %v2172, %v2167
        %v2558 = vpack.c.b16 %v2173, %v2168
        %v2559 = vpack.c.b16 %v2174, %v2169
        %v2560 = vpack.c.b16 %v2175, %v2170
        %v2561 = vpack.c.b16 %v2181, %v2176
        %v2562 = vpack.c.b16 %v2182, %v2177
        %v2563 = vpack.c.b16 %v2183, %v2178
        %v2564 = vpack.c.b16 %v2184, %v2179
        %v2565 = vpack.c.b16 %v2185, %v2180
        %v2566 = vpack.c.b16 %v2191, %v2186
        %v2567 = vpack.c.b16 %v2192, %v2187
        %v2568 = vpack.c.b16 %v2193, %v2188
        %v2569 = vpack.c.b16 %v2194, %v2189
        %v2570 = vpack.c.b16 %v2195, %v2190
        %v2571 = vpack.c.b16 %v2201, %v2196
        %v2572 = vpack.c.b16 %v2202, %v2197
        %v2573 = vpack.c.b16 %v2203, %v2198
        %v2574 = vpack.c.b16 %v2204, %v2199
        %v2575 = vpack.c.b16 %v2205, %v2200
        %v2576 = vpack.c.b16 %v2211, %v2206
        %v2577 = vpack.c.b16 %v2212, %v2207
        %v2578 = vpack.c.b16 %v2213, %v2208
        %v2579 = vpack.c.b16 %v2214, %v2209
        %v2580 = vpack.c.b16 %v2215, %v2210
        %v2581 = vpack.c.b16 %v2221, %v2216
        %v2582 = vpack.c.b16 %v2222, %v2217
        %v2583 = vpack.c.b16 %v2223, %v2218
        %v2584 = vpack.c.b16 %v2224, %v2219
        %v2585 = vpack.c.b16 %v2225, %v2220
        %v2586 = vpack.c.b16 %v2231, %v2226
        %v2587 = vpack.c.b16 %v2232, %v2227
        %v2588 = vpack.c.b16 %v2233, %v2228
        %v2589 = vpack.c.b16 %v2234, %v2229
        %v2590 = vpack.c.b16 %v2235, %v2230
        %v2591 = vpack.c.b16 %v2241, %v2236
        %v2592 = vpack.c.b16 %v2242, %v2237
        %v2593 = vpack.c.b16 %v2243, %v2238
        %v2594 = vpack.c.b16 %v2244, %v2239
        %v2595 = vpack.c.b16 %v2245, %v2240
        %v2596 = vpack.c.b16 %v2251, %v2246
        %v2597 = vpack.c.b16 %v2252, %v2247
        %v2598 = vpack.c.b16 %v2253, %v2248
        %v2599 = vpack.c.b16 %v2254, %v2249
        %v2600 = vpack.c.b16 %v2255, %v2250
        %v2601 = vpack.c.b16 %v2261, %v2256
        %v2602 = vpack.c.b16 %v2262, %v2257
        %v2603 = vpack.c.b16 %v2263, %v2258
        %v2604 = vpack.c.b16 %v2264, %v2259
        %v2605 = vpack.c.b16 %v2265, %v2260
        %v2606 = vpack.c.b16 %v2271, %v2266
        %v2607 = vpack.c.b16 %v2272, %v2267
        %v2608 = vpack.c.b16 %v2273, %v2268
        %v2609 = vpack.c.b16 %v2274, %v2269
        %v2610 = vpack.c.b16 %v2275, %v2270
        %v2611 = vpack.c.b16 %v2281, %v2276
        %v2612 = vpack.c.b16 %v2282, %v2277
        %v2613 = vpack.c.b16 %v2283, %v2278
        %v2614 = vpack.c.b16 %v2284, %v2279
        %v2615 = vpack.c.b16 %v2285, %v2280
        %v2616 = vpack.c.b16 %v2291, %v2286
        %v2617 = vpack.c.b16 %v2292, %v2287
        %v2618 = vpack.c.b16 %v2293, %v2288
        %v2619 = vpack.c.b16 %v2294, %v2289
        %v2620 = vpack.c.b16 %v2295, %v2290
        %v2621 = vpack.c.b16 %v2301, %v2296
        %v2622 = vpack.c.b16 %v2302, %v2297
        %v2623 = vpack.c.b16 %v2303, %v2298
        %v2624 = vpack.c.b16 %v2304, %v2299
        %v2625 = vpack.c.b16 %v2305, %v2300
        %v2626 = vpack.c.b16 %v2311, %v2306
        %v2627 = vpack.c.b16 %v2312, %v2307
        %v2628 = vpack.c.b16 %v2313, %v2308
        %v2629 = vpack.c.b16 %v2314, %v2309
        %v2630 = vpack.c.b16 %v2315, %v2310
        %v2631 = vpack.c.b16 %v2321, %v2316
        %v2632 = vpack.c.b16 %v2322, %v2317
        %v2633 = vpack.c.b16 %v2323, %v2318
        %v2634 = vpack.c.b16 %v2324, %v2319
        %v2635 = vpack.c.b16 %v2325, %v2320
        %v2636 = vpack.c.b16 %v2331, %v2326
        %v2637 = vpack.c.b16 %v2332, %v2327
        %v2638 = vpack.c.b16 %v2333, %v2328
        %v2639 = vpack.c.b16 %v2334, %v2329
        %v2640 = vpack.c.b16 %v2335, %v2330
        %v2641 = vpack.c.b16 %v2341, %v2336
        %v2642 = vpack.c.b16 %v2342, %v2337
        %v2643 = vpack.c.b16 %v2343, %v2338
        %v2644 = vpack.c.b16 %v2344, %v2339
        %v2645 = vpack.c.b16 %v2345, %v2340
        %v2646 = vpack.c.b16 %v2351, %v2346
        %v2647 = vpack.c.b16 %v2352, %v2347
        %v2648 = vpack.c.b16 %v2353, %v2348
        %v2649 = vpack.c.b16 %v2354, %v2349
        %v2650 = vpack.c.b16 %v2355, %v2350
        %v2651 = vpack.c.b16 %v2361, %v2356
        %v2652 = vpack.c.b16 %v2362, %v2357
        %v2653 = vpack.c.b16 %v2363, %v2358
        %v2654 = vpack.c.b16 %v2364, %v2359
        %v2655 = vpack.c.b16 %v2365, %v2360
        %v2656 = vpack.c.b16 %v2371, %v2366
        %v2657 = vpack.c.b16 %v2372, %v2367
        %v2658 = vpack.c.b16 %v2373, %v2368
        %v2659 = vpack.c.b16 %v2374, %v2369
        %v2660 = vpack.c.b16 %v2375, %v2370
        %v2661 = vpack.c.b16 %v2381, %v2376
        %v2662 = vpack.c.b16 %v2382, %v2377
        %v2663 = vpack.c.b16 %v2383, %v2378
        %v2664 = vpack.c.b16 %v2384, %v2379
        %v2665 = vpack.c.b16 %v2385, %v2380
        %2946 = vmatprep.subr.bf16.mxu0 %v2387
        %2947 = vmatpush1.bf16.msra.mxu0 %v2386
        %2948 = vmatprep.subr.bf16.mxu0 %v2392
        %2949 = vmatpush1.bf16.msra.mxu0 %v2391
        %2950 = vmatprep.subr.bf16.mxu0 %v2397
        %2951 = vmatpush1.bf16.msra.mxu0 %v2396
        %2952 = vmatprep.subr.bf16.mxu0 %v2402
        %2953 = vmatpush1.bf16.msra.mxu0 %v2401
        %2954 = vmatprep.subr.bf16.mxu0 %v2407
        %2955 = vmatpush1.bf16.msra.mxu0 %v2406
        %2956 = vmatprep.subr.bf16.mxu0 %v2412
        %2957 = vmatpush1.bf16.msra.mxu0 %v2411
        %2958 = vmatprep.subr.bf16.mxu0 %v2417
        %2959 = vmatpush1.bf16.msra.mxu0 %v2416
        %2960 = vmatprep.subr.bf16.mxu0 %v2422
        %2961 = vmatpush1.bf16.msra.mxu0 %v2421
        %2962 = vmatprep.subr.bf16.mxu0 %v2427
        %2963 = vmatpush1.bf16.msra.mxu0 %v2426
        %2964 = vmatprep.subr.bf16.mxu0 %v2432
        %2965 = vmatpush1.bf16.msra.mxu0 %v2431
        %2966 = vmatprep.subr.bf16.mxu0 %v2437
        %2967 = vmatpush1.bf16.msra.mxu0 %v2436
        %2968 = vmatprep.subr.bf16.mxu0 %v2442
        %2969 = vmatpush1.bf16.msra.mxu0 %v2441
        %2970 = vmatprep.subr.bf16.mxu0 %v2447
        %2971 = vmatpush1.bf16.msra.mxu0 %v2446
        %2972 = vmatprep.subr.bf16.mxu0 %v2452
        %2973 = vmatpush1.bf16.msra.mxu0 %v2451
        %2974 = vmatprep.subr.bf16.mxu0 %v2457
        %2975 = vmatpush1.bf16.msra.mxu0 %v2456
        %2976 = vmatprep.subr.bf16.mxu0 %v2462
        %2977 = vmatpush1.bf16.msra.mxu0 %v2461
        %2978 = vmatprep.mubr.bf16.mxu0 %v1121
        %2979 = vmatmul.mubr.bf16.gmra.mrb[0].mxu0 %v1120
        %v2980 = vpop.f32.mrb[0].mxu0
        %v2981 = vadd.f32 %v1468, %v2980
        %v2982 = vpop.f32.mrb[0].mxu0
        %v2983 = vadd.f32 %v1472, %v2982
        %v2984 = vpop.f32.mrb[0].mxu0
        %v2985 = vpop.f32.mrb[0].mxu0
        %2986 = vdwg.mxu0
        %2987 = vmatprep.subr.bf16.mxu0 %v2467
        %2988 = vmatpush1.bf16.msra.mxu0 %v2466
        %2989 = vmatprep.subr.bf16.mxu0 %v2472
        %2990 = vmatpush1.bf16.msra.mxu0 %v2471
        %2991 = vmatprep.subr.bf16.mxu0 %v2477
        %2992 = vmatpush1.bf16.msra.mxu0 %v2476
        %2993 = vmatprep.subr.bf16.mxu0 %v2482
        %2994 = vmatpush1.bf16.msra.mxu0 %v2481
        %2995 = vmatprep.subr.bf16.mxu0 %v2487
        %2996 = vmatpush1.bf16.msra.mxu0 %v2486
        %2997 = vmatprep.subr.bf16.mxu0 %v2492
        %2998 = vmatpush1.bf16.msra.mxu0 %v2491
        %2999 = vmatprep.subr.bf16.mxu0 %v2497
        %3000 = vmatpush1.bf16.msra.mxu0 %v2496
        %3001 = vmatprep.subr.bf16.mxu0 %v2502
        %3002 = vmatpush1.bf16.msra.mxu0 %v2501
        %3003 = vmatprep.subr.bf16.mxu0 %v2507
        %3004 = vmatpush1.bf16.msra.mxu0 %v2506
        %3005 = vmatprep.subr.bf16.mxu0 %v2512
        %3006 = vmatpush1.bf16.msra.mxu0 %v2511
        %3007 = vmatprep.subr.bf16.mxu0 %v2517
        %3008 = vmatpush1.bf16.msra.mxu0 %v2516
        %3009 = vmatprep.subr.bf16.mxu0 %v2522
        %3010 = vmatpush1.bf16.msra.mxu0 %v2521
        %3011 = vmatprep.subr.bf16.mxu0 %v2527
        %3012 = vmatpush1.bf16.msra.mxu0 %v2526
        %3013 = vmatprep.subr.bf16.mxu0 %v2532
        %3014 = vmatpush1.bf16.msra.mxu0 %v2531
        %3015 = vmatprep.subr.bf16.mxu0 %v2537
        %3016 = vmatpush1.bf16.msra.mxu0 %v2536
        %3017 = vmatprep.subr.bf16.mxu0 %v2542
        %3018 = vmatpush1.bf16.msra.mxu0 %v2541
        %3019 = vmatprep.mubr.bf16.mxu0 %v1123
        %3020 = vmatmul.mubr.bf16.gmra.mrb[0].mxu0 %v1122
        %v3021 = vpop.f32.mrb[0].mxu0
        %v3022 = vadd.f32 %v2981, %v3021
        %v3023 = vpop.f32.mrb[0].mxu0
        %v3024 = vadd.f32 %v2983, %v3023
        %v3025 = vpop.f32.mrb[0].mxu0
        %v3026 = vpop.f32.mrb[0].mxu0
        %3027 = vdwg.mxu0
        %3028 = vmatprep.subr.bf16.mxu0 %v2547
        %3029 = vmatpush1.bf16.msra.mxu0 %v2546
        %3030 = vmatprep.subr.bf16.mxu0 %v2552
        %3031 = vmatpush1.bf16.msra.mxu0 %v2551
        %3032 = vmatprep.subr.bf16.mxu0 %v2557
        %3033 = vmatpush1.bf16.msra.mxu0 %v2556
        %3034 = vmatprep.subr.bf16.mxu0 %v2562
        %3035 = vmatpush1.bf16.msra.mxu0 %v2561
        %3036 = vmatprep.subr.bf16.mxu0 %v2567
        %3037 = vmatpush1.bf16.msra.mxu0 %v2566
        %3038 = vmatprep.subr.bf16.mxu0 %v2572
        %3039 = vmatpush1.bf16.msra.mxu0 %v2571
        %3040 = vmatprep.subr.bf16.mxu0 %v2577
        %3041 = vmatpush1.bf16.msra.mxu0 %v2576
        %3042 = vmatprep.subr.bf16.mxu0 %v2582
        %3043 = vmatpush1.bf16.msra.mxu0 %v2581
        %3044 = vmatprep.subr.bf16.mxu0 %v2587
        %3045 = vmatpush1.bf16.msra.mxu0 %v2586
        %3046 = vmatprep.subr.bf16.mxu0 %v2592
        %3047 = vmatpush1.bf16.msra.mxu0 %v2591
        %3048 = vmatprep.subr.bf16.mxu0 %v2597
        %3049 = vmatpush1.bf16.msra.mxu0 %v2596
        %3050 = vmatprep.subr.bf16.mxu0 %v2602
        %3051 = vmatpush1.bf16.msra.mxu0 %v2601
        %3052 = vmatprep.subr.bf16.mxu0 %v2607
        %3053 = vmatpush1.bf16.msra.mxu0 %v2606
        %3054 = vmatprep.subr.bf16.mxu0 %v2612
        %3055 = vmatpush1.bf16.msra.mxu0 %v2611
        %3056 = vmatprep.subr.bf16.mxu0 %v2617
        %3057 = vmatpush1.bf16.msra.mxu0 %v2616
        %3058 = vmatprep.subr.bf16.mxu0 %v2622
        %3059 = vmatpush1.bf16.msra.mxu0 %v2621
        %3060 = vmatprep.mubr.bf16.mxu0 %v1125
        %3061 = vmatmul.mubr.bf16.gmra.mrb[0].mxu0 %v1124
        %v3062 = vpop.f32.mrb[0].mxu0
        %v3063 = vadd.f32 %v3022, %v3062
        %v3064 = vpop.f32.mrb[0].mxu0
        %v3065 = vadd.f32 %v3024, %v3064
        %v3066 = vpop.f32.mrb[0].mxu0
        %v3067 = vpop.f32.mrb[0].mxu0
        %3068 = vdwg.mxu0
        %3069 = vmatprep.subr.bf16.mxu0 %v2627
        %3070 = vmatpush1.bf16.msra.mxu0 %v2626
        %3071 = vmatprep.subr.bf16.mxu0 %v2632
        %3072 = vmatpush1.bf16.msra.mxu0 %v2631
        %3073 = vmatprep.subr.bf16.mxu0 %v2637
        %3074 = vmatpush1.bf16.msra.mxu0 %v2636
        %3075 = vmatprep.subr.bf16.mxu0 %v2642
        %3076 = vmatpush1.bf16.msra.mxu0 %v2641
        %3077 = vmatprep.subr.bf16.mxu0 %v2647
        %3078 = vmatpush1.bf16.msra.mxu0 %v2646
        %3079 = vmatprep.subr.bf16.mxu0 %v2652
        %3080 = vmatpush1.bf16.msra.mxu0 %v2651
        %3081 = vmatprep.subr.bf16.mxu0 %v2657
        %3082 = vmatpush1.bf16.msra.mxu0 %v2656
        %3083 = vmatprep.subr.bf16.mxu0 %v2662
        %3084 = vmatpush1.bf16.msra.mxu0 %v2661
        %3085 = vmatprep.subr.bf16.mxu0 0
        %3086 = vmatpush1.bf16.msra.mxu0 0
        %3087 = vmatprep.subr.bf16.mxu0 0
        %3088 = vmatpush1.bf16.msra.mxu0 0
        %3089 = vmatprep.subr.bf16.mxu0 0
        %3090 = vmatpush1.bf16.msra.mxu0 0
        %3091 = vmatprep.subr.bf16.mxu0 0
        %3092 = vmatpush1.bf16.msra.mxu0 0
        %3093 = vmatprep.subr.bf16.mxu0 0
        %3094 = vmatpush1.bf16.msra.mxu0 0
        %3095 = vmatprep.subr.bf16.mxu0 0
        %3096 = vmatpush1.bf16.msra.mxu0 0
        %3097 = vmatprep.subr.bf16.mxu0 0
        %3098 = vmatpush1.bf16.msra.mxu0 0
        %3099 = vmatprep.subr.bf16.mxu0 0
        %3100 = vmatpush1.bf16.msra.mxu0 0
        %3101 = vmatprep.mubr.bf16.mxu0 0
        %3102 = vmatmul.mubr.bf16.gmra.mrb[0].mxu0 %v1126
        %v3103 = vpop.f32.mrb[0].mxu0
        %v3104 = vadd.f32 %v3063, %v3103
        %v3105 = vpop.f32.mrb[0].mxu0
        %v3106 = vadd.f32 %v3065, %v3105
        %v3107 = vpop.f32.mrb[0].mxu0
        %v3108 = vpop.f32.mrb[0].mxu0
        %3109 = vdwg.mxu0
        %3110 = vmatprep.subr.bf16.mxu0 %v2389
        %3111 = vmatpush1.bf16.msra.mxu0 %v2388
        %3112 = vmatprep.subr.bf16.mxu0 %v2394
        %3113 = vmatpush1.bf16.msra.mxu0 %v2393
        %3114 = vmatprep.subr.bf16.mxu0 %v2399
        %3115 = vmatpush1.bf16.msra.mxu0 %v2398
        %3116 = vmatprep.subr.bf16.mxu0 %v2404
        %3117 = vmatpush1.bf16.msra.mxu0 %v2403
        %3118 = vmatprep.subr.bf16.mxu0 %v2409
        %3119 = vmatpush1.bf16.msra.mxu0 %v2408
        %3120 = vmatprep.subr.bf16.mxu0 %v2414
        %3121 = vmatpush1.bf16.msra.mxu0 %v2413
        %3122 = vmatprep.subr.bf16.mxu0 %v2419
        %3123 = vmatpush1.bf16.msra.mxu0 %v2418
        %3124 = vmatprep.subr.bf16.mxu0 %v2424
        %3125 = vmatpush1.bf16.msra.mxu0 %v2423
        %3126 = vmatprep.subr.bf16.mxu0 %v2429
        %3127 = vmatpush1.bf16.msra.mxu0 %v2428
        %3128 = vmatprep.subr.bf16.mxu0 %v2434
        %3129 = vmatpush1.bf16.msra.mxu0 %v2433
        %3130 = vmatprep.subr.bf16.mxu0 %v2439
        %3131 = vmatpush1.bf16.msra.mxu0 %v2438
        %3132 = vmatprep.subr.bf16.mxu0 %v2444
        %3133 = vmatpush1.bf16.msra.mxu0 %v2443
        %3134 = vmatprep.subr.bf16.mxu0 %v2449
        %3135 = vmatpush1.bf16.msra.mxu0 %v2448
        %3136 = vmatprep.subr.bf16.mxu0 %v2454
        %3137 = vmatpush1.bf16.msra.mxu0 %v2453
        %3138 = vmatprep.subr.bf16.mxu0 %v2459
        %3139 = vmatpush1.bf16.msra.mxu0 %v2458
        %3140 = vmatprep.subr.bf16.mxu0 %v2464
        %3141 = vmatpush1.bf16.msra.mxu0 %v2463
        %3142 = vmatprep.mubr.bf16.mxu0 %v1121
        %3143 = vmatmul.mubr.bf16.gmra.mrb[0].mxu0 %v1120
        %v3144 = vpop.f32.mrb[0].mxu0
        %v3145 = vadd.f32 %v1476, %v3144
        %v3146 = vpop.f32.mrb[0].mxu0
        %v3147 = vadd.f32 %v1480, %v3146
        %v3148 = vpop.f32.mrb[0].mxu0
        %v3149 = vpop.f32.mrb[0].mxu0
        %3150 = vdwg.mxu0
        %3151 = vmatprep.subr.bf16.mxu0 %v2469
        %3152 = vmatpush1.bf16.msra.mxu0 %v2468
        %3153 = vmatprep.subr.bf16.mxu0 %v2474
        %3154 = vmatpush1.bf16.msra.mxu0 %v2473
        %3155 = vmatprep.subr.bf16.mxu0 %v2479
        %3156 = vmatpush1.bf16.msra.mxu0 %v2478
        %3157 = vmatprep.subr.bf16.mxu0 %v2484
        %3158 = vmatpush1.bf16.msra.mxu0 %v2483
        %3159 = vmatprep.subr.bf16.mxu0 %v2489
        %3160 = vmatpush1.bf16.msra.mxu0 %v2488
        %3161 = vmatprep.subr.bf16.mxu0 %v2494
        %3162 = vmatpush1.bf16.msra.mxu0 %v2493
        %3163 = vmatprep.subr.bf16.mxu0 %v2499
        %3164 = vmatpush1.bf16.msra.mxu0 %v2498
        %3165 = vmatprep.subr.bf16.mxu0 %v2504
        %3166 = vmatpush1.bf16.msra.mxu0 %v2503
        %3167 = vmatprep.subr.bf16.mxu0 %v2509
        %3168 = vmatpush1.bf16.msra.mxu0 %v2508
        %3169 = vmatprep.subr.bf16.mxu0 %v2514
        %3170 = vmatpush1.bf16.msra.mxu0 %v2513
        %3171 = vmatprep.subr.bf16.mxu0 %v2519
        %3172 = vmatpush1.bf16.msra.mxu0 %v2518
        %3173 = vmatprep.subr.bf16.mxu0 %v2524
        %3174 = vmatpush1.bf16.msra.mxu0 %v2523
        %3175 = vmatprep.subr.bf16.mxu0 %v2529
        %3176 = vmatpush1.bf16.msra.mxu0 %v2528
        %3177 = vmatprep.subr.bf16.mxu0 %v2534
        %3178 = vmatpush1.bf16.msra.mxu0 %v2533
        %3179 = vmatprep.subr.bf16.mxu0 %v2539
        %3180 = vmatpush1.bf16.msra.mxu0 %v2538
        %3181 = vmatprep.subr.bf16.mxu0 %v2544
        %3182 = vmatpush1.bf16.msra.mxu0 %v2543
        %3183 = vmatprep.mubr.bf16.mxu0 %v1123
        %3184 = vmatmul.mubr.bf16.gmra.mrb[0].mxu0 %v1122
        %v3185 = vpop.f32.mrb[0].mxu0
        %v3186 = vadd.f32 %v3145, %v3185
        %v3187 = vpop.f32.mrb[0].mxu0
        %v3188 = vadd.f32 %v3147, %v3187
        %v3189 = vpop.f32.mrb[0].mxu0
        %v3190 = vpop.f32.mrb[0].mxu0
        %3191 = vdwg.mxu0
        %3192 = vmatprep.subr.bf16.mxu0 %v2549
        %3193 = vmatpush1.bf16.msra.mxu0 %v2548
        %3194 = vmatprep.subr.bf16.mxu0 %v2554
        %3195 = vmatpush1.bf16.msra.mxu0 %v2553
        %3196 = vmatprep.subr.bf16.mxu0 %v2559
        %3197 = vmatpush1.bf16.msra.mxu0 %v2558
        %3198 = vmatprep.subr.bf16.mxu0 %v2564
        %3199 = vmatpush1.bf16.msra.mxu0 %v2563
        %3200 = vmatprep.subr.bf16.mxu0 %v2569
        %3201 = vmatpush1.bf16.msra.mxu0 %v2568
        %3202 = vmatprep.subr.bf16.mxu0 %v2574
        %3203 = vmatpush1.bf16.msra.mxu0 %v2573
        %3204 = vmatprep.subr.bf16.mxu0 %v2579
        %3205 = vmatpush1.bf16.msra.mxu0 %v2578
        %3206 = vmatprep.subr.bf16.mxu0 %v2584
        %3207 = vmatpush1.bf16.msra.mxu0 %v2583
        %3208 = vmatprep.subr.bf16.mxu0 %v2589
        %3209 = vmatpush1.bf16.msra.mxu0 %v2588
        %3210 = vmatprep.subr.bf16.mxu0 %v2594
        %3211 = vmatpush1.bf16.msra.mxu0 %v2593
        %3212 = vmatprep.subr.bf16.mxu0 %v2599
        %3213 = vmatpush1.bf16.msra.mxu0 %v2598
        %3214 = vmatprep.subr.bf16.mxu0 %v2604
        %3215 = vmatpush1.bf16.msra.mxu0 %v2603
        %3216 = vmatprep.subr.bf16.mxu0 %v2609
        %3217 = vmatpush1.bf16.msra.mxu0 %v2608
        %3218 = vmatprep.subr.bf16.mxu0 %v2614
        %3219 = vmatpush1.bf16.msra.mxu0 %v2613
        %3220 = vmatprep.subr.bf16.mxu0 %v2619
        %3221 = vmatpush1.bf16.msra.mxu0 %v2618
        %3222 = vmatprep.subr.bf16.mxu0 %v2624
        %3223 = vmatpush1.bf16.msra.mxu0 %v2623
        %3224 = vmatprep.mubr.bf16.mxu0 %v1125
        %3225 = vmatmul.mubr.bf16.gmra.mrb[0].mxu0 %v1124
        %v3226 = vpop.f32.mrb[0].mxu0
        %v3227 = vadd.f32 %v3186, %v3226
        %v3228 = vpop.f32.mrb[0].mxu0
        %v3229 = vadd.f32 %v3188, %v3228
        %v3230 = vpop.f32.mrb[0].mxu0
        %v3231 = vpop.f32.mrb[0].mxu0
        %3232 = vdwg.mxu0
        %3233 = vmatprep.subr.bf16.mxu0 %v2629
        %3234 = vmatpush1.bf16.msra.mxu0 %v2628
        %3235 = vmatprep.subr.bf16.mxu0 %v2634
        %3236 = vmatpush1.bf16.msra.mxu0 %v2633
        %3237 = vmatprep.subr.bf16.mxu0 %v2639
        %3238 = vmatpush1.bf16.msra.mxu0 %v2638
        %3239 = vmatprep.subr.bf16.mxu0 %v2644
        %3240 = vmatpush1.bf16.msra.mxu0 %v2643
        %3241 = vmatprep.subr.bf16.mxu0 %v2649
        %3242 = vmatpush1.bf16.msra.mxu0 %v2648
        %3243 = vmatprep.subr.bf16.mxu0 %v2654
        %3244 = vmatpush1.bf16.msra.mxu0 %v2653
        %3245 = vmatprep.subr.bf16.mxu0 %v2659
        %3246 = vmatpush1.bf16.msra.mxu0 %v2658
        %3247 = vmatprep.subr.bf16.mxu0 %v2664
        %3248 = vmatpush1.bf16.msra.mxu0 %v2663
        %3249 = vmatprep.subr.bf16.mxu0 0
        %3250 = vmatpush1.bf16.msra.mxu0 0
        %3251 = vmatprep.subr.bf16.mxu0 0
        %3252 = vmatpush1.bf16.msra.mxu0 0
        %3253 = vmatprep.subr.bf16.mxu0 0
        %3254 = vmatpush1.bf16.msra.mxu0 0
        %3255 = vmatprep.subr.bf16.mxu0 0
        %3256 = vmatpush1.bf16.msra.mxu0 0
        %3257 = vmatprep.subr.bf16.mxu0 0
        %3258 = vmatpush1.bf16.msra.mxu0 0
        %3259 = vmatprep.subr.bf16.mxu0 0
        %3260 = vmatpush1.bf16.msra.mxu0 0
        %3261 = vmatprep.subr.bf16.mxu0 0
        %3262 = vmatpush1.bf16.msra.mxu0 0
        %3263 = vmatprep.subr.bf16.mxu0 0
        %3264 = vmatpush1.bf16.msra.mxu0 0
        %3265 = vmatprep.mubr.bf16.mxu0 0
        %3266 = vmatmul.mubr.bf16.gmra.mrb[0].mxu0 %v1126
        %v3267 = vpop.f32.mrb[0].mxu0
        %v3268 = vadd.f32 %v3227, %v3267
        %v3269 = vpop.f32.mrb[0].mxu0
        %v3270 = vadd.f32 %v3229, %v3269
        %v3271 = vpop.f32.mrb[0].mxu0
        %v3272 = vpop.f32.mrb[0].mxu0
        %3273 = vdwg.mxu0
        %3274 = vmatprep.subr.bf16.mxu0 0
        %3275 = vmatpush1.bf16.msra.mxu0 %v2390
        %3276 = vmatprep.subr.bf16.mxu0 0
        %3277 = vmatpush1.bf16.msra.mxu0 %v2395
        %3278 = vmatprep.subr.bf16.mxu0 0
        %3279 = vmatpush1.bf16.msra.mxu0 %v2400
        %3280 = vmatprep.subr.bf16.mxu0 0
        %3281 = vmatpush1.bf16.msra.mxu0 %v2405
        %3282 = vmatprep.subr.bf16.mxu0 0
        %3283 = vmatpush1.bf16.msra.mxu0 %v2410
        %3284 = vmatprep.subr.bf16.mxu0 0
        %3285 = vmatpush1.bf16.msra.mxu0 %v2415
        %3286 = vmatprep.subr.bf16.mxu0 0
        %3287 = vmatpush1.bf16.msra.mxu0 %v2420
        %3288 = vmatprep.subr.bf16.mxu0 0
        %3289 = vmatpush1.bf16.msra.mxu0 %v2425
        %3290 = vmatprep.subr.bf16.mxu0 0
        %3291 = vmatpush1.bf16.msra.mxu0 %v2430
        %3292 = vmatprep.subr.bf16.mxu0 0
        %3293 = vmatpush1.bf16.msra.mxu0 %v2435
        %3294 = vmatprep.subr.bf16.mxu0 0
        %3295 = vmatpush1.bf16.msra.mxu0 %v2440
        %3296 = vmatprep.subr.bf16.mxu0 0
        %3297 = vmatpush1.bf16.msra.mxu0 %v2445
        %3298 = vmatprep.subr.bf16.mxu0 0
        %3299 = vmatpush1.bf16.msra.mxu0 %v2450
        %3300 = vmatprep.subr.bf16.mxu0 0
        %3301 = vmatpush1.bf16.msra.mxu0 %v2455
        %3302 = vmatprep.subr.bf16.mxu0 0
        %3303 = vmatpush1.bf16.msra.mxu0 %v2460
        %3304 = vmatprep.subr.bf16.mxu0 0
        %3305 = vmatpush1.bf16.msra.mxu0 %v2465
        %3306 = vmatprep.mubr.bf16.mxu0 %v1121
        %3307 = vmatmul.mubr.bf16.gmra.mrb[0].mxu0 %v1120
        %v3308 = vpop.f32.mrb[0].mxu0
        %v3309 = vadd.f32 %v1484, %v3308
        %v3310 = vpop.f32.mrb[0].mxu0
        %v3311 = vpop.f32.mrb[0].mxu0
        %v3312 = vpop.f32.mrb[0].mxu0
        %3313 = vdwg.mxu0
        %3314 = vmatprep.subr.bf16.mxu0 0
        %3315 = vmatpush1.bf16.msra.mxu0 %v2470
        %3316 = vmatprep.subr.bf16.mxu0 0
        %3317 = vmatpush1.bf16.msra.mxu0 %v2475
        %3318 = vmatprep.subr.bf16.mxu0 0
        %3319 = vmatpush1.bf16.msra.mxu0 %v2480
        %3320 = vmatprep.subr.bf16.mxu0 0
        %3321 = vmatpush1.bf16.msra.mxu0 %v2485
        %3322 = vmatprep.subr.bf16.mxu0 0
        %3323 = vmatpush1.bf16.msra.mxu0 %v2490
        %3324 = vmatprep.subr.bf16.mxu0 0
        %3325 = vmatpush1.bf16.msra.mxu0 %v2495
        %3326 = vmatprep.subr.bf16.mxu0 0
        %3327 = vmatpush1.bf16.msra.mxu0 %v2500
        %3328 = vmatprep.subr.bf16.mxu0 0
        %3329 = vmatpush1.bf16.msra.mxu0 %v2505
        %3330 = vmatprep.subr.bf16.mxu0 0
        %3331 = vmatpush1.bf16.msra.mxu0 %v2510
        %3332 = vmatprep.subr.bf16.mxu0 0
        %3333 = vmatpush1.bf16.msra.mxu0 %v2515
        %3334 = vmatprep.subr.bf16.mxu0 0
        %3335 = vmatpush1.bf16.msra.mxu0 %v2520
        %3336 = vmatprep.subr.bf16.mxu0 0
        %3337 = vmatpush1.bf16.msra.mxu0 %v2525
        %3338 = vmatprep.subr.bf16.mxu0 0
        %3339 = vmatpush1.bf16.msra.mxu0 %v2530
        %3340 = vmatprep.subr.bf16.mxu0 0
        %3341 = vmatpush1.bf16.msra.mxu0 %v2535
        %3342 = vmatprep.subr.bf16.mxu0 0
        %3343 = vmatpush1.bf16.msra.mxu0 %v2540
        %3344 = vmatprep.subr.bf16.mxu0 0
        %3345 = vmatpush1.bf16.msra.mxu0 %v2545
        %3346 = vmatprep.mubr.bf16.mxu0 %v1123
        %3347 = vmatmul.mubr.bf16.gmra.mrb[0].mxu0 %v1122
        %v3348 = vpop.f32.mrb[0].mxu0
        %v3349 = vadd.f32 %v3309, %v3348
        %v3350 = vpop.f32.mrb[0].mxu0
        %v3351 = vpop.f32.mrb[0].mxu0
        %v3352 = vpop.f32.mrb[0].mxu0
        %3353 = vdwg.mxu0
        %3354 = vmatprep.subr.bf16.mxu0 0
        %3355 = vmatpush1.bf16.msra.mxu0 %v2550
        %3356 = vmatprep.subr.bf16.mxu0 0
        %3357 = vmatpush1.bf16.msra.mxu0 %v2555
        %3358 = vmatprep.subr.bf16.mxu0 0
        %3359 = vmatpush1.bf16.msra.mxu0 %v2560
        %3360 = vmatprep.subr.bf16.mxu0 0
        %3361 = vmatpush1.bf16.msra.mxu0 %v2565
        %3362 = vmatprep.subr.bf16.mxu0 0
        %3363 = vmatpush1.bf16.msra.mxu0 %v2570
        %3364 = vmatprep.subr.bf16.mxu0 0
        %3365 = vmatpush1.bf16.msra.mxu0 %v2575
        %3366 = vmatprep.subr.bf16.mxu0 0
        %3367 = vmatpush1.bf16.msra.mxu0 %v2580
        %3368 = vmatprep.subr.bf16.mxu0 0
        %3369 = vmatpush1.bf16.msra.mxu0 %v2585
        %3370 = vmatprep.subr.bf16.mxu0 0
        %3371 = vmatpush1.bf16.msra.mxu0 %v2590
        %3372 = vmatprep.subr.bf16.mxu0 0
        %3373 = vmatpush1.bf16.msra.mxu0 %v2595
        %3374 = vmatprep.subr.bf16.mxu0 0
        %3375 = vmatpush1.bf16.msra.mxu0 %v2600
        %3376 = vmatprep.subr.bf16.mxu0 0
        %3377 = vmatpush1.bf16.msra.mxu0 %v2605
        %3378 = vmatprep.subr.bf16.mxu0 0
        %3379 = vmatpush1.bf16.msra.mxu0 %v2610
        %3380 = vmatprep.subr.bf16.mxu0 0
        %3381 = vmatpush1.bf16.msra.mxu0 %v2615
        %3382 = vmatprep.subr.bf16.mxu0 0
        %3383 = vmatpush1.bf16.msra.mxu0 %v2620
        %3384 = vmatprep.subr.bf16.mxu0 0
        %3385 = vmatpush1.bf16.msra.mxu0 %v2625
        %3386 = vmatprep.mubr.bf16.mxu0 %v1125
        %3387 = vmatmul.mubr.bf16.gmra.mrb[0].mxu0 %v1124
        %v3388 = vpop.f32.mrb[0].mxu0
        %v3389 = vadd.f32 %v3349, %v3388
        %v3390 = vpop.f32.mrb[0].mxu0
        %v3391 = vpop.f32.mrb[0].mxu0
        %v3392 = vpop.f32.mrb[0].mxu0
        %3393 = vdwg.mxu0
        %3394 = vmatprep.subr.bf16.mxu0 0
        %3395 = vmatpush1.bf16.msra.mxu0 %v2630
        %3396 = vmatprep.subr.bf16.mxu0 0
        %3397 = vmatpush1.bf16.msra.mxu0 %v2635
        %3398 = vmatprep.subr.bf16.mxu0 0
        %3399 = vmatpush1.bf16.msra.mxu0 %v2640
        %3400 = vmatprep.subr.bf16.mxu0 0
        %3401 = vmatpush1.bf16.msra.mxu0 %v2645
        %3402 = vmatprep.subr.bf16.mxu0 0
        %3403 = vmatpush1.bf16.msra.mxu0 %v2650
        %3404 = vmatprep.subr.bf16.mxu0 0
        %3405 = vmatpush1.bf16.msra.mxu0 %v2655
        %3406 = vmatprep.subr.bf16.mxu0 0
        %3407 = vmatpush1.bf16.msra.mxu0 %v2660
        %3408 = vmatprep.subr.bf16.mxu0 0
        %3409 = vmatpush1.bf16.msra.mxu0 %v2665
        %3410 = vmatprep.subr.bf16.mxu0 0
        %3411 = vmatpush1.bf16.msra.mxu0 0
        %3412 = vmatprep.subr.bf16.mxu0 0
        %3413 = vmatpush1.bf16.msra.mxu0 0
        %3414 = vmatprep.subr.bf16.mxu0 0
        %3415 = vmatpush1.bf16.msra.mxu0 0
        %3416 = vmatprep.subr.bf16.mxu0 0
        %3417 = vmatpush1.bf16.msra.mxu0 0
        %3418 = vmatprep.subr.bf16.mxu0 0
        %3419 = vmatpush1.bf16.msra.mxu0 0
        %3420 = vmatprep.subr.bf16.mxu0 0
        %3421 = vmatpush1.bf16.msra.mxu0 0
        %3422 = vmatprep.subr.bf16.mxu0 0
        %3423 = vmatpush1.bf16.msra.mxu0 0
        %3424 = vmatprep.subr.bf16.mxu0 0
        %3425 = vmatpush1.bf16.msra.mxu0 0
        %3426 = vmatprep.mubr.bf16.mxu0 0
        %3427 = vmatmul.mubr.bf16.gmra.mrb[0].mxu0 %v1126
        %v3428 = vpop.f32.mrb[0].mxu0
        %v3429 = vadd.f32 %v3389, %v3428
        %v3430 = vpop.f32.mrb[0].mxu0
        %v3431 = vpop.f32.mrb[0].mxu0
        %v3432 = vpop.f32.mrb[0].mxu0
        %3433 = vdwg.mxu0
        %v3434 = vmax.f32 %v3104, 0.0
        %v3435 = vmax.f32 %v3106, 0.0
        %v3436 = vmax.f32 %v3268, 0.0
        %v3437 = vmax.f32 %v3270, 0.0
        %v3438 = vmax.f32 %v3429, 0.0
        %v3444 = vrot.slane %v3434, 2
        %v3445 = vrot.slane %v3435, 2
        %v3446 = vrot.slane %v3436, 2
        %v3447 = vrot.slane %v3437, 2
        %v3448 = vrot.slane %v3438, 2
        %v3454 = vrot.slane %v3434, 4
        %v3455 = vrot.slane %v3435, 4
        %v3456 = vrot.slane %v3436, 4
        %v3457 = vrot.slane %v3437, 4
        %v3458 = vrot.slane %v3438, 4
        %v3464 = vpack.c.bf16 %v3434, %v3434
        %v3465 = vpack.c.bf16 %v3435, %v3435
        %v3466 = vpack.c.bf16 %v3436, %v3436
        %v3467 = vpack.c.bf16 %v3437, %v3437
        %v3468 = vpack.c.bf16 %v3438, %v3438
        %v3469 = vpack.c.bf16 %v3444, %v3444
        %v3470 = vpack.c.bf16 %v3445, %v3445
        %v3471 = vpack.c.bf16 %v3446, %v3446
        %v3472 = vpack.c.bf16 %v3447, %v3447
        %v3473 = vpack.c.bf16 %v3448, %v3448
        %v3474 = vpack.c.bf16 %v3454, %v3454
        %v3475 = vpack.c.bf16 %v3455, %v3455
        %v3476 = vpack.c.bf16 %v3456, %v3456
        %v3477 = vpack.c.bf16 %v3457, %v3457
        %v3478 = vpack.c.bf16 %v3458, %v3458
        %v3479 = vld [vmem:[%s508] sm:$0xff]
        %v3480 = vld [vmem:[%s508 + $0x8] sm:$0xff]
        %v3481 = vld [vmem:[%s508 + $0x10] sm:$0xff]
        %v3482 = vld [vmem:[%s508 + $0x18] sm:$0xff]
        %v3483 = vld [vmem:[%s508 + $0x20] sm:$0xff]
        %v3484 = vld [vmem:[%s508 + $0x28] sm:$0xff]
        %v3485 = vld [vmem:[%s508 + $0x30] sm:$0xff]
        %v3486 = vld [vmem:[%s508 + $0x38] sm:$0xff]
        %v3487 = vld [vmem:[%s508 + $0x40] sm:$0xff]
        %v3488 = vld [vmem:[%s508 + $0x48] sm:$0xff]
        %v3489 = vld [vmem:[%s508 + $0x50] sm:$0xff]
        %v3490 = vld [vmem:[%s508 + $0x58] sm:$0xff]
        %v3491 = vld [vmem:[%s508 + $0x60] sm:$0xff]
        %v3492 = vld [vmem:[%s508 + $0x68] sm:$0xff]
        %v3493 = vld [vmem:[%s508 + $0x70] sm:$0xff]
        %v3494 = vld [vmem:[%s508 + $0x78] sm:$0xff]
        %v3495 = vld [vmem:[%s508 + $0x80] sm:$0xff]
        %v3496 = vld [vmem:[%s508 + $0x88] sm:$0xff]
        %v3497 = vld [vmem:[%s508 + $0x90] sm:$0xff]
        %v3498 = vld [vmem:[%s508 + $0x98] sm:$0xff]
        %v3499 = vld [vmem:[%s508 + $0xa0] sm:$0xff]
        %v3500 = vld [vmem:[%s508 + $0xa8] sm:$0xff]
        %v3501 = vld [vmem:[%s508 + $0xb0] sm:$0xff]
        %v3502 = vld [vmem:[%s508 + $0xb8] sm:$0xff]
        %v3503 = vld [vmem:[%s508 + $0xc0] sm:$0xff]
        %v3504 = vld [vmem:[%s508 + $0xc8] sm:$0xff]
        %v3505 = vld [vmem:[%s508 + $0xd0] sm:$0xff]
        %v3506 = vld [vmem:[%s508 + $0xd8] sm:$0xff]
        %v3507 = vld [vmem:[%s508 + $0xe0] sm:$0xff]
        %v3508 = vld [vmem:[%s508 + $0xe8] sm:$0xff]
        %v3509 = vld [vmem:[%s508 + $0xf0] sm:$0xff]
        %v3510 = vld [vmem:[%s508 + $0xf8] sm:$0xff]
        %v3511 = vld [vmem:[%s508 + $0x100] sm:$0xff]
        %v3512 = vld [vmem:[%s508 + $0x108] sm:$0xff]
        %v3513 = vld [vmem:[%s508 + $0x110] sm:$0xff]
        %v3514 = vld [vmem:[%s508 + $0x118] sm:$0xff]
        %v3515 = vld [vmem:[%s508 + $0x120] sm:$0xff]
        %v3516 = vld [vmem:[%s508 + $0x128] sm:$0xff]
        %v3517 = vld [vmem:[%s508 + $0x130] sm:$0xff]
        %v3518 = vld [vmem:[%s508 + $0x138] sm:$0xff]
        %v3519 = vld [vmem:[%s508 + $0x140] sm:$0xff]
        %v3520 = vld [vmem:[%s508 + $0x148] sm:$0xff]
        %v3521 = vld [vmem:[%s508 + $0x150] sm:$0xff]
        %v3522 = vld [vmem:[%s508 + $0x158] sm:$0xff]
        %v3523 = vld [vmem:[%s508 + $0x160] sm:$0xff]
        %v3524 = vld [vmem:[%s508 + $0x168] sm:$0xff]
        %v3525 = vld [vmem:[%s508 + $0x170] sm:$0xff]
        %v3526 = vld [vmem:[%s508 + $0x178] sm:$0xff]
        %v3527 = vld [vmem:[%s508 + $0x180] sm:$0xff]
        %v3528 = vld [vmem:[%s508 + $0x188] sm:$0xff]
        %v3529 = vld [vmem:[%s508 + $0x190] sm:$0xff]
        %v3530 = vld [vmem:[%s508 + $0x198] sm:$0xff]
        %v3531 = vld [vmem:[%s508 + $0x1a0] sm:$0xff]
        %v3532 = vld [vmem:[%s508 + $0x1a8] sm:$0xff]
        %v3533 = vld [vmem:[%s508 + $0x1b0] sm:$0xff]
        %v3534 = vld [vmem:[%s508 + $0x1b8] sm:$0xff]
        %v3535 = vld [vmem:[%s508 + $0x1c0] sm:$0xff]
        %v3536 = vld [vmem:[%s508 + $0x1c8] sm:$0xff]
        %v3537 = vld [vmem:[%s508 + $0x1d0] sm:$0xff]
        %v3538 = vld [vmem:[%s508 + $0x1d8] sm:$0xff]
        %v3539 = vld [vmem:[%s508 + $0x1e0] sm:$0xff]
        %v3540 = vld [vmem:[%s508 + $0x1e8] sm:$0xff]
        %v3541 = vld [vmem:[%s508 + $0x1f0] sm:$0xff]
        %v3542 = vld [vmem:[%s508 + $0x1f8] sm:$0xff]
        %v3543 = vld [vmem:[%s508 + $0x200] sm:$0xff]
        %v3544 = vld [vmem:[%s508 + $0x208] sm:$0xff]
        %v3545 = vld [vmem:[%s508 + $0x210] sm:$0xff]
        %v3546 = vld [vmem:[%s508 + $0x218] sm:$0xff]
        %v3547 = vld [vmem:[%s508 + $0x220] sm:$0xff]
        %v3548 = vld [vmem:[%s508 + $0x228] sm:$0xff]
        %v3549 = vld [vmem:[%s508 + $0x230] sm:$0xff]
        %v3550 = vld [vmem:[%s508 + $0x238] sm:$0xff]
        %v3551 = vld [vmem:[%s508 + $0x240] sm:$0xff]
        %v3552 = vld [vmem:[%s508 + $0x248] sm:$0xff]
        %v3553 = vld [vmem:[%s508 + $0x250] sm:$0xff]
        %v3554 = vld [vmem:[%s508 + $0x258] sm:$0xff]
        %v3555 = vld [vmem:[%s508 + $0x260] sm:$0xff]
        %v3556 = vld [vmem:[%s508 + $0x268] sm:$0xff]
        %v3557 = vld [vmem:[%s508 + $0x270] sm:$0xff]
        %v3558 = vld [vmem:[%s508 + $0x278] sm:$0xff]
        %v3559 = vld [vmem:[%s508 + $0x280] sm:$0xff]
        %v3560 = vld [vmem:[%s508 + $0x288] sm:$0xff]
        %v3561 = vld [vmem:[%s508 + $0x290] sm:$0xff]
        %v3562 = vld [vmem:[%s508 + $0x298] sm:$0xff]
        %v3563 = vld [vmem:[%s508 + $0x2a0] sm:$0xff]
        %v3564 = vld [vmem:[%s508 + $0x2a8] sm:$0xff]
        %v3565 = vld [vmem:[%s508 + $0x2b0] sm:$0xff]
        %v3566 = vld [vmem:[%s508 + $0x2b8] sm:$0xff]
        %v3567 = vld [vmem:[%s508 + $0x2c0] sm:$0xff]
        %v3568 = vld [vmem:[%s508 + $0x2c8] sm:$0xff]
        %v3569 = vld [vmem:[%s508 + $0x2d0] sm:$0xff]
        %v3570 = vld [vmem:[%s508 + $0x2d8] sm:$0xff]
        %v3571 = vld [vmem:[%s508 + $0x2e0] sm:$0xff]
        %v3572 = vld [vmem:[%s508 + $0x2e8] sm:$0xff]
        %v3573 = vld [vmem:[%s508 + $0x2f0] sm:$0xff]
        %v3574 = vld [vmem:[%s508 + $0x2f8] sm:$0xff]
        %v3575 = vld [vmem:[%s508 + $0x300] sm:$0xff]
        %v3576 = vld [vmem:[%s508 + $0x308] sm:$0xff]
        %v3577 = vld [vmem:[%s508 + $0x310] sm:$0xff]
        %v3578 = vld [vmem:[%s508 + $0x318] sm:$0xff]
        %v3579 = vld [vmem:[%s508 + $0x320] sm:$0xff]
        %v3580 = vld [vmem:[%s508 + $0x328] sm:$0xff]
        %v3581 = vld [vmem:[%s508 + $0x330] sm:$0xff]
        %v3582 = vld [vmem:[%s508 + $0x338] sm:$0xff]
        %v3583 = vld [vmem:[%s508 + $0x340] sm:$0xff]
        %v3584 = vld [vmem:[%s508 + $0x348] sm:$0xff]
        %v3585 = vld [vmem:[%s508 + $0x350] sm:$0xff]
        %v3586 = vld [vmem:[%s508 + $0x358] sm:$0xff]
        %v3587 = vld [vmem:[%s508 + $0x360] sm:$0xff]
        %v3588 = vld [vmem:[%s508 + $0x368] sm:$0xff]
        %v3589 = vld [vmem:[%s508 + $0x370] sm:$0xff]
        %v3590 = vld [vmem:[%s508 + $0x378] sm:$0xff]
        %v3591 = vld [vmem:[%s508 + $0x380] sm:$0xff]
        %v3592 = vld [vmem:[%s508 + $0x388] sm:$0xff]
        %v3593 = vld [vmem:[%s508 + $0x390] sm:$0xff]
        %v3594 = vld [vmem:[%s508 + $0x398] sm:$0xff]
        %v3595 = vld [vmem:[%s508 + $0x3a0] sm:$0xff]
        %v3596 = vld [vmem:[%s508 + $0x3a8] sm:$0xff]
        %v3597 = vld [vmem:[%s508 + $0x3b0] sm:$0xff]
        %v3598 = vld [vmem:[%s508 + $0x3b8] sm:$0xff]
        %v3599 = vld [vmem:[%s508 + $0x3c0] sm:$0xff]
        %v3600 = vld [vmem:[%s508 + $0x3c8] sm:$0xff]
        %v3601 = vld [vmem:[%s508 + $0x3d0] sm:$0xff]
        %v3602 = vld [vmem:[%s508 + $0x3d8] sm:$0xff]
        %v3603 = vld [vmem:[%s508 + $0x3e0] sm:$0xff]
        %v3604 = vld [vmem:[%s508 + $0x3e8] sm:$0xff]
        %v3605 = vld [vmem:[%s508 + $0x3f0] sm:$0xff]
        %v3606 = vld [vmem:[%s508 + $0x3f8] sm:$0xff]
        %v3607 = vld [vmem:[%s508 + $0x400] sm:$0xff]
        %v3608 = vld [vmem:[%s508 + $0x408] sm:$0xff]
        %v3609 = vld [vmem:[%s508 + $0x410] sm:$0xff]
        %v3610 = vld [vmem:[%s508 + $0x418] sm:$0xff]
        %v3611 = vld [vmem:[%s508 + $0x420] sm:$0xff]
        %v3612 = vld [vmem:[%s508 + $0x428] sm:$0xff]
        %v3613 = vld [vmem:[%s508 + $0x430] sm:$0xff]
        %v3614 = vld [vmem:[%s508 + $0x438] sm:$0xff]
        %v3615 = vld [vmem:[%s508 + $0x440] sm:$0xff]
        %v3616 = vld [vmem:[%s508 + $0x448] sm:$0xff]
        %v3617 = vld [vmem:[%s508 + $0x450] sm:$0xff]
        %v3618 = vld [vmem:[%s508 + $0x458] sm:$0xff]
        %v3619 = vld [vmem:[%s508 + $0x460] sm:$0xff]
        %v3620 = vld [vmem:[%s508 + $0x468] sm:$0xff]
        %v3621 = vld [vmem:[%s508 + $0x470] sm:$0xff]
        %v3622 = vld [vmem:[%s508 + $0x478] sm:$0xff]
        %v3623 = vld [vmem:[%s508 + $0x480] sm:$0xff]
        %v3624 = vld [vmem:[%s508 + $0x488] sm:$0xff]
        %v3625 = vld [vmem:[%s508 + $0x490] sm:$0xff]
        %v3626 = vld [vmem:[%s508 + $0x498] sm:$0xff]
        %v3627 = vld [vmem:[%s508 + $0x4a0] sm:$0xff]
        %v3628 = vld [vmem:[%s508 + $0x4a8] sm:$0xff]
        %v3629 = vld [vmem:[%s508 + $0x4b0] sm:$0xff]
        %v3630 = vld [vmem:[%s508 + $0x4b8] sm:$0xff]
        %v3631 = vld [vmem:[%s508 + $0x4c0] sm:$0xff]
        %v3632 = vld [vmem:[%s508 + $0x4c8] sm:$0xff]
        %v3633 = vld [vmem:[%s508 + $0x4d0] sm:$0xff]
        %v3634 = vld [vmem:[%s508 + $0x4d8] sm:$0xff]
        %v3635 = vld [vmem:[%s508 + $0x4e0] sm:$0xff]
        %v3636 = vld [vmem:[%s508 + $0x4e8] sm:$0xff]
        %v3637 = vld [vmem:[%s508 + $0x4f0] sm:$0xff]
        %v3638 = vld [vmem:[%s508 + $0x4f8] sm:$0xff]
        %v3639 = vld [vmem:[%s508 + $0x500] sm:$0xff]
        %v3640 = vld [vmem:[%s508 + $0x508] sm:$0xff]
        %v3641 = vld [vmem:[%s508 + $0x510] sm:$0xff]
        %v3642 = vld [vmem:[%s508 + $0x518] sm:$0xff]
        %v3643 = vld [vmem:[%s508 + $0x520] sm:$0xff]
        %v3644 = vld [vmem:[%s508 + $0x528] sm:$0xff]
        %v3645 = vld [vmem:[%s508 + $0x530] sm:$0xff]
        %v3646 = vld [vmem:[%s508 + $0x538] sm:$0xff]
        %v3647 = vld [vmem:[%s508 + $0x540] sm:$0xff]
        %v3648 = vld [vmem:[%s508 + $0x548] sm:$0xff]
        %v3649 = vld [vmem:[%s508 + $0x550] sm:$0xff]
        %v3650 = vld [vmem:[%s508 + $0x558] sm:$0xff]
        %v3651 = vld [vmem:[%s508 + $0x560] sm:$0xff]
        %v3652 = vld [vmem:[%s508 + $0x568] sm:$0xff]
        %v3653 = vld [vmem:[%s508 + $0x570] sm:$0xff]
        %v3654 = vld [vmem:[%s508 + $0x578] sm:$0xff]
        %v3655 = vld [vmem:[%s508 + $0x580] sm:$0xff]
        %v3656 = vld [vmem:[%s508 + $0x588] sm:$0xff]
        %v3657 = vld [vmem:[%s508 + $0x590] sm:$0xff]
        %v3658 = vld [vmem:[%s508 + $0x598] sm:$0xff]
        %v3659 = vld [vmem:[%s508 + $0x5a0] sm:$0xff]
        %v3660 = vld [vmem:[%s508 + $0x5a8] sm:$0xff]
        %v3661 = vld [vmem:[%s508 + $0x5b0] sm:$0xff]
        %v3662 = vld [vmem:[%s508 + $0x5b8] sm:$0xff]
        %v3663 = vld [vmem:[%s508 + $0x5c0] sm:$0xff]
        %v3664 = vld [vmem:[%s508 + $0x5c8] sm:$0xff]
        %v3665 = vld [vmem:[%s508 + $0x5d0] sm:$0xff]
        %v3666 = vld [vmem:[%s508 + $0x5d8] sm:$0xff]
        %v3667 = vld [vmem:[%s508 + $0x5e0] sm:$0xff]
        %v3668 = vld [vmem:[%s508 + $0x5e8] sm:$0xff]
        %v3669 = vld [vmem:[%s508 + $0x5f0] sm:$0xff]
        %v3670 = vld [vmem:[%s508 + $0x5f8] sm:$0xff]
        %v3671 = vld [vmem:[%s508 + $0x600] sm:$0xff]
        %v3672 = vld [vmem:[%s508 + $0x608] sm:$0xff]
        %v3673 = vld [vmem:[%s508 + $0x610] sm:$0xff]
        %v3674 = vld [vmem:[%s508 + $0x618] sm:$0xff]
        %v3675 = vld [vmem:[%s508 + $0x620] sm:$0xff]
        %v3676 = vld [vmem:[%s508 + $0x628] sm:$0xff]
        %v3677 = vld [vmem:[%s508 + $0x630] sm:$0xff]
        %v3678 = vld [vmem:[%s508 + $0x638] sm:$0xff]
        %v3679 = vld [vmem:[%s508 + $0x640] sm:$0xff]
        %v3680 = vld [vmem:[%s508 + $0x648] sm:$0xff]
        %v3681 = vld [vmem:[%s508 + $0x650] sm:$0xff]
        %v3682 = vld [vmem:[%s508 + $0x658] sm:$0xff]
        %v3683 = vld [vmem:[%s508 + $0x660] sm:$0xff]
        %v3684 = vld [vmem:[%s508 + $0x668] sm:$0xff]
        %v3685 = vld [vmem:[%s508 + $0x670] sm:$0xff]
        %v3686 = vld [vmem:[%s508 + $0x678] sm:$0xff]
        %v3687 = vld [vmem:[%s508 + $0x680] sm:$0xff]
        %v3688 = vld [vmem:[%s508 + $0x688] sm:$0xff]
        %v3689 = vld [vmem:[%s508 + $0x690] sm:$0xff]
        %v3690 = vld [vmem:[%s508 + $0x698] sm:$0xff]
        %v3691 = vld [vmem:[%s508 + $0x6a0] sm:$0xff]
        %v3692 = vld [vmem:[%s508 + $0x6a8] sm:$0xff]
        %v3693 = vld [vmem:[%s508 + $0x6b0] sm:$0xff]
        %v3694 = vld [vmem:[%s508 + $0x6b8] sm:$0xff]
        %v3695 = vld [vmem:[%s508 + $0x6c0] sm:$0xff]
        %v3696 = vld [vmem:[%s508 + $0x6c8] sm:$0xff]
        %v3697 = vld [vmem:[%s508 + $0x6d0] sm:$0xff]
        %v3698 = vld [vmem:[%s508 + $0x6d8] sm:$0xff]
        %v3699 = vld [vmem:[%s508 + $0x6e0] sm:$0xff]
        %v3700 = vld [vmem:[%s508 + $0x6e8] sm:$0xff]
        %v3701 = vld [vmem:[%s508 + $0x6f0] sm:$0xff]
        %v3702 = vld [vmem:[%s508 + $0x6f8] sm:$0xff]
        %v3703 = vld [vmem:[%s508 + $0x700] sm:$0xff]
        %v3704 = vld [vmem:[%s508 + $0x708] sm:$0xff]
        %v3705 = vld [vmem:[%s508 + $0x710] sm:$0xff]
        %v3706 = vld [vmem:[%s508 + $0x718] sm:$0xff]
        %v3707 = vld [vmem:[%s508 + $0x720] sm:$0xff]
        %v3708 = vld [vmem:[%s508 + $0x728] sm:$0xff]
        %v3709 = vld [vmem:[%s508 + $0x730] sm:$0xff]
        %v3710 = vld [vmem:[%s508 + $0x738] sm:$0xff]
        %v3711 = vld [vmem:[%s508 + $0x740] sm:$0xff]
        %v3712 = vld [vmem:[%s508 + $0x748] sm:$0xff]
        %v3713 = vld [vmem:[%s508 + $0x750] sm:$0xff]
        %v3714 = vld [vmem:[%s508 + $0x758] sm:$0xff]
        %v3715 = vld [vmem:[%s508 + $0x760] sm:$0xff]
        %v3716 = vld [vmem:[%s508 + $0x768] sm:$0xff]
        %v3717 = vld [vmem:[%s508 + $0x770] sm:$0xff]
        %v3718 = vld [vmem:[%s508 + $0x778] sm:$0xff]
        %v3719 = vld [vmem:[%s508 + $0x780] sm:$0xff]
        %v3720 = vld [vmem:[%s508 + $0x788] sm:$0xff]
        %v3721 = vld [vmem:[%s508 + $0x790] sm:$0xff]
        %v3722 = vld [vmem:[%s508 + $0x798] sm:$0xff]
        %v3723 = vld [vmem:[%s508 + $0x7a0] sm:$0xff]
        %v3724 = vld [vmem:[%s508 + $0x7a8] sm:$0xff]
        %v3725 = vld [vmem:[%s508 + $0x7b0] sm:$0xff]
        %v3726 = vld [vmem:[%s508 + $0x7b8] sm:$0xff]
        %v3727 = vld [vmem:[%s508 + $0x7c0] sm:$0xff]
        %v3728 = vld [vmem:[%s508 + $0x7c8] sm:$0xff]
        %v3729 = vld [vmem:[%s508 + $0x7d0] sm:$0xff]
        %v3730 = vld [vmem:[%s508 + $0x7d8] sm:$0xff]
        %v3731 = vld [vmem:[%s508 + $0x7e0] sm:$0xff]
        %v3732 = vld [vmem:[%s508 + $0x7e8] sm:$0xff]
        %v3733 = vld [vmem:[%s508 + $0x7f0] sm:$0xff]
        %v3734 = vld [vmem:[%s508 + $0x7f8] sm:$0xff]
        %v3735 = vld [vmem:[%s508 + $0x800] sm:$0xff]
        %v3736 = vld [vmem:[%s508 + $0x808] sm:$0xff]
        %v3737 = vld [vmem:[%s508 + $0x810] sm:$0xff]
        %v3738 = vld [vmem:[%s508 + $0x818] sm:$0xff]
        %v3739 = vld [vmem:[%s508 + $0x820] sm:$0xff]
        %v3740 = vld [vmem:[%s508 + $0x828] sm:$0xff]
        %v3741 = vld [vmem:[%s508 + $0x830] sm:$0xff]
        %v3742 = vld [vmem:[%s508 + $0x838] sm:$0xff]
        %v3743 = vld [vmem:[%s508 + $0x840] sm:$0xff]
        %v3744 = vld [vmem:[%s508 + $0x848] sm:$0xff]
        %v3745 = vld [vmem:[%s508 + $0x850] sm:$0xff]
        %v3746 = vld [vmem:[%s508 + $0x858] sm:$0xff]
        %v3747 = vld [vmem:[%s508 + $0x860] sm:$0xff]
        %v3748 = vld [vmem:[%s508 + $0x868] sm:$0xff]
        %v3749 = vld [vmem:[%s508 + $0x870] sm:$0xff]
        %v3750 = vld [vmem:[%s508 + $0x878] sm:$0xff]
        %v3751 = vld [vmem:[%s508 + $0x880] sm:$0xff]
        %v3752 = vld [vmem:[%s508 + $0x888] sm:$0xff]
        %v3753 = vld [vmem:[%s508 + $0x890] sm:$0xff]
        %v3754 = vld [vmem:[%s508 + $0x898] sm:$0xff]
        %v3755 = vld [vmem:[%s508 + $0x8a0] sm:$0xff]
        %v3756 = vld [vmem:[%s508 + $0x8a8] sm:$0xff]
        %v3757 = vld [vmem:[%s508 + $0x8b0] sm:$0xff]
        %v3758 = vld [vmem:[%s508 + $0x8b8] sm:$0xff]
        %v3759 = vld [vmem:[%s508 + $0x8c0] sm:$0xff]
        %v3760 = vld [vmem:[%s508 + $0x8c8] sm:$0xff]
        %v3761 = vld [vmem:[%s508 + $0x8d0] sm:$0xff]
        %v3762 = vld [vmem:[%s508 + $0x8d8] sm:$0xff]
        %v3763 = vld [vmem:[%s508 + $0x8e0] sm:$0xff]
        %v3764 = vld [vmem:[%s508 + $0x8e8] sm:$0xff]
        %v3765 = vld [vmem:[%s508 + $0x8f0] sm:$0xff]
        %v3766 = vld [vmem:[%s508 + $0x8f8] sm:$0xff]
        %v3767 = vld [vmem:[%s508 + $0x900] sm:$0xff]
        %v3768 = vld [vmem:[%s508 + $0x908] sm:$0xff]
        %v3769 = vld [vmem:[%s508 + $0x910] sm:$0xff]
        %v3770 = vld [vmem:[%s508 + $0x918] sm:$0xff]
        %v3771 = vld [vmem:[%s508 + $0x920] sm:$0xff]
        %v3772 = vld [vmem:[%s508 + $0x928] sm:$0xff]
        %v3773 = vld [vmem:[%s508 + $0x930] sm:$0xff]
        %v3774 = vld [vmem:[%s508 + $0x938] sm:$0xff]
        %v3775 = vld [vmem:[%s508 + $0x940] sm:$0xff]
        %v3776 = vld [vmem:[%s508 + $0x948] sm:$0xff]
        %v3777 = vld [vmem:[%s508 + $0x950] sm:$0xff]
        %v3778 = vld [vmem:[%s508 + $0x958] sm:$0xff]
        %v3779 = vld [vmem:[%s508 + $0x960] sm:$0xff]
        %v3780 = vld [vmem:[%s508 + $0x968] sm:$0xff]
        %v3781 = vld [vmem:[%s508 + $0x970] sm:$0xff]
        %v3782 = vld [vmem:[%s508 + $0x978] sm:$0xff]
        %v3783 = vld [vmem:[%s508 + $0x980] sm:$0xff]
        %v3784 = vld [vmem:[%s508 + $0x988] sm:$0xff]
        %v3785 = vld [vmem:[%s508 + $0x990] sm:$0xff]
        %v3786 = vld [vmem:[%s508 + $0x998] sm:$0xff]
        %v3787 = vld [vmem:[%s508 + $0x9a0] sm:$0xff]
        %v3788 = vld [vmem:[%s508 + $0x9a8] sm:$0xff]
        %v3789 = vld [vmem:[%s508 + $0x9b0] sm:$0xff]
        %v3790 = vld [vmem:[%s508 + $0x9b8] sm:$0xff]
        %v3791 = vld [vmem:[%s508 + $0x9c0] sm:$0xff]
        %v3792 = vld [vmem:[%s508 + $0x9c8] sm:$0xff]
        %v3793 = vld [vmem:[%s508 + $0x9d0] sm:$0xff]
        %v3794 = vld [vmem:[%s508 + $0x9d8] sm:$0xff]
        %v3795 = vld [vmem:[%s508 + $0x9e0] sm:$0xff]
        %v3796 = vld [vmem:[%s508 + $0x9e8] sm:$0xff]
        %v3797 = vld [vmem:[%s508 + $0x9f0] sm:$0xff]
        %v3798 = vld [vmem:[%s508 + $0x9f8] sm:$0xff]
        %v3799 = vld [vmem:[%s508 + $0xa00] sm:$0xff]
        %v3800 = vld [vmem:[%s508 + $0xa08] sm:$0xff]
        %v3801 = vld [vmem:[%s508 + $0xa10] sm:$0xff]
        %v3802 = vld [vmem:[%s508 + $0xa18] sm:$0xff]
        %v3803 = vld [vmem:[%s508 + $0xa20] sm:$0xff]
        %v3804 = vld [vmem:[%s508 + $0xa28] sm:$0xff]
        %v3805 = vld [vmem:[%s508 + $0xa30] sm:$0xff]
        %v3806 = vld [vmem:[%s508 + $0xa38] sm:$0xff]
        %v3807 = vld [vmem:[%s508 + $0xa40] sm:$0xff]
        %v3808 = vld [vmem:[%s508 + $0xa48] sm:$0xff]
        %v3809 = vld [vmem:[%s508 + $0xa50] sm:$0xff]
        %v3810 = vld [vmem:[%s508 + $0xa58] sm:$0xff]
        %v3811 = vld [vmem:[%s508 + $0xa60] sm:$0xff]
        %v3812 = vld [vmem:[%s508 + $0xa68] sm:$0xff]
        %v3813 = vld [vmem:[%s508 + $0xa70] sm:$0xff]
        %v3814 = vld [vmem:[%s508 + $0xa78] sm:$0xff]
        %v3815 = vld [vmem:[%s508 + $0xa80] sm:$0xff]
        %v3816 = vld [vmem:[%s508 + $0xa88] sm:$0xff]
        %v3817 = vld [vmem:[%s508 + $0xa90] sm:$0xff]
        %v3818 = vld [vmem:[%s508 + $0xa98] sm:$0xff]
        %v3819 = vld [vmem:[%s508 + $0xaa0] sm:$0xff]
        %v3820 = vld [vmem:[%s508 + $0xaa8] sm:$0xff]
        %v3821 = vld [vmem:[%s508 + $0xab0] sm:$0xff]
        %v3822 = vld [vmem:[%s508 + $0xab8] sm:$0xff]
        %v3823 = vld [vmem:[%s508 + $0xac0] sm:$0xff]
        %v3824 = vld [vmem:[%s508 + $0xac8] sm:$0xff]
        %v3825 = vld [vmem:[%s508 + $0xad0] sm:$0xff]
        %v3826 = vld [vmem:[%s508 + $0xad8] sm:$0xff]
        %v3827 = vld [vmem:[%s508 + $0xae0] sm:$0xff]
        %v3828 = vld [vmem:[%s508 + $0xae8] sm:$0xff]
        %v3829 = vld [vmem:[%s508 + $0xaf0] sm:$0xff]
        %v3830 = vld [vmem:[%s508 + $0xaf8] sm:$0xff]
        %v3831 = vld [vmem:[%s508 + $0xb00] sm:$0xff]
        %v3832 = vld [vmem:[%s508 + $0xb08] sm:$0xff]
        %v3833 = vld [vmem:[%s508 + $0xb10] sm:$0xff]
        %v3834 = vld [vmem:[%s508 + $0xb18] sm:$0xff]
        %v3835 = vld [vmem:[%s508 + $0xb20] sm:$0xff]
        %v3836 = vld [vmem:[%s508 + $0xb28] sm:$0xff]
        %v3837 = vld [vmem:[%s508 + $0xb30] sm:$0xff]
        %v3838 = vld [vmem:[%s508 + $0xb38] sm:$0xff]
        %v3839 = vld [vmem:[%s508 + $0xb40] sm:$0xff]
        %v3840 = vld [vmem:[%s508 + $0xb48] sm:$0xff]
        %v3841 = vld [vmem:[%s508 + $0xb50] sm:$0xff]
        %v3842 = vld [vmem:[%s508 + $0xb58] sm:$0xff]
        %v3843 = vld [vmem:[%s508 + $0xb60] sm:$0xff]
        %v3844 = vld [vmem:[%s508 + $0xb68] sm:$0xff]
        %v3845 = vld [vmem:[%s508 + $0xb70] sm:$0xff]
        %v3846 = vld [vmem:[%s508 + $0xb78] sm:$0xff]
        %v3847 = vld [vmem:[%s508 + $0xb80] sm:$0xff]
        %v3848 = vld [vmem:[%s508 + $0xb88] sm:$0xff]
        %v3849 = vld [vmem:[%s508 + $0xb90] sm:$0xff]
        %v3850 = vld [vmem:[%s508 + $0xb98] sm:$0xff]
        %v3851 = vld [vmem:[%s508 + $0xba0] sm:$0xff]
        %v3852 = vld [vmem:[%s508 + $0xba8] sm:$0xff]
        %v3853 = vld [vmem:[%s508 + $0xbb0] sm:$0xff]
        %v3854 = vld [vmem:[%s508 + $0xbb8] sm:$0xff]
        %v3855 = vld [vmem:[%s508 + $0xbc0] sm:$0xff]
        %v3856 = vld [vmem:[%s508 + $0xbc8] sm:$0xff]
        %v3857 = vld [vmem:[%s508 + $0xbd0] sm:$0xff]
        %v3858 = vld [vmem:[%s508 + $0xbd8] sm:$0xff]
        %v3859 = vld [vmem:[%s508 + $0xbe0] sm:$0xff]
        %v3860 = vld [vmem:[%s508 + $0xbe8] sm:$0xff]
        %v3861 = vld [vmem:[%s508 + $0xbf0] sm:$0xff]
        %v3862 = vld [vmem:[%s508 + $0xbf8] sm:$0xff]
        %v3863 = vld [vmem:[%s508 + $0xc00] sm:$0xff]
        %v3864 = vld [vmem:[%s508 + $0xc08] sm:$0xff]
        %v3865 = vld [vmem:[%s508 + $0xc10] sm:$0xff]
        %v3866 = vld [vmem:[%s508 + $0xc18] sm:$0xff]
        %v3867 = vld [vmem:[%s508 + $0xc20] sm:$0xff]
        %v3868 = vld [vmem:[%s508 + $0xc28] sm:$0xff]
        %v3869 = vld [vmem:[%s508 + $0xc30] sm:$0xff]
        %v3870 = vld [vmem:[%s508 + $0xc38] sm:$0xff]
        %v3871 = vld [vmem:[%s508 + $0xc40] sm:$0xff]
        %v3872 = vld [vmem:[%s508 + $0xc48] sm:$0xff]
        %v3873 = vld [vmem:[%s508 + $0xc50] sm:$0xff]
        %v3874 = vld [vmem:[%s508 + $0xc58] sm:$0xff]
        %v3875 = vld [vmem:[%s508 + $0xc60] sm:$0xff]
        %v3876 = vld [vmem:[%s508 + $0xc68] sm:$0xff]
        %v3877 = vld [vmem:[%s508 + $0xc70] sm:$0xff]
        %v3878 = vld [vmem:[%s508 + $0xc78] sm:$0xff]
        %v3879 = vld [vmem:[%s508 + $0xc80] sm:$0xff]
        %v3880 = vld [vmem:[%s508 + $0xc88] sm:$0xff]
        %v3881 = vld [vmem:[%s508 + $0xc90] sm:$0xff]
        %v3882 = vld [vmem:[%s508 + $0xc98] sm:$0xff]
        %v3883 = vld [vmem:[%s508 + $0xca0] sm:$0xff]
        %v3884 = vld [vmem:[%s508 + $0xca8] sm:$0xff]
        %v3885 = vld [vmem:[%s508 + $0xcb0] sm:$0xff]
        %v3886 = vld [vmem:[%s508 + $0xcb8] sm:$0xff]
        %v3887 = vld [vmem:[%s508 + $0xcc0] sm:$0xff]
        %v3888 = vld [vmem:[%s508 + $0xcc8] sm:$0xff]
        %v3889 = vld [vmem:[%s508 + $0xcd0] sm:$0xff]
        %v3890 = vld [vmem:[%s508 + $0xcd8] sm:$0xff]
        %v3891 = vld [vmem:[%s508 + $0xce0] sm:$0xff]
        %v3892 = vld [vmem:[%s508 + $0xce8] sm:$0xff]
        %v3893 = vld [vmem:[%s508 + $0xcf0] sm:$0xff]
        %v3894 = vld [vmem:[%s508 + $0xcf8] sm:$0xff]
        %v3895 = vld [vmem:[%s508 + $0xd00] sm:$0xff]
        %v3896 = vld [vmem:[%s508 + $0xd08] sm:$0xff]
        %v3897 = vld [vmem:[%s508 + $0xd10] sm:$0xff]
        %v3898 = vld [vmem:[%s508 + $0xd18] sm:$0xff]
        %v3899 = vld [vmem:[%s508 + $0xd20] sm:$0xff]
        %v3900 = vld [vmem:[%s508 + $0xd28] sm:$0xff]
        %v3901 = vld [vmem:[%s508 + $0xd30] sm:$0xff]
        %v3902 = vld [vmem:[%s508 + $0xd38] sm:$0xff]
        %v3903 = vld [vmem:[%s508 + $0xd40] sm:$0xff]
        %v3904 = vld [vmem:[%s508 + $0xd48] sm:$0xff]
        %v3905 = vld [vmem:[%s508 + $0xd50] sm:$0xff]
        %v3906 = vld [vmem:[%s508 + $0xd58] sm:$0xff]
        %v3907 = vld [vmem:[%s508 + $0xd60] sm:$0xff]
        %v3908 = vld [vmem:[%s508 + $0xd68] sm:$0xff]
        %v3909 = vld [vmem:[%s508 + $0xd70] sm:$0xff]
        %v3910 = vld [vmem:[%s508 + $0xd78] sm:$0xff]
        %v3911 = vld [vmem:[%s508 + $0xd80] sm:$0xff]
        %v3912 = vld [vmem:[%s508 + $0xd88] sm:$0xff]
        %v3913 = vld [vmem:[%s508 + $0xd90] sm:$0xff]
        %v3914 = vld [vmem:[%s508 + $0xd98] sm:$0xff]
        %v3915 = vld [vmem:[%s508 + $0xda0] sm:$0xff]
        %v3916 = vld [vmem:[%s508 + $0xda8] sm:$0xff]
        %v3917 = vld [vmem:[%s508 + $0xdb0] sm:$0xff]
        %v3918 = vld [vmem:[%s508 + $0xdb8] sm:$0xff]
        %v3919 = vld [vmem:[%s508 + $0xdc0] sm:$0xff]
        %v3920 = vld [vmem:[%s508 + $0xdc8] sm:$0xff]
        %v3921 = vld [vmem:[%s508 + $0xdd0] sm:$0xff]
        %v3922 = vld [vmem:[%s508 + $0xdd8] sm:$0xff]
        %v3923 = vld [vmem:[%s508 + $0xde0] sm:$0xff]
        %v3924 = vld [vmem:[%s508 + $0xde8] sm:$0xff]
        %v3925 = vld [vmem:[%s508 + $0xdf0] sm:$0xff]
        %v3926 = vld [vmem:[%s508 + $0xdf8] sm:$0xff]
        %v3927 = vld [vmem:[%s508 + $0xe00] sm:$0xff]
        %v3928 = vld [vmem:[%s508 + $0xe08] sm:$0xff]
        %v3929 = vld [vmem:[%s508 + $0xe10] sm:$0xff]
        %v3930 = vld [vmem:[%s508 + $0xe18] sm:$0xff]
        %v3931 = vld [vmem:[%s508 + $0xe20] sm:$0xff]
        %v3932 = vld [vmem:[%s508 + $0xe28] sm:$0xff]
        %v3933 = vld [vmem:[%s508 + $0xe30] sm:$0xff]
        %v3934 = vld [vmem:[%s508 + $0xe38] sm:$0xff]
        %v3935 = vld [vmem:[%s508 + $0xe40] sm:$0xff]
        %v3936 = vld [vmem:[%s508 + $0xe48] sm:$0xff]
        %v3937 = vld [vmem:[%s508 + $0xe50] sm:$0xff]
        %v3938 = vld [vmem:[%s508 + $0xe58] sm:$0xff]
        %v3939 = vld [vmem:[%s508 + $0xe60] sm:$0xff]
        %v3940 = vld [vmem:[%s508 + $0xe68] sm:$0xff]
        %v3941 = vld [vmem:[%s508 + $0xe70] sm:$0xff]
        %v3942 = vld [vmem:[%s508 + $0xe78] sm:$0xff]
        %v3943 = vld [vmem:[%s508 + $0xe80] sm:$0xff]
        %v3944 = vld [vmem:[%s508 + $0xe88] sm:$0xff]
        %v3945 = vld [vmem:[%s508 + $0xe90] sm:$0xff]
        %v3946 = vld [vmem:[%s508 + $0xe98] sm:$0xff]
        %v3947 = vld [vmem:[%s508 + $0xea0] sm:$0xff]
        %v3948 = vld [vmem:[%s508 + $0xea8] sm:$0xff]
        %v3949 = vld [vmem:[%s508 + $0xeb0] sm:$0xff]
        %v3950 = vld [vmem:[%s508 + $0xeb8] sm:$0xff]
        %v3951 = vld [vmem:[%s508 + $0xec0] sm:$0xff]
        %v3952 = vld [vmem:[%s508 + $0xec8] sm:$0xff]
        %v3953 = vld [vmem:[%s508 + $0xed0] sm:$0xff]
        %v3954 = vld [vmem:[%s508 + $0xed8] sm:$0xff]
        %v3955 = vld [vmem:[%s508 + $0xee0] sm:$0xff]
        %v3956 = vld [vmem:[%s508 + $0xee8] sm:$0xff]
        %v3957 = vld [vmem:[%s508 + $0xef0] sm:$0xff]
        %v3958 = vld [vmem:[%s508 + $0xef8] sm:$0xff]
        %v3959 = vld [vmem:[%s508 + $0xf00] sm:$0xff]
        %v3960 = vld [vmem:[%s508 + $0xf08] sm:$0xff]
        %v3961 = vld [vmem:[%s508 + $0xf10] sm:$0xff]
        %v3962 = vld [vmem:[%s508 + $0xf18] sm:$0xff]
        %v3963 = vld [vmem:[%s508 + $0xf20] sm:$0xff]
        %v3964 = vld [vmem:[%s508 + $0xf28] sm:$0xff]
        %v3965 = vld [vmem:[%s508 + $0xf30] sm:$0xff]
        %v3966 = vld [vmem:[%s508 + $0xf38] sm:$0xff]
        %v3967 = vld [vmem:[%s508 + $0xf40] sm:$0xff]
        %v3968 = vld [vmem:[%s508 + $0xf48] sm:$0xff]
        %v3969 = vld [vmem:[%s508 + $0xf50] sm:$0xff]
        %v3970 = vld [vmem:[%s508 + $0xf58] sm:$0xff]
        %v3971 = vld [vmem:[%s508 + $0xf60] sm:$0xff]
        %v3972 = vld [vmem:[%s508 + $0xf68] sm:$0xff]
        %v3973 = vld [vmem:[%s508 + $0xf70] sm:$0xff]
        %v3974 = vld [vmem:[%s508 + $0xf78] sm:$0xff]
        %v3975 = vld [vmem:[%s508 + $0xf80] sm:$0xff]
        %v3976 = vld [vmem:[%s508 + $0xf88] sm:$0xff]
        %v3977 = vld [vmem:[%s508 + $0xf90] sm:$0xff]
        %v3978 = vld [vmem:[%s508 + $0xf98] sm:$0xff]
        %v3979 = vld [vmem:[%s508 + $0xfa0] sm:$0xff]
        %v3980 = vld [vmem:[%s508 + $0xfa8] sm:$0xff]
        %v3981 = vld [vmem:[%s508 + $0xfb0] sm:$0xff]
        %v3982 = vld [vmem:[%s508 + $0xfb8] sm:$0xff]
        %v3983 = vld [vmem:[%s508 + $0xfc0] sm:$0xff]
        %v3984 = vld [vmem:[%s508 + $0xfc8] sm:$0xff]
        %v3985 = vld [vmem:[%s508 + $0xfd0] sm:$0xff]
        %v3986 = vld [vmem:[%s508 + $0xfd8] sm:$0xff]
        %v3987 = vld [vmem:[%s508 + $0xfe0] sm:$0xff]
        %v3988 = vld [vmem:[%s508 + $0xfe8] sm:$0xff]
        %v3989 = vld [vmem:[%s508 + $0xff0] sm:$0xff]
        %v3990 = vld [vmem:[%s508 + $0xff8] sm:$0xff]
        %v3991 = vld [vmem:[%s508 + $0x1000] sm:$0xff]
        %v3992 = vld [vmem:[%s508 + $0x1008] sm:$0xff]
        %v3993 = vld [vmem:[%s508 + $0x1010] sm:$0xff]
        %v3994 = vld [vmem:[%s508 + $0x1018] sm:$0xff]
        %v3995 = vld [vmem:[%s508 + $0x1020] sm:$0xff]
        %v3996 = vld [vmem:[%s508 + $0x1028] sm:$0xff]
        %v3997 = vld [vmem:[%s508 + $0x1030] sm:$0xff]
        %v3998 = vld [vmem:[%s508 + $0x1038] sm:$0xff]
        %v3999 = vld [vmem:[%s508 + $0x1040] sm:$0xff]
        %v4000 = vld [vmem:[%s508 + $0x1048] sm:$0xff]
        %v4001 = vld [vmem:[%s508 + $0x1050] sm:$0xff]
        %v4002 = vld [vmem:[%s508 + $0x1058] sm:$0xff]
        %v4003 = vld [vmem:[%s508 + $0x1060] sm:$0xff]
        %v4004 = vld [vmem:[%s508 + $0x1068] sm:$0xff]
        %v4005 = vld [vmem:[%s508 + $0x1070] sm:$0xff]
        %v4006 = vld [vmem:[%s508 + $0x1078] sm:$0xff]
        %v4007 = vld [vmem:[%s508 + $0x1080] sm:$0xff]
        %v4008 = vld [vmem:[%s508 + $0x1088] sm:$0xff]
        %v4009 = vld [vmem:[%s508 + $0x1090] sm:$0xff]
        %v4010 = vld [vmem:[%s508 + $0x1098] sm:$0xff]
        %v4011 = vld [vmem:[%s508 + $0x10a0] sm:$0xff]
        %v4012 = vld [vmem:[%s508 + $0x10a8] sm:$0xff]
        %v4013 = vld [vmem:[%s508 + $0x10b0] sm:$0xff]
        %v4014 = vld [vmem:[%s508 + $0x10b8] sm:$0xff]
        %v4015 = vld [vmem:[%s508 + $0x10c0] sm:$0xff]
        %v4016 = vld [vmem:[%s508 + $0x10c8] sm:$0xff]
        %v4017 = vld [vmem:[%s508 + $0x10d0] sm:$0xff]
        %v4018 = vld [vmem:[%s508 + $0x10d8] sm:$0xff]
        %v4019 = vld [vmem:[%s508 + $0x10e0] sm:$0xff]
        %v4020 = vld [vmem:[%s508 + $0x10e8] sm:$0xff]
        %v4021 = vld [vmem:[%s508 + $0x10f0] sm:$0xff]
        %v4022 = vld [vmem:[%s508 + $0x10f8] sm:$0xff]
        %v4023 = vld [vmem:[%s508 + $0x1100] sm:$0xff]
        %v4024 = vld [vmem:[%s508 + $0x1108] sm:$0xff]
        %v4025 = vld [vmem:[%s508 + $0x1110] sm:$0xff]
        %v4026 = vld [vmem:[%s508 + $0x1118] sm:$0xff]
        %v4027 = vld [vmem:[%s508 + $0x1120] sm:$0xff]
        %v4028 = vld [vmem:[%s508 + $0x1128] sm:$0xff]
        %v4029 = vld [vmem:[%s508 + $0x1130] sm:$0xff]
        %v4030 = vld [vmem:[%s508 + $0x1138] sm:$0xff]
        %v4031 = vld [vmem:[%s508 + $0x1140] sm:$0xff]
        %v4032 = vld [vmem:[%s508 + $0x1148] sm:$0xff]
        %v4033 = vld [vmem:[%s508 + $0x1150] sm:$0xff]
        %v4034 = vld [vmem:[%s508 + $0x1158] sm:$0xff]
        %v4035 = vld [vmem:[%s508 + $0x1160] sm:$0xff]
        %v4036 = vld [vmem:[%s508 + $0x1168] sm:$0xff]
        %v4037 = vld [vmem:[%s508 + $0x1170] sm:$0xff]
        %v4038 = vld [vmem:[%s508 + $0x1178] sm:$0xff]
        %v4039 = vld [vmem:[%s508 + $0x1180] sm:$0xff]
        %v4040 = vld [vmem:[%s508 + $0x1188] sm:$0xff]
        %v4041 = vld [vmem:[%s508 + $0x1190] sm:$0xff]
        %v4042 = vld [vmem:[%s508 + $0x1198] sm:$0xff]
        %v4043 = vld [vmem:[%s508 + $0x11a0] sm:$0xff]
        %v4044 = vld [vmem:[%s508 + $0x11a8] sm:$0xff]
        %v4045 = vld [vmem:[%s508 + $0x11b0] sm:$0xff]
        %v4046 = vld [vmem:[%s508 + $0x11b8] sm:$0xff]
        %v4047 = vld [vmem:[%s508 + $0x11c0] sm:$0xff]
        %v4048 = vld [vmem:[%s508 + $0x11c8] sm:$0xff]
        %v4049 = vld [vmem:[%s508 + $0x11d0] sm:$0xff]
        %v4050 = vld [vmem:[%s508 + $0x11d8] sm:$0xff]
        %v4051 = vld [vmem:[%s508 + $0x11e0] sm:$0xff]
        %v4052 = vld [vmem:[%s508 + $0x11e8] sm:$0xff]
        %v4053 = vld [vmem:[%s508 + $0x11f0] sm:$0xff]
        %v4054 = vld [vmem:[%s508 + $0x11f8] sm:$0xff]
        %v4055 = vld [vmem:[%s508 + $0x1200] sm:$0xff]
        %v4056 = vld [vmem:[%s508 + $0x1208] sm:$0xff]
        %v4057 = vld [vmem:[%s508 + $0x1210] sm:$0xff]
        %v4058 = vld [vmem:[%s508 + $0x1218] sm:$0xff]
        %v4059 = vld [vmem:[%s508 + $0x1220] sm:$0xff]
        %v4060 = vld [vmem:[%s508 + $0x1228] sm:$0xff]
        %v4061 = vld [vmem:[%s508 + $0x1230] sm:$0xff]
        %v4062 = vld [vmem:[%s508 + $0x1238] sm:$0xff]
        %v4063 = vld [vmem:[%s508 + $0x1240] sm:$0xff]
        %v4064 = vld [vmem:[%s508 + $0x1248] sm:$0xff]
        %v4065 = vld [vmem:[%s508 + $0x1250] sm:$0xff]
        %v4066 = vld [vmem:[%s508 + $0x1258] sm:$0xff]
        %v4067 = vld [vmem:[%s508 + $0x1260] sm:$0xff]
        %v4068 = vld [vmem:[%s508 + $0x1268] sm:$0xff]
        %v4069 = vld [vmem:[%s508 + $0x1270] sm:$0xff]
        %v4070 = vld [vmem:[%s508 + $0x1278] sm:$0xff]
        %v4071 = vld [vmem:[%s508 + $0x1280] sm:$0xff]
        %v4072 = vld [vmem:[%s508 + $0x1288] sm:$0xff]
        %v4073 = vld [vmem:[%s508 + $0x1290] sm:$0xff]
        %v4074 = vld [vmem:[%s508 + $0x1298] sm:$0xff]
        %v4075 = vld [vmem:[%s508 + $0x12a0] sm:$0xff]
        %v4076 = vld [vmem:[%s508 + $0x12a8] sm:$0xff]
        %v4077 = vld [vmem:[%s508 + $0x12b0] sm:$0xff]
        %v4078 = vld [vmem:[%s508 + $0x12b8] sm:$0xff]
        %v4079 = vld [vmem:[%s508 + $0x12c0] sm:$0xff]
        %v4080 = vld [vmem:[%s508 + $0x12c8] sm:$0xff]
        %v4081 = vld [vmem:[%s508 + $0x12d0] sm:$0xff]
        %v4082 = vld [vmem:[%s508 + $0x12d8] sm:$0xff]
        %v4083 = vld [vmem:[%s508 + $0x12e0] sm:$0xff]
        %v4084 = vld [vmem:[%s508 + $0x12e8] sm:$0xff]
        %v4085 = vld [vmem:[%s508 + $0x12f0] sm:$0xff]
        %v4086 = vld [vmem:[%s508 + $0x12f8] sm:$0xff]
        %v4087 = vld [vmem:[%s508 + $0x1300] sm:$0xff]
        %v4088 = vld [vmem:[%s508 + $0x1308] sm:$0xff]
        %v4089 = vld [vmem:[%s508 + $0x1310] sm:$0xff]
        %v4090 = vld [vmem:[%s508 + $0x1318] sm:$0xff]
        %v4091 = vld [vmem:[%s508 + $0x1320] sm:$0xff]
        %v4092 = vld [vmem:[%s508 + $0x1328] sm:$0xff]
        %v4093 = vld [vmem:[%s508 + $0x1330] sm:$0xff]
        %v4094 = vld [vmem:[%s508 + $0x1338] sm:$0xff]
        %v4095 = vld [vmem:[%s508 + $0x1340] sm:$0xff]
        %v4096 = vld [vmem:[%s508 + $0x1348] sm:$0xff]
        %v4097 = vld [vmem:[%s508 + $0x1350] sm:$0xff]
        %v4098 = vld [vmem:[%s508 + $0x1358] sm:$0xff]
        %v4099 = vld [vmem:[%s508 + $0x1360] sm:$0xff]
        %v4100 = vld [vmem:[%s508 + $0x1368] sm:$0xff]
        %v4101 = vld [vmem:[%s508 + $0x1370] sm:$0xff]
        %v4102 = vld [vmem:[%s508 + $0x1378] sm:$0xff]
        %v4103 = vld [vmem:[%s508 + $0x1380] sm:$0xff]
        %v4104 = vld [vmem:[%s508 + $0x1388] sm:$0xff]
        %v4105 = vld [vmem:[%s508 + $0x1390] sm:$0xff]
        %v4106 = vld [vmem:[%s508 + $0x1398] sm:$0xff]
        %v4107 = vld [vmem:[%s508 + $0x13a0] sm:$0xff]
        %v4108 = vld [vmem:[%s508 + $0x13a8] sm:$0xff]
        %v4109 = vld [vmem:[%s508 + $0x13b0] sm:$0xff]
        %v4110 = vld [vmem:[%s508 + $0x13b8] sm:$0xff]
        %v4111 = vld [vmem:[%s508 + $0x13c0] sm:$0xff]
        %v4112 = vld [vmem:[%s508 + $0x13c8] sm:$0xff]
        %v4113 = vld [vmem:[%s508 + $0x13d0] sm:$0xff]
        %v4114 = vld [vmem:[%s508 + $0x13d8] sm:$0xff]
        %v4115 = vld [vmem:[%s508 + $0x13e0] sm:$0xff]
        %v4116 = vld [vmem:[%s508 + $0x13e8] sm:$0xff]
        %v4117 = vld [vmem:[%s508 + $0x13f0] sm:$0xff]
        %v4118 = vld [vmem:[%s508 + $0x13f8] sm:$0xff]
        %v4119 = vld [vmem:[%s508 + $0x1400] sm:$0xff]
        %v4120 = vld [vmem:[%s508 + $0x1408] sm:$0xff]
        %v4121 = vld [vmem:[%s508 + $0x1410] sm:$0xff]
        %v4122 = vld [vmem:[%s508 + $0x1418] sm:$0xff]
        %v4123 = vld [vmem:[%s508 + $0x1420] sm:$0xff]
        %v4124 = vld [vmem:[%s508 + $0x1428] sm:$0xff]
        %v4125 = vld [vmem:[%s508 + $0x1430] sm:$0xff]
        %v4126 = vld [vmem:[%s508 + $0x1438] sm:$0xff]
        %v4127 = vld [vmem:[%s508 + $0x1440] sm:$0xff]
        %v4128 = vld [vmem:[%s508 + $0x1448] sm:$0xff]
        %v4129 = vld [vmem:[%s508 + $0x1450] sm:$0xff]
        %v4130 = vld [vmem:[%s508 + $0x1458] sm:$0xff]
        %v4131 = vld [vmem:[%s508 + $0x1460] sm:$0xff]
        %v4132 = vld [vmem:[%s508 + $0x1468] sm:$0xff]
        %v4133 = vld [vmem:[%s508 + $0x1470] sm:$0xff]
        %v4134 = vld [vmem:[%s508 + $0x1478] sm:$0xff]
        %v4135 = vld [vmem:[%s508 + $0x1480] sm:$0xff]
        %v4136 = vld [vmem:[%s508 + $0x1488] sm:$0xff]
        %v4137 = vld [vmem:[%s508 + $0x1490] sm:$0xff]
        %v4138 = vld [vmem:[%s508 + $0x1498] sm:$0xff]
        %v4139 = vld [vmem:[%s508 + $0x14a0] sm:$0xff]
        %v4140 = vld [vmem:[%s508 + $0x14a8] sm:$0xff]
        %v4141 = vld [vmem:[%s508 + $0x14b0] sm:$0xff]
        %v4142 = vld [vmem:[%s508 + $0x14b8] sm:$0xff]
        %v4143 = vld [vmem:[%s508 + $0x14c0] sm:$0xff]
        %v4144 = vld [vmem:[%s508 + $0x14c8] sm:$0xff]
        %v4145 = vld [vmem:[%s508 + $0x14d0] sm:$0xff]
        %v4146 = vld [vmem:[%s508 + $0x14d8] sm:$0xff]
        %v4147 = vld [vmem:[%s508 + $0x14e0] sm:$0xff]
        %v4148 = vld [vmem:[%s508 + $0x14e8] sm:$0xff]
        %v4149 = vld [vmem:[%s508 + $0x14f0] sm:$0xff]
        %v4150 = vld [vmem:[%s508 + $0x14f8] sm:$0xff]
        %v4151 = vld [vmem:[%s508 + $0x1500] sm:$0xff]
        %v4152 = vld [vmem:[%s508 + $0x1508] sm:$0xff]
        %v4153 = vld [vmem:[%s508 + $0x1510] sm:$0xff]
        %v4154 = vld [vmem:[%s508 + $0x1518] sm:$0xff]
        %v4155 = vld [vmem:[%s508 + $0x1520] sm:$0xff]
        %v4156 = vld [vmem:[%s508 + $0x1528] sm:$0xff]
        %v4157 = vld [vmem:[%s508 + $0x1530] sm:$0xff]
        %v4158 = vld [vmem:[%s508 + $0x1538] sm:$0xff]
        %v4159 = vld [vmem:[%s508 + $0x1540] sm:$0xff]
        %v4160 = vld [vmem:[%s508 + $0x1548] sm:$0xff]
        %v4161 = vld [vmem:[%s508 + $0x1550] sm:$0xff]
        %v4162 = vld [vmem:[%s508 + $0x1558] sm:$0xff]
        %v4163 = vld [vmem:[%s508 + $0x1560] sm:$0xff]
        %v4164 = vld [vmem:[%s508 + $0x1568] sm:$0xff]
        %v4165 = vld [vmem:[%s508 + $0x1570] sm:$0xff]
        %v4166 = vld [vmem:[%s508 + $0x1578] sm:$0xff]
        %v4167 = vld [vmem:[%s508 + $0x1580] sm:$0xff]
        %v4168 = vld [vmem:[%s508 + $0x1588] sm:$0xff]
        %v4169 = vld [vmem:[%s508 + $0x1590] sm:$0xff]
        %v4170 = vld [vmem:[%s508 + $0x1598] sm:$0xff]
        %v4171 = vld [vmem:[%s508 + $0x15a0] sm:$0xff]
        %v4172 = vld [vmem:[%s508 + $0x15a8] sm:$0xff]
        %v4173 = vld [vmem:[%s508 + $0x15b0] sm:$0xff]
        %v4174 = vld [vmem:[%s508 + $0x15b8] sm:$0xff]
        %v4175 = vld [vmem:[%s508 + $0x15c0] sm:$0xff]
        %v4176 = vld [vmem:[%s508 + $0x15c8] sm:$0xff]
        %v4177 = vld [vmem:[%s508 + $0x15d0] sm:$0xff]
        %v4178 = vld [vmem:[%s508 + $0x15d8] sm:$0xff]
        %v4179 = vld [vmem:[%s508 + $0x15e0] sm:$0xff]
        %v4180 = vld [vmem:[%s508 + $0x15e8] sm:$0xff]
        %v4181 = vld [vmem:[%s508 + $0x15f0] sm:$0xff]
        %v4182 = vld [vmem:[%s508 + $0x15f8] sm:$0xff]
        %v4183 = vld [vmem:[%s508 + $0x1600] sm:$0xff]
        %v4184 = vld [vmem:[%s508 + $0x1608] sm:$0xff]
        %v4185 = vld [vmem:[%s508 + $0x1610] sm:$0xff]
        %v4186 = vld [vmem:[%s508 + $0x1618] sm:$0xff]
        %v4187 = vld [vmem:[%s508 + $0x1620] sm:$0xff]
        %v4188 = vld [vmem:[%s508 + $0x1628] sm:$0xff]
        %v4189 = vld [vmem:[%s508 + $0x1630] sm:$0xff]
        %v4190 = vld [vmem:[%s508 + $0x1638] sm:$0xff]
        %v4191 = vld [vmem:[%s508 + $0x1640] sm:$0xff]
        %v4192 = vld [vmem:[%s508 + $0x1648] sm:$0xff]
        %v4193 = vld [vmem:[%s508 + $0x1650] sm:$0xff]
        %v4194 = vld [vmem:[%s508 + $0x1658] sm:$0xff]
        %v4195 = vld [vmem:[%s508 + $0x1660] sm:$0xff]
        %v4196 = vld [vmem:[%s508 + $0x1668] sm:$0xff]
        %v4197 = vld [vmem:[%s508 + $0x1670] sm:$0xff]
        %v4198 = vld [vmem:[%s508 + $0x1678] sm:$0xff]
        %v4199 = vld [vmem:[%s508 + $0x1680] sm:$0xff]
        %v4200 = vld [vmem:[%s508 + $0x1688] sm:$0xff]
        %v4201 = vld [vmem:[%s508 + $0x1690] sm:$0xff]
        %v4202 = vld [vmem:[%s508 + $0x1698] sm:$0xff]
        %v4203 = vld [vmem:[%s508 + $0x16a0] sm:$0xff]
        %v4204 = vld [vmem:[%s508 + $0x16a8] sm:$0xff]
        %v4205 = vld [vmem:[%s508 + $0x16b0] sm:$0xff]
        %v4206 = vld [vmem:[%s508 + $0x16b8] sm:$0xff]
        %v4207 = vld [vmem:[%s508 + $0x16c0] sm:$0xff]
        %v4208 = vld [vmem:[%s508 + $0x16c8] sm:$0xff]
        %v4209 = vld [vmem:[%s508 + $0x16d0] sm:$0xff]
        %v4210 = vld [vmem:[%s508 + $0x16d8] sm:$0xff]
        %v4211 = vld [vmem:[%s508 + $0x16e0] sm:$0xff]
        %v4212 = vld [vmem:[%s508 + $0x16e8] sm:$0xff]
        %v4213 = vld [vmem:[%s508 + $0x16f0] sm:$0xff]
        %v4214 = vld [vmem:[%s508 + $0x16f8] sm:$0xff]
        %v4215 = vld [vmem:[%s508 + $0x1700] sm:$0xff]
        %v4216 = vld [vmem:[%s508 + $0x1708] sm:$0xff]
        %v4217 = vld [vmem:[%s508 + $0x1710] sm:$0xff]
        %v4218 = vld [vmem:[%s508 + $0x1718] sm:$0xff]
        %v4219 = vld [vmem:[%s508 + $0x1720] sm:$0xff]
        %v4220 = vld [vmem:[%s508 + $0x1728] sm:$0xff]
        %v4221 = vld [vmem:[%s508 + $0x1730] sm:$0xff]
        %v4222 = vld [vmem:[%s508 + $0x1738] sm:$0xff]
        %v4223 = vld [vmem:[%s508 + $0x1740] sm:$0xff]
        %v4224 = vld [vmem:[%s508 + $0x1748] sm:$0xff]
        %v4225 = vld [vmem:[%s508 + $0x1750] sm:$0xff]
        %v4226 = vld [vmem:[%s508 + $0x1758] sm:$0xff]
        %v4227 = vld [vmem:[%s508 + $0x1760] sm:$0xff]
        %v4228 = vld [vmem:[%s508 + $0x1768] sm:$0xff]
        %v4229 = vld [vmem:[%s508 + $0x1770] sm:$0xff]
        %v4230 = vld [vmem:[%s508 + $0x1778] sm:$0xff]
        %v4231 = vld [vmem:[%s508 + $0x1780] sm:$0xff]
        %v4232 = vld [vmem:[%s508 + $0x1788] sm:$0xff]
        %v4233 = vld [vmem:[%s508 + $0x1790] sm:$0xff]
        %v4234 = vld [vmem:[%s508 + $0x1798] sm:$0xff]
        %v4235 = vld [vmem:[%s508 + $0x17a0] sm:$0xff]
        %v4236 = vld [vmem:[%s508 + $0x17a8] sm:$0xff]
        %v4237 = vld [vmem:[%s508 + $0x17b0] sm:$0xff]
        %v4238 = vld [vmem:[%s508 + $0x17b8] sm:$0xff]
        %v4239 = vld [vmem:[%s508 + $0x17c0] sm:$0xff]
        %v4240 = vld [vmem:[%s508 + $0x17c8] sm:$0xff]
        %v4241 = vld [vmem:[%s508 + $0x17d0] sm:$0xff]
        %v4242 = vld [vmem:[%s508 + $0x17d8] sm:$0xff]
        %v4243 = vld [vmem:[%s508 + $0x17e0] sm:$0xff]
        %v4244 = vld [vmem:[%s508 + $0x17e8] sm:$0xff]
        %v4245 = vld [vmem:[%s508 + $0x17f0] sm:$0xff]
        %v4246 = vld [vmem:[%s508 + $0x17f8] sm:$0xff]
        %v4247 = vld [vmem:[%s508 + $0x1800] sm:$0xff]
        %v4248 = vld [vmem:[%s508 + $0x1808] sm:$0xff]
        %v4249 = vld [vmem:[%s508 + $0x1810] sm:$0xff]
        %v4250 = vld [vmem:[%s508 + $0x1818] sm:$0xff]
        %v4251 = vld [vmem:[%s508 + $0x1820] sm:$0xff]
        %v4252 = vld [vmem:[%s508 + $0x1828] sm:$0xff]
        %v4253 = vld [vmem:[%s508 + $0x1830] sm:$0xff]
        %v4254 = vld [vmem:[%s508 + $0x1838] sm:$0xff]
        %v4255 = vld [vmem:[%s508 + $0x1840] sm:$0xff]
        %v4256 = vld [vmem:[%s508 + $0x1848] sm:$0xff]
        %v4257 = vld [vmem:[%s508 + $0x1850] sm:$0xff]
        %v4258 = vld [vmem:[%s508 + $0x1858] sm:$0xff]
        %v4259 = vld [vmem:[%s508 + $0x1860] sm:$0xff]
        %v4260 = vld [vmem:[%s508 + $0x1868] sm:$0xff]
        %v4261 = vld [vmem:[%s508 + $0x1870] sm:$0xff]
        %v4262 = vld [vmem:[%s508 + $0x1878] sm:$0xff]
        %v4263 = vld [vmem:[%s508 + $0x1880] sm:$0xff]
        %v4264 = vld [vmem:[%s508 + $0x1888] sm:$0xff]
        %v4265 = vld [vmem:[%s508 + $0x1890] sm:$0xff]
        %v4266 = vld [vmem:[%s508 + $0x1898] sm:$0xff]
        %v4267 = vld [vmem:[%s508 + $0x18a0] sm:$0xff]
        %v4268 = vld [vmem:[%s508 + $0x18a8] sm:$0xff]
        %v4269 = vld [vmem:[%s508 + $0x18b0] sm:$0xff]
        %v4270 = vld [vmem:[%s508 + $0x18b8] sm:$0xff]
        %v4271 = vld [vmem:[%s508 + $0x18c0] sm:$0xff]
        %v4272 = vld [vmem:[%s508 + $0x18c8] sm:$0xff]
        %v4273 = vld [vmem:[%s508 + $0x18d0] sm:$0xff]
        %v4274 = vld [vmem:[%s508 + $0x18d8] sm:$0xff]
        %v4275 = vld [vmem:[%s508 + $0x18e0] sm:$0xff]
        %v4276 = vld [vmem:[%s508 + $0x18e8] sm:$0xff]
        %v4277 = vld [vmem:[%s508 + $0x18f0] sm:$0xff]
        %v4278 = vld [vmem:[%s508 + $0x18f8] sm:$0xff]
        %v4279 = vld [vmem:[%s508 + $0x1900] sm:$0xff]
        %v4280 = vld [vmem:[%s508 + $0x1908] sm:$0xff]
        %v4281 = vld [vmem:[%s508 + $0x1910] sm:$0xff]
        %v4282 = vld [vmem:[%s508 + $0x1918] sm:$0xff]
        %v4283 = vld [vmem:[%s508 + $0x1920] sm:$0xff]
        %v4284 = vld [vmem:[%s508 + $0x1928] sm:$0xff]
        %v4285 = vld [vmem:[%s508 + $0x1930] sm:$0xff]
        %v4286 = vld [vmem:[%s508 + $0x1938] sm:$0xff]
        %v4287 = vld [vmem:[%s508 + $0x1940] sm:$0xff]
        %v4288 = vld [vmem:[%s508 + $0x1948] sm:$0xff]
        %v4289 = vld [vmem:[%s508 + $0x1950] sm:$0xff]
        %v4290 = vld [vmem:[%s508 + $0x1958] sm:$0xff]
        %v4291 = vld [vmem:[%s508 + $0x1960] sm:$0xff]
        %v4292 = vld [vmem:[%s508 + $0x1968] sm:$0xff]
        %v4293 = vld [vmem:[%s508 + $0x1970] sm:$0xff]
        %v4294 = vld [vmem:[%s508 + $0x1978] sm:$0xff]
        %v4295 = vld [vmem:[%s508 + $0x1980] sm:$0xff]
        %v4296 = vld [vmem:[%s508 + $0x1988] sm:$0xff]
        %v4297 = vld [vmem:[%s508 + $0x1990] sm:$0xff]
        %v4298 = vld [vmem:[%s508 + $0x1998] sm:$0xff]
        %v4299 = vld [vmem:[%s508 + $0x19a0] sm:$0xff]
        %v4300 = vld [vmem:[%s508 + $0x19a8] sm:$0xff]
        %v4301 = vld [vmem:[%s508 + $0x19b0] sm:$0xff]
        %v4302 = vld [vmem:[%s508 + $0x19b8] sm:$0xff]
        %v4303 = vld [vmem:[%s508 + $0x19c0] sm:$0xff]
        %v4304 = vld [vmem:[%s508 + $0x19c8] sm:$0xff]
        %v4305 = vld [vmem:[%s508 + $0x19d0] sm:$0xff]
        %v4306 = vld [vmem:[%s508 + $0x19d8] sm:$0xff]
        %v4307 = vld [vmem:[%s508 + $0x19e0] sm:$0xff]
        %v4308 = vld [vmem:[%s508 + $0x19e8] sm:$0xff]
        %v4309 = vld [vmem:[%s508 + $0x19f0] sm:$0xff]
        %v4310 = vld [vmem:[%s508 + $0x19f8] sm:$0xff]
        %v4311 = vld [vmem:[%s508 + $0x1a00] sm:$0xff]
        %v4312 = vld [vmem:[%s508 + $0x1a08] sm:$0xff]
        %v4313 = vld [vmem:[%s508 + $0x1a10] sm:$0xff]
        %v4314 = vld [vmem:[%s508 + $0x1a18] sm:$0xff]
        %v4315 = vld [vmem:[%s508 + $0x1a20] sm:$0xff]
        %v4316 = vld [vmem:[%s508 + $0x1a28] sm:$0xff]
        %v4317 = vld [vmem:[%s508 + $0x1a30] sm:$0xff]
        %v4318 = vld [vmem:[%s508 + $0x1a38] sm:$0xff]
        %v4319 = vld [vmem:[%s508 + $0x1a40] sm:$0xff]
        %v4320 = vld [vmem:[%s508 + $0x1a48] sm:$0xff]
        %v4321 = vld [vmem:[%s508 + $0x1a50] sm:$0xff]
        %v4322 = vld [vmem:[%s508 + $0x1a58] sm:$0xff]
        %v4323 = vld [vmem:[%s508 + $0x1a60] sm:$0xff]
        %v4324 = vld [vmem:[%s508 + $0x1a68] sm:$0xff]
        %v4325 = vld [vmem:[%s508 + $0x1a70] sm:$0xff]
        %v4326 = vld [vmem:[%s508 + $0x1a78] sm:$0xff]
        %v4327 = vld [vmem:[%s508 + $0x1a80] sm:$0xff]
        %v4328 = vld [vmem:[%s508 + $0x1a88] sm:$0xff]
        %v4329 = vld [vmem:[%s508 + $0x1a90] sm:$0xff]
        %v4330 = vld [vmem:[%s508 + $0x1a98] sm:$0xff]
        %v4331 = vld [vmem:[%s508 + $0x1aa0] sm:$0xff]
        %v4332 = vld [vmem:[%s508 + $0x1aa8] sm:$0xff]
        %v4333 = vld [vmem:[%s508 + $0x1ab0] sm:$0xff]
        %v4334 = vld [vmem:[%s508 + $0x1ab8] sm:$0xff]
        %v4335 = vld [vmem:[%s508 + $0x1ac0] sm:$0xff]
        %v4336 = vld [vmem:[%s508 + $0x1ac8] sm:$0xff]
        %v4337 = vld [vmem:[%s508 + $0x1ad0] sm:$0xff]
        %v4338 = vld [vmem:[%s508 + $0x1ad8] sm:$0xff]
        %v4339 = vld [vmem:[%s508 + $0x1ae0] sm:$0xff]
        %v4340 = vld [vmem:[%s508 + $0x1ae8] sm:$0xff]
        %v4341 = vld [vmem:[%s508 + $0x1af0] sm:$0xff]
        %v4342 = vld [vmem:[%s508 + $0x1af8] sm:$0xff]
        %v4343 = vld [vmem:[%s508 + $0x1b00] sm:$0xff]
        %v4344 = vld [vmem:[%s508 + $0x1b08] sm:$0xff]
        %v4345 = vld [vmem:[%s508 + $0x1b10] sm:$0xff]
        %v4346 = vld [vmem:[%s508 + $0x1b18] sm:$0xff]
        %v4347 = vld [vmem:[%s508 + $0x1b20] sm:$0xff]
        %v4348 = vld [vmem:[%s508 + $0x1b28] sm:$0xff]
        %v4349 = vld [vmem:[%s508 + $0x1b30] sm:$0xff]
        %v4350 = vld [vmem:[%s508 + $0x1b38] sm:$0xff]
        %v4351 = vld [vmem:[%s508 + $0x1b40] sm:$0xff]
        %v4352 = vld [vmem:[%s508 + $0x1b48] sm:$0xff]
        %v4353 = vld [vmem:[%s508 + $0x1b50] sm:$0xff]
        %v4354 = vld [vmem:[%s508 + $0x1b58] sm:$0xff]
        %v4355 = vld [vmem:[%s508 + $0x1b60] sm:$0xff]
        %v4356 = vld [vmem:[%s508 + $0x1b68] sm:$0xff]
        %v4357 = vld [vmem:[%s508 + $0x1b70] sm:$0xff]
        %v4358 = vld [vmem:[%s508 + $0x1b78] sm:$0xff]
        %v4359 = vld [vmem:[%s508 + $0x1b80] sm:$0xff]
        %v4360 = vld [vmem:[%s508 + $0x1b88] sm:$0xff]
        %v4361 = vld [vmem:[%s508 + $0x1b90] sm:$0xff]
        %v4362 = vld [vmem:[%s508 + $0x1b98] sm:$0xff]
        %v4363 = vld [vmem:[%s508 + $0x1ba0] sm:$0xff]
        %v4364 = vld [vmem:[%s508 + $0x1ba8] sm:$0xff]
        %v4365 = vld [vmem:[%s508 + $0x1bb0] sm:$0xff]
        %v4366 = vld [vmem:[%s508 + $0x1bb8] sm:$0xff]
        %v4367 = vld [vmem:[%s508 + $0x1bc0] sm:$0xff]
        %v4368 = vld [vmem:[%s508 + $0x1bc8] sm:$0xff]
        %v4369 = vld [vmem:[%s508 + $0x1bd0] sm:$0xff]
        %v4370 = vld [vmem:[%s508 + $0x1bd8] sm:$0xff]
        %v4371 = vld [vmem:[%s508 + $0x1be0] sm:$0xff]
        %v4372 = vld [vmem:[%s508 + $0x1be8] sm:$0xff]
        %v4373 = vld [vmem:[%s508 + $0x1bf0] sm:$0xff]
        %v4374 = vld [vmem:[%s508 + $0x1bf8] sm:$0xff]
        %v4375 = vld [vmem:[%s508 + $0x1c00] sm:$0xff]
        %v4376 = vld [vmem:[%s508 + $0x1c08] sm:$0xff]
        %v4377 = vld [vmem:[%s508 + $0x1c10] sm:$0xff]
        %v4378 = vld [vmem:[%s508 + $0x1c18] sm:$0xff]
        %v4379 = vld [vmem:[%s508 + $0x1c20] sm:$0xff]
        %v4380 = vld [vmem:[%s508 + $0x1c28] sm:$0xff]
        %v4381 = vld [vmem:[%s508 + $0x1c30] sm:$0xff]
        %v4382 = vld [vmem:[%s508 + $0x1c38] sm:$0xff]
        %v4383 = vld [vmem:[%s508 + $0x1c40] sm:$0xff]
        %v4384 = vld [vmem:[%s508 + $0x1c48] sm:$0xff]
        %v4385 = vld [vmem:[%s508 + $0x1c50] sm:$0xff]
        %v4386 = vld [vmem:[%s508 + $0x1c58] sm:$0xff]
        %v4387 = vld [vmem:[%s508 + $0x1c60] sm:$0xff]
        %v4388 = vld [vmem:[%s508 + $0x1c68] sm:$0xff]
        %v4389 = vld [vmem:[%s508 + $0x1c70] sm:$0xff]
        %v4390 = vld [vmem:[%s508 + $0x1c78] sm:$0xff]
        %v4391 = vld [vmem:[%s508 + $0x1c80] sm:$0xff]
        %v4392 = vld [vmem:[%s508 + $0x1c88] sm:$0xff]
        %v4393 = vld [vmem:[%s508 + $0x1c90] sm:$0xff]
        %v4394 = vld [vmem:[%s508 + $0x1c98] sm:$0xff]
        %v4395 = vld [vmem:[%s508 + $0x1ca0] sm:$0xff]
        %v4396 = vld [vmem:[%s508 + $0x1ca8] sm:$0xff]
        %v4397 = vld [vmem:[%s508 + $0x1cb0] sm:$0xff]
        %v4398 = vld [vmem:[%s508 + $0x1cb8] sm:$0xff]
        %v4399 = vld [vmem:[%s508 + $0x1cc0] sm:$0xff]
        %v4400 = vld [vmem:[%s508 + $0x1cc8] sm:$0xff]
        %v4401 = vld [vmem:[%s508 + $0x1cd0] sm:$0xff]
        %v4402 = vld [vmem:[%s508 + $0x1cd8] sm:$0xff]
        %v4403 = vld [vmem:[%s508 + $0x1ce0] sm:$0xff]
        %v4404 = vld [vmem:[%s508 + $0x1ce8] sm:$0xff]
        %v4405 = vld [vmem:[%s508 + $0x1cf0] sm:$0xff]
        %v4406 = vld [vmem:[%s508 + $0x1cf8] sm:$0xff]
        %v4407 = vld [vmem:[%s508 + $0x1d00] sm:$0xff]
        %v4408 = vld [vmem:[%s508 + $0x1d08] sm:$0xff]
        %v4409 = vld [vmem:[%s508 + $0x1d10] sm:$0xff]
        %v4410 = vld [vmem:[%s508 + $0x1d18] sm:$0xff]
        %v4411 = vld [vmem:[%s508 + $0x1d20] sm:$0xff]
        %v4412 = vld [vmem:[%s508 + $0x1d28] sm:$0xff]
        %v4413 = vld [vmem:[%s508 + $0x1d30] sm:$0xff]
        %v4414 = vld [vmem:[%s508 + $0x1d38] sm:$0xff]
        %v4415 = vld [vmem:[%s508 + $0x1d40] sm:$0xff]
        %v4416 = vld [vmem:[%s508 + $0x1d48] sm:$0xff]
        %v4417 = vld [vmem:[%s508 + $0x1d50] sm:$0xff]
        %v4418 = vld [vmem:[%s508 + $0x1d58] sm:$0xff]
        %v4419 = vld [vmem:[%s508 + $0x1d60] sm:$0xff]
        %v4420 = vld [vmem:[%s508 + $0x1d68] sm:$0xff]
        %v4421 = vld [vmem:[%s508 + $0x1d70] sm:$0xff]
        %v4422 = vld [vmem:[%s508 + $0x1d78] sm:$0xff]
        %v4423 = vld [vmem:[%s508 + $0x1d80] sm:$0xff]
        %v4424 = vld [vmem:[%s508 + $0x1d88] sm:$0xff]
        %v4425 = vld [vmem:[%s508 + $0x1d90] sm:$0xff]
        %v4426 = vld [vmem:[%s508 + $0x1d98] sm:$0xff]
        %v4427 = vld [vmem:[%s508 + $0x1da0] sm:$0xff]
        %v4428 = vld [vmem:[%s508 + $0x1da8] sm:$0xff]
        %v4429 = vld [vmem:[%s508 + $0x1db0] sm:$0xff]
        %v4430 = vld [vmem:[%s508 + $0x1db8] sm:$0xff]
        %v4431 = vld [vmem:[%s508 + $0x1dc0] sm:$0xff]
        %v4432 = vld [vmem:[%s508 + $0x1dc8] sm:$0xff]
        %v4433 = vld [vmem:[%s508 + $0x1dd0] sm:$0xff]
        %v4434 = vld [vmem:[%s508 + $0x1dd8] sm:$0xff]
        %v4435 = vld [vmem:[%s508 + $0x1de0] sm:$0xff]
        %v4436 = vld [vmem:[%s508 + $0x1de8] sm:$0xff]
        %v4437 = vld [vmem:[%s508 + $0x1df0] sm:$0xff]
        %v4438 = vld [vmem:[%s508 + $0x1df8] sm:$0xff]
        %v4439 = vld [vmem:[%s517] sm:$0xff]
        %v4441 = vlaneseq
        %v4442 = vshrl.u32 %v4441, 7
        %v4443 = vsub.s32 0, %v4442
        %v4444 = vrot.slane %v4439, %v4443
        %v4445 = vlaneseq
        %v4446 = vshrl.u32 %v4445, 7
        %v4447 = vsub.s32 1, %v4446
        %v4448 = vrot.slane %v4439, %v4447
        %v4449 = vlaneseq
        %v4450 = vshrl.u32 %v4449, 7
        %v4451 = vsub.s32 2, %v4450
        %v4452 = vrot.slane %v4439, %v4451
        %v4453 = vlaneseq
        %v4454 = vshrl.u32 %v4453, 7
        %v4455 = vsub.s32 3, %v4454
        %v4456 = vrot.slane %v4439, %v4455
        %v4457 = vlaneseq
        %v4458 = vshrl.u32 %v4457, 7
        %v4459 = vsub.s32 4, %v4458
        %v4460 = vrot.slane %v4439, %v4459
        %v4461 = vlaneseq
        %v4462 = vshrl.u32 %v4461, 7
        %v4463 = vsub.s32 5, %v4462
        %v4464 = vrot.slane %v4439, %v4463
        %v4465 = vlaneseq
        %v4466 = vshrl.u32 %v4465, 7
        %v4467 = vsub.s32 6, %v4466
        %v4468 = vrot.slane %v4439, %v4467
        %v4469 = vlaneseq
        %v4470 = vshrl.u32 %v4469, 7
        %v4471 = vsub.s32 7, %v4470
        %v4472 = vrot.slane %v4439, %v4471
        %v5441 = vunpack.c.l.b16 %v3479
        %v5442 = vunpack.c.h.b16 %v3479
        %v5443 = vunpack.c.l.b16 %v3480
        %v5444 = vunpack.c.h.b16 %v3480
        %v5445 = vunpack.c.l.b16 %v3481
        %v5446 = vunpack.c.h.b16 %v3481
        %v5447 = vunpack.c.l.b16 %v3482
        %v5448 = vunpack.c.h.b16 %v3482
        %v5449 = vunpack.c.l.b16 %v3483
        %v5450 = vunpack.c.h.b16 %v3483
        %v5451 = vunpack.c.l.b16 %v3484
        %v5452 = vunpack.c.h.b16 %v3484
        %v5453 = vunpack.c.l.b16 %v3485
        %v5454 = vunpack.c.h.b16 %v3485
        %v5455 = vunpack.c.l.b16 %v3486
        %v5456 = vunpack.c.h.b16 %v3486
        %v5457 = vunpack.c.l.b16 %v3487
        %v5458 = vunpack.c.h.b16 %v3487
        %v5459 = vunpack.c.l.b16 %v3488
        %v5460 = vunpack.c.h.b16 %v3488
        %v5461 = vunpack.c.l.b16 %v3489
        %v5462 = vunpack.c.h.b16 %v3489
        %v5463 = vunpack.c.l.b16 %v3490
        %v5464 = vunpack.c.h.b16 %v3490
        %v5465 = vunpack.c.l.b16 %v3491
        %v5466 = vunpack.c.h.b16 %v3491
        %v5467 = vunpack.c.l.b16 %v3492
        %v5468 = vunpack.c.h.b16 %v3492
        %v5469 = vunpack.c.l.b16 %v3493
        %v5470 = vunpack.c.h.b16 %v3493
        %v5471 = vunpack.c.l.b16 %v3494
        %v5472 = vunpack.c.h.b16 %v3494
        %v5473 = vunpack.c.l.b16 %v3495
        %v5474 = vunpack.c.h.b16 %v3495
        %v5475 = vunpack.c.l.b16 %v3496
        %v5476 = vunpack.c.h.b16 %v3496
        %v5477 = vunpack.c.l.b16 %v3497
        %v5478 = vunpack.c.h.b16 %v3497
        %v5479 = vunpack.c.l.b16 %v3498
        %v5480 = vunpack.c.h.b16 %v3498
        %v5481 = vunpack.c.l.b16 %v3499
        %v5482 = vunpack.c.h.b16 %v3499
        %v5483 = vunpack.c.l.b16 %v3500
        %v5484 = vunpack.c.h.b16 %v3500
        %v5485 = vunpack.c.l.b16 %v3501
        %v5486 = vunpack.c.h.b16 %v3501
        %v5487 = vunpack.c.l.b16 %v3502
        %v5488 = vunpack.c.h.b16 %v3502
        %v5489 = vunpack.c.l.b16 %v3503
        %v5490 = vunpack.c.h.b16 %v3503
        %v5491 = vunpack.c.l.b16 %v3504
        %v5492 = vunpack.c.h.b16 %v3504
        %v5493 = vunpack.c.l.b16 %v3505
        %v5494 = vunpack.c.h.b16 %v3505
        %v5495 = vunpack.c.l.b16 %v3506
        %v5496 = vunpack.c.h.b16 %v3506
        %v5497 = vunpack.c.l.b16 %v3507
        %v5498 = vunpack.c.h.b16 %v3507
        %v5499 = vunpack.c.l.b16 %v3508
        %v5500 = vunpack.c.h.b16 %v3508
        %v5501 = vunpack.c.l.b16 %v3509
        %v5502 = vunpack.c.h.b16 %v3509
        %v5503 = vunpack.c.l.b16 %v3510
        %v5504 = vunpack.c.h.b16 %v3510
        %v5505 = vunpack.c.l.b16 %v3511
        %v5506 = vunpack.c.h.b16 %v3511
        %v5507 = vunpack.c.l.b16 %v3512
        %v5508 = vunpack.c.h.b16 %v3512
        %v5509 = vunpack.c.l.b16 %v3513
        %v5510 = vunpack.c.h.b16 %v3513
        %v5511 = vunpack.c.l.b16 %v3514
        %v5512 = vunpack.c.h.b16 %v3514
        %v5513 = vunpack.c.l.b16 %v3515
        %v5514 = vunpack.c.h.b16 %v3515
        %v5515 = vunpack.c.l.b16 %v3516
        %v5516 = vunpack.c.h.b16 %v3516
        %v5517 = vunpack.c.l.b16 %v3517
        %v5518 = vunpack.c.h.b16 %v3517
        %v5519 = vunpack.c.l.b16 %v3518
        %v5520 = vunpack.c.h.b16 %v3518
        %v5521 = vunpack.c.l.b16 %v3519
        %v5522 = vunpack.c.h.b16 %v3519
        %v5523 = vunpack.c.l.b16 %v3520
        %v5524 = vunpack.c.h.b16 %v3520
        %v5525 = vunpack.c.l.b16 %v3521
        %v5526 = vunpack.c.h.b16 %v3521
        %v5527 = vunpack.c.l.b16 %v3522
        %v5528 = vunpack.c.h.b16 %v3522
        %v5529 = vunpack.c.l.b16 %v3523
        %v5530 = vunpack.c.h.b16 %v3523
        %v5531 = vunpack.c.l.b16 %v3524
        %v5532 = vunpack.c.h.b16 %v3524
        %v5533 = vunpack.c.l.b16 %v3525
        %v5534 = vunpack.c.h.b16 %v3525
        %v5535 = vunpack.c.l.b16 %v3526
        %v5536 = vunpack.c.h.b16 %v3526
        %v5537 = vunpack.c.l.b16 %v3527
        %v5538 = vunpack.c.h.b16 %v3527
        %v5539 = vunpack.c.l.b16 %v3528
        %v5540 = vunpack.c.h.b16 %v3528
        %v5541 = vunpack.c.l.b16 %v3529
        %v5542 = vunpack.c.h.b16 %v3529
        %v5543 = vunpack.c.l.b16 %v3530
        %v5544 = vunpack.c.h.b16 %v3530
        %v5545 = vunpack.c.l.b16 %v3531
        %v5546 = vunpack.c.h.b16 %v3531
        %v5547 = vunpack.c.l.b16 %v3532
        %v5548 = vunpack.c.h.b16 %v3532
        %v5549 = vunpack.c.l.b16 %v3533
        %v5550 = vunpack.c.h.b16 %v3533
        %v5551 = vunpack.c.l.b16 %v3534
        %v5552 = vunpack.c.h.b16 %v3534
        %v5553 = vunpack.c.l.b16 %v3535
        %v5554 = vunpack.c.h.b16 %v3535
        %v5555 = vunpack.c.l.b16 %v3536
        %v5556 = vunpack.c.h.b16 %v3536
        %v5557 = vunpack.c.l.b16 %v3537
        %v5558 = vunpack.c.h.b16 %v3537
        %v5559 = vunpack.c.l.b16 %v3538
        %v5560 = vunpack.c.h.b16 %v3538
        %v5561 = vunpack.c.l.b16 %v3539
        %v5562 = vunpack.c.h.b16 %v3539
        %v5563 = vunpack.c.l.b16 %v3540
        %v5564 = vunpack.c.h.b16 %v3540
        %v5565 = vunpack.c.l.b16 %v3541
        %v5566 = vunpack.c.h.b16 %v3541
        %v5567 = vunpack.c.l.b16 %v3542
        %v5568 = vunpack.c.h.b16 %v3542
        %v5569 = vunpack.c.l.b16 %v3543
        %v5570 = vunpack.c.h.b16 %v3543
        %v5571 = vunpack.c.l.b16 %v3544
        %v5572 = vunpack.c.h.b16 %v3544
        %v5573 = vunpack.c.l.b16 %v3545
        %v5574 = vunpack.c.h.b16 %v3545
        %v5575 = vunpack.c.l.b16 %v3546
        %v5576 = vunpack.c.h.b16 %v3546
        %v5577 = vunpack.c.l.b16 %v3547
        %v5578 = vunpack.c.h.b16 %v3547
        %v5579 = vunpack.c.l.b16 %v3548
        %v5580 = vunpack.c.h.b16 %v3548
        %v5581 = vunpack.c.l.b16 %v3549
        %v5582 = vunpack.c.h.b16 %v3549
        %v5583 = vunpack.c.l.b16 %v3550
        %v5584 = vunpack.c.h.b16 %v3550
        %v5585 = vunpack.c.l.b16 %v3551
        %v5586 = vunpack.c.h.b16 %v3551
        %v5587 = vunpack.c.l.b16 %v3552
        %v5588 = vunpack.c.h.b16 %v3552
        %v5589 = vunpack.c.l.b16 %v3553
        %v5590 = vunpack.c.h.b16 %v3553
        %v5591 = vunpack.c.l.b16 %v3554
        %v5592 = vunpack.c.h.b16 %v3554
        %v5593 = vunpack.c.l.b16 %v3555
        %v5594 = vunpack.c.h.b16 %v3555
        %v5595 = vunpack.c.l.b16 %v3556
        %v5596 = vunpack.c.h.b16 %v3556
        %v5597 = vunpack.c.l.b16 %v3557
        %v5598 = vunpack.c.h.b16 %v3557
        %v5599 = vunpack.c.l.b16 %v3558
        %v5600 = vunpack.c.h.b16 %v3558
        %v5601 = vunpack.c.l.b16 %v3559
        %v5602 = vunpack.c.h.b16 %v3559
        %v5603 = vunpack.c.l.b16 %v3560
        %v5604 = vunpack.c.h.b16 %v3560
        %v5605 = vunpack.c.l.b16 %v3561
        %v5606 = vunpack.c.h.b16 %v3561
        %v5607 = vunpack.c.l.b16 %v3562
        %v5608 = vunpack.c.h.b16 %v3562
        %v5609 = vunpack.c.l.b16 %v3563
        %v5610 = vunpack.c.h.b16 %v3563
        %v5611 = vunpack.c.l.b16 %v3564
        %v5612 = vunpack.c.h.b16 %v3564
        %v5613 = vunpack.c.l.b16 %v3565
        %v5614 = vunpack.c.h.b16 %v3565
        %v5615 = vunpack.c.l.b16 %v3566
        %v5616 = vunpack.c.h.b16 %v3566
        %v5617 = vunpack.c.l.b16 %v3567
        %v5618 = vunpack.c.h.b16 %v3567
        %v5619 = vunpack.c.l.b16 %v3568
        %v5620 = vunpack.c.h.b16 %v3568
        %v5621 = vunpack.c.l.b16 %v3569
        %v5622 = vunpack.c.h.b16 %v3569
        %v5623 = vunpack.c.l.b16 %v3570
        %v5624 = vunpack.c.h.b16 %v3570
        %v5625 = vunpack.c.l.b16 %v3571
        %v5626 = vunpack.c.h.b16 %v3571
        %v5627 = vunpack.c.l.b16 %v3572
        %v5628 = vunpack.c.h.b16 %v3572
        %v5629 = vunpack.c.l.b16 %v3573
        %v5630 = vunpack.c.h.b16 %v3573
        %v5631 = vunpack.c.l.b16 %v3574
        %v5632 = vunpack.c.h.b16 %v3574
        %v5633 = vunpack.c.l.b16 %v3575
        %v5634 = vunpack.c.h.b16 %v3575
        %v5635 = vunpack.c.l.b16 %v3576
        %v5636 = vunpack.c.h.b16 %v3576
        %v5637 = vunpack.c.l.b16 %v3577
        %v5638 = vunpack.c.h.b16 %v3577
        %v5639 = vunpack.c.l.b16 %v3578
        %v5640 = vunpack.c.h.b16 %v3578
        %v5641 = vunpack.c.l.b16 %v3579
        %v5642 = vunpack.c.h.b16 %v3579
        %v5643 = vunpack.c.l.b16 %v3580
        %v5644 = vunpack.c.h.b16 %v3580
        %v5645 = vunpack.c.l.b16 %v3581
        %v5646 = vunpack.c.h.b16 %v3581
        %v5647 = vunpack.c.l.b16 %v3582
        %v5648 = vunpack.c.h.b16 %v3582
        %v5649 = vunpack.c.l.b16 %v3583
        %v5650 = vunpack.c.h.b16 %v3583
        %v5651 = vunpack.c.l.b16 %v3584
        %v5652 = vunpack.c.h.b16 %v3584
        %v5653 = vunpack.c.l.b16 %v3585
        %v5654 = vunpack.c.h.b16 %v3585
        %v5655 = vunpack.c.l.b16 %v3586
        %v5656 = vunpack.c.h.b16 %v3586
        %v5657 = vunpack.c.l.b16 %v3587
        %v5658 = vunpack.c.h.b16 %v3587
        %v5659 = vunpack.c.l.b16 %v3588
        %v5660 = vunpack.c.h.b16 %v3588
        %v5661 = vunpack.c.l.b16 %v3589
        %v5662 = vunpack.c.h.b16 %v3589
        %v5663 = vunpack.c.l.b16 %v3590
        %v5664 = vunpack.c.h.b16 %v3590
        %v5665 = vunpack.c.l.b16 %v3591
        %v5666 = vunpack.c.h.b16 %v3591
        %v5667 = vunpack.c.l.b16 %v3592
        %v5668 = vunpack.c.h.b16 %v3592
        %v5669 = vunpack.c.l.b16 %v3593
        %v5670 = vunpack.c.h.b16 %v3593
        %v5671 = vunpack.c.l.b16 %v3594
        %v5672 = vunpack.c.h.b16 %v3594
        %v5673 = vunpack.c.l.b16 %v3595
        %v5674 = vunpack.c.h.b16 %v3595
        %v5675 = vunpack.c.l.b16 %v3596
        %v5676 = vunpack.c.h.b16 %v3596
        %v5677 = vunpack.c.l.b16 %v3597
        %v5678 = vunpack.c.h.b16 %v3597
        %v5679 = vunpack.c.l.b16 %v3598
        %v5680 = vunpack.c.h.b16 %v3598
        %v5681 = vunpack.c.l.b16 %v3599
        %v5682 = vunpack.c.h.b16 %v3599
        %v5683 = vunpack.c.l.b16 %v3600
        %v5684 = vunpack.c.h.b16 %v3600
        %v5685 = vunpack.c.l.b16 %v3601
        %v5686 = vunpack.c.h.b16 %v3601
        %v5687 = vunpack.c.l.b16 %v3602
        %v5688 = vunpack.c.h.b16 %v3602
        %v5689 = vunpack.c.l.b16 %v3603
        %v5690 = vunpack.c.h.b16 %v3603
        %v5691 = vunpack.c.l.b16 %v3604
        %v5692 = vunpack.c.h.b16 %v3604
        %v5693 = vunpack.c.l.b16 %v3605
        %v5694 = vunpack.c.h.b16 %v3605
        %v5695 = vunpack.c.l.b16 %v3606
        %v5696 = vunpack.c.h.b16 %v3606
        %v5697 = vunpack.c.l.b16 %v3607
        %v5698 = vunpack.c.h.b16 %v3607
        %v5699 = vunpack.c.l.b16 %v3608
        %v5700 = vunpack.c.h.b16 %v3608
        %v5701 = vunpack.c.l.b16 %v3609
        %v5702 = vunpack.c.h.b16 %v3609
        %v5703 = vunpack.c.l.b16 %v3610
        %v5704 = vunpack.c.h.b16 %v3610
        %v5705 = vunpack.c.l.b16 %v3611
        %v5706 = vunpack.c.h.b16 %v3611
        %v5707 = vunpack.c.l.b16 %v3612
        %v5708 = vunpack.c.h.b16 %v3612
        %v5709 = vunpack.c.l.b16 %v3613
        %v5710 = vunpack.c.h.b16 %v3613
        %v5711 = vunpack.c.l.b16 %v3614
        %v5712 = vunpack.c.h.b16 %v3614
        %v5713 = vunpack.c.l.b16 %v3615
        %v5714 = vunpack.c.h.b16 %v3615
        %v5715 = vunpack.c.l.b16 %v3616
        %v5716 = vunpack.c.h.b16 %v3616
        %v5717 = vunpack.c.l.b16 %v3617
        %v5718 = vunpack.c.h.b16 %v3617
        %v5719 = vunpack.c.l.b16 %v3618
        %v5720 = vunpack.c.h.b16 %v3618
        %v5721 = vunpack.c.l.b16 %v3619
        %v5722 = vunpack.c.h.b16 %v3619
        %v5723 = vunpack.c.l.b16 %v3620
        %v5724 = vunpack.c.h.b16 %v3620
        %v5725 = vunpack.c.l.b16 %v3621
        %v5726 = vunpack.c.h.b16 %v3621
        %v5727 = vunpack.c.l.b16 %v3622
        %v5728 = vunpack.c.h.b16 %v3622
        %v5729 = vunpack.c.l.b16 %v3623
        %v5730 = vunpack.c.h.b16 %v3623
        %v5731 = vunpack.c.l.b16 %v3624
        %v5732 = vunpack.c.h.b16 %v3624
        %v5733 = vunpack.c.l.b16 %v3625
        %v5734 = vunpack.c.h.b16 %v3625
        %v5735 = vunpack.c.l.b16 %v3626
        %v5736 = vunpack.c.h.b16 %v3626
        %v5737 = vunpack.c.l.b16 %v3627
        %v5738 = vunpack.c.h.b16 %v3627
        %v5739 = vunpack.c.l.b16 %v3628
        %v5740 = vunpack.c.h.b16 %v3628
        %v5741 = vunpack.c.l.b16 %v3629
        %v5742 = vunpack.c.h.b16 %v3629
        %v5743 = vunpack.c.l.b16 %v3630
        %v5744 = vunpack.c.h.b16 %v3630
        %v5745 = vunpack.c.l.b16 %v3631
        %v5746 = vunpack.c.h.b16 %v3631
        %v5747 = vunpack.c.l.b16 %v3632
        %v5748 = vunpack.c.h.b16 %v3632
        %v5749 = vunpack.c.l.b16 %v3633
        %v5750 = vunpack.c.h.b16 %v3633
        %v5751 = vunpack.c.l.b16 %v3634
        %v5752 = vunpack.c.h.b16 %v3634
        %v5753 = vunpack.c.l.b16 %v3635
        %v5754 = vunpack.c.h.b16 %v3635
        %v5755 = vunpack.c.l.b16 %v3636
        %v5756 = vunpack.c.h.b16 %v3636
        %v5757 = vunpack.c.l.b16 %v3637
        %v5758 = vunpack.c.h.b16 %v3637
        %v5759 = vunpack.c.l.b16 %v3638
        %v5760 = vunpack.c.h.b16 %v3638
        %v5761 = vunpack.c.l.b16 %v3639
        %v5762 = vunpack.c.h.b16 %v3639
        %v5763 = vunpack.c.l.b16 %v3640
        %v5764 = vunpack.c.h.b16 %v3640
        %v5765 = vunpack.c.l.b16 %v3641
        %v5766 = vunpack.c.h.b16 %v3641
        %v5767 = vunpack.c.l.b16 %v3642
        %v5768 = vunpack.c.h.b16 %v3642
        %v5769 = vunpack.c.l.b16 %v3643
        %v5770 = vunpack.c.h.b16 %v3643
        %v5771 = vunpack.c.l.b16 %v3644
        %v5772 = vunpack.c.h.b16 %v3644
        %v5773 = vunpack.c.l.b16 %v3645
        %v5774 = vunpack.c.h.b16 %v3645
        %v5775 = vunpack.c.l.b16 %v3646
        %v5776 = vunpack.c.h.b16 %v3646
        %v5777 = vunpack.c.l.b16 %v3647
        %v5778 = vunpack.c.h.b16 %v3647
        %v5779 = vunpack.c.l.b16 %v3648
        %v5780 = vunpack.c.h.b16 %v3648
        %v5781 = vunpack.c.l.b16 %v3649
        %v5782 = vunpack.c.h.b16 %v3649
        %v5783 = vunpack.c.l.b16 %v3650
        %v5784 = vunpack.c.h.b16 %v3650
        %v5785 = vunpack.c.l.b16 %v3651
        %v5786 = vunpack.c.h.b16 %v3651
        %v5787 = vunpack.c.l.b16 %v3652
        %v5788 = vunpack.c.h.b16 %v3652
        %v5789 = vunpack.c.l.b16 %v3653
        %v5790 = vunpack.c.h.b16 %v3653
        %v5791 = vunpack.c.l.b16 %v3654
        %v5792 = vunpack.c.h.b16 %v3654
        %v5793 = vunpack.c.l.b16 %v3655
        %v5794 = vunpack.c.h.b16 %v3655
        %v5795 = vunpack.c.l.b16 %v3656
        %v5796 = vunpack.c.h.b16 %v3656
        %v5797 = vunpack.c.l.b16 %v3657
        %v5798 = vunpack.c.h.b16 %v3657
        %v5799 = vunpack.c.l.b16 %v3658
        %v5800 = vunpack.c.h.b16 %v3658
        %v5801 = vunpack.c.l.b16 %v3659
        %v5802 = vunpack.c.h.b16 %v3659
        %v5803 = vunpack.c.l.b16 %v3660
        %v5804 = vunpack.c.h.b16 %v3660
        %v5805 = vunpack.c.l.b16 %v3661
        %v5806 = vunpack.c.h.b16 %v3661
        %v5807 = vunpack.c.l.b16 %v3662
        %v5808 = vunpack.c.h.b16 %v3662
        %v5809 = vunpack.c.l.b16 %v3663
        %v5810 = vunpack.c.h.b16 %v3663
        %v5811 = vunpack.c.l.b16 %v3664
        %v5812 = vunpack.c.h.b16 %v3664
        %v5813 = vunpack.c.l.b16 %v3665
        %v5814 = vunpack.c.h.b16 %v3665
        %v5815 = vunpack.c.l.b16 %v3666
        %v5816 = vunpack.c.h.b16 %v3666
        %v5817 = vunpack.c.l.b16 %v3667
        %v5818 = vunpack.c.h.b16 %v3667
        %v5819 = vunpack.c.l.b16 %v3668
        %v5820 = vunpack.c.h.b16 %v3668
        %v5821 = vunpack.c.l.b16 %v3669
        %v5822 = vunpack.c.h.b16 %v3669
        %v5823 = vunpack.c.l.b16 %v3670
        %v5824 = vunpack.c.h.b16 %v3670
        %v5825 = vunpack.c.l.b16 %v3671
        %v5826 = vunpack.c.h.b16 %v3671
        %v5827 = vunpack.c.l.b16 %v3672
        %v5828 = vunpack.c.h.b16 %v3672
        %v5829 = vunpack.c.l.b16 %v3673
        %v5830 = vunpack.c.h.b16 %v3673
        %v5831 = vunpack.c.l.b16 %v3674
        %v5832 = vunpack.c.h.b16 %v3674
        %v5833 = vunpack.c.l.b16 %v3675
        %v5834 = vunpack.c.h.b16 %v3675
        %v5835 = vunpack.c.l.b16 %v3676
        %v5836 = vunpack.c.h.b16 %v3676
        %v5837 = vunpack.c.l.b16 %v3677
        %v5838 = vunpack.c.h.b16 %v3677
        %v5839 = vunpack.c.l.b16 %v3678
        %v5840 = vunpack.c.h.b16 %v3678
        %v5841 = vunpack.c.l.b16 %v3679
        %v5842 = vunpack.c.h.b16 %v3679
        %v5843 = vunpack.c.l.b16 %v3680
        %v5844 = vunpack.c.h.b16 %v3680
        %v5845 = vunpack.c.l.b16 %v3681
        %v5846 = vunpack.c.h.b16 %v3681
        %v5847 = vunpack.c.l.b16 %v3682
        %v5848 = vunpack.c.h.b16 %v3682
        %v5849 = vunpack.c.l.b16 %v3683
        %v5850 = vunpack.c.h.b16 %v3683
        %v5851 = vunpack.c.l.b16 %v3684
        %v5852 = vunpack.c.h.b16 %v3684
        %v5853 = vunpack.c.l.b16 %v3685
        %v5854 = vunpack.c.h.b16 %v3685
        %v5855 = vunpack.c.l.b16 %v3686
        %v5856 = vunpack.c.h.b16 %v3686
        %v5857 = vunpack.c.l.b16 %v3687
        %v5858 = vunpack.c.h.b16 %v3687
        %v5859 = vunpack.c.l.b16 %v3688
        %v5860 = vunpack.c.h.b16 %v3688
        %v5861 = vunpack.c.l.b16 %v3689
        %v5862 = vunpack.c.h.b16 %v3689
        %v5863 = vunpack.c.l.b16 %v3690
        %v5864 = vunpack.c.h.b16 %v3690
        %v5865 = vunpack.c.l.b16 %v3691
        %v5866 = vunpack.c.h.b16 %v3691
        %v5867 = vunpack.c.l.b16 %v3692
        %v5868 = vunpack.c.h.b16 %v3692
        %v5869 = vunpack.c.l.b16 %v3693
        %v5870 = vunpack.c.h.b16 %v3693
        %v5871 = vunpack.c.l.b16 %v3694
        %v5872 = vunpack.c.h.b16 %v3694
        %v5873 = vunpack.c.l.b16 %v3695
        %v5874 = vunpack.c.h.b16 %v3695
        %v5875 = vunpack.c.l.b16 %v3696
        %v5876 = vunpack.c.h.b16 %v3696
        %v5877 = vunpack.c.l.b16 %v3697
        %v5878 = vunpack.c.h.b16 %v3697
        %v5879 = vunpack.c.l.b16 %v3698
        %v5880 = vunpack.c.h.b16 %v3698
        %v5881 = vunpack.c.l.b16 %v3699
        %v5882 = vunpack.c.h.b16 %v3699
        %v5883 = vunpack.c.l.b16 %v3700
        %v5884 = vunpack.c.h.b16 %v3700
        %v5885 = vunpack.c.l.b16 %v3701
        %v5886 = vunpack.c.h.b16 %v3701
        %v5887 = vunpack.c.l.b16 %v3702
        %v5888 = vunpack.c.h.b16 %v3702
        %v5889 = vunpack.c.l.b16 %v3703
        %v5890 = vunpack.c.h.b16 %v3703
        %v5891 = vunpack.c.l.b16 %v3704
        %v5892 = vunpack.c.h.b16 %v3704
        %v5893 = vunpack.c.l.b16 %v3705
        %v5894 = vunpack.c.h.b16 %v3705
        %v5895 = vunpack.c.l.b16 %v3706
        %v5896 = vunpack.c.h.b16 %v3706
        %v5897 = vunpack.c.l.b16 %v3707
        %v5898 = vunpack.c.h.b16 %v3707
        %v5899 = vunpack.c.l.b16 %v3708
        %v5900 = vunpack.c.h.b16 %v3708
        %v5901 = vunpack.c.l.b16 %v3709
        %v5902 = vunpack.c.h.b16 %v3709
        %v5903 = vunpack.c.l.b16 %v3710
        %v5904 = vunpack.c.h.b16 %v3710
        %v5905 = vunpack.c.l.b16 %v3711
        %v5906 = vunpack.c.h.b16 %v3711
        %v5907 = vunpack.c.l.b16 %v3712
        %v5908 = vunpack.c.h.b16 %v3712
        %v5909 = vunpack.c.l.b16 %v3713
        %v5910 = vunpack.c.h.b16 %v3713
        %v5911 = vunpack.c.l.b16 %v3714
        %v5912 = vunpack.c.h.b16 %v3714
        %v5913 = vunpack.c.l.b16 %v3715
        %v5914 = vunpack.c.h.b16 %v3715
        %v5915 = vunpack.c.l.b16 %v3716
        %v5916 = vunpack.c.h.b16 %v3716
        %v5917 = vunpack.c.l.b16 %v3717
        %v5918 = vunpack.c.h.b16 %v3717
        %v5919 = vunpack.c.l.b16 %v3718
        %v5920 = vunpack.c.h.b16 %v3718
        %v5921 = vunpack.c.l.b16 %v3719
        %v5922 = vunpack.c.h.b16 %v3719
        %v5923 = vunpack.c.l.b16 %v3720
        %v5924 = vunpack.c.h.b16 %v3720
        %v5925 = vunpack.c.l.b16 %v3721
        %v5926 = vunpack.c.h.b16 %v3721
        %v5927 = vunpack.c.l.b16 %v3722
        %v5928 = vunpack.c.h.b16 %v3722
        %v5929 = vunpack.c.l.b16 %v3723
        %v5930 = vunpack.c.h.b16 %v3723
        %v5931 = vunpack.c.l.b16 %v3724
        %v5932 = vunpack.c.h.b16 %v3724
        %v5933 = vunpack.c.l.b16 %v3725
        %v5934 = vunpack.c.h.b16 %v3725
        %v5935 = vunpack.c.l.b16 %v3726
        %v5936 = vunpack.c.h.b16 %v3726
        %v5937 = vunpack.c.l.b16 %v3727
        %v5938 = vunpack.c.h.b16 %v3727
        %v5939 = vunpack.c.l.b16 %v3728
        %v5940 = vunpack.c.h.b16 %v3728
        %v5941 = vunpack.c.l.b16 %v3729
        %v5942 = vunpack.c.h.b16 %v3729
        %v5943 = vunpack.c.l.b16 %v3730
        %v5944 = vunpack.c.h.b16 %v3730
        %v5945 = vunpack.c.l.b16 %v3731
        %v5946 = vunpack.c.h.b16 %v3731
        %v5947 = vunpack.c.l.b16 %v3732
        %v5948 = vunpack.c.h.b16 %v3732
        %v5949 = vunpack.c.l.b16 %v3733
        %v5950 = vunpack.c.h.b16 %v3733
        %v5951 = vunpack.c.l.b16 %v3734
        %v5952 = vunpack.c.h.b16 %v3734
        %v5953 = vunpack.c.l.b16 %v3735
        %v5954 = vunpack.c.h.b16 %v3735
        %v5955 = vunpack.c.l.b16 %v3736
        %v5956 = vunpack.c.h.b16 %v3736
        %v5957 = vunpack.c.l.b16 %v3737
        %v5958 = vunpack.c.h.b16 %v3737
        %v5959 = vunpack.c.l.b16 %v3738
        %v5960 = vunpack.c.h.b16 %v3738
        %v5961 = vunpack.c.l.b16 %v3739
        %v5962 = vunpack.c.h.b16 %v3739
        %v5963 = vunpack.c.l.b16 %v3740
        %v5964 = vunpack.c.h.b16 %v3740
        %v5965 = vunpack.c.l.b16 %v3741
        %v5966 = vunpack.c.h.b16 %v3741
        %v5967 = vunpack.c.l.b16 %v3742
        %v5968 = vunpack.c.h.b16 %v3742
        %v5969 = vunpack.c.l.b16 %v3743
        %v5970 = vunpack.c.h.b16 %v3743
        %v5971 = vunpack.c.l.b16 %v3744
        %v5972 = vunpack.c.h.b16 %v3744
        %v5973 = vunpack.c.l.b16 %v3745
        %v5974 = vunpack.c.h.b16 %v3745
        %v5975 = vunpack.c.l.b16 %v3746
        %v5976 = vunpack.c.h.b16 %v3746
        %v5977 = vunpack.c.l.b16 %v3747
        %v5978 = vunpack.c.h.b16 %v3747
        %v5979 = vunpack.c.l.b16 %v3748
        %v5980 = vunpack.c.h.b16 %v3748
        %v5981 = vunpack.c.l.b16 %v3749
        %v5982 = vunpack.c.h.b16 %v3749
        %v5983 = vunpack.c.l.b16 %v3750
        %v5984 = vunpack.c.h.b16 %v3750
        %v5985 = vunpack.c.l.b16 %v3751
        %v5986 = vunpack.c.h.b16 %v3751
        %v5987 = vunpack.c.l.b16 %v3752
        %v5988 = vunpack.c.h.b16 %v3752
        %v5989 = vunpack.c.l.b16 %v3753
        %v5990 = vunpack.c.h.b16 %v3753
        %v5991 = vunpack.c.l.b16 %v3754
        %v5992 = vunpack.c.h.b16 %v3754
        %v5993 = vunpack.c.l.b16 %v3755
        %v5994 = vunpack.c.h.b16 %v3755
        %v5995 = vunpack.c.l.b16 %v3756
        %v5996 = vunpack.c.h.b16 %v3756
        %v5997 = vunpack.c.l.b16 %v3757
        %v5998 = vunpack.c.h.b16 %v3757
        %v5999 = vunpack.c.l.b16 %v3758
        %v6000 = vunpack.c.h.b16 %v3758
        %v6001 = vunpack.c.l.b16 %v3759
        %v6002 = vunpack.c.h.b16 %v3759
        %v6003 = vunpack.c.l.b16 %v3760
        %v6004 = vunpack.c.h.b16 %v3760
        %v6005 = vunpack.c.l.b16 %v3761
        %v6006 = vunpack.c.h.b16 %v3761
        %v6007 = vunpack.c.l.b16 %v3762
        %v6008 = vunpack.c.h.b16 %v3762
        %v6009 = vunpack.c.l.b16 %v3763
        %v6010 = vunpack.c.h.b16 %v3763
        %v6011 = vunpack.c.l.b16 %v3764
        %v6012 = vunpack.c.h.b16 %v3764
        %v6013 = vunpack.c.l.b16 %v3765
        %v6014 = vunpack.c.h.b16 %v3765
        %v6015 = vunpack.c.l.b16 %v3766
        %v6016 = vunpack.c.h.b16 %v3766
        %v6017 = vunpack.c.l.b16 %v3767
        %v6018 = vunpack.c.h.b16 %v3767
        %v6019 = vunpack.c.l.b16 %v3768
        %v6020 = vunpack.c.h.b16 %v3768
        %v6021 = vunpack.c.l.b16 %v3769
        %v6022 = vunpack.c.h.b16 %v3769
        %v6023 = vunpack.c.l.b16 %v3770
        %v6024 = vunpack.c.h.b16 %v3770
        %v6025 = vunpack.c.l.b16 %v3771
        %v6026 = vunpack.c.h.b16 %v3771
        %v6027 = vunpack.c.l.b16 %v3772
        %v6028 = vunpack.c.h.b16 %v3772
        %v6029 = vunpack.c.l.b16 %v3773
        %v6030 = vunpack.c.h.b16 %v3773
        %v6031 = vunpack.c.l.b16 %v3774
        %v6032 = vunpack.c.h.b16 %v3774
        %v6033 = vunpack.c.l.b16 %v3775
        %v6034 = vunpack.c.h.b16 %v3775
        %v6035 = vunpack.c.l.b16 %v3776
        %v6036 = vunpack.c.h.b16 %v3776
        %v6037 = vunpack.c.l.b16 %v3777
        %v6038 = vunpack.c.h.b16 %v3777
        %v6039 = vunpack.c.l.b16 %v3778
        %v6040 = vunpack.c.h.b16 %v3778
        %v6041 = vunpack.c.l.b16 %v3779
        %v6042 = vunpack.c.h.b16 %v3779
        %v6043 = vunpack.c.l.b16 %v3780
        %v6044 = vunpack.c.h.b16 %v3780
        %v6045 = vunpack.c.l.b16 %v3781
        %v6046 = vunpack.c.h.b16 %v3781
        %v6047 = vunpack.c.l.b16 %v3782
        %v6048 = vunpack.c.h.b16 %v3782
        %v6049 = vunpack.c.l.b16 %v3783
        %v6050 = vunpack.c.h.b16 %v3783
        %v6051 = vunpack.c.l.b16 %v3784
        %v6052 = vunpack.c.h.b16 %v3784
        %v6053 = vunpack.c.l.b16 %v3785
        %v6054 = vunpack.c.h.b16 %v3785
        %v6055 = vunpack.c.l.b16 %v3786
        %v6056 = vunpack.c.h.b16 %v3786
        %v6057 = vunpack.c.l.b16 %v3787
        %v6058 = vunpack.c.h.b16 %v3787
        %v6059 = vunpack.c.l.b16 %v3788
        %v6060 = vunpack.c.h.b16 %v3788
        %v6061 = vunpack.c.l.b16 %v3789
        %v6062 = vunpack.c.h.b16 %v3789
        %v6063 = vunpack.c.l.b16 %v3790
        %v6064 = vunpack.c.h.b16 %v3790
        %v6065 = vunpack.c.l.b16 %v3791
        %v6066 = vunpack.c.h.b16 %v3791
        %v6067 = vunpack.c.l.b16 %v3792
        %v6068 = vunpack.c.h.b16 %v3792
        %v6069 = vunpack.c.l.b16 %v3793
        %v6070 = vunpack.c.h.b16 %v3793
        %v6071 = vunpack.c.l.b16 %v3794
        %v6072 = vunpack.c.h.b16 %v3794
        %v6073 = vunpack.c.l.b16 %v3795
        %v6074 = vunpack.c.h.b16 %v3795
        %v6075 = vunpack.c.l.b16 %v3796
        %v6076 = vunpack.c.h.b16 %v3796
        %v6077 = vunpack.c.l.b16 %v3797
        %v6078 = vunpack.c.h.b16 %v3797
        %v6079 = vunpack.c.l.b16 %v3798
        %v6080 = vunpack.c.h.b16 %v3798
        %v6081 = vunpack.c.l.b16 %v3799
        %v6082 = vunpack.c.h.b16 %v3799
        %v6083 = vunpack.c.l.b16 %v3800
        %v6084 = vunpack.c.h.b16 %v3800
        %v6085 = vunpack.c.l.b16 %v3801
        %v6086 = vunpack.c.h.b16 %v3801
        %v6087 = vunpack.c.l.b16 %v3802
        %v6088 = vunpack.c.h.b16 %v3802
        %v6089 = vunpack.c.l.b16 %v3803
        %v6090 = vunpack.c.h.b16 %v3803
        %v6091 = vunpack.c.l.b16 %v3804
        %v6092 = vunpack.c.h.b16 %v3804
        %v6093 = vunpack.c.l.b16 %v3805
        %v6094 = vunpack.c.h.b16 %v3805
        %v6095 = vunpack.c.l.b16 %v3806
        %v6096 = vunpack.c.h.b16 %v3806
        %v6097 = vunpack.c.l.b16 %v3807
        %v6098 = vunpack.c.h.b16 %v3807
        %v6099 = vunpack.c.l.b16 %v3808
        %v6100 = vunpack.c.h.b16 %v3808
        %v6101 = vunpack.c.l.b16 %v3809
        %v6102 = vunpack.c.h.b16 %v3809
        %v6103 = vunpack.c.l.b16 %v3810
        %v6104 = vunpack.c.h.b16 %v3810
        %v6105 = vunpack.c.l.b16 %v3811
        %v6106 = vunpack.c.h.b16 %v3811
        %v6107 = vunpack.c.l.b16 %v3812
        %v6108 = vunpack.c.h.b16 %v3812
        %v6109 = vunpack.c.l.b16 %v3813
        %v6110 = vunpack.c.h.b16 %v3813
        %v6111 = vunpack.c.l.b16 %v3814
        %v6112 = vunpack.c.h.b16 %v3814
        %v6113 = vunpack.c.l.b16 %v3815
        %v6114 = vunpack.c.h.b16 %v3815
        %v6115 = vunpack.c.l.b16 %v3816
        %v6116 = vunpack.c.h.b16 %v3816
        %v6117 = vunpack.c.l.b16 %v3817
        %v6118 = vunpack.c.h.b16 %v3817
        %v6119 = vunpack.c.l.b16 %v3818
        %v6120 = vunpack.c.h.b16 %v3818
        %v6121 = vunpack.c.l.b16 %v3819
        %v6122 = vunpack.c.h.b16 %v3819
        %v6123 = vunpack.c.l.b16 %v3820
        %v6124 = vunpack.c.h.b16 %v3820
        %v6125 = vunpack.c.l.b16 %v3821
        %v6126 = vunpack.c.h.b16 %v3821
        %v6127 = vunpack.c.l.b16 %v3822
        %v6128 = vunpack.c.h.b16 %v3822
        %v6129 = vunpack.c.l.b16 %v3823
        %v6130 = vunpack.c.h.b16 %v3823
        %v6131 = vunpack.c.l.b16 %v3824
        %v6132 = vunpack.c.h.b16 %v3824
        %v6133 = vunpack.c.l.b16 %v3825
        %v6134 = vunpack.c.h.b16 %v3825
        %v6135 = vunpack.c.l.b16 %v3826
        %v6136 = vunpack.c.h.b16 %v3826
        %v6137 = vunpack.c.l.b16 %v3827
        %v6138 = vunpack.c.h.b16 %v3827
        %v6139 = vunpack.c.l.b16 %v3828
        %v6140 = vunpack.c.h.b16 %v3828
        %v6141 = vunpack.c.l.b16 %v3829
        %v6142 = vunpack.c.h.b16 %v3829
        %v6143 = vunpack.c.l.b16 %v3830
        %v6144 = vunpack.c.h.b16 %v3830
        %v6145 = vunpack.c.l.b16 %v3831
        %v6146 = vunpack.c.h.b16 %v3831
        %v6147 = vunpack.c.l.b16 %v3832
        %v6148 = vunpack.c.h.b16 %v3832
        %v6149 = vunpack.c.l.b16 %v3833
        %v6150 = vunpack.c.h.b16 %v3833
        %v6151 = vunpack.c.l.b16 %v3834
        %v6152 = vunpack.c.h.b16 %v3834
        %v6153 = vunpack.c.l.b16 %v3835
        %v6154 = vunpack.c.h.b16 %v3835
        %v6155 = vunpack.c.l.b16 %v3836
        %v6156 = vunpack.c.h.b16 %v3836
        %v6157 = vunpack.c.l.b16 %v3837
        %v6158 = vunpack.c.h.b16 %v3837
        %v6159 = vunpack.c.l.b16 %v3838
        %v6160 = vunpack.c.h.b16 %v3838
        %v6161 = vunpack.c.l.b16 %v3839
        %v6162 = vunpack.c.h.b16 %v3839
        %v6163 = vunpack.c.l.b16 %v3840
        %v6164 = vunpack.c.h.b16 %v3840
        %v6165 = vunpack.c.l.b16 %v3841
        %v6166 = vunpack.c.h.b16 %v3841
        %v6167 = vunpack.c.l.b16 %v3842
        %v6168 = vunpack.c.h.b16 %v3842
        %v6169 = vunpack.c.l.b16 %v3843
        %v6170 = vunpack.c.h.b16 %v3843
        %v6171 = vunpack.c.l.b16 %v3844
        %v6172 = vunpack.c.h.b16 %v3844
        %v6173 = vunpack.c.l.b16 %v3845
        %v6174 = vunpack.c.h.b16 %v3845
        %v6175 = vunpack.c.l.b16 %v3846
        %v6176 = vunpack.c.h.b16 %v3846
        %v6177 = vunpack.c.l.b16 %v3847
        %v6178 = vunpack.c.h.b16 %v3847
        %v6179 = vunpack.c.l.b16 %v3848
        %v6180 = vunpack.c.h.b16 %v3848
        %v6181 = vunpack.c.l.b16 %v3849
        %v6182 = vunpack.c.h.b16 %v3849
        %v6183 = vunpack.c.l.b16 %v3850
        %v6184 = vunpack.c.h.b16 %v3850
        %v6185 = vunpack.c.l.b16 %v3851
        %v6186 = vunpack.c.h.b16 %v3851
        %v6187 = vunpack.c.l.b16 %v3852
        %v6188 = vunpack.c.h.b16 %v3852
        %v6189 = vunpack.c.l.b16 %v3853
        %v6190 = vunpack.c.h.b16 %v3853
        %v6191 = vunpack.c.l.b16 %v3854
        %v6192 = vunpack.c.h.b16 %v3854
        %v6193 = vunpack.c.l.b16 %v3855
        %v6194 = vunpack.c.h.b16 %v3855
        %v6195 = vunpack.c.l.b16 %v3856
        %v6196 = vunpack.c.h.b16 %v3856
        %v6197 = vunpack.c.l.b16 %v3857
        %v6198 = vunpack.c.h.b16 %v3857
        %v6199 = vunpack.c.l.b16 %v3858
        %v6200 = vunpack.c.h.b16 %v3858
        %v6201 = vunpack.c.l.b16 %v3859
        %v6202 = vunpack.c.h.b16 %v3859
        %v6203 = vunpack.c.l.b16 %v3860
        %v6204 = vunpack.c.h.b16 %v3860
        %v6205 = vunpack.c.l.b16 %v3861
        %v6206 = vunpack.c.h.b16 %v3861
        %v6207 = vunpack.c.l.b16 %v3862
        %v6208 = vunpack.c.h.b16 %v3862
        %v6209 = vunpack.c.l.b16 %v3863
        %v6210 = vunpack.c.h.b16 %v3863
        %v6211 = vunpack.c.l.b16 %v3864
        %v6212 = vunpack.c.h.b16 %v3864
        %v6213 = vunpack.c.l.b16 %v3865
        %v6214 = vunpack.c.h.b16 %v3865
        %v6215 = vunpack.c.l.b16 %v3866
        %v6216 = vunpack.c.h.b16 %v3866
        %v6217 = vunpack.c.l.b16 %v3867
        %v6218 = vunpack.c.h.b16 %v3867
        %v6219 = vunpack.c.l.b16 %v3868
        %v6220 = vunpack.c.h.b16 %v3868
        %v6221 = vunpack.c.l.b16 %v3869
        %v6222 = vunpack.c.h.b16 %v3869
        %v6223 = vunpack.c.l.b16 %v3870
        %v6224 = vunpack.c.h.b16 %v3870
        %v6225 = vunpack.c.l.b16 %v3871
        %v6226 = vunpack.c.h.b16 %v3871
        %v6227 = vunpack.c.l.b16 %v3872
        %v6228 = vunpack.c.h.b16 %v3872
        %v6229 = vunpack.c.l.b16 %v3873
        %v6230 = vunpack.c.h.b16 %v3873
        %v6231 = vunpack.c.l.b16 %v3874
        %v6232 = vunpack.c.h.b16 %v3874
        %v6233 = vunpack.c.l.b16 %v3875
        %v6234 = vunpack.c.h.b16 %v3875
        %v6235 = vunpack.c.l.b16 %v3876
        %v6236 = vunpack.c.h.b16 %v3876
        %v6237 = vunpack.c.l.b16 %v3877
        %v6238 = vunpack.c.h.b16 %v3877
        %v6239 = vunpack.c.l.b16 %v3878
        %v6240 = vunpack.c.h.b16 %v3878
        %v6241 = vunpack.c.l.b16 %v3879
        %v6242 = vunpack.c.h.b16 %v3879
        %v6243 = vunpack.c.l.b16 %v3880
        %v6244 = vunpack.c.h.b16 %v3880
        %v6245 = vunpack.c.l.b16 %v3881
        %v6246 = vunpack.c.h.b16 %v3881
        %v6247 = vunpack.c.l.b16 %v3882
        %v6248 = vunpack.c.h.b16 %v3882
        %v6249 = vunpack.c.l.b16 %v3883
        %v6250 = vunpack.c.h.b16 %v3883
        %v6251 = vunpack.c.l.b16 %v3884
        %v6252 = vunpack.c.h.b16 %v3884
        %v6253 = vunpack.c.l.b16 %v3885
        %v6254 = vunpack.c.h.b16 %v3885
        %v6255 = vunpack.c.l.b16 %v3886
        %v6256 = vunpack.c.h.b16 %v3886
        %v6257 = vunpack.c.l.b16 %v3887
        %v6258 = vunpack.c.h.b16 %v3887
        %v6259 = vunpack.c.l.b16 %v3888
        %v6260 = vunpack.c.h.b16 %v3888
        %v6261 = vunpack.c.l.b16 %v3889
        %v6262 = vunpack.c.h.b16 %v3889
        %v6263 = vunpack.c.l.b16 %v3890
        %v6264 = vunpack.c.h.b16 %v3890
        %v6265 = vunpack.c.l.b16 %v3891
        %v6266 = vunpack.c.h.b16 %v3891
        %v6267 = vunpack.c.l.b16 %v3892
        %v6268 = vunpack.c.h.b16 %v3892
        %v6269 = vunpack.c.l.b16 %v3893
        %v6270 = vunpack.c.h.b16 %v3893
        %v6271 = vunpack.c.l.b16 %v3894
        %v6272 = vunpack.c.h.b16 %v3894
        %v6273 = vunpack.c.l.b16 %v3895
        %v6274 = vunpack.c.h.b16 %v3895
        %v6275 = vunpack.c.l.b16 %v3896
        %v6276 = vunpack.c.h.b16 %v3896
        %v6277 = vunpack.c.l.b16 %v3897
        %v6278 = vunpack.c.h.b16 %v3897
        %v6279 = vunpack.c.l.b16 %v3898
        %v6280 = vunpack.c.h.b16 %v3898
        %v6281 = vunpack.c.l.b16 %v3899
        %v6282 = vunpack.c.h.b16 %v3899
        %v6283 = vunpack.c.l.b16 %v3900
        %v6284 = vunpack.c.h.b16 %v3900
        %v6285 = vunpack.c.l.b16 %v3901
        %v6286 = vunpack.c.h.b16 %v3901
        %v6287 = vunpack.c.l.b16 %v3902
        %v6288 = vunpack.c.h.b16 %v3902
        %v6289 = vunpack.c.l.b16 %v3903
        %v6290 = vunpack.c.h.b16 %v3903
        %v6291 = vunpack.c.l.b16 %v3904
        %v6292 = vunpack.c.h.b16 %v3904
        %v6293 = vunpack.c.l.b16 %v3905
        %v6294 = vunpack.c.h.b16 %v3905
        %v6295 = vunpack.c.l.b16 %v3906
        %v6296 = vunpack.c.h.b16 %v3906
        %v6297 = vunpack.c.l.b16 %v3907
        %v6298 = vunpack.c.h.b16 %v3907
        %v6299 = vunpack.c.l.b16 %v3908
        %v6300 = vunpack.c.h.b16 %v3908
        %v6301 = vunpack.c.l.b16 %v3909
        %v6302 = vunpack.c.h.b16 %v3909
        %v6303 = vunpack.c.l.b16 %v3910
        %v6304 = vunpack.c.h.b16 %v3910
        %v6305 = vunpack.c.l.b16 %v3911
        %v6306 = vunpack.c.h.b16 %v3911
        %v6307 = vunpack.c.l.b16 %v3912
        %v6308 = vunpack.c.h.b16 %v3912
        %v6309 = vunpack.c.l.b16 %v3913
        %v6310 = vunpack.c.h.b16 %v3913
        %v6311 = vunpack.c.l.b16 %v3914
        %v6312 = vunpack.c.h.b16 %v3914
        %v6313 = vunpack.c.l.b16 %v3915
        %v6314 = vunpack.c.h.b16 %v3915
        %v6315 = vunpack.c.l.b16 %v3916
        %v6316 = vunpack.c.h.b16 %v3916
        %v6317 = vunpack.c.l.b16 %v3917
        %v6318 = vunpack.c.h.b16 %v3917
        %v6319 = vunpack.c.l.b16 %v3918
        %v6320 = vunpack.c.h.b16 %v3918
        %v6321 = vunpack.c.l.b16 %v3919
        %v6322 = vunpack.c.h.b16 %v3919
        %v6323 = vunpack.c.l.b16 %v3920
        %v6324 = vunpack.c.h.b16 %v3920
        %v6325 = vunpack.c.l.b16 %v3921
        %v6326 = vunpack.c.h.b16 %v3921
        %v6327 = vunpack.c.l.b16 %v3922
        %v6328 = vunpack.c.h.b16 %v3922
        %v6329 = vunpack.c.l.b16 %v3923
        %v6330 = vunpack.c.h.b16 %v3923
        %v6331 = vunpack.c.l.b16 %v3924
        %v6332 = vunpack.c.h.b16 %v3924
        %v6333 = vunpack.c.l.b16 %v3925
        %v6334 = vunpack.c.h.b16 %v3925
        %v6335 = vunpack.c.l.b16 %v3926
        %v6336 = vunpack.c.h.b16 %v3926
        %v6337 = vunpack.c.l.b16 %v3927
        %v6338 = vunpack.c.h.b16 %v3927
        %v6339 = vunpack.c.l.b16 %v3928
        %v6340 = vunpack.c.h.b16 %v3928
        %v6341 = vunpack.c.l.b16 %v3929
        %v6342 = vunpack.c.h.b16 %v3929
        %v6343 = vunpack.c.l.b16 %v3930
        %v6344 = vunpack.c.h.b16 %v3930
        %v6345 = vunpack.c.l.b16 %v3931
        %v6346 = vunpack.c.h.b16 %v3931
        %v6347 = vunpack.c.l.b16 %v3932
        %v6348 = vunpack.c.h.b16 %v3932
        %v6349 = vunpack.c.l.b16 %v3933
        %v6350 = vunpack.c.h.b16 %v3933
        %v6351 = vunpack.c.l.b16 %v3934
        %v6352 = vunpack.c.h.b16 %v3934
        %v6353 = vunpack.c.l.b16 %v3935
        %v6354 = vunpack.c.h.b16 %v3935
        %v6355 = vunpack.c.l.b16 %v3936
        %v6356 = vunpack.c.h.b16 %v3936
        %v6357 = vunpack.c.l.b16 %v3937
        %v6358 = vunpack.c.h.b16 %v3937
        %v6359 = vunpack.c.l.b16 %v3938
        %v6360 = vunpack.c.h.b16 %v3938
        %v6361 = vunpack.c.l.b16 %v3939
        %v6362 = vunpack.c.h.b16 %v3939
        %v6363 = vunpack.c.l.b16 %v3940
        %v6364 = vunpack.c.h.b16 %v3940
        %v6365 = vunpack.c.l.b16 %v3941
        %v6366 = vunpack.c.h.b16 %v3941
        %v6367 = vunpack.c.l.b16 %v3942
        %v6368 = vunpack.c.h.b16 %v3942
        %v6369 = vunpack.c.l.b16 %v3943
        %v6370 = vunpack.c.h.b16 %v3943
        %v6371 = vunpack.c.l.b16 %v3944
        %v6372 = vunpack.c.h.b16 %v3944
        %v6373 = vunpack.c.l.b16 %v3945
        %v6374 = vunpack.c.h.b16 %v3945
        %v6375 = vunpack.c.l.b16 %v3946
        %v6376 = vunpack.c.h.b16 %v3946
        %v6377 = vunpack.c.l.b16 %v3947
        %v6378 = vunpack.c.h.b16 %v3947
        %v6379 = vunpack.c.l.b16 %v3948
        %v6380 = vunpack.c.h.b16 %v3948
        %v6381 = vunpack.c.l.b16 %v3949
        %v6382 = vunpack.c.h.b16 %v3949
        %v6383 = vunpack.c.l.b16 %v3950
        %v6384 = vunpack.c.h.b16 %v3950
        %v6385 = vunpack.c.l.b16 %v3951
        %v6386 = vunpack.c.h.b16 %v3951
        %v6387 = vunpack.c.l.b16 %v3952
        %v6388 = vunpack.c.h.b16 %v3952
        %v6389 = vunpack.c.l.b16 %v3953
        %v6390 = vunpack.c.h.b16 %v3953
        %v6391 = vunpack.c.l.b16 %v3954
        %v6392 = vunpack.c.h.b16 %v3954
        %v6393 = vunpack.c.l.b16 %v3955
        %v6394 = vunpack.c.h.b16 %v3955
        %v6395 = vunpack.c.l.b16 %v3956
        %v6396 = vunpack.c.h.b16 %v3956
        %v6397 = vunpack.c.l.b16 %v3957
        %v6398 = vunpack.c.h.b16 %v3957
        %v6399 = vunpack.c.l.b16 %v3958
        %v6400 = vunpack.c.h.b16 %v3958
        %v6401 = vunpack.c.l.b16 %v3959
        %v6402 = vunpack.c.h.b16 %v3959
        %v6403 = vunpack.c.l.b16 %v3960
        %v6404 = vunpack.c.h.b16 %v3960
        %v6405 = vunpack.c.l.b16 %v3961
        %v6406 = vunpack.c.h.b16 %v3961
        %v6407 = vunpack.c.l.b16 %v3962
        %v6408 = vunpack.c.h.b16 %v3962
        %v6409 = vunpack.c.l.b16 %v3963
        %v6410 = vunpack.c.h.b16 %v3963
        %v6411 = vunpack.c.l.b16 %v3964
        %v6412 = vunpack.c.h.b16 %v3964
        %v6413 = vunpack.c.l.b16 %v3965
        %v6414 = vunpack.c.h.b16 %v3965
        %v6415 = vunpack.c.l.b16 %v3966
        %v6416 = vunpack.c.h.b16 %v3966
        %v6417 = vunpack.c.l.b16 %v3967
        %v6418 = vunpack.c.h.b16 %v3967
        %v6419 = vunpack.c.l.b16 %v3968
        %v6420 = vunpack.c.h.b16 %v3968
        %v6421 = vunpack.c.l.b16 %v3969
        %v6422 = vunpack.c.h.b16 %v3969
        %v6423 = vunpack.c.l.b16 %v3970
        %v6424 = vunpack.c.h.b16 %v3970
        %v6425 = vunpack.c.l.b16 %v3971
        %v6426 = vunpack.c.h.b16 %v3971
        %v6427 = vunpack.c.l.b16 %v3972
        %v6428 = vunpack.c.h.b16 %v3972
        %v6429 = vunpack.c.l.b16 %v3973
        %v6430 = vunpack.c.h.b16 %v3973
        %v6431 = vunpack.c.l.b16 %v3974
        %v6432 = vunpack.c.h.b16 %v3974
        %v6433 = vunpack.c.l.b16 %v3975
        %v6434 = vunpack.c.h.b16 %v3975
        %v6435 = vunpack.c.l.b16 %v3976
        %v6436 = vunpack.c.h.b16 %v3976
        %v6437 = vunpack.c.l.b16 %v3977
        %v6438 = vunpack.c.h.b16 %v3977
        %v6439 = vunpack.c.l.b16 %v3978
        %v6440 = vunpack.c.h.b16 %v3978
        %v6441 = vunpack.c.l.b16 %v3979
        %v6442 = vunpack.c.h.b16 %v3979
        %v6443 = vunpack.c.l.b16 %v3980
        %v6444 = vunpack.c.h.b16 %v3980
        %v6445 = vunpack.c.l.b16 %v3981
        %v6446 = vunpack.c.h.b16 %v3981
        %v6447 = vunpack.c.l.b16 %v3982
        %v6448 = vunpack.c.h.b16 %v3982
        %v6449 = vunpack.c.l.b16 %v3983
        %v6450 = vunpack.c.h.b16 %v3983
        %v6451 = vunpack.c.l.b16 %v3984
        %v6452 = vunpack.c.h.b16 %v3984
        %v6453 = vunpack.c.l.b16 %v3985
        %v6454 = vunpack.c.h.b16 %v3985
        %v6455 = vunpack.c.l.b16 %v3986
        %v6456 = vunpack.c.h.b16 %v3986
        %v6457 = vunpack.c.l.b16 %v3987
        %v6458 = vunpack.c.h.b16 %v3987
        %v6459 = vunpack.c.l.b16 %v3988
        %v6460 = vunpack.c.h.b16 %v3988
        %v6461 = vunpack.c.l.b16 %v3989
        %v6462 = vunpack.c.h.b16 %v3989
        %v6463 = vunpack.c.l.b16 %v3990
        %v6464 = vunpack.c.h.b16 %v3990
        %v6465 = vunpack.c.l.b16 %v3991
        %v6466 = vunpack.c.h.b16 %v3991
        %v6467 = vunpack.c.l.b16 %v3992
        %v6468 = vunpack.c.h.b16 %v3992
        %v6469 = vunpack.c.l.b16 %v3993
        %v6470 = vunpack.c.h.b16 %v3993
        %v6471 = vunpack.c.l.b16 %v3994
        %v6472 = vunpack.c.h.b16 %v3994
        %v6473 = vunpack.c.l.b16 %v3995
        %v6474 = vunpack.c.h.b16 %v3995
        %v6475 = vunpack.c.l.b16 %v3996
        %v6476 = vunpack.c.h.b16 %v3996
        %v6477 = vunpack.c.l.b16 %v3997
        %v6478 = vunpack.c.h.b16 %v3997
        %v6479 = vunpack.c.l.b16 %v3998
        %v6480 = vunpack.c.h.b16 %v3998
        %v6481 = vunpack.c.l.b16 %v3999
        %v6482 = vunpack.c.h.b16 %v3999
        %v6483 = vunpack.c.l.b16 %v4000
        %v6484 = vunpack.c.h.b16 %v4000
        %v6485 = vunpack.c.l.b16 %v4001
        %v6486 = vunpack.c.h.b16 %v4001
        %v6487 = vunpack.c.l.b16 %v4002
        %v6488 = vunpack.c.h.b16 %v4002
        %v6489 = vunpack.c.l.b16 %v4003
        %v6490 = vunpack.c.h.b16 %v4003
        %v6491 = vunpack.c.l.b16 %v4004
        %v6492 = vunpack.c.h.b16 %v4004
        %v6493 = vunpack.c.l.b16 %v4005
        %v6494 = vunpack.c.h.b16 %v4005
        %v6495 = vunpack.c.l.b16 %v4006
        %v6496 = vunpack.c.h.b16 %v4006
        %v6497 = vunpack.c.l.b16 %v4007
        %v6498 = vunpack.c.h.b16 %v4007
        %v6499 = vunpack.c.l.b16 %v4008
        %v6500 = vunpack.c.h.b16 %v4008
        %v6501 = vunpack.c.l.b16 %v4009
        %v6502 = vunpack.c.h.b16 %v4009
        %v6503 = vunpack.c.l.b16 %v4010
        %v6504 = vunpack.c.h.b16 %v4010
        %v6505 = vunpack.c.l.b16 %v4011
        %v6506 = vunpack.c.h.b16 %v4011
        %v6507 = vunpack.c.l.b16 %v4012
        %v6508 = vunpack.c.h.b16 %v4012
        %v6509 = vunpack.c.l.b16 %v4013
        %v6510 = vunpack.c.h.b16 %v4013
        %v6511 = vunpack.c.l.b16 %v4014
        %v6512 = vunpack.c.h.b16 %v4014
        %v6513 = vunpack.c.l.b16 %v4015
        %v6514 = vunpack.c.h.b16 %v4015
        %v6515 = vunpack.c.l.b16 %v4016
        %v6516 = vunpack.c.h.b16 %v4016
        %v6517 = vunpack.c.l.b16 %v4017
        %v6518 = vunpack.c.h.b16 %v4017
        %v6519 = vunpack.c.l.b16 %v4018
        %v6520 = vunpack.c.h.b16 %v4018
        %v6521 = vunpack.c.l.b16 %v4019
        %v6522 = vunpack.c.h.b16 %v4019
        %v6523 = vunpack.c.l.b16 %v4020
        %v6524 = vunpack.c.h.b16 %v4020
        %v6525 = vunpack.c.l.b16 %v4021
        %v6526 = vunpack.c.h.b16 %v4021
        %v6527 = vunpack.c.l.b16 %v4022
        %v6528 = vunpack.c.h.b16 %v4022
        %v6529 = vunpack.c.l.b16 %v4023
        %v6530 = vunpack.c.h.b16 %v4023
        %v6531 = vunpack.c.l.b16 %v4024
        %v6532 = vunpack.c.h.b16 %v4024
        %v6533 = vunpack.c.l.b16 %v4025
        %v6534 = vunpack.c.h.b16 %v4025
        %v6535 = vunpack.c.l.b16 %v4026
        %v6536 = vunpack.c.h.b16 %v4026
        %v6537 = vunpack.c.l.b16 %v4027
        %v6538 = vunpack.c.h.b16 %v4027
        %v6539 = vunpack.c.l.b16 %v4028
        %v6540 = vunpack.c.h.b16 %v4028
        %v6541 = vunpack.c.l.b16 %v4029
        %v6542 = vunpack.c.h.b16 %v4029
        %v6543 = vunpack.c.l.b16 %v4030
        %v6544 = vunpack.c.h.b16 %v4030
        %v6545 = vunpack.c.l.b16 %v4031
        %v6546 = vunpack.c.h.b16 %v4031
        %v6547 = vunpack.c.l.b16 %v4032
        %v6548 = vunpack.c.h.b16 %v4032
        %v6549 = vunpack.c.l.b16 %v4033
        %v6550 = vunpack.c.h.b16 %v4033
        %v6551 = vunpack.c.l.b16 %v4034
        %v6552 = vunpack.c.h.b16 %v4034
        %v6553 = vunpack.c.l.b16 %v4035
        %v6554 = vunpack.c.h.b16 %v4035
        %v6555 = vunpack.c.l.b16 %v4036
        %v6556 = vunpack.c.h.b16 %v4036
        %v6557 = vunpack.c.l.b16 %v4037
        %v6558 = vunpack.c.h.b16 %v4037
        %v6559 = vunpack.c.l.b16 %v4038
        %v6560 = vunpack.c.h.b16 %v4038
        %v6561 = vunpack.c.l.b16 %v4039
        %v6562 = vunpack.c.h.b16 %v4039
        %v6563 = vunpack.c.l.b16 %v4040
        %v6564 = vunpack.c.h.b16 %v4040
        %v6565 = vunpack.c.l.b16 %v4041
        %v6566 = vunpack.c.h.b16 %v4041
        %v6567 = vunpack.c.l.b16 %v4042
        %v6568 = vunpack.c.h.b16 %v4042
        %v6569 = vunpack.c.l.b16 %v4043
        %v6570 = vunpack.c.h.b16 %v4043
        %v6571 = vunpack.c.l.b16 %v4044
        %v6572 = vunpack.c.h.b16 %v4044
        %v6573 = vunpack.c.l.b16 %v4045
        %v6574 = vunpack.c.h.b16 %v4045
        %v6575 = vunpack.c.l.b16 %v4046
        %v6576 = vunpack.c.h.b16 %v4046
        %v6577 = vunpack.c.l.b16 %v4047
        %v6578 = vunpack.c.h.b16 %v4047
        %v6579 = vunpack.c.l.b16 %v4048
        %v6580 = vunpack.c.h.b16 %v4048
        %v6581 = vunpack.c.l.b16 %v4049
        %v6582 = vunpack.c.h.b16 %v4049
        %v6583 = vunpack.c.l.b16 %v4050
        %v6584 = vunpack.c.h.b16 %v4050
        %v6585 = vunpack.c.l.b16 %v4051
        %v6586 = vunpack.c.h.b16 %v4051
        %v6587 = vunpack.c.l.b16 %v4052
        %v6588 = vunpack.c.h.b16 %v4052
        %v6589 = vunpack.c.l.b16 %v4053
        %v6590 = vunpack.c.h.b16 %v4053
        %v6591 = vunpack.c.l.b16 %v4054
        %v6592 = vunpack.c.h.b16 %v4054
        %v6593 = vunpack.c.l.b16 %v4055
        %v6594 = vunpack.c.h.b16 %v4055
        %v6595 = vunpack.c.l.b16 %v4056
        %v6596 = vunpack.c.h.b16 %v4056
        %v6597 = vunpack.c.l.b16 %v4057
        %v6598 = vunpack.c.h.b16 %v4057
        %v6599 = vunpack.c.l.b16 %v4058
        %v6600 = vunpack.c.h.b16 %v4058
        %v6601 = vunpack.c.l.b16 %v4059
        %v6602 = vunpack.c.h.b16 %v4059
        %v6603 = vunpack.c.l.b16 %v4060
        %v6604 = vunpack.c.h.b16 %v4060
        %v6605 = vunpack.c.l.b16 %v4061
        %v6606 = vunpack.c.h.b16 %v4061
        %v6607 = vunpack.c.l.b16 %v4062
        %v6608 = vunpack.c.h.b16 %v4062
        %v6609 = vunpack.c.l.b16 %v4063
        %v6610 = vunpack.c.h.b16 %v4063
        %v6611 = vunpack.c.l.b16 %v4064
        %v6612 = vunpack.c.h.b16 %v4064
        %v6613 = vunpack.c.l.b16 %v4065
        %v6614 = vunpack.c.h.b16 %v4065
        %v6615 = vunpack.c.l.b16 %v4066
        %v6616 = vunpack.c.h.b16 %v4066
        %v6617 = vunpack.c.l.b16 %v4067
        %v6618 = vunpack.c.h.b16 %v4067
        %v6619 = vunpack.c.l.b16 %v4068
        %v6620 = vunpack.c.h.b16 %v4068
        %v6621 = vunpack.c.l.b16 %v4069
        %v6622 = vunpack.c.h.b16 %v4069
        %v6623 = vunpack.c.l.b16 %v4070
        %v6624 = vunpack.c.h.b16 %v4070
        %v6625 = vunpack.c.l.b16 %v4071
        %v6626 = vunpack.c.h.b16 %v4071
        %v6627 = vunpack.c.l.b16 %v4072
        %v6628 = vunpack.c.h.b16 %v4072
        %v6629 = vunpack.c.l.b16 %v4073
        %v6630 = vunpack.c.h.b16 %v4073
        %v6631 = vunpack.c.l.b16 %v4074
        %v6632 = vunpack.c.h.b16 %v4074
        %v6633 = vunpack.c.l.b16 %v4075
        %v6634 = vunpack.c.h.b16 %v4075
        %v6635 = vunpack.c.l.b16 %v4076
        %v6636 = vunpack.c.h.b16 %v4076
        %v6637 = vunpack.c.l.b16 %v4077
        %v6638 = vunpack.c.h.b16 %v4077
        %v6639 = vunpack.c.l.b16 %v4078
        %v6640 = vunpack.c.h.b16 %v4078
        %v6641 = vunpack.c.l.b16 %v4079
        %v6642 = vunpack.c.h.b16 %v4079
        %v6643 = vunpack.c.l.b16 %v4080
        %v6644 = vunpack.c.h.b16 %v4080
        %v6645 = vunpack.c.l.b16 %v4081
        %v6646 = vunpack.c.h.b16 %v4081
        %v6647 = vunpack.c.l.b16 %v4082
        %v6648 = vunpack.c.h.b16 %v4082
        %v6649 = vunpack.c.l.b16 %v4083
        %v6650 = vunpack.c.h.b16 %v4083
        %v6651 = vunpack.c.l.b16 %v4084
        %v6652 = vunpack.c.h.b16 %v4084
        %v6653 = vunpack.c.l.b16 %v4085
        %v6654 = vunpack.c.h.b16 %v4085
        %v6655 = vunpack.c.l.b16 %v4086
        %v6656 = vunpack.c.h.b16 %v4086
        %v6657 = vunpack.c.l.b16 %v4087
        %v6658 = vunpack.c.h.b16 %v4087
        %v6659 = vunpack.c.l.b16 %v4088
        %v6660 = vunpack.c.h.b16 %v4088
        %v6661 = vunpack.c.l.b16 %v4089
        %v6662 = vunpack.c.h.b16 %v4089
        %v6663 = vunpack.c.l.b16 %v4090
        %v6664 = vunpack.c.h.b16 %v4090
        %v6665 = vunpack.c.l.b16 %v4091
        %v6666 = vunpack.c.h.b16 %v4091
        %v6667 = vunpack.c.l.b16 %v4092
        %v6668 = vunpack.c.h.b16 %v4092
        %v6669 = vunpack.c.l.b16 %v4093
        %v6670 = vunpack.c.h.b16 %v4093
        %v6671 = vunpack.c.l.b16 %v4094
        %v6672 = vunpack.c.h.b16 %v4094
        %v6673 = vunpack.c.l.b16 %v4095
        %v6674 = vunpack.c.h.b16 %v4095
        %v6675 = vunpack.c.l.b16 %v4096
        %v6676 = vunpack.c.h.b16 %v4096
        %v6677 = vunpack.c.l.b16 %v4097
        %v6678 = vunpack.c.h.b16 %v4097
        %v6679 = vunpack.c.l.b16 %v4098
        %v6680 = vunpack.c.h.b16 %v4098
        %v6681 = vunpack.c.l.b16 %v4099
        %v6682 = vunpack.c.h.b16 %v4099
        %v6683 = vunpack.c.l.b16 %v4100
        %v6684 = vunpack.c.h.b16 %v4100
        %v6685 = vunpack.c.l.b16 %v4101
        %v6686 = vunpack.c.h.b16 %v4101
        %v6687 = vunpack.c.l.b16 %v4102
        %v6688 = vunpack.c.h.b16 %v4102
        %v6689 = vunpack.c.l.b16 %v4103
        %v6690 = vunpack.c.h.b16 %v4103
        %v6691 = vunpack.c.l.b16 %v4104
        %v6692 = vunpack.c.h.b16 %v4104
        %v6693 = vunpack.c.l.b16 %v4105
        %v6694 = vunpack.c.h.b16 %v4105
        %v6695 = vunpack.c.l.b16 %v4106
        %v6696 = vunpack.c.h.b16 %v4106
        %v6697 = vunpack.c.l.b16 %v4107
        %v6698 = vunpack.c.h.b16 %v4107
        %v6699 = vunpack.c.l.b16 %v4108
        %v6700 = vunpack.c.h.b16 %v4108
        %v6701 = vunpack.c.l.b16 %v4109
        %v6702 = vunpack.c.h.b16 %v4109
        %v6703 = vunpack.c.l.b16 %v4110
        %v6704 = vunpack.c.h.b16 %v4110
        %v6705 = vunpack.c.l.b16 %v4111
        %v6706 = vunpack.c.h.b16 %v4111
        %v6707 = vunpack.c.l.b16 %v4112
        %v6708 = vunpack.c.h.b16 %v4112
        %v6709 = vunpack.c.l.b16 %v4113
        %v6710 = vunpack.c.h.b16 %v4113
        %v6711 = vunpack.c.l.b16 %v4114
        %v6712 = vunpack.c.h.b16 %v4114
        %v6713 = vunpack.c.l.b16 %v4115
        %v6714 = vunpack.c.h.b16 %v4115
        %v6715 = vunpack.c.l.b16 %v4116
        %v6716 = vunpack.c.h.b16 %v4116
        %v6717 = vunpack.c.l.b16 %v4117
        %v6718 = vunpack.c.h.b16 %v4117
        %v6719 = vunpack.c.l.b16 %v4118
        %v6720 = vunpack.c.h.b16 %v4118
        %v6721 = vunpack.c.l.b16 %v4119
        %v6722 = vunpack.c.h.b16 %v4119
        %v6723 = vunpack.c.l.b16 %v4120
        %v6724 = vunpack.c.h.b16 %v4120
        %v6725 = vunpack.c.l.b16 %v4121
        %v6726 = vunpack.c.h.b16 %v4121
        %v6727 = vunpack.c.l.b16 %v4122
        %v6728 = vunpack.c.h.b16 %v4122
        %v6729 = vunpack.c.l.b16 %v4123
        %v6730 = vunpack.c.h.b16 %v4123
        %v6731 = vunpack.c.l.b16 %v4124
        %v6732 = vunpack.c.h.b16 %v4124
        %v6733 = vunpack.c.l.b16 %v4125
        %v6734 = vunpack.c.h.b16 %v4125
        %v6735 = vunpack.c.l.b16 %v4126
        %v6736 = vunpack.c.h.b16 %v4126
        %v6737 = vunpack.c.l.b16 %v4127
        %v6738 = vunpack.c.h.b16 %v4127
        %v6739 = vunpack.c.l.b16 %v4128
        %v6740 = vunpack.c.h.b16 %v4128
        %v6741 = vunpack.c.l.b16 %v4129
        %v6742 = vunpack.c.h.b16 %v4129
        %v6743 = vunpack.c.l.b16 %v4130
        %v6744 = vunpack.c.h.b16 %v4130
        %v6745 = vunpack.c.l.b16 %v4131
        %v6746 = vunpack.c.h.b16 %v4131
        %v6747 = vunpack.c.l.b16 %v4132
        %v6748 = vunpack.c.h.b16 %v4132
        %v6749 = vunpack.c.l.b16 %v4133
        %v6750 = vunpack.c.h.b16 %v4133
        %v6751 = vunpack.c.l.b16 %v4134
        %v6752 = vunpack.c.h.b16 %v4134
        %v6753 = vunpack.c.l.b16 %v4135
        %v6754 = vunpack.c.h.b16 %v4135
        %v6755 = vunpack.c.l.b16 %v4136
        %v6756 = vunpack.c.h.b16 %v4136
        %v6757 = vunpack.c.l.b16 %v4137
        %v6758 = vunpack.c.h.b16 %v4137
        %v6759 = vunpack.c.l.b16 %v4138
        %v6760 = vunpack.c.h.b16 %v4138
        %v6761 = vunpack.c.l.b16 %v4139
        %v6762 = vunpack.c.h.b16 %v4139
        %v6763 = vunpack.c.l.b16 %v4140
        %v6764 = vunpack.c.h.b16 %v4140
        %v6765 = vunpack.c.l.b16 %v4141
        %v6766 = vunpack.c.h.b16 %v4141
        %v6767 = vunpack.c.l.b16 %v4142
        %v6768 = vunpack.c.h.b16 %v4142
        %v6769 = vunpack.c.l.b16 %v4143
        %v6770 = vunpack.c.h.b16 %v4143
        %v6771 = vunpack.c.l.b16 %v4144
        %v6772 = vunpack.c.h.b16 %v4144
        %v6773 = vunpack.c.l.b16 %v4145
        %v6774 = vunpack.c.h.b16 %v4145
        %v6775 = vunpack.c.l.b16 %v4146
        %v6776 = vunpack.c.h.b16 %v4146
        %v6777 = vunpack.c.l.b16 %v4147
        %v6778 = vunpack.c.h.b16 %v4147
        %v6779 = vunpack.c.l.b16 %v4148
        %v6780 = vunpack.c.h.b16 %v4148
        %v6781 = vunpack.c.l.b16 %v4149
        %v6782 = vunpack.c.h.b16 %v4149
        %v6783 = vunpack.c.l.b16 %v4150
        %v6784 = vunpack.c.h.b16 %v4150
        %v6785 = vunpack.c.l.b16 %v4151
        %v6786 = vunpack.c.h.b16 %v4151
        %v6787 = vunpack.c.l.b16 %v4152
        %v6788 = vunpack.c.h.b16 %v4152
        %v6789 = vunpack.c.l.b16 %v4153
        %v6790 = vunpack.c.h.b16 %v4153
        %v6791 = vunpack.c.l.b16 %v4154
        %v6792 = vunpack.c.h.b16 %v4154
        %v6793 = vunpack.c.l.b16 %v4155
        %v6794 = vunpack.c.h.b16 %v4155
        %v6795 = vunpack.c.l.b16 %v4156
        %v6796 = vunpack.c.h.b16 %v4156
        %v6797 = vunpack.c.l.b16 %v4157
        %v6798 = vunpack.c.h.b16 %v4157
        %v6799 = vunpack.c.l.b16 %v4158
        %v6800 = vunpack.c.h.b16 %v4158
        %v6801 = vunpack.c.l.b16 %v4159
        %v6802 = vunpack.c.h.b16 %v4159
        %v6803 = vunpack.c.l.b16 %v4160
        %v6804 = vunpack.c.h.b16 %v4160
        %v6805 = vunpack.c.l.b16 %v4161
        %v6806 = vunpack.c.h.b16 %v4161
        %v6807 = vunpack.c.l.b16 %v4162
        %v6808 = vunpack.c.h.b16 %v4162
        %v6809 = vunpack.c.l.b16 %v4163
        %v6810 = vunpack.c.h.b16 %v4163
        %v6811 = vunpack.c.l.b16 %v4164
        %v6812 = vunpack.c.h.b16 %v4164
        %v6813 = vunpack.c.l.b16 %v4165
        %v6814 = vunpack.c.h.b16 %v4165
        %v6815 = vunpack.c.l.b16 %v4166
        %v6816 = vunpack.c.h.b16 %v4166
        %v6817 = vunpack.c.l.b16 %v4167
        %v6818 = vunpack.c.h.b16 %v4167
        %v6819 = vunpack.c.l.b16 %v4168
        %v6820 = vunpack.c.h.b16 %v4168
        %v6821 = vunpack.c.l.b16 %v4169
        %v6822 = vunpack.c.h.b16 %v4169
        %v6823 = vunpack.c.l.b16 %v4170
        %v6824 = vunpack.c.h.b16 %v4170
        %v6825 = vunpack.c.l.b16 %v4171
        %v6826 = vunpack.c.h.b16 %v4171
        %v6827 = vunpack.c.l.b16 %v4172
        %v6828 = vunpack.c.h.b16 %v4172
        %v6829 = vunpack.c.l.b16 %v4173
        %v6830 = vunpack.c.h.b16 %v4173
        %v6831 = vunpack.c.l.b16 %v4174
        %v6832 = vunpack.c.h.b16 %v4174
        %v6833 = vunpack.c.l.b16 %v4175
        %v6834 = vunpack.c.h.b16 %v4175
        %v6835 = vunpack.c.l.b16 %v4176
        %v6836 = vunpack.c.h.b16 %v4176
        %v6837 = vunpack.c.l.b16 %v4177
        %v6838 = vunpack.c.h.b16 %v4177
        %v6839 = vunpack.c.l.b16 %v4178
        %v6840 = vunpack.c.h.b16 %v4178
        %v6841 = vunpack.c.l.b16 %v4179
        %v6842 = vunpack.c.h.b16 %v4179
        %v6843 = vunpack.c.l.b16 %v4180
        %v6844 = vunpack.c.h.b16 %v4180
        %v6845 = vunpack.c.l.b16 %v4181
        %v6846 = vunpack.c.h.b16 %v4181
        %v6847 = vunpack.c.l.b16 %v4182
        %v6848 = vunpack.c.h.b16 %v4182
        %v6849 = vunpack.c.l.b16 %v4183
        %v6850 = vunpack.c.h.b16 %v4183
        %v6851 = vunpack.c.l.b16 %v4184
        %v6852 = vunpack.c.h.b16 %v4184
        %v6853 = vunpack.c.l.b16 %v4185
        %v6854 = vunpack.c.h.b16 %v4185
        %v6855 = vunpack.c.l.b16 %v4186
        %v6856 = vunpack.c.h.b16 %v4186
        %v6857 = vunpack.c.l.b16 %v4187
        %v6858 = vunpack.c.h.b16 %v4187
        %v6859 = vunpack.c.l.b16 %v4188
        %v6860 = vunpack.c.h.b16 %v4188
        %v6861 = vunpack.c.l.b16 %v4189
        %v6862 = vunpack.c.h.b16 %v4189
        %v6863 = vunpack.c.l.b16 %v4190
        %v6864 = vunpack.c.h.b16 %v4190
        %v6865 = vunpack.c.l.b16 %v4191
        %v6866 = vunpack.c.h.b16 %v4191
        %v6867 = vunpack.c.l.b16 %v4192
        %v6868 = vunpack.c.h.b16 %v4192
        %v6869 = vunpack.c.l.b16 %v4193
        %v6870 = vunpack.c.h.b16 %v4193
        %v6871 = vunpack.c.l.b16 %v4194
        %v6872 = vunpack.c.h.b16 %v4194
        %v6873 = vunpack.c.l.b16 %v4195
        %v6874 = vunpack.c.h.b16 %v4195
        %v6875 = vunpack.c.l.b16 %v4196
        %v6876 = vunpack.c.h.b16 %v4196
        %v6877 = vunpack.c.l.b16 %v4197
        %v6878 = vunpack.c.h.b16 %v4197
        %v6879 = vunpack.c.l.b16 %v4198
        %v6880 = vunpack.c.h.b16 %v4198
        %v6881 = vunpack.c.l.b16 %v4199
        %v6882 = vunpack.c.h.b16 %v4199
        %v6883 = vunpack.c.l.b16 %v4200
        %v6884 = vunpack.c.h.b16 %v4200
        %v6885 = vunpack.c.l.b16 %v4201
        %v6886 = vunpack.c.h.b16 %v4201
        %v6887 = vunpack.c.l.b16 %v4202
        %v6888 = vunpack.c.h.b16 %v4202
        %v6889 = vunpack.c.l.b16 %v4203
        %v6890 = vunpack.c.h.b16 %v4203
        %v6891 = vunpack.c.l.b16 %v4204
        %v6892 = vunpack.c.h.b16 %v4204
        %v6893 = vunpack.c.l.b16 %v4205
        %v6894 = vunpack.c.h.b16 %v4205
        %v6895 = vunpack.c.l.b16 %v4206
        %v6896 = vunpack.c.h.b16 %v4206
        %v6897 = vunpack.c.l.b16 %v4207
        %v6898 = vunpack.c.h.b16 %v4207
        %v6899 = vunpack.c.l.b16 %v4208
        %v6900 = vunpack.c.h.b16 %v4208
        %v6901 = vunpack.c.l.b16 %v4209
        %v6902 = vunpack.c.h.b16 %v4209
        %v6903 = vunpack.c.l.b16 %v4210
        %v6904 = vunpack.c.h.b16 %v4210
        %v6905 = vunpack.c.l.b16 %v4211
        %v6906 = vunpack.c.h.b16 %v4211
        %v6907 = vunpack.c.l.b16 %v4212
        %v6908 = vunpack.c.h.b16 %v4212
        %v6909 = vunpack.c.l.b16 %v4213
        %v6910 = vunpack.c.h.b16 %v4213
        %v6911 = vunpack.c.l.b16 %v4214
        %v6912 = vunpack.c.h.b16 %v4214
        %v6913 = vunpack.c.l.b16 %v4215
        %v6914 = vunpack.c.h.b16 %v4215
        %v6915 = vunpack.c.l.b16 %v4216
        %v6916 = vunpack.c.h.b16 %v4216
        %v6917 = vunpack.c.l.b16 %v4217
        %v6918 = vunpack.c.h.b16 %v4217
        %v6919 = vunpack.c.l.b16 %v4218
        %v6920 = vunpack.c.h.b16 %v4218
        %v6921 = vunpack.c.l.b16 %v4219
        %v6922 = vunpack.c.h.b16 %v4219
        %v6923 = vunpack.c.l.b16 %v4220
        %v6924 = vunpack.c.h.b16 %v4220
        %v6925 = vunpack.c.l.b16 %v4221
        %v6926 = vunpack.c.h.b16 %v4221
        %v6927 = vunpack.c.l.b16 %v4222
        %v6928 = vunpack.c.h.b16 %v4222
        %v6929 = vunpack.c.l.b16 %v4223
        %v6930 = vunpack.c.h.b16 %v4223
        %v6931 = vunpack.c.l.b16 %v4224
        %v6932 = vunpack.c.h.b16 %v4224
        %v6933 = vunpack.c.l.b16 %v4225
        %v6934 = vunpack.c.h.b16 %v4225
        %v6935 = vunpack.c.l.b16 %v4226
        %v6936 = vunpack.c.h.b16 %v4226
        %v6937 = vunpack.c.l.b16 %v4227
        %v6938 = vunpack.c.h.b16 %v4227
        %v6939 = vunpack.c.l.b16 %v4228
        %v6940 = vunpack.c.h.b16 %v4228
        %v6941 = vunpack.c.l.b16 %v4229
        %v6942 = vunpack.c.h.b16 %v4229
        %v6943 = vunpack.c.l.b16 %v4230
        %v6944 = vunpack.c.h.b16 %v4230
        %v6945 = vunpack.c.l.b16 %v4231
        %v6946 = vunpack.c.h.b16 %v4231
        %v6947 = vunpack.c.l.b16 %v4232
        %v6948 = vunpack.c.h.b16 %v4232
        %v6949 = vunpack.c.l.b16 %v4233
        %v6950 = vunpack.c.h.b16 %v4233
        %v6951 = vunpack.c.l.b16 %v4234
        %v6952 = vunpack.c.h.b16 %v4234
        %v6953 = vunpack.c.l.b16 %v4235
        %v6954 = vunpack.c.h.b16 %v4235
        %v6955 = vunpack.c.l.b16 %v4236
        %v6956 = vunpack.c.h.b16 %v4236
        %v6957 = vunpack.c.l.b16 %v4237
        %v6958 = vunpack.c.h.b16 %v4237
        %v6959 = vunpack.c.l.b16 %v4238
        %v6960 = vunpack.c.h.b16 %v4238
        %v6961 = vunpack.c.l.b16 %v4239
        %v6962 = vunpack.c.h.b16 %v4239
        %v6963 = vunpack.c.l.b16 %v4240
        %v6964 = vunpack.c.h.b16 %v4240
        %v6965 = vunpack.c.l.b16 %v4241
        %v6966 = vunpack.c.h.b16 %v4241
        %v6967 = vunpack.c.l.b16 %v4242
        %v6968 = vunpack.c.h.b16 %v4242
        %v6969 = vunpack.c.l.b16 %v4243
        %v6970 = vunpack.c.h.b16 %v4243
        %v6971 = vunpack.c.l.b16 %v4244
        %v6972 = vunpack.c.h.b16 %v4244
        %v6973 = vunpack.c.l.b16 %v4245
        %v6974 = vunpack.c.h.b16 %v4245
        %v6975 = vunpack.c.l.b16 %v4246
        %v6976 = vunpack.c.h.b16 %v4246
        %v6977 = vunpack.c.l.b16 %v4247
        %v6978 = vunpack.c.h.b16 %v4247
        %v6979 = vunpack.c.l.b16 %v4248
        %v6980 = vunpack.c.h.b16 %v4248
        %v6981 = vunpack.c.l.b16 %v4249
        %v6982 = vunpack.c.h.b16 %v4249
        %v6983 = vunpack.c.l.b16 %v4250
        %v6984 = vunpack.c.h.b16 %v4250
        %v6985 = vunpack.c.l.b16 %v4251
        %v6986 = vunpack.c.h.b16 %v4251
        %v6987 = vunpack.c.l.b16 %v4252
        %v6988 = vunpack.c.h.b16 %v4252
        %v6989 = vunpack.c.l.b16 %v4253
        %v6990 = vunpack.c.h.b16 %v4253
        %v6991 = vunpack.c.l.b16 %v4254
        %v6992 = vunpack.c.h.b16 %v4254
        %v6993 = vunpack.c.l.b16 %v4255
        %v6994 = vunpack.c.h.b16 %v4255
        %v6995 = vunpack.c.l.b16 %v4256
        %v6996 = vunpack.c.h.b16 %v4256
        %v6997 = vunpack.c.l.b16 %v4257
        %v6998 = vunpack.c.h.b16 %v4257
        %v6999 = vunpack.c.l.b16 %v4258
        %v7000 = vunpack.c.h.b16 %v4258
        %v7001 = vunpack.c.l.b16 %v4259
        %v7002 = vunpack.c.h.b16 %v4259
        %v7003 = vunpack.c.l.b16 %v4260
        %v7004 = vunpack.c.h.b16 %v4260
        %v7005 = vunpack.c.l.b16 %v4261
        %v7006 = vunpack.c.h.b16 %v4261
        %v7007 = vunpack.c.l.b16 %v4262
        %v7008 = vunpack.c.h.b16 %v4262
        %v7009 = vunpack.c.l.b16 %v4263
        %v7010 = vunpack.c.h.b16 %v4263
        %v7011 = vunpack.c.l.b16 %v4264
        %v7012 = vunpack.c.h.b16 %v4264
        %v7013 = vunpack.c.l.b16 %v4265
        %v7014 = vunpack.c.h.b16 %v4265
        %v7015 = vunpack.c.l.b16 %v4266
        %v7016 = vunpack.c.h.b16 %v4266
        %v7017 = vunpack.c.l.b16 %v4267
        %v7018 = vunpack.c.h.b16 %v4267
        %v7019 = vunpack.c.l.b16 %v4268
        %v7020 = vunpack.c.h.b16 %v4268
        %v7021 = vunpack.c.l.b16 %v4269
        %v7022 = vunpack.c.h.b16 %v4269
        %v7023 = vunpack.c.l.b16 %v4270
        %v7024 = vunpack.c.h.b16 %v4270
        %v7025 = vunpack.c.l.b16 %v4271
        %v7026 = vunpack.c.h.b16 %v4271
        %v7027 = vunpack.c.l.b16 %v4272
        %v7028 = vunpack.c.h.b16 %v4272
        %v7029 = vunpack.c.l.b16 %v4273
        %v7030 = vunpack.c.h.b16 %v4273
        %v7031 = vunpack.c.l.b16 %v4274
        %v7032 = vunpack.c.h.b16 %v4274
        %v7033 = vunpack.c.l.b16 %v4275
        %v7034 = vunpack.c.h.b16 %v4275
        %v7035 = vunpack.c.l.b16 %v4276
        %v7036 = vunpack.c.h.b16 %v4276
        %v7037 = vunpack.c.l.b16 %v4277
        %v7038 = vunpack.c.h.b16 %v4277
        %v7039 = vunpack.c.l.b16 %v4278
        %v7040 = vunpack.c.h.b16 %v4278
        %v7041 = vunpack.c.l.b16 %v4279
        %v7042 = vunpack.c.h.b16 %v4279
        %v7043 = vunpack.c.l.b16 %v4280
        %v7044 = vunpack.c.h.b16 %v4280
        %v7045 = vunpack.c.l.b16 %v4281
        %v7046 = vunpack.c.h.b16 %v4281
        %v7047 = vunpack.c.l.b16 %v4282
        %v7048 = vunpack.c.h.b16 %v4282
        %v7049 = vunpack.c.l.b16 %v4283
        %v7050 = vunpack.c.h.b16 %v4283
        %v7051 = vunpack.c.l.b16 %v4284
        %v7052 = vunpack.c.h.b16 %v4284
        %v7053 = vunpack.c.l.b16 %v4285
        %v7054 = vunpack.c.h.b16 %v4285
        %v7055 = vunpack.c.l.b16 %v4286
        %v7056 = vunpack.c.h.b16 %v4286
        %v7057 = vunpack.c.l.b16 %v4287
        %v7058 = vunpack.c.h.b16 %v4287
        %v7059 = vunpack.c.l.b16 %v4288
        %v7060 = vunpack.c.h.b16 %v4288
        %v7061 = vunpack.c.l.b16 %v4289
        %v7062 = vunpack.c.h.b16 %v4289
        %v7063 = vunpack.c.l.b16 %v4290
        %v7064 = vunpack.c.h.b16 %v4290
        %v7065 = vunpack.c.l.b16 %v4291
        %v7066 = vunpack.c.h.b16 %v4291
        %v7067 = vunpack.c.l.b16 %v4292
        %v7068 = vunpack.c.h.b16 %v4292
        %v7069 = vunpack.c.l.b16 %v4293
        %v7070 = vunpack.c.h.b16 %v4293
        %v7071 = vunpack.c.l.b16 %v4294
        %v7072 = vunpack.c.h.b16 %v4294
        %v7073 = vunpack.c.l.b16 %v4295
        %v7074 = vunpack.c.h.b16 %v4295
        %v7075 = vunpack.c.l.b16 %v4296
        %v7076 = vunpack.c.h.b16 %v4296
        %v7077 = vunpack.c.l.b16 %v4297
        %v7078 = vunpack.c.h.b16 %v4297
        %v7079 = vunpack.c.l.b16 %v4298
        %v7080 = vunpack.c.h.b16 %v4298
        %v7081 = vunpack.c.l.b16 %v4299
        %v7082 = vunpack.c.h.b16 %v4299
        %v7083 = vunpack.c.l.b16 %v4300
        %v7084 = vunpack.c.h.b16 %v4300
        %v7085 = vunpack.c.l.b16 %v4301
        %v7086 = vunpack.c.h.b16 %v4301
        %v7087 = vunpack.c.l.b16 %v4302
        %v7088 = vunpack.c.h.b16 %v4302
        %v7089 = vunpack.c.l.b16 %v4303
        %v7090 = vunpack.c.h.b16 %v4303
        %v7091 = vunpack.c.l.b16 %v4304
        %v7092 = vunpack.c.h.b16 %v4304
        %v7093 = vunpack.c.l.b16 %v4305
        %v7094 = vunpack.c.h.b16 %v4305
        %v7095 = vunpack.c.l.b16 %v4306
        %v7096 = vunpack.c.h.b16 %v4306
        %v7097 = vunpack.c.l.b16 %v4307
        %v7098 = vunpack.c.h.b16 %v4307
        %v7099 = vunpack.c.l.b16 %v4308
        %v7100 = vunpack.c.h.b16 %v4308
        %v7101 = vunpack.c.l.b16 %v4309
        %v7102 = vunpack.c.h.b16 %v4309
        %v7103 = vunpack.c.l.b16 %v4310
        %v7104 = vunpack.c.h.b16 %v4310
        %v7105 = vunpack.c.l.b16 %v4311
        %v7106 = vunpack.c.h.b16 %v4311
        %v7107 = vunpack.c.l.b16 %v4312
        %v7108 = vunpack.c.h.b16 %v4312
        %v7109 = vunpack.c.l.b16 %v4313
        %v7110 = vunpack.c.h.b16 %v4313
        %v7111 = vunpack.c.l.b16 %v4314
        %v7112 = vunpack.c.h.b16 %v4314
        %v7113 = vunpack.c.l.b16 %v4315
        %v7114 = vunpack.c.h.b16 %v4315
        %v7115 = vunpack.c.l.b16 %v4316
        %v7116 = vunpack.c.h.b16 %v4316
        %v7117 = vunpack.c.l.b16 %v4317
        %v7118 = vunpack.c.h.b16 %v4317
        %v7119 = vunpack.c.l.b16 %v4318
        %v7120 = vunpack.c.h.b16 %v4318
        %v7121 = vunpack.c.l.b16 %v4319
        %v7122 = vunpack.c.h.b16 %v4319
        %v7123 = vunpack.c.l.b16 %v4320
        %v7124 = vunpack.c.h.b16 %v4320
        %v7125 = vunpack.c.l.b16 %v4321
        %v7126 = vunpack.c.h.b16 %v4321
        %v7127 = vunpack.c.l.b16 %v4322
        %v7128 = vunpack.c.h.b16 %v4322
        %v7129 = vunpack.c.l.b16 %v4323
        %v7130 = vunpack.c.h.b16 %v4323
        %v7131 = vunpack.c.l.b16 %v4324
        %v7132 = vunpack.c.h.b16 %v4324
        %v7133 = vunpack.c.l.b16 %v4325
        %v7134 = vunpack.c.h.b16 %v4325
        %v7135 = vunpack.c.l.b16 %v4326
        %v7136 = vunpack.c.h.b16 %v4326
        %v7137 = vunpack.c.l.b16 %v4327
        %v7138 = vunpack.c.h.b16 %v4327
        %v7139 = vunpack.c.l.b16 %v4328
        %v7140 = vunpack.c.h.b16 %v4328
        %v7141 = vunpack.c.l.b16 %v4329
        %v7142 = vunpack.c.h.b16 %v4329
        %v7143 = vunpack.c.l.b16 %v4330
        %v7144 = vunpack.c.h.b16 %v4330
        %v7145 = vunpack.c.l.b16 %v4331
        %v7146 = vunpack.c.h.b16 %v4331
        %v7147 = vunpack.c.l.b16 %v4332
        %v7148 = vunpack.c.h.b16 %v4332
        %v7149 = vunpack.c.l.b16 %v4333
        %v7150 = vunpack.c.h.b16 %v4333
        %v7151 = vunpack.c.l.b16 %v4334
        %v7152 = vunpack.c.h.b16 %v4334
        %v7153 = vunpack.c.l.b16 %v4335
        %v7154 = vunpack.c.h.b16 %v4335
        %v7155 = vunpack.c.l.b16 %v4336
        %v7156 = vunpack.c.h.b16 %v4336
        %v7157 = vunpack.c.l.b16 %v4337
        %v7158 = vunpack.c.h.b16 %v4337
        %v7159 = vunpack.c.l.b16 %v4338
        %v7160 = vunpack.c.h.b16 %v4338
        %v7161 = vunpack.c.l.b16 %v4339
        %v7162 = vunpack.c.h.b16 %v4339
        %v7163 = vunpack.c.l.b16 %v4340
        %v7164 = vunpack.c.h.b16 %v4340
        %v7165 = vunpack.c.l.b16 %v4341
        %v7166 = vunpack.c.h.b16 %v4341
        %v7167 = vunpack.c.l.b16 %v4342
        %v7168 = vunpack.c.h.b16 %v4342
        %v7169 = vunpack.c.l.b16 %v4343
        %v7170 = vunpack.c.h.b16 %v4343
        %v7171 = vunpack.c.l.b16 %v4344
        %v7172 = vunpack.c.h.b16 %v4344
        %v7173 = vunpack.c.l.b16 %v4345
        %v7174 = vunpack.c.h.b16 %v4345
        %v7175 = vunpack.c.l.b16 %v4346
        %v7176 = vunpack.c.h.b16 %v4346
        %v7177 = vunpack.c.l.b16 %v4347
        %v7178 = vunpack.c.h.b16 %v4347
        %v7179 = vunpack.c.l.b16 %v4348
        %v7180 = vunpack.c.h.b16 %v4348
        %v7181 = vunpack.c.l.b16 %v4349
        %v7182 = vunpack.c.h.b16 %v4349
        %v7183 = vunpack.c.l.b16 %v4350
        %v7184 = vunpack.c.h.b16 %v4350
        %v7185 = vunpack.c.l.b16 %v4351
        %v7186 = vunpack.c.h.b16 %v4351
        %v7187 = vunpack.c.l.b16 %v4352
        %v7188 = vunpack.c.h.b16 %v4352
        %v7189 = vunpack.c.l.b16 %v4353
        %v7190 = vunpack.c.h.b16 %v4353
        %v7191 = vunpack.c.l.b16 %v4354
        %v7192 = vunpack.c.h.b16 %v4354
        %v7193 = vunpack.c.l.b16 %v4355
        %v7194 = vunpack.c.h.b16 %v4355
        %v7195 = vunpack.c.l.b16 %v4356
        %v7196 = vunpack.c.h.b16 %v4356
        %v7197 = vunpack.c.l.b16 %v4357
        %v7198 = vunpack.c.h.b16 %v4357
        %v7199 = vunpack.c.l.b16 %v4358
        %v7200 = vunpack.c.h.b16 %v4358
        %v7201 = vunpack.c.l.b16 %v4359
        %v7202 = vunpack.c.h.b16 %v4359
        %v7203 = vunpack.c.l.b16 %v4360
        %v7204 = vunpack.c.h.b16 %v4360
        %v7205 = vunpack.c.l.b16 %v4361
        %v7206 = vunpack.c.h.b16 %v4361
        %v7207 = vunpack.c.l.b16 %v4362
        %v7208 = vunpack.c.h.b16 %v4362
        %v7209 = vunpack.c.l.b16 %v4363
        %v7210 = vunpack.c.h.b16 %v4363
        %v7211 = vunpack.c.l.b16 %v4364
        %v7212 = vunpack.c.h.b16 %v4364
        %v7213 = vunpack.c.l.b16 %v4365
        %v7214 = vunpack.c.h.b16 %v4365
        %v7215 = vunpack.c.l.b16 %v4366
        %v7216 = vunpack.c.h.b16 %v4366
        %v7217 = vunpack.c.l.b16 %v4367
        %v7218 = vunpack.c.h.b16 %v4367
        %v7219 = vunpack.c.l.b16 %v4368
        %v7220 = vunpack.c.h.b16 %v4368
        %v7221 = vunpack.c.l.b16 %v4369
        %v7222 = vunpack.c.h.b16 %v4369
        %v7223 = vunpack.c.l.b16 %v4370
        %v7224 = vunpack.c.h.b16 %v4370
        %v7225 = vunpack.c.l.b16 %v4371
        %v7226 = vunpack.c.h.b16 %v4371
        %v7227 = vunpack.c.l.b16 %v4372
        %v7228 = vunpack.c.h.b16 %v4372
        %v7229 = vunpack.c.l.b16 %v4373
        %v7230 = vunpack.c.h.b16 %v4373
        %v7231 = vunpack.c.l.b16 %v4374
        %v7232 = vunpack.c.h.b16 %v4374
        %v7233 = vunpack.c.l.b16 %v4375
        %v7234 = vunpack.c.h.b16 %v4375
        %v7235 = vunpack.c.l.b16 %v4376
        %v7236 = vunpack.c.h.b16 %v4376
        %v7237 = vunpack.c.l.b16 %v4377
        %v7238 = vunpack.c.h.b16 %v4377
        %v7239 = vunpack.c.l.b16 %v4378
        %v7240 = vunpack.c.h.b16 %v4378
        %v7241 = vunpack.c.l.b16 %v4379
        %v7242 = vunpack.c.h.b16 %v4379
        %v7243 = vunpack.c.l.b16 %v4380
        %v7244 = vunpack.c.h.b16 %v4380
        %v7245 = vunpack.c.l.b16 %v4381
        %v7246 = vunpack.c.h.b16 %v4381
        %v7247 = vunpack.c.l.b16 %v4382
        %v7248 = vunpack.c.h.b16 %v4382
        %v7249 = vunpack.c.l.b16 %v4383
        %v7250 = vunpack.c.h.b16 %v4383
        %v7251 = vunpack.c.l.b16 %v4384
        %v7252 = vunpack.c.h.b16 %v4384
        %v7253 = vunpack.c.l.b16 %v4385
        %v7254 = vunpack.c.h.b16 %v4385
        %v7255 = vunpack.c.l.b16 %v4386
        %v7256 = vunpack.c.h.b16 %v4386
        %v7257 = vunpack.c.l.b16 %v4387
        %v7258 = vunpack.c.h.b16 %v4387
        %v7259 = vunpack.c.l.b16 %v4388
        %v7260 = vunpack.c.h.b16 %v4388
        %v7261 = vunpack.c.l.b16 %v4389
        %v7262 = vunpack.c.h.b16 %v4389
        %v7263 = vunpack.c.l.b16 %v4390
        %v7264 = vunpack.c.h.b16 %v4390
        %v7265 = vunpack.c.l.b16 %v4391
        %v7266 = vunpack.c.h.b16 %v4391
        %v7267 = vunpack.c.l.b16 %v4392
        %v7268 = vunpack.c.h.b16 %v4392
        %v7269 = vunpack.c.l.b16 %v4393
        %v7270 = vunpack.c.h.b16 %v4393
        %v7271 = vunpack.c.l.b16 %v4394
        %v7272 = vunpack.c.h.b16 %v4394
        %v7273 = vunpack.c.l.b16 %v4395
        %v7274 = vunpack.c.h.b16 %v4395
        %v7275 = vunpack.c.l.b16 %v4396
        %v7276 = vunpack.c.h.b16 %v4396
        %v7277 = vunpack.c.l.b16 %v4397
        %v7278 = vunpack.c.h.b16 %v4397
        %v7279 = vunpack.c.l.b16 %v4398
        %v7280 = vunpack.c.h.b16 %v4398
        %v7281 = vunpack.c.l.b16 %v4399
        %v7282 = vunpack.c.h.b16 %v4399
        %v7283 = vunpack.c.l.b16 %v4400
        %v7284 = vunpack.c.h.b16 %v4400
        %v7285 = vunpack.c.l.b16 %v4401
        %v7286 = vunpack.c.h.b16 %v4401
        %v7287 = vunpack.c.l.b16 %v4402
        %v7288 = vunpack.c.h.b16 %v4402
        %v7289 = vunpack.c.l.b16 %v4403
        %v7290 = vunpack.c.h.b16 %v4403
        %v7291 = vunpack.c.l.b16 %v4404
        %v7292 = vunpack.c.h.b16 %v4404
        %v7293 = vunpack.c.l.b16 %v4405
        %v7294 = vunpack.c.h.b16 %v4405
        %v7295 = vunpack.c.l.b16 %v4406
        %v7296 = vunpack.c.h.b16 %v4406
        %v7297 = vunpack.c.l.b16 %v4407
        %v7298 = vunpack.c.h.b16 %v4407
        %v7299 = vunpack.c.l.b16 %v4408
        %v7300 = vunpack.c.h.b16 %v4408
        %v7301 = vunpack.c.l.b16 %v4409
        %v7302 = vunpack.c.h.b16 %v4409
        %v7303 = vunpack.c.l.b16 %v4410
        %v7304 = vunpack.c.h.b16 %v4410
        %v7305 = vunpack.c.l.b16 %v4411
        %v7306 = vunpack.c.h.b16 %v4411
        %v7307 = vunpack.c.l.b16 %v4412
        %v7308 = vunpack.c.h.b16 %v4412
        %v7309 = vunpack.c.l.b16 %v4413
        %v7310 = vunpack.c.h.b16 %v4413
        %v7311 = vunpack.c.l.b16 %v4414
        %v7312 = vunpack.c.h.b16 %v4414
        %v7313 = vunpack.c.l.b16 %v4415
        %v7314 = vunpack.c.h.b16 %v4415
        %v7315 = vunpack.c.l.b16 %v4416
        %v7316 = vunpack.c.h.b16 %v4416
        %v7317 = vunpack.c.l.b16 %v4417
        %v7318 = vunpack.c.h.b16 %v4417
        %v7319 = vunpack.c.l.b16 %v4418
        %v7320 = vunpack.c.h.b16 %v4418
        %v7321 = vunpack.c.l.b16 %v4419
        %v7322 = vunpack.c.h.b16 %v4419
        %v7323 = vunpack.c.l.b16 %v4420
        %v7324 = vunpack.c.h.b16 %v4420
        %v7325 = vunpack.c.l.b16 %v4421
        %v7326 = vunpack.c.h.b16 %v4421
        %v7327 = vunpack.c.l.b16 %v4422
        %v7328 = vunpack.c.h.b16 %v4422
        %v7329 = vunpack.c.l.b16 %v4423
        %v7330 = vunpack.c.h.b16 %v4423
        %v7331 = vunpack.c.l.b16 %v4424
        %v7332 = vunpack.c.h.b16 %v4424
        %v7333 = vunpack.c.l.b16 %v4425
        %v7334 = vunpack.c.h.b16 %v4425
        %v7335 = vunpack.c.l.b16 %v4426
        %v7336 = vunpack.c.h.b16 %v4426
        %v7337 = vunpack.c.l.b16 %v4427
        %v7338 = vunpack.c.h.b16 %v4427
        %v7339 = vunpack.c.l.b16 %v4428
        %v7340 = vunpack.c.h.b16 %v4428
        %v7341 = vunpack.c.l.b16 %v4429
        %v7342 = vunpack.c.h.b16 %v4429
        %v7343 = vunpack.c.l.b16 %v4430
        %v7344 = vunpack.c.h.b16 %v4430
        %v7345 = vunpack.c.l.b16 %v4431
        %v7346 = vunpack.c.h.b16 %v4431
        %v7347 = vunpack.c.l.b16 %v4432
        %v7348 = vunpack.c.h.b16 %v4432
        %v7349 = vunpack.c.l.b16 %v4433
        %v7350 = vunpack.c.h.b16 %v4433
        %v7351 = vunpack.c.l.b16 %v4434
        %v7352 = vunpack.c.h.b16 %v4434
        %v7353 = vunpack.c.l.b16 %v4435
        %v7354 = vunpack.c.h.b16 %v4435
        %v7355 = vunpack.c.l.b16 %v4436
        %v7356 = vunpack.c.h.b16 %v4436
        %v7357 = vunpack.c.l.b16 %v4437
        %v7358 = vunpack.c.h.b16 %v4437
        %v7359 = vunpack.c.l.b16 %v4438
        %v7360 = vunpack.c.h.b16 %v4438
        %v7361 = vpack.c.b16 %v5449, %v5441
        %v7362 = vpack.c.b16 %v5450, %v5442
        %v7363 = vpack.c.b16 %v5451, %v5443
        %v7364 = vpack.c.b16 %v5452, %v5444
        %v7365 = vpack.c.b16 %v5453, %v5445
        %v7366 = vpack.c.b16 %v5454, %v5446
        %v7367 = vpack.c.b16 %v5455, %v5447
        %v7368 = vpack.c.b16 %v5456, %v5448
        %v7369 = vpack.c.b16 %v5465, %v5457
        %v7370 = vpack.c.b16 %v5466, %v5458
        %v7371 = vpack.c.b16 %v5467, %v5459
        %v7372 = vpack.c.b16 %v5468, %v5460
        %v7373 = vpack.c.b16 %v5469, %v5461
        %v7374 = vpack.c.b16 %v5470, %v5462
        %v7375 = vpack.c.b16 %v5471, %v5463
        %v7376 = vpack.c.b16 %v5472, %v5464
        %v7377 = vpack.c.b16 %v5481, %v5473
        %v7378 = vpack.c.b16 %v5482, %v5474
        %v7379 = vpack.c.b16 %v5483, %v5475
        %v7380 = vpack.c.b16 %v5484, %v5476
        %v7381 = vpack.c.b16 %v5485, %v5477
        %v7382 = vpack.c.b16 %v5486, %v5478
        %v7383 = vpack.c.b16 %v5487, %v5479
        %v7384 = vpack.c.b16 %v5488, %v5480
        %v7385 = vpack.c.b16 %v5497, %v5489
        %v7386 = vpack.c.b16 %v5498, %v5490
        %v7387 = vpack.c.b16 %v5499, %v5491
        %v7388 = vpack.c.b16 %v5500, %v5492
        %v7389 = vpack.c.b16 %v5501, %v5493
        %v7390 = vpack.c.b16 %v5502, %v5494
        %v7391 = vpack.c.b16 %v5503, %v5495
        %v7392 = vpack.c.b16 %v5504, %v5496
        %v7393 = vpack.c.b16 %v5513, %v5505
        %v7394 = vpack.c.b16 %v5514, %v5506
        %v7395 = vpack.c.b16 %v5515, %v5507
        %v7396 = vpack.c.b16 %v5516, %v5508
        %v7397 = vpack.c.b16 %v5517, %v5509
        %v7398 = vpack.c.b16 %v5518, %v5510
        %v7399 = vpack.c.b16 %v5519, %v5511
        %v7400 = vpack.c.b16 %v5520, %v5512
        %v7401 = vpack.c.b16 %v5529, %v5521
        %v7402 = vpack.c.b16 %v5530, %v5522
        %v7403 = vpack.c.b16 %v5531, %v5523
        %v7404 = vpack.c.b16 %v5532, %v5524
        %v7405 = vpack.c.b16 %v5533, %v5525
        %v7406 = vpack.c.b16 %v5534, %v5526
        %v7407 = vpack.c.b16 %v5535, %v5527
        %v7408 = vpack.c.b16 %v5536, %v5528
        %v7409 = vpack.c.b16 %v5545, %v5537
        %v7410 = vpack.c.b16 %v5546, %v5538
        %v7411 = vpack.c.b16 %v5547, %v5539
        %v7412 = vpack.c.b16 %v5548, %v5540
        %v7413 = vpack.c.b16 %v5549, %v5541
        %v7414 = vpack.c.b16 %v5550, %v5542
        %v7415 = vpack.c.b16 %v5551, %v5543
        %v7416 = vpack.c.b16 %v5552, %v5544
        %v7417 = vpack.c.b16 %v5561, %v5553
        %v7418 = vpack.c.b16 %v5562, %v5554
        %v7419 = vpack.c.b16 %v5563, %v5555
        %v7420 = vpack.c.b16 %v5564, %v5556
        %v7421 = vpack.c.b16 %v5565, %v5557
        %v7422 = vpack.c.b16 %v5566, %v5558
        %v7423 = vpack.c.b16 %v5567, %v5559
        %v7424 = vpack.c.b16 %v5568, %v5560
        %v7425 = vpack.c.b16 %v5577, %v5569
        %v7426 = vpack.c.b16 %v5578, %v5570
        %v7427 = vpack.c.b16 %v5579, %v5571
        %v7428 = vpack.c.b16 %v5580, %v5572
        %v7429 = vpack.c.b16 %v5581, %v5573
        %v7430 = vpack.c.b16 %v5582, %v5574
        %v7431 = vpack.c.b16 %v5583, %v5575
        %v7432 = vpack.c.b16 %v5584, %v5576
        %v7433 = vpack.c.b16 %v5593, %v5585
        %v7434 = vpack.c.b16 %v5594, %v5586
        %v7435 = vpack.c.b16 %v5595, %v5587
        %v7436 = vpack.c.b16 %v5596, %v5588
        %v7437 = vpack.c.b16 %v5597, %v5589
        %v7438 = vpack.c.b16 %v5598, %v5590
        %v7439 = vpack.c.b16 %v5599, %v5591
        %v7440 = vpack.c.b16 %v5600, %v5592
        %v7441 = vpack.c.b16 %v5609, %v5601
        %v7442 = vpack.c.b16 %v5610, %v5602
        %v7443 = vpack.c.b16 %v5611, %v5603
        %v7444 = vpack.c.b16 %v5612, %v5604
        %v7445 = vpack.c.b16 %v5613, %v5605
        %v7446 = vpack.c.b16 %v5614, %v5606
        %v7447 = vpack.c.b16 %v5615, %v5607
        %v7448 = vpack.c.b16 %v5616, %v5608
        %v7449 = vpack.c.b16 %v5625, %v5617
        %v7450 = vpack.c.b16 %v5626, %v5618
        %v7451 = vpack.c.b16 %v5627, %v5619
        %v7452 = vpack.c.b16 %v5628, %v5620
        %v7453 = vpack.c.b16 %v5629, %v5621
        %v7454 = vpack.c.b16 %v5630, %v5622
        %v7455 = vpack.c.b16 %v5631, %v5623
        %v7456 = vpack.c.b16 %v5632, %v5624
        %v7457 = vpack.c.b16 %v5641, %v5633
        %v7458 = vpack.c.b16 %v5642, %v5634
        %v7459 = vpack.c.b16 %v5643, %v5635
        %v7460 = vpack.c.b16 %v5644, %v5636
        %v7461 = vpack.c.b16 %v5645, %v5637
        %v7462 = vpack.c.b16 %v5646, %v5638
        %v7463 = vpack.c.b16 %v5647, %v5639
        %v7464 = vpack.c.b16 %v5648, %v5640
        %v7465 = vpack.c.b16 %v5657, %v5649
        %v7466 = vpack.c.b16 %v5658, %v5650
        %v7467 = vpack.c.b16 %v5659, %v5651
        %v7468 = vpack.c.b16 %v5660, %v5652
        %v7469 = vpack.c.b16 %v5661, %v5653
        %v7470 = vpack.c.b16 %v5662, %v5654
        %v7471 = vpack.c.b16 %v5663, %v5655
        %v7472 = vpack.c.b16 %v5664, %v5656
        %v7473 = vpack.c.b16 %v5673, %v5665
        %v7474 = vpack.c.b16 %v5674, %v5666
        %v7475 = vpack.c.b16 %v5675, %v5667
        %v7476 = vpack.c.b16 %v5676, %v5668
        %v7477 = vpack.c.b16 %v5677, %v5669
        %v7478 = vpack.c.b16 %v5678, %v5670
        %v7479 = vpack.c.b16 %v5679, %v5671
        %v7480 = vpack.c.b16 %v5680, %v5672
        %v7481 = vpack.c.b16 %v5689, %v5681
        %v7482 = vpack.c.b16 %v5690, %v5682
        %v7483 = vpack.c.b16 %v5691, %v5683
        %v7484 = vpack.c.b16 %v5692, %v5684
        %v7485 = vpack.c.b16 %v5693, %v5685
        %v7486 = vpack.c.b16 %v5694, %v5686
        %v7487 = vpack.c.b16 %v5695, %v5687
        %v7488 = vpack.c.b16 %v5696, %v5688
        %v7489 = vpack.c.b16 %v5705, %v5697
        %v7490 = vpack.c.b16 %v5706, %v5698
        %v7491 = vpack.c.b16 %v5707, %v5699
        %v7492 = vpack.c.b16 %v5708, %v5700
        %v7493 = vpack.c.b16 %v5709, %v5701
        %v7494 = vpack.c.b16 %v5710, %v5702
        %v7495 = vpack.c.b16 %v5711, %v5703
        %v7496 = vpack.c.b16 %v5712, %v5704
        %v7497 = vpack.c.b16 %v5721, %v5713
        %v7498 = vpack.c.b16 %v5722, %v5714
        %v7499 = vpack.c.b16 %v5723, %v5715
        %v7500 = vpack.c.b16 %v5724, %v5716
        %v7501 = vpack.c.b16 %v5725, %v5717
        %v7502 = vpack.c.b16 %v5726, %v5718
        %v7503 = vpack.c.b16 %v5727, %v5719
        %v7504 = vpack.c.b16 %v5728, %v5720
        %v7505 = vpack.c.b16 %v5737, %v5729
        %v7506 = vpack.c.b16 %v5738, %v5730
        %v7507 = vpack.c.b16 %v5739, %v5731
        %v7508 = vpack.c.b16 %v5740, %v5732
        %v7509 = vpack.c.b16 %v5741, %v5733
        %v7510 = vpack.c.b16 %v5742, %v5734
        %v7511 = vpack.c.b16 %v5743, %v5735
        %v7512 = vpack.c.b16 %v5744, %v5736
        %v7513 = vpack.c.b16 %v5753, %v5745
        %v7514 = vpack.c.b16 %v5754, %v5746
        %v7515 = vpack.c.b16 %v5755, %v5747
        %v7516 = vpack.c.b16 %v5756, %v5748
        %v7517 = vpack.c.b16 %v5757, %v5749
        %v7518 = vpack.c.b16 %v5758, %v5750
        %v7519 = vpack.c.b16 %v5759, %v5751
        %v7520 = vpack.c.b16 %v5760, %v5752
        %v7521 = vpack.c.b16 %v5769, %v5761
        %v7522 = vpack.c.b16 %v5770, %v5762
        %v7523 = vpack.c.b16 %v5771, %v5763
        %v7524 = vpack.c.b16 %v5772, %v5764
        %v7525 = vpack.c.b16 %v5773, %v5765
        %v7526 = vpack.c.b16 %v5774, %v5766
        %v7527 = vpack.c.b16 %v5775, %v5767
        %v7528 = vpack.c.b16 %v5776, %v5768
        %v7529 = vpack.c.b16 %v5785, %v5777
        %v7530 = vpack.c.b16 %v5786, %v5778
        %v7531 = vpack.c.b16 %v5787, %v5779
        %v7532 = vpack.c.b16 %v5788, %v5780
        %v7533 = vpack.c.b16 %v5789, %v5781
        %v7534 = vpack.c.b16 %v5790, %v5782
        %v7535 = vpack.c.b16 %v5791, %v5783
        %v7536 = vpack.c.b16 %v5792, %v5784
        %v7537 = vpack.c.b16 %v5801, %v5793
        %v7538 = vpack.c.b16 %v5802, %v5794
        %v7539 = vpack.c.b16 %v5803, %v5795
        %v7540 = vpack.c.b16 %v5804, %v5796
        %v7541 = vpack.c.b16 %v5805, %v5797
        %v7542 = vpack.c.b16 %v5806, %v5798
        %v7543 = vpack.c.b16 %v5807, %v5799
        %v7544 = vpack.c.b16 %v5808, %v5800
        %v7545 = vpack.c.b16 %v5817, %v5809
        %v7546 = vpack.c.b16 %v5818, %v5810
        %v7547 = vpack.c.b16 %v5819, %v5811
        %v7548 = vpack.c.b16 %v5820, %v5812
        %v7549 = vpack.c.b16 %v5821, %v5813
        %v7550 = vpack.c.b16 %v5822, %v5814
        %v7551 = vpack.c.b16 %v5823, %v5815
        %v7552 = vpack.c.b16 %v5824, %v5816
        %v7553 = vpack.c.b16 %v5833, %v5825
        %v7554 = vpack.c.b16 %v5834, %v5826
        %v7555 = vpack.c.b16 %v5835, %v5827
        %v7556 = vpack.c.b16 %v5836, %v5828
        %v7557 = vpack.c.b16 %v5837, %v5829
        %v7558 = vpack.c.b16 %v5838, %v5830
        %v7559 = vpack.c.b16 %v5839, %v5831
        %v7560 = vpack.c.b16 %v5840, %v5832
        %v7561 = vpack.c.b16 %v5849, %v5841
        %v7562 = vpack.c.b16 %v5850, %v5842
        %v7563 = vpack.c.b16 %v5851, %v5843
        %v7564 = vpack.c.b16 %v5852, %v5844
        %v7565 = vpack.c.b16 %v5853, %v5845
        %v7566 = vpack.c.b16 %v5854, %v5846
        %v7567 = vpack.c.b16 %v5855, %v5847
        %v7568 = vpack.c.b16 %v5856, %v5848
        %v7569 = vpack.c.b16 %v5865, %v5857
        %v7570 = vpack.c.b16 %v5866, %v5858
        %v7571 = vpack.c.b16 %v5867, %v5859
        %v7572 = vpack.c.b16 %v5868, %v5860
        %v7573 = vpack.c.b16 %v5869, %v5861
        %v7574 = vpack.c.b16 %v5870, %v5862
        %v7575 = vpack.c.b16 %v5871, %v5863
        %v7576 = vpack.c.b16 %v5872, %v5864
        %v7577 = vpack.c.b16 %v5881, %v5873
        %v7578 = vpack.c.b16 %v5882, %v5874
        %v7579 = vpack.c.b16 %v5883, %v5875
        %v7580 = vpack.c.b16 %v5884, %v5876
        %v7581 = vpack.c.b16 %v5885, %v5877
        %v7582 = vpack.c.b16 %v5886, %v5878
        %v7583 = vpack.c.b16 %v5887, %v5879
        %v7584 = vpack.c.b16 %v5888, %v5880
        %v7585 = vpack.c.b16 %v5897, %v5889
        %v7586 = vpack.c.b16 %v5898, %v5890
        %v7587 = vpack.c.b16 %v5899, %v5891
        %v7588 = vpack.c.b16 %v5900, %v5892
        %v7589 = vpack.c.b16 %v5901, %v5893
        %v7590 = vpack.c.b16 %v5902, %v5894
        %v7591 = vpack.c.b16 %v5903, %v5895
        %v7592 = vpack.c.b16 %v5904, %v5896
        %v7593 = vpack.c.b16 %v5913, %v5905
        %v7594 = vpack.c.b16 %v5914, %v5906
        %v7595 = vpack.c.b16 %v5915, %v5907
        %v7596 = vpack.c.b16 %v5916, %v5908
        %v7597 = vpack.c.b16 %v5917, %v5909
        %v7598 = vpack.c.b16 %v5918, %v5910
        %v7599 = vpack.c.b16 %v5919, %v5911
        %v7600 = vpack.c.b16 %v5920, %v5912
        %v7601 = vpack.c.b16 %v5929, %v5921
        %v7602 = vpack.c.b16 %v5930, %v5922
        %v7603 = vpack.c.b16 %v5931, %v5923
        %v7604 = vpack.c.b16 %v5932, %v5924
        %v7605 = vpack.c.b16 %v5933, %v5925
        %v7606 = vpack.c.b16 %v5934, %v5926
        %v7607 = vpack.c.b16 %v5935, %v5927
        %v7608 = vpack.c.b16 %v5936, %v5928
        %v7609 = vpack.c.b16 %v5945, %v5937
        %v7610 = vpack.c.b16 %v5946, %v5938
        %v7611 = vpack.c.b16 %v5947, %v5939
        %v7612 = vpack.c.b16 %v5948, %v5940
        %v7613 = vpack.c.b16 %v5949, %v5941
        %v7614 = vpack.c.b16 %v5950, %v5942
        %v7615 = vpack.c.b16 %v5951, %v5943
        %v7616 = vpack.c.b16 %v5952, %v5944
        %v7617 = vpack.c.b16 %v5961, %v5953
        %v7618 = vpack.c.b16 %v5962, %v5954
        %v7619 = vpack.c.b16 %v5963, %v5955
        %v7620 = vpack.c.b16 %v5964, %v5956
        %v7621 = vpack.c.b16 %v5965, %v5957
        %v7622 = vpack.c.b16 %v5966, %v5958
        %v7623 = vpack.c.b16 %v5967, %v5959
        %v7624 = vpack.c.b16 %v5968, %v5960
        %v7625 = vpack.c.b16 %v5977, %v5969
        %v7626 = vpack.c.b16 %v5978, %v5970
        %v7627 = vpack.c.b16 %v5979, %v5971
        %v7628 = vpack.c.b16 %v5980, %v5972
        %v7629 = vpack.c.b16 %v5981, %v5973
        %v7630 = vpack.c.b16 %v5982, %v5974
        %v7631 = vpack.c.b16 %v5983, %v5975
        %v7632 = vpack.c.b16 %v5984, %v5976
        %v7633 = vpack.c.b16 %v5993, %v5985
        %v7634 = vpack.c.b16 %v5994, %v5986
        %v7635 = vpack.c.b16 %v5995, %v5987
        %v7636 = vpack.c.b16 %v5996, %v5988
        %v7637 = vpack.c.b16 %v5997, %v5989
        %v7638 = vpack.c.b16 %v5998, %v5990
        %v7639 = vpack.c.b16 %v5999, %v5991
        %v7640 = vpack.c.b16 %v6000, %v5992
        %v7641 = vpack.c.b16 %v6009, %v6001
        %v7642 = vpack.c.b16 %v6010, %v6002
        %v7643 = vpack.c.b16 %v6011, %v6003
        %v7644 = vpack.c.b16 %v6012, %v6004
        %v7645 = vpack.c.b16 %v6013, %v6005
        %v7646 = vpack.c.b16 %v6014, %v6006
        %v7647 = vpack.c.b16 %v6015, %v6007
        %v7648 = vpack.c.b16 %v6016, %v6008
        %v7649 = vpack.c.b16 %v6025, %v6017
        %v7650 = vpack.c.b16 %v6026, %v6018
        %v7651 = vpack.c.b16 %v6027, %v6019
        %v7652 = vpack.c.b16 %v6028, %v6020
        %v7653 = vpack.c.b16 %v6029, %v6021
        %v7654 = vpack.c.b16 %v6030, %v6022
        %v7655 = vpack.c.b16 %v6031, %v6023
        %v7656 = vpack.c.b16 %v6032, %v6024
        %v7657 = vpack.c.b16 %v6041, %v6033
        %v7658 = vpack.c.b16 %v6042, %v6034
        %v7659 = vpack.c.b16 %v6043, %v6035
        %v7660 = vpack.c.b16 %v6044, %v6036
        %v7661 = vpack.c.b16 %v6045, %v6037
        %v7662 = vpack.c.b16 %v6046, %v6038
        %v7663 = vpack.c.b16 %v6047, %v6039
        %v7664 = vpack.c.b16 %v6048, %v6040
        %v7665 = vpack.c.b16 %v6057, %v6049
        %v7666 = vpack.c.b16 %v6058, %v6050
        %v7667 = vpack.c.b16 %v6059, %v6051
        %v7668 = vpack.c.b16 %v6060, %v6052
        %v7669 = vpack.c.b16 %v6061, %v6053
        %v7670 = vpack.c.b16 %v6062, %v6054
        %v7671 = vpack.c.b16 %v6063, %v6055
        %v7672 = vpack.c.b16 %v6064, %v6056
        %v7673 = vpack.c.b16 %v6073, %v6065
        %v7674 = vpack.c.b16 %v6074, %v6066
        %v7675 = vpack.c.b16 %v6075, %v6067
        %v7676 = vpack.c.b16 %v6076, %v6068
        %v7677 = vpack.c.b16 %v6077, %v6069
        %v7678 = vpack.c.b16 %v6078, %v6070
        %v7679 = vpack.c.b16 %v6079, %v6071
        %v7680 = vpack.c.b16 %v6080, %v6072
        %v7681 = vpack.c.b16 %v6089, %v6081
        %v7682 = vpack.c.b16 %v6090, %v6082
        %v7683 = vpack.c.b16 %v6091, %v6083
        %v7684 = vpack.c.b16 %v6092, %v6084
        %v7685 = vpack.c.b16 %v6093, %v6085
        %v7686 = vpack.c.b16 %v6094, %v6086
        %v7687 = vpack.c.b16 %v6095, %v6087
        %v7688 = vpack.c.b16 %v6096, %v6088
        %v7689 = vpack.c.b16 %v6105, %v6097
        %v7690 = vpack.c.b16 %v6106, %v6098
        %v7691 = vpack.c.b16 %v6107, %v6099
        %v7692 = vpack.c.b16 %v6108, %v6100
        %v7693 = vpack.c.b16 %v6109, %v6101
        %v7694 = vpack.c.b16 %v6110, %v6102
        %v7695 = vpack.c.b16 %v6111, %v6103
        %v7696 = vpack.c.b16 %v6112, %v6104
        %v7697 = vpack.c.b16 %v6121, %v6113
        %v7698 = vpack.c.b16 %v6122, %v6114
        %v7699 = vpack.c.b16 %v6123, %v6115
        %v7700 = vpack.c.b16 %v6124, %v6116
        %v7701 = vpack.c.b16 %v6125, %v6117
        %v7702 = vpack.c.b16 %v6126, %v6118
        %v7703 = vpack.c.b16 %v6127, %v6119
        %v7704 = vpack.c.b16 %v6128, %v6120
        %v7705 = vpack.c.b16 %v6137, %v6129
        %v7706 = vpack.c.b16 %v6138, %v6130
        %v7707 = vpack.c.b16 %v6139, %v6131
        %v7708 = vpack.c.b16 %v6140, %v6132
        %v7709 = vpack.c.b16 %v6141, %v6133
        %v7710 = vpack.c.b16 %v6142, %v6134
        %v7711 = vpack.c.b16 %v6143, %v6135
        %v7712 = vpack.c.b16 %v6144, %v6136
        %v7713 = vpack.c.b16 %v6153, %v6145
        %v7714 = vpack.c.b16 %v6154, %v6146
        %v7715 = vpack.c.b16 %v6155, %v6147
        %v7716 = vpack.c.b16 %v6156, %v6148
        %v7717 = vpack.c.b16 %v6157, %v6149
        %v7718 = vpack.c.b16 %v6158, %v6150
        %v7719 = vpack.c.b16 %v6159, %v6151
        %v7720 = vpack.c.b16 %v6160, %v6152
        %v7721 = vpack.c.b16 %v6169, %v6161
        %v7722 = vpack.c.b16 %v6170, %v6162
        %v7723 = vpack.c.b16 %v6171, %v6163
        %v7724 = vpack.c.b16 %v6172, %v6164
        %v7725 = vpack.c.b16 %v6173, %v6165
        %v7726 = vpack.c.b16 %v6174, %v6166
        %v7727 = vpack.c.b16 %v6175, %v6167
        %v7728 = vpack.c.b16 %v6176, %v6168
        %v7729 = vpack.c.b16 %v6185, %v6177
        %v7730 = vpack.c.b16 %v6186, %v6178
        %v7731 = vpack.c.b16 %v6187, %v6179
        %v7732 = vpack.c.b16 %v6188, %v6180
        %v7733 = vpack.c.b16 %v6189, %v6181
        %v7734 = vpack.c.b16 %v6190, %v6182
        %v7735 = vpack.c.b16 %v6191, %v6183
        %v7736 = vpack.c.b16 %v6192, %v6184
        %v7737 = vpack.c.b16 %v6201, %v6193
        %v7738 = vpack.c.b16 %v6202, %v6194
        %v7739 = vpack.c.b16 %v6203, %v6195
        %v7740 = vpack.c.b16 %v6204, %v6196
        %v7741 = vpack.c.b16 %v6205, %v6197
        %v7742 = vpack.c.b16 %v6206, %v6198
        %v7743 = vpack.c.b16 %v6207, %v6199
        %v7744 = vpack.c.b16 %v6208, %v6200
        %v7745 = vpack.c.b16 %v6217, %v6209
        %v7746 = vpack.c.b16 %v6218, %v6210
        %v7747 = vpack.c.b16 %v6219, %v6211
        %v7748 = vpack.c.b16 %v6220, %v6212
        %v7749 = vpack.c.b16 %v6221, %v6213
        %v7750 = vpack.c.b16 %v6222, %v6214
        %v7751 = vpack.c.b16 %v6223, %v6215
        %v7752 = vpack.c.b16 %v6224, %v6216
        %v7753 = vpack.c.b16 %v6233, %v6225
        %v7754 = vpack.c.b16 %v6234, %v6226
        %v7755 = vpack.c.b16 %v6235, %v6227
        %v7756 = vpack.c.b16 %v6236, %v6228
        %v7757 = vpack.c.b16 %v6237, %v6229
        %v7758 = vpack.c.b16 %v6238, %v6230
        %v7759 = vpack.c.b16 %v6239, %v6231
        %v7760 = vpack.c.b16 %v6240, %v6232
        %v7761 = vpack.c.b16 %v6249, %v6241
        %v7762 = vpack.c.b16 %v6250, %v6242
        %v7763 = vpack.c.b16 %v6251, %v6243
        %v7764 = vpack.c.b16 %v6252, %v6244
        %v7765 = vpack.c.b16 %v6253, %v6245
        %v7766 = vpack.c.b16 %v6254, %v6246
        %v7767 = vpack.c.b16 %v6255, %v6247
        %v7768 = vpack.c.b16 %v6256, %v6248
        %v7769 = vpack.c.b16 %v6265, %v6257
        %v7770 = vpack.c.b16 %v6266, %v6258
        %v7771 = vpack.c.b16 %v6267, %v6259
        %v7772 = vpack.c.b16 %v6268, %v6260
        %v7773 = vpack.c.b16 %v6269, %v6261
        %v7774 = vpack.c.b16 %v6270, %v6262
        %v7775 = vpack.c.b16 %v6271, %v6263
        %v7776 = vpack.c.b16 %v6272, %v6264
        %v7777 = vpack.c.b16 %v6281, %v6273
        %v7778 = vpack.c.b16 %v6282, %v6274
        %v7779 = vpack.c.b16 %v6283, %v6275
        %v7780 = vpack.c.b16 %v6284, %v6276
        %v7781 = vpack.c.b16 %v6285, %v6277
        %v7782 = vpack.c.b16 %v6286, %v6278
        %v7783 = vpack.c.b16 %v6287, %v6279
        %v7784 = vpack.c.b16 %v6288, %v6280
        %v7785 = vpack.c.b16 %v6297, %v6289
        %v7786 = vpack.c.b16 %v6298, %v6290
        %v7787 = vpack.c.b16 %v6299, %v6291
        %v7788 = vpack.c.b16 %v6300, %v6292
        %v7789 = vpack.c.b16 %v6301, %v6293
        %v7790 = vpack.c.b16 %v6302, %v6294
        %v7791 = vpack.c.b16 %v6303, %v6295
        %v7792 = vpack.c.b16 %v6304, %v6296
        %v7793 = vpack.c.b16 %v6313, %v6305
        %v7794 = vpack.c.b16 %v6314, %v6306
        %v7795 = vpack.c.b16 %v6315, %v6307
        %v7796 = vpack.c.b16 %v6316, %v6308
        %v7797 = vpack.c.b16 %v6317, %v6309
        %v7798 = vpack.c.b16 %v6318, %v6310
        %v7799 = vpack.c.b16 %v6319, %v6311
        %v7800 = vpack.c.b16 %v6320, %v6312
        %v7801 = vpack.c.b16 %v6329, %v6321
        %v7802 = vpack.c.b16 %v6330, %v6322
        %v7803 = vpack.c.b16 %v6331, %v6323
        %v7804 = vpack.c.b16 %v6332, %v6324
        %v7805 = vpack.c.b16 %v6333, %v6325
        %v7806 = vpack.c.b16 %v6334, %v6326
        %v7807 = vpack.c.b16 %v6335, %v6327
        %v7808 = vpack.c.b16 %v6336, %v6328
        %v7809 = vpack.c.b16 %v6345, %v6337
        %v7810 = vpack.c.b16 %v6346, %v6338
        %v7811 = vpack.c.b16 %v6347, %v6339
        %v7812 = vpack.c.b16 %v6348, %v6340
        %v7813 = vpack.c.b16 %v6349, %v6341
        %v7814 = vpack.c.b16 %v6350, %v6342
        %v7815 = vpack.c.b16 %v6351, %v6343
        %v7816 = vpack.c.b16 %v6352, %v6344
        %v7817 = vpack.c.b16 %v6361, %v6353
        %v7818 = vpack.c.b16 %v6362, %v6354
        %v7819 = vpack.c.b16 %v6363, %v6355
        %v7820 = vpack.c.b16 %v6364, %v6356
        %v7821 = vpack.c.b16 %v6365, %v6357
        %v7822 = vpack.c.b16 %v6366, %v6358
        %v7823 = vpack.c.b16 %v6367, %v6359
        %v7824 = vpack.c.b16 %v6368, %v6360
        %v7825 = vpack.c.b16 %v6377, %v6369
        %v7826 = vpack.c.b16 %v6378, %v6370
        %v7827 = vpack.c.b16 %v6379, %v6371
        %v7828 = vpack.c.b16 %v6380, %v6372
        %v7829 = vpack.c.b16 %v6381, %v6373
        %v7830 = vpack.c.b16 %v6382, %v6374
        %v7831 = vpack.c.b16 %v6383, %v6375
        %v7832 = vpack.c.b16 %v6384, %v6376
        %v7833 = vpack.c.b16 %v6393, %v6385
        %v7834 = vpack.c.b16 %v6394, %v6386
        %v7835 = vpack.c.b16 %v6395, %v6387
        %v7836 = vpack.c.b16 %v6396, %v6388
        %v7837 = vpack.c.b16 %v6397, %v6389
        %v7838 = vpack.c.b16 %v6398, %v6390
        %v7839 = vpack.c.b16 %v6399, %v6391
        %v7840 = vpack.c.b16 %v6400, %v6392
        %v7841 = vpack.c.b16 %v6409, %v6401
        %v7842 = vpack.c.b16 %v6410, %v6402
        %v7843 = vpack.c.b16 %v6411, %v6403
        %v7844 = vpack.c.b16 %v6412, %v6404
        %v7845 = vpack.c.b16 %v6413, %v6405
        %v7846 = vpack.c.b16 %v6414, %v6406
        %v7847 = vpack.c.b16 %v6415, %v6407
        %v7848 = vpack.c.b16 %v6416, %v6408
        %v7849 = vpack.c.b16 %v6425, %v6417
        %v7850 = vpack.c.b16 %v6426, %v6418
        %v7851 = vpack.c.b16 %v6427, %v6419
        %v7852 = vpack.c.b16 %v6428, %v6420
        %v7853 = vpack.c.b16 %v6429, %v6421
        %v7854 = vpack.c.b16 %v6430, %v6422
        %v7855 = vpack.c.b16 %v6431, %v6423
        %v7856 = vpack.c.b16 %v6432, %v6424
        %v7857 = vpack.c.b16 %v6441, %v6433
        %v7858 = vpack.c.b16 %v6442, %v6434
        %v7859 = vpack.c.b16 %v6443, %v6435
        %v7860 = vpack.c.b16 %v6444, %v6436
        %v7861 = vpack.c.b16 %v6445, %v6437
        %v7862 = vpack.c.b16 %v6446, %v6438
        %v7863 = vpack.c.b16 %v6447, %v6439
        %v7864 = vpack.c.b16 %v6448, %v6440
        %v7865 = vpack.c.b16 %v6457, %v6449
        %v7866 = vpack.c.b16 %v6458, %v6450
        %v7867 = vpack.c.b16 %v6459, %v6451
        %v7868 = vpack.c.b16 %v6460, %v6452
        %v7869 = vpack.c.b16 %v6461, %v6453
        %v7870 = vpack.c.b16 %v6462, %v6454
        %v7871 = vpack.c.b16 %v6463, %v6455
        %v7872 = vpack.c.b16 %v6464, %v6456
        %v7873 = vpack.c.b16 %v6473, %v6465
        %v7874 = vpack.c.b16 %v6474, %v6466
        %v7875 = vpack.c.b16 %v6475, %v6467
        %v7876 = vpack.c.b16 %v6476, %v6468
        %v7877 = vpack.c.b16 %v6477, %v6469
        %v7878 = vpack.c.b16 %v6478, %v6470
        %v7879 = vpack.c.b16 %v6479, %v6471
        %v7880 = vpack.c.b16 %v6480, %v6472
        %v7881 = vpack.c.b16 %v6489, %v6481
        %v7882 = vpack.c.b16 %v6490, %v6482
        %v7883 = vpack.c.b16 %v6491, %v6483
        %v7884 = vpack.c.b16 %v6492, %v6484
        %v7885 = vpack.c.b16 %v6493, %v6485
        %v7886 = vpack.c.b16 %v6494, %v6486
        %v7887 = vpack.c.b16 %v6495, %v6487
        %v7888 = vpack.c.b16 %v6496, %v6488
        %v7889 = vpack.c.b16 %v6505, %v6497
        %v7890 = vpack.c.b16 %v6506, %v6498
        %v7891 = vpack.c.b16 %v6507, %v6499
        %v7892 = vpack.c.b16 %v6508, %v6500
        %v7893 = vpack.c.b16 %v6509, %v6501
        %v7894 = vpack.c.b16 %v6510, %v6502
        %v7895 = vpack.c.b16 %v6511, %v6503
        %v7896 = vpack.c.b16 %v6512, %v6504
        %v7897 = vpack.c.b16 %v6521, %v6513
        %v7898 = vpack.c.b16 %v6522, %v6514
        %v7899 = vpack.c.b16 %v6523, %v6515
        %v7900 = vpack.c.b16 %v6524, %v6516
        %v7901 = vpack.c.b16 %v6525, %v6517
        %v7902 = vpack.c.b16 %v6526, %v6518
        %v7903 = vpack.c.b16 %v6527, %v6519
        %v7904 = vpack.c.b16 %v6528, %v6520
        %v7905 = vpack.c.b16 %v6537, %v6529
        %v7906 = vpack.c.b16 %v6538, %v6530
        %v7907 = vpack.c.b16 %v6539, %v6531
        %v7908 = vpack.c.b16 %v6540, %v6532
        %v7909 = vpack.c.b16 %v6541, %v6533
        %v7910 = vpack.c.b16 %v6542, %v6534
        %v7911 = vpack.c.b16 %v6543, %v6535
        %v7912 = vpack.c.b16 %v6544, %v6536
        %v7913 = vpack.c.b16 %v6553, %v6545
        %v7914 = vpack.c.b16 %v6554, %v6546
        %v7915 = vpack.c.b16 %v6555, %v6547
        %v7916 = vpack.c.b16 %v6556, %v6548
        %v7917 = vpack.c.b16 %v6557, %v6549
        %v7918 = vpack.c.b16 %v6558, %v6550
        %v7919 = vpack.c.b16 %v6559, %v6551
        %v7920 = vpack.c.b16 %v6560, %v6552
        %v7921 = vpack.c.b16 %v6569, %v6561
        %v7922 = vpack.c.b16 %v6570, %v6562
        %v7923 = vpack.c.b16 %v6571, %v6563
        %v7924 = vpack.c.b16 %v6572, %v6564
        %v7925 = vpack.c.b16 %v6573, %v6565
        %v7926 = vpack.c.b16 %v6574, %v6566
        %v7927 = vpack.c.b16 %v6575, %v6567
        %v7928 = vpack.c.b16 %v6576, %v6568
        %v7929 = vpack.c.b16 %v6585, %v6577
        %v7930 = vpack.c.b16 %v6586, %v6578
        %v7931 = vpack.c.b16 %v6587, %v6579
        %v7932 = vpack.c.b16 %v6588, %v6580
        %v7933 = vpack.c.b16 %v6589, %v6581
        %v7934 = vpack.c.b16 %v6590, %v6582
        %v7935 = vpack.c.b16 %v6591, %v6583
        %v7936 = vpack.c.b16 %v6592, %v6584
        %v7937 = vpack.c.b16 %v6601, %v6593
        %v7938 = vpack.c.b16 %v6602, %v6594
        %v7939 = vpack.c.b16 %v6603, %v6595
        %v7940 = vpack.c.b16 %v6604, %v6596
        %v7941 = vpack.c.b16 %v6605, %v6597
        %v7942 = vpack.c.b16 %v6606, %v6598
        %v7943 = vpack.c.b16 %v6607, %v6599
        %v7944 = vpack.c.b16 %v6608, %v6600
        %v7945 = vpack.c.b16 %v6617, %v6609
        %v7946 = vpack.c.b16 %v6618, %v6610
        %v7947 = vpack.c.b16 %v6619, %v6611
        %v7948 = vpack.c.b16 %v6620, %v6612
        %v7949 = vpack.c.b16 %v6621, %v6613
        %v7950 = vpack.c.b16 %v6622, %v6614
        %v7951 = vpack.c.b16 %v6623, %v6615
        %v7952 = vpack.c.b16 %v6624, %v6616
        %v7953 = vpack.c.b16 %v6633, %v6625
        %v7954 = vpack.c.b16 %v6634, %v6626
        %v7955 = vpack.c.b16 %v6635, %v6627
        %v7956 = vpack.c.b16 %v6636, %v6628
        %v7957 = vpack.c.b16 %v6637, %v6629
        %v7958 = vpack.c.b16 %v6638, %v6630
        %v7959 = vpack.c.b16 %v6639, %v6631
        %v7960 = vpack.c.b16 %v6640, %v6632
        %v7961 = vpack.c.b16 %v6649, %v6641
        %v7962 = vpack.c.b16 %v6650, %v6642
        %v7963 = vpack.c.b16 %v6651, %v6643
        %v7964 = vpack.c.b16 %v6652, %v6644
        %v7965 = vpack.c.b16 %v6653, %v6645
        %v7966 = vpack.c.b16 %v6654, %v6646
        %v7967 = vpack.c.b16 %v6655, %v6647
        %v7968 = vpack.c.b16 %v6656, %v6648
        %v7969 = vpack.c.b16 %v6665, %v6657
        %v7970 = vpack.c.b16 %v6666, %v6658
        %v7971 = vpack.c.b16 %v6667, %v6659
        %v7972 = vpack.c.b16 %v6668, %v6660
        %v7973 = vpack.c.b16 %v6669, %v6661
        %v7974 = vpack.c.b16 %v6670, %v6662
        %v7975 = vpack.c.b16 %v6671, %v6663
        %v7976 = vpack.c.b16 %v6672, %v6664
        %v7977 = vpack.c.b16 %v6681, %v6673
        %v7978 = vpack.c.b16 %v6682, %v6674
        %v7979 = vpack.c.b16 %v6683, %v6675
        %v7980 = vpack.c.b16 %v6684, %v6676
        %v7981 = vpack.c.b16 %v6685, %v6677
        %v7982 = vpack.c.b16 %v6686, %v6678
        %v7983 = vpack.c.b16 %v6687, %v6679
        %v7984 = vpack.c.b16 %v6688, %v6680
        %v7985 = vpack.c.b16 %v6697, %v6689
        %v7986 = vpack.c.b16 %v6698, %v6690
        %v7987 = vpack.c.b16 %v6699, %v6691
        %v7988 = vpack.c.b16 %v6700, %v6692
        %v7989 = vpack.c.b16 %v6701, %v6693
        %v7990 = vpack.c.b16 %v6702, %v6694
        %v7991 = vpack.c.b16 %v6703, %v6695
        %v7992 = vpack.c.b16 %v6704, %v6696
        %v7993 = vpack.c.b16 %v6713, %v6705
        %v7994 = vpack.c.b16 %v6714, %v6706
        %v7995 = vpack.c.b16 %v6715, %v6707
        %v7996 = vpack.c.b16 %v6716, %v6708
        %v7997 = vpack.c.b16 %v6717, %v6709
        %v7998 = vpack.c.b16 %v6718, %v6710
        %v7999 = vpack.c.b16 %v6719, %v6711
        %v8000 = vpack.c.b16 %v6720, %v6712
        %v8001 = vpack.c.b16 %v6729, %v6721
        %v8002 = vpack.c.b16 %v6730, %v6722
        %v8003 = vpack.c.b16 %v6731, %v6723
        %v8004 = vpack.c.b16 %v6732, %v6724
        %v8005 = vpack.c.b16 %v6733, %v6725
        %v8006 = vpack.c.b16 %v6734, %v6726
        %v8007 = vpack.c.b16 %v6735, %v6727
        %v8008 = vpack.c.b16 %v6736, %v6728
        %v8009 = vpack.c.b16 %v6745, %v6737
        %v8010 = vpack.c.b16 %v6746, %v6738
        %v8011 = vpack.c.b16 %v6747, %v6739
        %v8012 = vpack.c.b16 %v6748, %v6740
        %v8013 = vpack.c.b16 %v6749, %v6741
        %v8014 = vpack.c.b16 %v6750, %v6742
        %v8015 = vpack.c.b16 %v6751, %v6743
        %v8016 = vpack.c.b16 %v6752, %v6744
        %v8017 = vpack.c.b16 %v6761, %v6753
        %v8018 = vpack.c.b16 %v6762, %v6754
        %v8019 = vpack.c.b16 %v6763, %v6755
        %v8020 = vpack.c.b16 %v6764, %v6756
        %v8021 = vpack.c.b16 %v6765, %v6757
        %v8022 = vpack.c.b16 %v6766, %v6758
        %v8023 = vpack.c.b16 %v6767, %v6759
        %v8024 = vpack.c.b16 %v6768, %v6760
        %v8025 = vpack.c.b16 %v6777, %v6769
        %v8026 = vpack.c.b16 %v6778, %v6770
        %v8027 = vpack.c.b16 %v6779, %v6771
        %v8028 = vpack.c.b16 %v6780, %v6772
        %v8029 = vpack.c.b16 %v6781, %v6773
        %v8030 = vpack.c.b16 %v6782, %v6774
        %v8031 = vpack.c.b16 %v6783, %v6775
        %v8032 = vpack.c.b16 %v6784, %v6776
        %v8033 = vpack.c.b16 %v6793, %v6785
        %v8034 = vpack.c.b16 %v6794, %v6786
        %v8035 = vpack.c.b16 %v6795, %v6787
        %v8036 = vpack.c.b16 %v6796, %v6788
        %v8037 = vpack.c.b16 %v6797, %v6789
        %v8038 = vpack.c.b16 %v6798, %v6790
        %v8039 = vpack.c.b16 %v6799, %v6791
        %v8040 = vpack.c.b16 %v6800, %v6792
        %v8041 = vpack.c.b16 %v6809, %v6801
        %v8042 = vpack.c.b16 %v6810, %v6802
        %v8043 = vpack.c.b16 %v6811, %v6803
        %v8044 = vpack.c.b16 %v6812, %v6804
        %v8045 = vpack.c.b16 %v6813, %v6805
        %v8046 = vpack.c.b16 %v6814, %v6806
        %v8047 = vpack.c.b16 %v6815, %v6807
        %v8048 = vpack.c.b16 %v6816, %v6808
        %v8049 = vpack.c.b16 %v6825, %v6817
        %v8050 = vpack.c.b16 %v6826, %v6818
        %v8051 = vpack.c.b16 %v6827, %v6819
        %v8052 = vpack.c.b16 %v6828, %v6820
        %v8053 = vpack.c.b16 %v6829, %v6821
        %v8054 = vpack.c.b16 %v6830, %v6822
        %v8055 = vpack.c.b16 %v6831, %v6823
        %v8056 = vpack.c.b16 %v6832, %v6824
        %v8057 = vpack.c.b16 %v6841, %v6833
        %v8058 = vpack.c.b16 %v6842, %v6834
        %v8059 = vpack.c.b16 %v6843, %v6835
        %v8060 = vpack.c.b16 %v6844, %v6836
        %v8061 = vpack.c.b16 %v6845, %v6837
        %v8062 = vpack.c.b16 %v6846, %v6838
        %v8063 = vpack.c.b16 %v6847, %v6839
        %v8064 = vpack.c.b16 %v6848, %v6840
        %v8065 = vpack.c.b16 %v6857, %v6849
        %v8066 = vpack.c.b16 %v6858, %v6850
        %v8067 = vpack.c.b16 %v6859, %v6851
        %v8068 = vpack.c.b16 %v6860, %v6852
        %v8069 = vpack.c.b16 %v6861, %v6853
        %v8070 = vpack.c.b16 %v6862, %v6854
        %v8071 = vpack.c.b16 %v6863, %v6855
        %v8072 = vpack.c.b16 %v6864, %v6856
        %v8073 = vpack.c.b16 %v6873, %v6865
        %v8074 = vpack.c.b16 %v6874, %v6866
        %v8075 = vpack.c.b16 %v6875, %v6867
        %v8076 = vpack.c.b16 %v6876, %v6868
        %v8077 = vpack.c.b16 %v6877, %v6869
        %v8078 = vpack.c.b16 %v6878, %v6870
        %v8079 = vpack.c.b16 %v6879, %v6871
        %v8080 = vpack.c.b16 %v6880, %v6872
        %v8081 = vpack.c.b16 %v6889, %v6881
        %v8082 = vpack.c.b16 %v6890, %v6882
        %v8083 = vpack.c.b16 %v6891, %v6883
        %v8084 = vpack.c.b16 %v6892, %v6884
        %v8085 = vpack.c.b16 %v6893, %v6885
        %v8086 = vpack.c.b16 %v6894, %v6886
        %v8087 = vpack.c.b16 %v6895, %v6887
        %v8088 = vpack.c.b16 %v6896, %v6888
        %v8089 = vpack.c.b16 %v6905, %v6897
        %v8090 = vpack.c.b16 %v6906, %v6898
        %v8091 = vpack.c.b16 %v6907, %v6899
        %v8092 = vpack.c.b16 %v6908, %v6900
        %v8093 = vpack.c.b16 %v6909, %v6901
        %v8094 = vpack.c.b16 %v6910, %v6902
        %v8095 = vpack.c.b16 %v6911, %v6903
        %v8096 = vpack.c.b16 %v6912, %v6904
        %v8097 = vpack.c.b16 %v6921, %v6913
        %v8098 = vpack.c.b16 %v6922, %v6914
        %v8099 = vpack.c.b16 %v6923, %v6915
        %v8100 = vpack.c.b16 %v6924, %v6916
        %v8101 = vpack.c.b16 %v6925, %v6917
        %v8102 = vpack.c.b16 %v6926, %v6918
        %v8103 = vpack.c.b16 %v6927, %v6919
        %v8104 = vpack.c.b16 %v6928, %v6920
        %v8105 = vpack.c.b16 %v6937, %v6929
        %v8106 = vpack.c.b16 %v6938, %v6930
        %v8107 = vpack.c.b16 %v6939, %v6931
        %v8108 = vpack.c.b16 %v6940, %v6932
        %v8109 = vpack.c.b16 %v6941, %v6933
        %v8110 = vpack.c.b16 %v6942, %v6934
        %v8111 = vpack.c.b16 %v6943, %v6935
        %v8112 = vpack.c.b16 %v6944, %v6936
        %v8113 = vpack.c.b16 %v6953, %v6945
        %v8114 = vpack.c.b16 %v6954, %v6946
        %v8115 = vpack.c.b16 %v6955, %v6947
        %v8116 = vpack.c.b16 %v6956, %v6948
        %v8117 = vpack.c.b16 %v6957, %v6949
        %v8118 = vpack.c.b16 %v6958, %v6950
        %v8119 = vpack.c.b16 %v6959, %v6951
        %v8120 = vpack.c.b16 %v6960, %v6952
        %v8121 = vpack.c.b16 %v6969, %v6961
        %v8122 = vpack.c.b16 %v6970, %v6962
        %v8123 = vpack.c.b16 %v6971, %v6963
        %v8124 = vpack.c.b16 %v6972, %v6964
        %v8125 = vpack.c.b16 %v6973, %v6965
        %v8126 = vpack.c.b16 %v6974, %v6966
        %v8127 = vpack.c.b16 %v6975, %v6967
        %v8128 = vpack.c.b16 %v6976, %v6968
        %v8129 = vpack.c.b16 %v6985, %v6977
        %v8130 = vpack.c.b16 %v6986, %v6978
        %v8131 = vpack.c.b16 %v6987, %v6979
        %v8132 = vpack.c.b16 %v6988, %v6980
        %v8133 = vpack.c.b16 %v6989, %v6981
        %v8134 = vpack.c.b16 %v6990, %v6982
        %v8135 = vpack.c.b16 %v6991, %v6983
        %v8136 = vpack.c.b16 %v6992, %v6984
        %v8137 = vpack.c.b16 %v7001, %v6993
        %v8138 = vpack.c.b16 %v7002, %v6994
        %v8139 = vpack.c.b16 %v7003, %v6995
        %v8140 = vpack.c.b16 %v7004, %v6996
        %v8141 = vpack.c.b16 %v7005, %v6997
        %v8142 = vpack.c.b16 %v7006, %v6998
        %v8143 = vpack.c.b16 %v7007, %v6999
        %v8144 = vpack.c.b16 %v7008, %v7000
        %v8145 = vpack.c.b16 %v7017, %v7009
        %v8146 = vpack.c.b16 %v7018, %v7010
        %v8147 = vpack.c.b16 %v7019, %v7011
        %v8148 = vpack.c.b16 %v7020, %v7012
        %v8149 = vpack.c.b16 %v7021, %v7013
        %v8150 = vpack.c.b16 %v7022, %v7014
        %v8151 = vpack.c.b16 %v7023, %v7015
        %v8152 = vpack.c.b16 %v7024, %v7016
        %v8153 = vpack.c.b16 %v7033, %v7025
        %v8154 = vpack.c.b16 %v7034, %v7026
        %v8155 = vpack.c.b16 %v7035, %v7027
        %v8156 = vpack.c.b16 %v7036, %v7028
        %v8157 = vpack.c.b16 %v7037, %v7029
        %v8158 = vpack.c.b16 %v7038, %v7030
        %v8159 = vpack.c.b16 %v7039, %v7031
        %v8160 = vpack.c.b16 %v7040, %v7032
        %v8161 = vpack.c.b16 %v7049, %v7041
        %v8162 = vpack.c.b16 %v7050, %v7042
        %v8163 = vpack.c.b16 %v7051, %v7043
        %v8164 = vpack.c.b16 %v7052, %v7044
        %v8165 = vpack.c.b16 %v7053, %v7045
        %v8166 = vpack.c.b16 %v7054, %v7046
        %v8167 = vpack.c.b16 %v7055, %v7047
        %v8168 = vpack.c.b16 %v7056, %v7048
        %v8169 = vpack.c.b16 %v7065, %v7057
        %v8170 = vpack.c.b16 %v7066, %v7058
        %v8171 = vpack.c.b16 %v7067, %v7059
        %v8172 = vpack.c.b16 %v7068, %v7060
        %v8173 = vpack.c.b16 %v7069, %v7061
        %v8174 = vpack.c.b16 %v7070, %v7062
        %v8175 = vpack.c.b16 %v7071, %v7063
        %v8176 = vpack.c.b16 %v7072, %v7064
        %v8177 = vpack.c.b16 %v7081, %v7073
        %v8178 = vpack.c.b16 %v7082, %v7074
        %v8179 = vpack.c.b16 %v7083, %v7075
        %v8180 = vpack.c.b16 %v7084, %v7076
        %v8181 = vpack.c.b16 %v7085, %v7077
        %v8182 = vpack.c.b16 %v7086, %v7078
        %v8183 = vpack.c.b16 %v7087, %v7079
        %v8184 = vpack.c.b16 %v7088, %v7080
        %v8185 = vpack.c.b16 %v7097, %v7089
        %v8186 = vpack.c.b16 %v7098, %v7090
        %v8187 = vpack.c.b16 %v7099, %v7091
        %v8188 = vpack.c.b16 %v7100, %v7092
        %v8189 = vpack.c.b16 %v7101, %v7093
        %v8190 = vpack.c.b16 %v7102, %v7094
        %v8191 = vpack.c.b16 %v7103, %v7095
        %v8192 = vpack.c.b16 %v7104, %v7096
        %v8193 = vpack.c.b16 %v7113, %v7105
        %v8194 = vpack.c.b16 %v7114, %v7106
        %v8195 = vpack.c.b16 %v7115, %v7107
        %v8196 = vpack.c.b16 %v7116, %v7108
        %v8197 = vpack.c.b16 %v7117, %v7109
        %v8198 = vpack.c.b16 %v7118, %v7110
        %v8199 = vpack.c.b16 %v7119, %v7111
        %v8200 = vpack.c.b16 %v7120, %v7112
        %v8201 = vpack.c.b16 %v7129, %v7121
        %v8202 = vpack.c.b16 %v7130, %v7122
        %v8203 = vpack.c.b16 %v7131, %v7123
        %v8204 = vpack.c.b16 %v7132, %v7124
        %v8205 = vpack.c.b16 %v7133, %v7125
        %v8206 = vpack.c.b16 %v7134, %v7126
        %v8207 = vpack.c.b16 %v7135, %v7127
        %v8208 = vpack.c.b16 %v7136, %v7128
        %v8209 = vpack.c.b16 %v7145, %v7137
        %v8210 = vpack.c.b16 %v7146, %v7138
        %v8211 = vpack.c.b16 %v7147, %v7139
        %v8212 = vpack.c.b16 %v7148, %v7140
        %v8213 = vpack.c.b16 %v7149, %v7141
        %v8214 = vpack.c.b16 %v7150, %v7142
        %v8215 = vpack.c.b16 %v7151, %v7143
        %v8216 = vpack.c.b16 %v7152, %v7144
        %v8217 = vpack.c.b16 %v7161, %v7153
        %v8218 = vpack.c.b16 %v7162, %v7154
        %v8219 = vpack.c.b16 %v7163, %v7155
        %v8220 = vpack.c.b16 %v7164, %v7156
        %v8221 = vpack.c.b16 %v7165, %v7157
        %v8222 = vpack.c.b16 %v7166, %v7158
        %v8223 = vpack.c.b16 %v7167, %v7159
        %v8224 = vpack.c.b16 %v7168, %v7160
        %v8225 = vpack.c.b16 %v7177, %v7169
        %v8226 = vpack.c.b16 %v7178, %v7170
        %v8227 = vpack.c.b16 %v7179, %v7171
        %v8228 = vpack.c.b16 %v7180, %v7172
        %v8229 = vpack.c.b16 %v7181, %v7173
        %v8230 = vpack.c.b16 %v7182, %v7174
        %v8231 = vpack.c.b16 %v7183, %v7175
        %v8232 = vpack.c.b16 %v7184, %v7176
        %v8233 = vpack.c.b16 %v7193, %v7185
        %v8234 = vpack.c.b16 %v7194, %v7186
        %v8235 = vpack.c.b16 %v7195, %v7187
        %v8236 = vpack.c.b16 %v7196, %v7188
        %v8237 = vpack.c.b16 %v7197, %v7189
        %v8238 = vpack.c.b16 %v7198, %v7190
        %v8239 = vpack.c.b16 %v7199, %v7191
        %v8240 = vpack.c.b16 %v7200, %v7192
        %v8241 = vpack.c.b16 %v7209, %v7201
        %v8242 = vpack.c.b16 %v7210, %v7202
        %v8243 = vpack.c.b16 %v7211, %v7203
        %v8244 = vpack.c.b16 %v7212, %v7204
        %v8245 = vpack.c.b16 %v7213, %v7205
        %v8246 = vpack.c.b16 %v7214, %v7206
        %v8247 = vpack.c.b16 %v7215, %v7207
        %v8248 = vpack.c.b16 %v7216, %v7208
        %v8249 = vpack.c.b16 %v7225, %v7217
        %v8250 = vpack.c.b16 %v7226, %v7218
        %v8251 = vpack.c.b16 %v7227, %v7219
        %v8252 = vpack.c.b16 %v7228, %v7220
        %v8253 = vpack.c.b16 %v7229, %v7221
        %v8254 = vpack.c.b16 %v7230, %v7222
        %v8255 = vpack.c.b16 %v7231, %v7223
        %v8256 = vpack.c.b16 %v7232, %v7224
        %v8257 = vpack.c.b16 %v7241, %v7233
        %v8258 = vpack.c.b16 %v7242, %v7234
        %v8259 = vpack.c.b16 %v7243, %v7235
        %v8260 = vpack.c.b16 %v7244, %v7236
        %v8261 = vpack.c.b16 %v7245, %v7237
        %v8262 = vpack.c.b16 %v7246, %v7238
        %v8263 = vpack.c.b16 %v7247, %v7239
        %v8264 = vpack.c.b16 %v7248, %v7240
        %v8265 = vpack.c.b16 %v7257, %v7249
        %v8266 = vpack.c.b16 %v7258, %v7250
        %v8267 = vpack.c.b16 %v7259, %v7251
        %v8268 = vpack.c.b16 %v7260, %v7252
        %v8269 = vpack.c.b16 %v7261, %v7253
        %v8270 = vpack.c.b16 %v7262, %v7254
        %v8271 = vpack.c.b16 %v7263, %v7255
        %v8272 = vpack.c.b16 %v7264, %v7256
        %v8273 = vpack.c.b16 %v7273, %v7265
        %v8274 = vpack.c.b16 %v7274, %v7266
        %v8275 = vpack.c.b16 %v7275, %v7267
        %v8276 = vpack.c.b16 %v7276, %v7268
        %v8277 = vpack.c.b16 %v7277, %v7269
        %v8278 = vpack.c.b16 %v7278, %v7270
        %v8279 = vpack.c.b16 %v7279, %v7271
        %v8280 = vpack.c.b16 %v7280, %v7272
        %v8281 = vpack.c.b16 %v7289, %v7281
        %v8282 = vpack.c.b16 %v7290, %v7282
        %v8283 = vpack.c.b16 %v7291, %v7283
        %v8284 = vpack.c.b16 %v7292, %v7284
        %v8285 = vpack.c.b16 %v7293, %v7285
        %v8286 = vpack.c.b16 %v7294, %v7286
        %v8287 = vpack.c.b16 %v7295, %v7287
        %v8288 = vpack.c.b16 %v7296, %v7288
        %v8289 = vpack.c.b16 %v7305, %v7297
        %v8290 = vpack.c.b16 %v7306, %v7298
        %v8291 = vpack.c.b16 %v7307, %v7299
        %v8292 = vpack.c.b16 %v7308, %v7300
        %v8293 = vpack.c.b16 %v7309, %v7301
        %v8294 = vpack.c.b16 %v7310, %v7302
        %v8295 = vpack.c.b16 %v7311, %v7303
        %v8296 = vpack.c.b16 %v7312, %v7304
        %v8297 = vpack.c.b16 %v7321, %v7313
        %v8298 = vpack.c.b16 %v7322, %v7314
        %v8299 = vpack.c.b16 %v7323, %v7315
        %v8300 = vpack.c.b16 %v7324, %v7316
        %v8301 = vpack.c.b16 %v7325, %v7317
        %v8302 = vpack.c.b16 %v7326, %v7318
        %v8303 = vpack.c.b16 %v7327, %v7319
        %v8304 = vpack.c.b16 %v7328, %v7320
        %v8305 = vpack.c.b16 %v7337, %v7329
        %v8306 = vpack.c.b16 %v7338, %v7330
        %v8307 = vpack.c.b16 %v7339, %v7331
        %v8308 = vpack.c.b16 %v7340, %v7332
        %v8309 = vpack.c.b16 %v7341, %v7333
        %v8310 = vpack.c.b16 %v7342, %v7334
        %v8311 = vpack.c.b16 %v7343, %v7335
        %v8312 = vpack.c.b16 %v7344, %v7336
        %v8313 = vpack.c.b16 %v7353, %v7345
        %v8314 = vpack.c.b16 %v7354, %v7346
        %v8315 = vpack.c.b16 %v7355, %v7347
        %v8316 = vpack.c.b16 %v7356, %v7348
        %v8317 = vpack.c.b16 %v7357, %v7349
        %v8318 = vpack.c.b16 %v7358, %v7350
        %v8319 = vpack.c.b16 %v7359, %v7351
        %v8320 = vpack.c.b16 %v7360, %v7352
        %9281 = vmatprep.subr.bf16.mxu0 %v7362
        %9282 = vmatpush1.bf16.msra.mxu0 %v7361
        %9283 = vmatprep.subr.bf16.mxu0 %v7370
        %9284 = vmatpush1.bf16.msra.mxu0 %v7369
        %9285 = vmatprep.subr.bf16.mxu0 %v7378
        %9286 = vmatpush1.bf16.msra.mxu0 %v7377
        %9287 = vmatprep.subr.bf16.mxu0 %v7386
        %9288 = vmatpush1.bf16.msra.mxu0 %v7385
        %9289 = vmatprep.subr.bf16.mxu0 %v7394
        %9290 = vmatpush1.bf16.msra.mxu0 %v7393
        %9291 = vmatprep.subr.bf16.mxu0 %v7402
        %9292 = vmatpush1.bf16.msra.mxu0 %v7401
        %9293 = vmatprep.subr.bf16.mxu0 %v7410
        %9294 = vmatpush1.bf16.msra.mxu0 %v7409
        %9295 = vmatprep.subr.bf16.mxu0 %v7418
        %9296 = vmatpush1.bf16.msra.mxu0 %v7417
        %9297 = vmatprep.subr.bf16.mxu0 %v7426
        %9298 = vmatpush1.bf16.msra.mxu0 %v7425
        %9299 = vmatprep.subr.bf16.mxu0 %v7434
        %9300 = vmatpush1.bf16.msra.mxu0 %v7433
        %9301 = vmatprep.subr.bf16.mxu0 %v7442
        %9302 = vmatpush1.bf16.msra.mxu0 %v7441
        %9303 = vmatprep.subr.bf16.mxu0 %v7450
        %9304 = vmatpush1.bf16.msra.mxu0 %v7449
        %9305 = vmatprep.subr.bf16.mxu0 %v7458
        %9306 = vmatpush1.bf16.msra.mxu0 %v7457
        %9307 = vmatprep.subr.bf16.mxu0 %v7466
        %9308 = vmatpush1.bf16.msra.mxu0 %v7465
        %9309 = vmatprep.subr.bf16.mxu0 %v7474
        %9310 = vmatpush1.bf16.msra.mxu0 %v7473
        %9311 = vmatprep.subr.bf16.mxu0 %v7482
        %9312 = vmatpush1.bf16.msra.mxu0 %v7481
        %9313 = vmatprep.mubr.bf16.mxu0 %v3465
        %9314 = vmatmul.mubr.bf16.gmra.mrb[0].mxu0 %v3464
        %v9315 = vpop.f32.mrb[0].mxu0
        %v9316 = vadd.f32 %v4444, %v9315
        %v9317 = vpop.f32.mrb[0].mxu0
        %v9318 = vadd.f32 %v4448, %v9317
        %v9319 = vpop.f32.mrb[0].mxu0
        %v9320 = vpop.f32.mrb[0].mxu0
        %9321 = vdwg.mxu0
        %9322 = vmatprep.subr.bf16.mxu0 %v7490
        %9323 = vmatpush1.bf16.msra.mxu0 %v7489
        %9324 = vmatprep.subr.bf16.mxu0 %v7498
        %9325 = vmatpush1.bf16.msra.mxu0 %v7497
        %9326 = vmatprep.subr.bf16.mxu0 %v7506
        %9327 = vmatpush1.bf16.msra.mxu0 %v7505
        %9328 = vmatprep.subr.bf16.mxu0 %v7514
        %9329 = vmatpush1.bf16.msra.mxu0 %v7513
        %9330 = vmatprep.subr.bf16.mxu0 %v7522
        %9331 = vmatpush1.bf16.msra.mxu0 %v7521
        %9332 = vmatprep.subr.bf16.mxu0 %v7530
        %9333 = vmatpush1.bf16.msra.mxu0 %v7529
        %9334 = vmatprep.subr.bf16.mxu0 %v7538
        %9335 = vmatpush1.bf16.msra.mxu0 %v7537
        %9336 = vmatprep.subr.bf16.mxu0 %v7546
        %9337 = vmatpush1.bf16.msra.mxu0 %v7545
        %9338 = vmatprep.subr.bf16.mxu0 %v7554
        %9339 = vmatpush1.bf16.msra.mxu0 %v7553
        %9340 = vmatprep.subr.bf16.mxu0 %v7562
        %9341 = vmatpush1.bf16.msra.mxu0 %v7561
        %9342 = vmatprep.subr.bf16.mxu0 %v7570
        %9343 = vmatpush1.bf16.msra.mxu0 %v7569
        %9344 = vmatprep.subr.bf16.mxu0 %v7578
        %9345 = vmatpush1.bf16.msra.mxu0 %v7577
        %9346 = vmatprep.subr.bf16.mxu0 %v7586
        %9347 = vmatpush1.bf16.msra.mxu0 %v7585
        %9348 = vmatprep.subr.bf16.mxu0 %v7594
        %9349 = vmatpush1.bf16.msra.mxu0 %v7593
        %9350 = vmatprep.subr.bf16.mxu0 %v7602
        %9351 = vmatpush1.bf16.msra.mxu0 %v7601
        %9352 = vmatprep.subr.bf16.mxu0 %v7610
        %9353 = vmatpush1.bf16.msra.mxu0 %v7609
        %9354 = vmatprep.mubr.bf16.mxu0 %v3467
        %9355 = vmatmul.mubr.bf16.gmra.mrb[0].mxu0 %v3466
        %v9356 = vpop.f32.mrb[0].mxu0
        %v9357 = vadd.f32 %v9316, %v9356
        %v9358 = vpop.f32.mrb[0].mxu0
        %v9359 = vadd.f32 %v9318, %v9358
        %v9360 = vpop.f32.mrb[0].mxu0
        %v9361 = vpop.f32.mrb[0].mxu0
        %9362 = vdwg.mxu0
        %9363 = vmatprep.subr.bf16.mxu0 %v7618
        %9364 = vmatpush1.bf16.msra.mxu0 %v7617
        %9365 = vmatprep.subr.bf16.mxu0 %v7626
        %9366 = vmatpush1.bf16.msra.mxu0 %v7625
        %9367 = vmatprep.subr.bf16.mxu0 %v7634
        %9368 = vmatpush1.bf16.msra.mxu0 %v7633
        %9369 = vmatprep.subr.bf16.mxu0 %v7642
        %9370 = vmatpush1.bf16.msra.mxu0 %v7641
        %9371 = vmatprep.subr.bf16.mxu0 %v7650
        %9372 = vmatpush1.bf16.msra.mxu0 %v7649
        %9373 = vmatprep.subr.bf16.mxu0 %v7658
        %9374 = vmatpush1.bf16.msra.mxu0 %v7657
        %9375 = vmatprep.subr.bf16.mxu0 %v7666
        %9376 = vmatpush1.bf16.msra.mxu0 %v7665
        %9377 = vmatprep.subr.bf16.mxu0 %v7674
        %9378 = vmatpush1.bf16.msra.mxu0 %v7673
        %9379 = vmatprep.subr.bf16.mxu0 %v7682
        %9380 = vmatpush1.bf16.msra.mxu0 %v7681
        %9381 = vmatprep.subr.bf16.mxu0 %v7690
        %9382 = vmatpush1.bf16.msra.mxu0 %v7689
        %9383 = vmatprep.subr.bf16.mxu0 %v7698
        %9384 = vmatpush1.bf16.msra.mxu0 %v7697
        %9385 = vmatprep.subr.bf16.mxu0 %v7706
        %9386 = vmatpush1.bf16.msra.mxu0 %v7705
        %9387 = vmatprep.subr.bf16.mxu0 %v7714
        %9388 = vmatpush1.bf16.msra.mxu0 %v7713
        %9389 = vmatprep.subr.bf16.mxu0 %v7722
        %9390 = vmatpush1.bf16.msra.mxu0 %v7721
        %9391 = vmatprep.subr.bf16.mxu0 %v7730
        %9392 = vmatpush1.bf16.msra.mxu0 %v7729
        %9393 = vmatprep.subr.bf16.mxu0 %v7738
        %9394 = vmatpush1.bf16.msra.mxu0 %v7737
        %9395 = vmatprep.mubr.bf16.mxu0 %v3469
        %9396 = vmatmul.mubr.bf16.gmra.mrb[0].mxu0 %v3468
        %v9397 = vpop.f32.mrb[0].mxu0
        %v9398 = vadd.f32 %v9357, %v9397
        %v9399 = vpop.f32.mrb[0].mxu0
        %v9400 = vadd.f32 %v9359, %v9399
        %v9401 = vpop.f32.mrb[0].mxu0
        %v9402 = vpop.f32.mrb[0].mxu0
        %9403 = vdwg.mxu0
        %9404 = vmatprep.subr.bf16.mxu0 %v7746
        %9405 = vmatpush1.bf16.msra.mxu0 %v7745
        %9406 = vmatprep.subr.bf16.mxu0 %v7754
        %9407 = vmatpush1.bf16.msra.mxu0 %v7753
        %9408 = vmatprep.subr.bf16.mxu0 %v7762
        %9409 = vmatpush1.bf16.msra.mxu0 %v7761
        %9410 = vmatprep.subr.bf16.mxu0 %v7770
        %9411 = vmatpush1.bf16.msra.mxu0 %v7769
        %9412 = vmatprep.subr.bf16.mxu0 %v7778
        %9413 = vmatpush1.bf16.msra.mxu0 %v7777
        %9414 = vmatprep.subr.bf16.mxu0 %v7786
        %9415 = vmatpush1.bf16.msra.mxu0 %v7785
        %9416 = vmatprep.subr.bf16.mxu0 %v7794
        %9417 = vmatpush1.bf16.msra.mxu0 %v7793
        %9418 = vmatprep.subr.bf16.mxu0 %v7802
        %9419 = vmatpush1.bf16.msra.mxu0 %v7801
        %9420 = vmatprep.subr.bf16.mxu0 %v7810
        %9421 = vmatpush1.bf16.msra.mxu0 %v7809
        %9422 = vmatprep.subr.bf16.mxu0 %v7818
        %9423 = vmatpush1.bf16.msra.mxu0 %v7817
        %9424 = vmatprep.subr.bf16.mxu0 %v7826
        %9425 = vmatpush1.bf16.msra.mxu0 %v7825
        %9426 = vmatprep.subr.bf16.mxu0 %v7834
        %9427 = vmatpush1.bf16.msra.mxu0 %v7833
        %9428 = vmatprep.subr.bf16.mxu0 %v7842
        %9429 = vmatpush1.bf16.msra.mxu0 %v7841
        %9430 = vmatprep.subr.bf16.mxu0 %v7850
        %9431 = vmatpush1.bf16.msra.mxu0 %v7849
        %9432 = vmatprep.subr.bf16.mxu0 %v7858
        %9433 = vmatpush1.bf16.msra.mxu0 %v7857
        %9434 = vmatprep.subr.bf16.mxu0 %v7866
        %9435 = vmatpush1.bf16.msra.mxu0 %v7865
        %9436 = vmatprep.mubr.bf16.mxu0 %v3471
        %9437 = vmatmul.mubr.bf16.gmra.mrb[0].mxu0 %v3470
        %v9438 = vpop.f32.mrb[0].mxu0
        %v9439 = vadd.f32 %v9398, %v9438
        %v9440 = vpop.f32.mrb[0].mxu0
        %v9441 = vadd.f32 %v9400, %v9440
        %v9442 = vpop.f32.mrb[0].mxu0
        %v9443 = vpop.f32.mrb[0].mxu0
        %9444 = vdwg.mxu0
        %9445 = vmatprep.subr.bf16.mxu0 %v7874
        %9446 = vmatpush1.bf16.msra.mxu0 %v7873
        %9447 = vmatprep.subr.bf16.mxu0 %v7882
        %9448 = vmatpush1.bf16.msra.mxu0 %v7881
        %9449 = vmatprep.subr.bf16.mxu0 %v7890
        %9450 = vmatpush1.bf16.msra.mxu0 %v7889
        %9451 = vmatprep.subr.bf16.mxu0 %v7898
        %9452 = vmatpush1.bf16.msra.mxu0 %v7897
        %9453 = vmatprep.subr.bf16.mxu0 %v7906
        %9454 = vmatpush1.bf16.msra.mxu0 %v7905
        %9455 = vmatprep.subr.bf16.mxu0 %v7914
        %9456 = vmatpush1.bf16.msra.mxu0 %v7913
        %9457 = vmatprep.subr.bf16.mxu0 %v7922
        %9458 = vmatpush1.bf16.msra.mxu0 %v7921
        %9459 = vmatprep.subr.bf16.mxu0 %v7930
        %9460 = vmatpush1.bf16.msra.mxu0 %v7929
        %9461 = vmatprep.subr.bf16.mxu0 %v7938
        %9462 = vmatpush1.bf16.msra.mxu0 %v7937
        %9463 = vmatprep.subr.bf16.mxu0 %v7946
        %9464 = vmatpush1.bf16.msra.mxu0 %v7945
        %9465 = vmatprep.subr.bf16.mxu0 %v7954
        %9466 = vmatpush1.bf16.msra.mxu0 %v7953
        %9467 = vmatprep.subr.bf16.mxu0 %v7962
        %9468 = vmatpush1.bf16.msra.mxu0 %v7961
        %9469 = vmatprep.subr.bf16.mxu0 %v7970
        %9470 = vmatpush1.bf16.msra.mxu0 %v7969
        %9471 = vmatprep.subr.bf16.mxu0 %v7978
        %9472 = vmatpush1.bf16.msra.mxu0 %v7977
        %9473 = vmatprep.subr.bf16.mxu0 %v7986
        %9474 = vmatpush1.bf16.msra.mxu0 %v7985
        %9475 = vmatprep.subr.bf16.mxu0 %v7994
        %9476 = vmatpush1.bf16.msra.mxu0 %v7993
        %9477 = vmatprep.mubr.bf16.mxu0 %v3473
        %9478 = vmatmul.mubr.bf16.gmra.mrb[0].mxu0 %v3472
        %v9479 = vpop.f32.mrb[0].mxu0
        %v9480 = vadd.f32 %v9439, %v9479
        %v9481 = vpop.f32.mrb[0].mxu0
        %v9482 = vadd.f32 %v9441, %v9481
        %v9483 = vpop.f32.mrb[0].mxu0
        %v9484 = vpop.f32.mrb[0].mxu0
        %9485 = vdwg.mxu0
        %9486 = vmatprep.subr.bf16.mxu0 %v8002
        %9487 = vmatpush1.bf16.msra.mxu0 %v8001
        %9488 = vmatprep.subr.bf16.mxu0 %v8010
        %9489 = vmatpush1.bf16.msra.mxu0 %v8009
        %9490 = vmatprep.subr.bf16.mxu0 %v8018
        %9491 = vmatpush1.bf16.msra.mxu0 %v8017
        %9492 = vmatprep.subr.bf16.mxu0 %v8026
        %9493 = vmatpush1.bf16.msra.mxu0 %v8025
        %9494 = vmatprep.subr.bf16.mxu0 %v8034
        %9495 = vmatpush1.bf16.msra.mxu0 %v8033
        %9496 = vmatprep.subr.bf16.mxu0 %v8042
        %9497 = vmatpush1.bf16.msra.mxu0 %v8041
        %9498 = vmatprep.subr.bf16.mxu0 %v8050
        %9499 = vmatpush1.bf16.msra.mxu0 %v8049
        %9500 = vmatprep.subr.bf16.mxu0 %v8058
        %9501 = vmatpush1.bf16.msra.mxu0 %v8057
        %9502 = vmatprep.subr.bf16.mxu0 %v8066
        %9503 = vmatpush1.bf16.msra.mxu0 %v8065
        %9504 = vmatprep.subr.bf16.mxu0 %v8074
        %9505 = vmatpush1.bf16.msra.mxu0 %v8073
        %9506 = vmatprep.subr.bf16.mxu0 %v8082
        %9507 = vmatpush1.bf16.msra.mxu0 %v8081
        %9508 = vmatprep.subr.bf16.mxu0 %v8090
        %9509 = vmatpush1.bf16.msra.mxu0 %v8089
        %9510 = vmatprep.subr.bf16.mxu0 %v8098
        %9511 = vmatpush1.bf16.msra.mxu0 %v8097
        %9512 = vmatprep.subr.bf16.mxu0 %v8106
        %9513 = vmatpush1.bf16.msra.mxu0 %v8105
        %9514 = vmatprep.subr.bf16.mxu0 %v8114
        %9515 = vmatpush1.bf16.msra.mxu0 %v8113
        %9516 = vmatprep.subr.bf16.mxu0 %v8122
        %9517 = vmatpush1.bf16.msra.mxu0 %v8121
        %9518 = vmatprep.mubr.bf16.mxu0 %v3475
        %9519 = vmatmul.mubr.bf16.gmra.mrb[0].mxu0 %v3474
        %v9520 = vpop.f32.mrb[0].mxu0
        %v9521 = vadd.f32 %v9480, %v9520
        %v9522 = vpop.f32.mrb[0].mxu0
        %v9523 = vadd.f32 %v9482, %v9522
        %v9524 = vpop.f32.mrb[0].mxu0
        %v9525 = vpop.f32.mrb[0].mxu0
        %9526 = vdwg.mxu0
        %9527 = vmatprep.subr.bf16.mxu0 %v8130
        %9528 = vmatpush1.bf16.msra.mxu0 %v8129
        %9529 = vmatprep.subr.bf16.mxu0 %v8138
        %9530 = vmatpush1.bf16.msra.mxu0 %v8137
        %9531 = vmatprep.subr.bf16.mxu0 %v8146
        %9532 = vmatpush1.bf16.msra.mxu0 %v8145
        %9533 = vmatprep.subr.bf16.mxu0 %v8154
        %9534 = vmatpush1.bf16.msra.mxu0 %v8153
        %9535 = vmatprep.subr.bf16.mxu0 %v8162
        %9536 = vmatpush1.bf16.msra.mxu0 %v8161
        %9537 = vmatprep.subr.bf16.mxu0 %v8170
        %9538 = vmatpush1.bf16.msra.mxu0 %v8169
        %9539 = vmatprep.subr.bf16.mxu0 %v8178
        %9540 = vmatpush1.bf16.msra.mxu0 %v8177
        %9541 = vmatprep.subr.bf16.mxu0 %v8186
        %9542 = vmatpush1.bf16.msra.mxu0 %v8185
        %9543 = vmatprep.subr.bf16.mxu0 %v8194
        %9544 = vmatpush1.bf16.msra.mxu0 %v8193
        %9545 = vmatprep.subr.bf16.mxu0 %v8202
        %9546 = vmatpush1.bf16.msra.mxu0 %v8201
        %9547 = vmatprep.subr.bf16.mxu0 %v8210
        %9548 = vmatpush1.bf16.msra.mxu0 %v8209
        %9549 = vmatprep.subr.bf16.mxu0 %v8218
        %9550 = vmatpush1.bf16.msra.mxu0 %v8217
        %9551 = vmatprep.subr.bf16.mxu0 %v8226
        %9552 = vmatpush1.bf16.msra.mxu0 %v8225
        %9553 = vmatprep.subr.bf16.mxu0 %v8234
        %9554 = vmatpush1.bf16.msra.mxu0 %v8233
        %9555 = vmatprep.subr.bf16.mxu0 %v8242
        %9556 = vmatpush1.bf16.msra.mxu0 %v8241
        %9557 = vmatprep.subr.bf16.mxu0 %v8250
        %9558 = vmatpush1.bf16.msra.mxu0 %v8249
        %9559 = vmatprep.mubr.bf16.mxu0 %v3477
        %9560 = vmatmul.mubr.bf16.gmra.mrb[0].mxu0 %v3476
        %v9561 = vpop.f32.mrb[0].mxu0
        %v9562 = vadd.f32 %v9521, %v9561
        %v9563 = vpop.f32.mrb[0].mxu0
        %v9564 = vadd.f32 %v9523, %v9563
        %v9565 = vpop.f32.mrb[0].mxu0
        %v9566 = vpop.f32.mrb[0].mxu0
        %9567 = vdwg.mxu0
        %9568 = vmatprep.subr.bf16.mxu0 %v8258
        %9569 = vmatpush1.bf16.msra.mxu0 %v8257
        %9570 = vmatprep.subr.bf16.mxu0 %v8266
        %9571 = vmatpush1.bf16.msra.mxu0 %v8265
        %9572 = vmatprep.subr.bf16.mxu0 %v8274
        %9573 = vmatpush1.bf16.msra.mxu0 %v8273
        %9574 = vmatprep.subr.bf16.mxu0 %v8282
        %9575 = vmatpush1.bf16.msra.mxu0 %v8281
        %9576 = vmatprep.subr.bf16.mxu0 %v8290
        %9577 = vmatpush1.bf16.msra.mxu0 %v8289
        %9578 = vmatprep.subr.bf16.mxu0 %v8298
        %9579 = vmatpush1.bf16.msra.mxu0 %v8297
        %9580 = vmatprep.subr.bf16.mxu0 %v8306
        %9581 = vmatpush1.bf16.msra.mxu0 %v8305
        %9582 = vmatprep.subr.bf16.mxu0 %v8314
        %9583 = vmatpush1.bf16.msra.mxu0 %v8313
        %9584 = vmatprep.subr.bf16.mxu0 0
        %9585 = vmatpush1.bf16.msra.mxu0 0
        %9586 = vmatprep.subr.bf16.mxu0 0
        %9587 = vmatpush1.bf16.msra.mxu0 0
        %9588 = vmatprep.subr.bf16.mxu0 0
        %9589 = vmatpush1.bf16.msra.mxu0 0
        %9590 = vmatprep.subr.bf16.mxu0 0
        %9591 = vmatpush1.bf16.msra.mxu0 0
        %9592 = vmatprep.subr.bf16.mxu0 0
        %9593 = vmatpush1.bf16.msra.mxu0 0
        %9594 = vmatprep.subr.bf16.mxu0 0
        %9595 = vmatpush1.bf16.msra.mxu0 0
        %9596 = vmatprep.subr.bf16.mxu0 0
        %9597 = vmatpush1.bf16.msra.mxu0 0
        %9598 = vmatprep.subr.bf16.mxu0 0
        %9599 = vmatpush1.bf16.msra.mxu0 0
        %9600 = vmatprep.mubr.bf16.mxu0 0
        %9601 = vmatmul.mubr.bf16.gmra.mrb[0].mxu0 %v3478
        %v9602 = vpop.f32.mrb[0].mxu0
        %v9603 = vadd.f32 %v9562, %v9602
        %v9604 = vpop.f32.mrb[0].mxu0
        %v9605 = vadd.f32 %v9564, %v9604
        %v9606 = vpop.f32.mrb[0].mxu0
        %v9607 = vpop.f32.mrb[0].mxu0
        %9608 = vdwg.mxu0
        %9609 = vmatprep.subr.bf16.mxu0 %v7364
        %9610 = vmatpush1.bf16.msra.mxu0 %v7363
        %9611 = vmatprep.subr.bf16.mxu0 %v7372
        %9612 = vmatpush1.bf16.msra.mxu0 %v7371
        %9613 = vmatprep.subr.bf16.mxu0 %v7380
        %9614 = vmatpush1.bf16.msra.mxu0 %v7379
        %9615 = vmatprep.subr.bf16.mxu0 %v7388
        %9616 = vmatpush1.bf16.msra.mxu0 %v7387
        %9617 = vmatprep.subr.bf16.mxu0 %v7396
        %9618 = vmatpush1.bf16.msra.mxu0 %v7395
        %9619 = vmatprep.subr.bf16.mxu0 %v7404
        %9620 = vmatpush1.bf16.msra.mxu0 %v7403
        %9621 = vmatprep.subr.bf16.mxu0 %v7412
        %9622 = vmatpush1.bf16.msra.mxu0 %v7411
        %9623 = vmatprep.subr.bf16.mxu0 %v7420
        %9624 = vmatpush1.bf16.msra.mxu0 %v7419
        %9625 = vmatprep.subr.bf16.mxu0 %v7428
        %9626 = vmatpush1.bf16.msra.mxu0 %v7427
        %9627 = vmatprep.subr.bf16.mxu0 %v7436
        %9628 = vmatpush1.bf16.msra.mxu0 %v7435
        %9629 = vmatprep.subr.bf16.mxu0 %v7444
        %9630 = vmatpush1.bf16.msra.mxu0 %v7443
        %9631 = vmatprep.subr.bf16.mxu0 %v7452
        %9632 = vmatpush1.bf16.msra.mxu0 %v7451
        %9633 = vmatprep.subr.bf16.mxu0 %v7460
        %9634 = vmatpush1.bf16.msra.mxu0 %v7459
        %9635 = vmatprep.subr.bf16.mxu0 %v7468
        %9636 = vmatpush1.bf16.msra.mxu0 %v7467
        %9637 = vmatprep.subr.bf16.mxu0 %v7476
        %9638 = vmatpush1.bf16.msra.mxu0 %v7475
        %9639 = vmatprep.subr.bf16.mxu0 %v7484
        %9640 = vmatpush1.bf16.msra.mxu0 %v7483
        %9641 = vmatprep.mubr.bf16.mxu0 %v3465
        %9642 = vmatmul.mubr.bf16.gmra.mrb[0].mxu0 %v3464
        %v9643 = vpop.f32.mrb[0].mxu0
        %v9644 = vadd.f32 %v4452, %v9643
        %v9645 = vpop.f32.mrb[0].mxu0
        %v9646 = vadd.f32 %v4456, %v9645
        %v9647 = vpop.f32.mrb[0].mxu0
        %v9648 = vpop.f32.mrb[0].mxu0
        %9649 = vdwg.mxu0
        %9650 = vmatprep.subr.bf16.mxu0 %v7492
        %9651 = vmatpush1.bf16.msra.mxu0 %v7491
        %9652 = vmatprep.subr.bf16.mxu0 %v7500
        %9653 = vmatpush1.bf16.msra.mxu0 %v7499
        %9654 = vmatprep.subr.bf16.mxu0 %v7508
        %9655 = vmatpush1.bf16.msra.mxu0 %v7507
        %9656 = vmatprep.subr.bf16.mxu0 %v7516
        %9657 = vmatpush1.bf16.msra.mxu0 %v7515
        %9658 = vmatprep.subr.bf16.mxu0 %v7524
        %9659 = vmatpush1.bf16.msra.mxu0 %v7523
        %9660 = vmatprep.subr.bf16.mxu0 %v7532
        %9661 = vmatpush1.bf16.msra.mxu0 %v7531
        %9662 = vmatprep.subr.bf16.mxu0 %v7540
        %9663 = vmatpush1.bf16.msra.mxu0 %v7539
        %9664 = vmatprep.subr.bf16.mxu0 %v7548
        %9665 = vmatpush1.bf16.msra.mxu0 %v7547
        %9666 = vmatprep.subr.bf16.mxu0 %v7556
        %9667 = vmatpush1.bf16.msra.mxu0 %v7555
        %9668 = vmatprep.subr.bf16.mxu0 %v7564
        %9669 = vmatpush1.bf16.msra.mxu0 %v7563
        %9670 = vmatprep.subr.bf16.mxu0 %v7572
        %9671 = vmatpush1.bf16.msra.mxu0 %v7571
        %9672 = vmatprep.subr.bf16.mxu0 %v7580
        %9673 = vmatpush1.bf16.msra.mxu0 %v7579
        %9674 = vmatprep.subr.bf16.mxu0 %v7588
        %9675 = vmatpush1.bf16.msra.mxu0 %v7587
        %9676 = vmatprep.subr.bf16.mxu0 %v7596
        %9677 = vmatpush1.bf16.msra.mxu0 %v7595
        %9678 = vmatprep.subr.bf16.mxu0 %v7604
        %9679 = vmatpush1.bf16.msra.mxu0 %v7603
        %9680 = vmatprep.subr.bf16.mxu0 %v7612
        %9681 = vmatpush1.bf16.msra.mxu0 %v7611
        %9682 = vmatprep.mubr.bf16.mxu0 %v3467
        %9683 = vmatmul.mubr.bf16.gmra.mrb[0].mxu0 %v3466
        %v9684 = vpop.f32.mrb[0].mxu0
        %v9685 = vadd.f32 %v9644, %v9684
        %v9686 = vpop.f32.mrb[0].mxu0
        %v9687 = vadd.f32 %v9646, %v9686
        %v9688 = vpop.f32.mrb[0].mxu0
        %v9689 = vpop.f32.mrb[0].mxu0
        %9690 = vdwg.mxu0
        %9691 = vmatprep.subr.bf16.mxu0 %v7620
        %9692 = vmatpush1.bf16.msra.mxu0 %v7619
        %9693 = vmatprep.subr.bf16.mxu0 %v7628
        %9694 = vmatpush1.bf16.msra.mxu0 %v7627
        %9695 = vmatprep.subr.bf16.mxu0 %v7636
        %9696 = vmatpush1.bf16.msra.mxu0 %v7635
        %9697 = vmatprep.subr.bf16.mxu0 %v7644
        %9698 = vmatpush1.bf16.msra.mxu0 %v7643
        %9699 = vmatprep.subr.bf16.mxu0 %v7652
        %9700 = vmatpush1.bf16.msra.mxu0 %v7651
        %9701 = vmatprep.subr.bf16.mxu0 %v7660
        %9702 = vmatpush1.bf16.msra.mxu0 %v7659
        %9703 = vmatprep.subr.bf16.mxu0 %v7668
        %9704 = vmatpush1.bf16.msra.mxu0 %v7667
        %9705 = vmatprep.subr.bf16.mxu0 %v7676
        %9706 = vmatpush1.bf16.msra.mxu0 %v7675
        %9707 = vmatprep.subr.bf16.mxu0 %v7684
        %9708 = vmatpush1.bf16.msra.mxu0 %v7683
        %9709 = vmatprep.subr.bf16.mxu0 %v7692
        %9710 = vmatpush1.bf16.msra.mxu0 %v7691
        %9711 = vmatprep.subr.bf16.mxu0 %v7700
        %9712 = vmatpush1.bf16.msra.mxu0 %v7699
        %9713 = vmatprep.subr.bf16.mxu0 %v7708
        %9714 = vmatpush1.bf16.msra.mxu0 %v7707
        %9715 = vmatprep.subr.bf16.mxu0 %v7716
        %9716 = vmatpush1.bf16.msra.mxu0 %v7715
        %9717 = vmatprep.subr.bf16.mxu0 %v7724
        %9718 = vmatpush1.bf16.msra.mxu0 %v7723
        %9719 = vmatprep.subr.bf16.mxu0 %v7732
        %9720 = vmatpush1.bf16.msra.mxu0 %v7731
        %9721 = vmatprep.subr.bf16.mxu0 %v7740
        %9722 = vmatpush1.bf16.msra.mxu0 %v7739
        %9723 = vmatprep.mubr.bf16.mxu0 %v3469
        %9724 = vmatmul.mubr.bf16.gmra.mrb[0].mxu0 %v3468
        %v9725 = vpop.f32.mrb[0].mxu0
        %v9726 = vadd.f32 %v9685, %v9725
        %v9727 = vpop.f32.mrb[0].mxu0
        %v9728 = vadd.f32 %v9687, %v9727
        %v9729 = vpop.f32.mrb[0].mxu0
        %v9730 = vpop.f32.mrb[0].mxu0
        %9731 = vdwg.mxu0
        %9732 = vmatprep.subr.bf16.mxu0 %v7748
        %9733 = vmatpush1.bf16.msra.mxu0 %v7747
        %9734 = vmatprep.subr.bf16.mxu0 %v7756
        %9735 = vmatpush1.bf16.msra.mxu0 %v7755
        %9736 = vmatprep.subr.bf16.mxu0 %v7764
        %9737 = vmatpush1.bf16.msra.mxu0 %v7763
        %9738 = vmatprep.subr.bf16.mxu0 %v7772
        %9739 = vmatpush1.bf16.msra.mxu0 %v7771
        %9740 = vmatprep.subr.bf16.mxu0 %v7780
        %9741 = vmatpush1.bf16.msra.mxu0 %v7779
        %9742 = vmatprep.subr.bf16.mxu0 %v7788
        %9743 = vmatpush1.bf16.msra.mxu0 %v7787
        %9744 = vmatprep.subr.bf16.mxu0 %v7796
        %9745 = vmatpush1.bf16.msra.mxu0 %v7795
        %9746 = vmatprep.subr.bf16.mxu0 %v7804
        %9747 = vmatpush1.bf16.msra.mxu0 %v7803
        %9748 = vmatprep.subr.bf16.mxu0 %v7812
        %9749 = vmatpush1.bf16.msra.mxu0 %v7811
        %9750 = vmatprep.subr.bf16.mxu0 %v7820
        %9751 = vmatpush1.bf16.msra.mxu0 %v7819
        %9752 = vmatprep.subr.bf16.mxu0 %v7828
        %9753 = vmatpush1.bf16.msra.mxu0 %v7827
        %9754 = vmatprep.subr.bf16.mxu0 %v7836
        %9755 = vmatpush1.bf16.msra.mxu0 %v7835
        %9756 = vmatprep.subr.bf16.mxu0 %v7844
        %9757 = vmatpush1.bf16.msra.mxu0 %v7843
        %9758 = vmatprep.subr.bf16.mxu0 %v7852
        %9759 = vmatpush1.bf16.msra.mxu0 %v7851
        %9760 = vmatprep.subr.bf16.mxu0 %v7860
        %9761 = vmatpush1.bf16.msra.mxu0 %v7859
        %9762 = vmatprep.subr.bf16.mxu0 %v7868
        %9763 = vmatpush1.bf16.msra.mxu0 %v7867
        %9764 = vmatprep.mubr.bf16.mxu0 %v3471
        %9765 = vmatmul.mubr.bf16.gmra.mrb[0].mxu0 %v3470
        %v9766 = vpop.f32.mrb[0].mxu0
        %v9767 = vadd.f32 %v9726, %v9766
        %v9768 = vpop.f32.mrb[0].mxu0
        %v9769 = vadd.f32 %v9728, %v9768
        %v9770 = vpop.f32.mrb[0].mxu0
        %v9771 = vpop.f32.mrb[0].mxu0
        %9772 = vdwg.mxu0
        %9773 = vmatprep.subr.bf16.mxu0 %v7876
        %9774 = vmatpush1.bf16.msra.mxu0 %v7875
        %9775 = vmatprep.subr.bf16.mxu0 %v7884
        %9776 = vmatpush1.bf16.msra.mxu0 %v7883
        %9777 = vmatprep.subr.bf16.mxu0 %v7892
        %9778 = vmatpush1.bf16.msra.mxu0 %v7891
        %9779 = vmatprep.subr.bf16.mxu0 %v7900
        %9780 = vmatpush1.bf16.msra.mxu0 %v7899
        %9781 = vmatprep.subr.bf16.mxu0 %v7908
        %9782 = vmatpush1.bf16.msra.mxu0 %v7907
        %9783 = vmatprep.subr.bf16.mxu0 %v7916
        %9784 = vmatpush1.bf16.msra.mxu0 %v7915
        %9785 = vmatprep.subr.bf16.mxu0 %v7924
        %9786 = vmatpush1.bf16.msra.mxu0 %v7923
        %9787 = vmatprep.subr.bf16.mxu0 %v7932
        %9788 = vmatpush1.bf16.msra.mxu0 %v7931
        %9789 = vmatprep.subr.bf16.mxu0 %v7940
        %9790 = vmatpush1.bf16.msra.mxu0 %v7939
        %9791 = vmatprep.subr.bf16.mxu0 %v7948
        %9792 = vmatpush1.bf16.msra.mxu0 %v7947
        %9793 = vmatprep.subr.bf16.mxu0 %v7956
        %9794 = vmatpush1.bf16.msra.mxu0 %v7955
        %9795 = vmatprep.subr.bf16.mxu0 %v7964
        %9796 = vmatpush1.bf16.msra.mxu0 %v7963
        %9797 = vmatprep.subr.bf16.mxu0 %v7972
        %9798 = vmatpush1.bf16.msra.mxu0 %v7971
        %9799 = vmatprep.subr.bf16.mxu0 %v7980
        %9800 = vmatpush1.bf16.msra.mxu0 %v7979
        %9801 = vmatprep.subr.bf16.mxu0 %v7988
        %9802 = vmatpush1.bf16.msra.mxu0 %v7987
        %9803 = vmatprep.subr.bf16.mxu0 %v7996
        %9804 = vmatpush1.bf16.msra.mxu0 %v7995
        %9805 = vmatprep.mubr.bf16.mxu0 %v3473
        %9806 = vmatmul.mubr.bf16.gmra.mrb[0].mxu0 %v3472
        %v9807 = vpop.f32.mrb[0].mxu0
        %v9808 = vadd.f32 %v9767, %v9807
        %v9809 = vpop.f32.mrb[0].mxu0
        %v9810 = vadd.f32 %v9769, %v9809
        %v9811 = vpop.f32.mrb[0].mxu0
        %v9812 = vpop.f32.mrb[0].mxu0
        %9813 = vdwg.mxu0
        %9814 = vmatprep.subr.bf16.mxu0 %v8004
        %9815 = vmatpush1.bf16.msra.mxu0 %v8003
        %9816 = vmatprep.subr.bf16.mxu0 %v8012
        %9817 = vmatpush1.bf16.msra.mxu0 %v8011
        %9818 = vmatprep.subr.bf16.mxu0 %v8020
        %9819 = vmatpush1.bf16.msra.mxu0 %v8019
        %9820 = vmatprep.subr.bf16.mxu0 %v8028
        %9821 = vmatpush1.bf16.msra.mxu0 %v8027
        %9822 = vmatprep.subr.bf16.mxu0 %v8036
        %9823 = vmatpush1.bf16.msra.mxu0 %v8035
        %9824 = vmatprep.subr.bf16.mxu0 %v8044
        %9825 = vmatpush1.bf16.msra.mxu0 %v8043
        %9826 = vmatprep.subr.bf16.mxu0 %v8052
        %9827 = vmatpush1.bf16.msra.mxu0 %v8051
        %9828 = vmatprep.subr.bf16.mxu0 %v8060
        %9829 = vmatpush1.bf16.msra.mxu0 %v8059
        %9830 = vmatprep.subr.bf16.mxu0 %v8068
        %9831 = vmatpush1.bf16.msra.mxu0 %v8067
        %9832 = vmatprep.subr.bf16.mxu0 %v8076
        %9833 = vmatpush1.bf16.msra.mxu0 %v8075
        %9834 = vmatprep.subr.bf16.mxu0 %v8084
        %9835 = vmatpush1.bf16.msra.mxu0 %v8083
        %9836 = vmatprep.subr.bf16.mxu0 %v8092
        %9837 = vmatpush1.bf16.msra.mxu0 %v8091
        %9838 = vmatprep.subr.bf16.mxu0 %v8100
        %9839 = vmatpush1.bf16.msra.mxu0 %v8099
        %9840 = vmatprep.subr.bf16.mxu0 %v8108
        %9841 = vmatpush1.bf16.msra.mxu0 %v8107
        %9842 = vmatprep.subr.bf16.mxu0 %v8116
        %9843 = vmatpush1.bf16.msra.mxu0 %v8115
        %9844 = vmatprep.subr.bf16.mxu0 %v8124
        %9845 = vmatpush1.bf16.msra.mxu0 %v8123
        %9846 = vmatprep.mubr.bf16.mxu0 %v3475
        %9847 = vmatmul.mubr.bf16.gmra.mrb[0].mxu0 %v3474
        %v9848 = vpop.f32.mrb[0].mxu0
        %v9849 = vadd.f32 %v9808, %v9848
        %v9850 = vpop.f32.mrb[0].mxu0
        %v9851 = vadd.f32 %v9810, %v9850
        %v9852 = vpop.f32.mrb[0].mxu0
        %v9853 = vpop.f32.mrb[0].mxu0
        %9854 = vdwg.mxu0
        %9855 = vmatprep.subr.bf16.mxu0 %v8132
        %9856 = vmatpush1.bf16.msra.mxu0 %v8131
        %9857 = vmatprep.subr.bf16.mxu0 %v8140
        %9858 = vmatpush1.bf16.msra.mxu0 %v8139
        %9859 = vmatprep.subr.bf16.mxu0 %v8148
        %9860 = vmatpush1.bf16.msra.mxu0 %v8147
        %9861 = vmatprep.subr.bf16.mxu0 %v8156
        %9862 = vmatpush1.bf16.msra.mxu0 %v8155
        %9863 = vmatprep.subr.bf16.mxu0 %v8164
        %9864 = vmatpush1.bf16.msra.mxu0 %v8163
        %9865 = vmatprep.subr.bf16.mxu0 %v8172
        %9866 = vmatpush1.bf16.msra.mxu0 %v8171
        %9867 = vmatprep.subr.bf16.mxu0 %v8180
        %9868 = vmatpush1.bf16.msra.mxu0 %v8179
        %9869 = vmatprep.subr.bf16.mxu0 %v8188
        %9870 = vmatpush1.bf16.msra.mxu0 %v8187
        %9871 = vmatprep.subr.bf16.mxu0 %v8196
        %9872 = vmatpush1.bf16.msra.mxu0 %v8195
        %9873 = vmatprep.subr.bf16.mxu0 %v8204
        %9874 = vmatpush1.bf16.msra.mxu0 %v8203
        %9875 = vmatprep.subr.bf16.mxu0 %v8212
        %9876 = vmatpush1.bf16.msra.mxu0 %v8211
        %9877 = vmatprep.subr.bf16.mxu0 %v8220
        %9878 = vmatpush1.bf16.msra.mxu0 %v8219
        %9879 = vmatprep.subr.bf16.mxu0 %v8228
        %9880 = vmatpush1.bf16.msra.mxu0 %v8227
        %9881 = vmatprep.subr.bf16.mxu0 %v8236
        %9882 = vmatpush1.bf16.msra.mxu0 %v8235
        %9883 = vmatprep.subr.bf16.mxu0 %v8244
        %9884 = vmatpush1.bf16.msra.mxu0 %v8243
        %9885 = vmatprep.subr.bf16.mxu0 %v8252
        %9886 = vmatpush1.bf16.msra.mxu0 %v8251
        %9887 = vmatprep.mubr.bf16.mxu0 %v3477
        %9888 = vmatmul.mubr.bf16.gmra.mrb[0].mxu0 %v3476
        %v9889 = vpop.f32.mrb[0].mxu0
        %v9890 = vadd.f32 %v9849, %v9889
        %v9891 = vpop.f32.mrb[0].mxu0
        %v9892 = vadd.f32 %v9851, %v9891
        %v9893 = vpop.f32.mrb[0].mxu0
        %v9894 = vpop.f32.mrb[0].mxu0
        %9895 = vdwg.mxu0
        %9896 = vmatprep.subr.bf16.mxu0 %v8260
        %9897 = vmatpush1.bf16.msra.mxu0 %v8259
        %9898 = vmatprep.subr.bf16.mxu0 %v8268
        %9899 = vmatpush1.bf16.msra.mxu0 %v8267
        %9900 = vmatprep.subr.bf16.mxu0 %v8276
        %9901 = vmatpush1.bf16.msra.mxu0 %v8275
        %9902 = vmatprep.subr.bf16.mxu0 %v8284
        %9903 = vmatpush1.bf16.msra.mxu0 %v8283
        %9904 = vmatprep.subr.bf16.mxu0 %v8292
        %9905 = vmatpush1.bf16.msra.mxu0 %v8291
        %9906 = vmatprep.subr.bf16.mxu0 %v8300
        %9907 = vmatpush1.bf16.msra.mxu0 %v8299
        %9908 = vmatprep.subr.bf16.mxu0 %v8308
        %9909 = vmatpush1.bf16.msra.mxu0 %v8307
        %9910 = vmatprep.subr.bf16.mxu0 %v8316
        %9911 = vmatpush1.bf16.msra.mxu0 %v8315
        %9912 = vmatprep.subr.bf16.mxu0 0
        %9913 = vmatpush1.bf16.msra.mxu0 0
        %9914 = vmatprep.subr.bf16.mxu0 0
        %9915 = vmatpush1.bf16.msra.mxu0 0
        %9916 = vmatprep.subr.bf16.mxu0 0
        %9917 = vmatpush1.bf16.msra.mxu0 0
        %9918 = vmatprep.subr.bf16.mxu0 0
        %9919 = vmatpush1.bf16.msra.mxu0 0
        %9920 = vmatprep.subr.bf16.mxu0 0
        %9921 = vmatpush1.bf16.msra.mxu0 0
        %9922 = vmatprep.subr.bf16.mxu0 0
        %9923 = vmatpush1.bf16.msra.mxu0 0
        %9924 = vmatprep.subr.bf16.mxu0 0
        %9925 = vmatpush1.bf16.msra.mxu0 0
        %9926 = vmatprep.subr.bf16.mxu0 0
        %9927 = vmatpush1.bf16.msra.mxu0 0
        %9928 = vmatprep.mubr.bf16.mxu0 0
        %9929 = vmatmul.mubr.bf16.gmra.mrb[0].mxu0 %v3478
        %v9930 = vpop.f32.mrb[0].mxu0
        %v9931 = vadd.f32 %v9890, %v9930
        %v9932 = vpop.f32.mrb[0].mxu0
        %v9933 = vadd.f32 %v9892, %v9932
        %v9934 = vpop.f32.mrb[0].mxu0
        %v9935 = vpop.f32.mrb[0].mxu0
        %9936 = vdwg.mxu0
        %9937 = vmatprep.subr.bf16.mxu0 %v7366
        %9938 = vmatpush1.bf16.msra.mxu0 %v7365
        %9939 = vmatprep.subr.bf16.mxu0 %v7374
        %9940 = vmatpush1.bf16.msra.mxu0 %v7373
        %9941 = vmatprep.subr.bf16.mxu0 %v7382
        %9942 = vmatpush1.bf16.msra.mxu0 %v7381
        %9943 = vmatprep.subr.bf16.mxu0 %v7390
        %9944 = vmatpush1.bf16.msra.mxu0 %v7389
        %9945 = vmatprep.subr.bf16.mxu0 %v7398
        %9946 = vmatpush1.bf16.msra.mxu0 %v7397
        %9947 = vmatprep.subr.bf16.mxu0 %v7406
        %9948 = vmatpush1.bf16.msra.mxu0 %v7405
        %9949 = vmatprep.subr.bf16.mxu0 %v7414
        %9950 = vmatpush1.bf16.msra.mxu0 %v7413
        %9951 = vmatprep.subr.bf16.mxu0 %v7422
        %9952 = vmatpush1.bf16.msra.mxu0 %v7421
        %9953 = vmatprep.subr.bf16.mxu0 %v7430
        %9954 = vmatpush1.bf16.msra.mxu0 %v7429
        %9955 = vmatprep.subr.bf16.mxu0 %v7438
        %9956 = vmatpush1.bf16.msra.mxu0 %v7437
        %9957 = vmatprep.subr.bf16.mxu0 %v7446
        %9958 = vmatpush1.bf16.msra.mxu0 %v7445
        %9959 = vmatprep.subr.bf16.mxu0 %v7454
        %9960 = vmatpush1.bf16.msra.mxu0 %v7453
        %9961 = vmatprep.subr.bf16.mxu0 %v7462
        %9962 = vmatpush1.bf16.msra.mxu0 %v7461
        %9963 = vmatprep.subr.bf16.mxu0 %v7470
        %9964 = vmatpush1.bf16.msra.mxu0 %v7469
        %9965 = vmatprep.subr.bf16.mxu0 %v7478
        %9966 = vmatpush1.bf16.msra.mxu0 %v7477
        %9967 = vmatprep.subr.bf16.mxu0 %v7486
        %9968 = vmatpush1.bf16.msra.mxu0 %v7485
        %9969 = vmatprep.mubr.bf16.mxu0 %v3465
        %9970 = vmatmul.mubr.bf16.gmra.mrb[0].mxu0 %v3464
        %v9971 = vpop.f32.mrb[0].mxu0
        %v9972 = vadd.f32 %v4460, %v9971
        %v9973 = vpop.f32.mrb[0].mxu0
        %v9974 = vadd.f32 %v4464, %v9973
        %v9975 = vpop.f32.mrb[0].mxu0
        %v9976 = vpop.f32.mrb[0].mxu0
        %9977 = vdwg.mxu0
        %9978 = vmatprep.subr.bf16.mxu0 %v7494
        %9979 = vmatpush1.bf16.msra.mxu0 %v7493
        %9980 = vmatprep.subr.bf16.mxu0 %v7502
        %9981 = vmatpush1.bf16.msra.mxu0 %v7501
        %9982 = vmatprep.subr.bf16.mxu0 %v7510
        %9983 = vmatpush1.bf16.msra.mxu0 %v7509
        %9984 = vmatprep.subr.bf16.mxu0 %v7518
        %9985 = vmatpush1.bf16.msra.mxu0 %v7517
        %9986 = vmatprep.subr.bf16.mxu0 %v7526
        %9987 = vmatpush1.bf16.msra.mxu0 %v7525
        %9988 = vmatprep.subr.bf16.mxu0 %v7534
        %9989 = vmatpush1.bf16.msra.mxu0 %v7533
        %9990 = vmatprep.subr.bf16.mxu0 %v7542
        %9991 = vmatpush1.bf16.msra.mxu0 %v7541
        %9992 = vmatprep.subr.bf16.mxu0 %v7550
        %9993 = vmatpush1.bf16.msra.mxu0 %v7549
        %9994 = vmatprep.subr.bf16.mxu0 %v7558
        %9995 = vmatpush1.bf16.msra.mxu0 %v7557
        %9996 = vmatprep.subr.bf16.mxu0 %v7566
        %9997 = vmatpush1.bf16.msra.mxu0 %v7565
        %9998 = vmatprep.subr.bf16.mxu0 %v7574
        %9999 = vmatpush1.bf16.msra.mxu0 %v7573
        %10000 = vmatprep.subr.bf16.mxu0 %v7582
        %10001 = vmatpush1.bf16.msra.mxu0 %v7581
        %10002 = vmatprep.subr.bf16.mxu0 %v7590
        %10003 = vmatpush1.bf16.msra.mxu0 %v7589
        %10004 = vmatprep.subr.bf16.mxu0 %v7598
        %10005 = vmatpush1.bf16.msra.mxu0 %v7597
        %10006 = vmatprep.subr.bf16.mxu0 %v7606
        %10007 = vmatpush1.bf16.msra.mxu0 %v7605
        %10008 = vmatprep.subr.bf16.mxu0 %v7614
        %10009 = vmatpush1.bf16.msra.mxu0 %v7613
        %10010 = vmatprep.mubr.bf16.mxu0 %v3467
        %10011 = vmatmul.mubr.bf16.gmra.mrb[0].mxu0 %v3466
        %v10012 = vpop.f32.mrb[0].mxu0
        %v10013 = vadd.f32 %v9972, %v10012
        %v10014 = vpop.f32.mrb[0].mxu0
        %v10015 = vadd.f32 %v9974, %v10014
        %v10016 = vpop.f32.mrb[0].mxu0
        %v10017 = vpop.f32.mrb[0].mxu0
        %10018 = vdwg.mxu0
        %10019 = vmatprep.subr.bf16.mxu0 %v7622
        %10020 = vmatpush1.bf16.msra.mxu0 %v7621
        %10021 = vmatprep.subr.bf16.mxu0 %v7630
        %10022 = vmatpush1.bf16.msra.mxu0 %v7629
        %10023 = vmatprep.subr.bf16.mxu0 %v7638
        %10024 = vmatpush1.bf16.msra.mxu0 %v7637
        %10025 = vmatprep.subr.bf16.mxu0 %v7646
        %10026 = vmatpush1.bf16.msra.mxu0 %v7645
        %10027 = vmatprep.subr.bf16.mxu0 %v7654
        %10028 = vmatpush1.bf16.msra.mxu0 %v7653
        %10029 = vmatprep.subr.bf16.mxu0 %v7662
        %10030 = vmatpush1.bf16.msra.mxu0 %v7661
        %10031 = vmatprep.subr.bf16.mxu0 %v7670
        %10032 = vmatpush1.bf16.msra.mxu0 %v7669
        %10033 = vmatprep.subr.bf16.mxu0 %v7678
        %10034 = vmatpush1.bf16.msra.mxu0 %v7677
        %10035 = vmatprep.subr.bf16.mxu0 %v7686
        %10036 = vmatpush1.bf16.msra.mxu0 %v7685
        %10037 = vmatprep.subr.bf16.mxu0 %v7694
        %10038 = vmatpush1.bf16.msra.mxu0 %v7693
        %10039 = vmatprep.subr.bf16.mxu0 %v7702
        %10040 = vmatpush1.bf16.msra.mxu0 %v7701
        %10041 = vmatprep.subr.bf16.mxu0 %v7710
        %10042 = vmatpush1.bf16.msra.mxu0 %v7709
        %10043 = vmatprep.subr.bf16.mxu0 %v7718
        %10044 = vmatpush1.bf16.msra.mxu0 %v7717
        %10045 = vmatprep.subr.bf16.mxu0 %v7726
        %10046 = vmatpush1.bf16.msra.mxu0 %v7725
        %10047 = vmatprep.subr.bf16.mxu0 %v7734
        %10048 = vmatpush1.bf16.msra.mxu0 %v7733
        %10049 = vmatprep.subr.bf16.mxu0 %v7742
        %10050 = vmatpush1.bf16.msra.mxu0 %v7741
        %10051 = vmatprep.mubr.bf16.mxu0 %v3469
        %10052 = vmatmul.mubr.bf16.gmra.mrb[0].mxu0 %v3468
        %v10053 = vpop.f32.mrb[0].mxu0
        %v10054 = vadd.f32 %v10013, %v10053
        %v10055 = vpop.f32.mrb[0].mxu0
        %v10056 = vadd.f32 %v10015, %v10055
        %v10057 = vpop.f32.mrb[0].mxu0
        %v10058 = vpop.f32.mrb[0].mxu0
        %10059 = vdwg.mxu0
        %10060 = vmatprep.subr.bf16.mxu0 %v7750
        %10061 = vmatpush1.bf16.msra.mxu0 %v7749
        %10062 = vmatprep.subr.bf16.mxu0 %v7758
        %10063 = vmatpush1.bf16.msra.mxu0 %v7757
        %10064 = vmatprep.subr.bf16.mxu0 %v7766
        %10065 = vmatpush1.bf16.msra.mxu0 %v7765
        %10066 = vmatprep.subr.bf16.mxu0 %v7774
        %10067 = vmatpush1.bf16.msra.mxu0 %v7773
        %10068 = vmatprep.subr.bf16.mxu0 %v7782
        %10069 = vmatpush1.bf16.msra.mxu0 %v7781
        %10070 = vmatprep.subr.bf16.mxu0 %v7790
        %10071 = vmatpush1.bf16.msra.mxu0 %v7789
        %10072 = vmatprep.subr.bf16.mxu0 %v7798
        %10073 = vmatpush1.bf16.msra.mxu0 %v7797
        %10074 = vmatprep.subr.bf16.mxu0 %v7806
        %10075 = vmatpush1.bf16.msra.mxu0 %v7805
        %10076 = vmatprep.subr.bf16.mxu0 %v7814
        %10077 = vmatpush1.bf16.msra.mxu0 %v7813
        %10078 = vmatprep.subr.bf16.mxu0 %v7822
        %10079 = vmatpush1.bf16.msra.mxu0 %v7821
        %10080 = vmatprep.subr.bf16.mxu0 %v7830
        %10081 = vmatpush1.bf16.msra.mxu0 %v7829
        %10082 = vmatprep.subr.bf16.mxu0 %v7838
        %10083 = vmatpush1.bf16.msra.mxu0 %v7837
        %10084 = vmatprep.subr.bf16.mxu0 %v7846
        %10085 = vmatpush1.bf16.msra.mxu0 %v7845
        %10086 = vmatprep.subr.bf16.mxu0 %v7854
        %10087 = vmatpush1.bf16.msra.mxu0 %v7853
        %10088 = vmatprep.subr.bf16.mxu0 %v7862
        %10089 = vmatpush1.bf16.msra.mxu0 %v7861
        %10090 = vmatprep.subr.bf16.mxu0 %v7870
        %10091 = vmatpush1.bf16.msra.mxu0 %v7869
        %10092 = vmatprep.mubr.bf16.mxu0 %v3471
        %10093 = vmatmul.mubr.bf16.gmra.mrb[0].mxu0 %v3470
        %v10094 = vpop.f32.mrb[0].mxu0
        %v10095 = vadd.f32 %v10054, %v10094
        %v10096 = vpop.f32.mrb[0].mxu0
        %v10097 = vadd.f32 %v10056, %v10096
        %v10098 = vpop.f32.mrb[0].mxu0
        %v10099 = vpop.f32.mrb[0].mxu0
        %10100 = vdwg.mxu0
        %10101 = vmatprep.subr.bf16.mxu0 %v7878
        %10102 = vmatpush1.bf16.msra.mxu0 %v7877
        %10103 = vmatprep.subr.bf16.mxu0 %v7886
        %10104 = vmatpush1.bf16.msra.mxu0 %v7885
        %10105 = vmatprep.subr.bf16.mxu0 %v7894
        %10106 = vmatpush1.bf16.msra.mxu0 %v7893
        %10107 = vmatprep.subr.bf16.mxu0 %v7902
        %10108 = vmatpush1.bf16.msra.mxu0 %v7901
        %10109 = vmatprep.subr.bf16.mxu0 %v7910
        %10110 = vmatpush1.bf16.msra.mxu0 %v7909
        %10111 = vmatprep.subr.bf16.mxu0 %v7918
        %10112 = vmatpush1.bf16.msra.mxu0 %v7917
        %10113 = vmatprep.subr.bf16.mxu0 %v7926
        %10114 = vmatpush1.bf16.msra.mxu0 %v7925
        %10115 = vmatprep.subr.bf16.mxu0 %v7934
        %10116 = vmatpush1.bf16.msra.mxu0 %v7933
        %10117 = vmatprep.subr.bf16.mxu0 %v7942
        %10118 = vmatpush1.bf16.msra.mxu0 %v7941
        %10119 = vmatprep.subr.bf16.mxu0 %v7950
        %10120 = vmatpush1.bf16.msra.mxu0 %v7949
        %10121 = vmatprep.subr.bf16.mxu0 %v7958
        %10122 = vmatpush1.bf16.msra.mxu0 %v7957
        %10123 = vmatprep.subr.bf16.mxu0 %v7966
        %10124 = vmatpush1.bf16.msra.mxu0 %v7965
        %10125 = vmatprep.subr.bf16.mxu0 %v7974
        %10126 = vmatpush1.bf16.msra.mxu0 %v7973
        %10127 = vmatprep.subr.bf16.mxu0 %v7982
        %10128 = vmatpush1.bf16.msra.mxu0 %v7981
        %10129 = vmatprep.subr.bf16.mxu0 %v7990
        %10130 = vmatpush1.bf16.msra.mxu0 %v7989
        %10131 = vmatprep.subr.bf16.mxu0 %v7998
        %10132 = vmatpush1.bf16.msra.mxu0 %v7997
        %10133 = vmatprep.mubr.bf16.mxu0 %v3473
        %10134 = vmatmul.mubr.bf16.gmra.mrb[0].mxu0 %v3472
        %v10135 = vpop.f32.mrb[0].mxu0
        %v10136 = vadd.f32 %v10095, %v10135
        %v10137 = vpop.f32.mrb[0].mxu0
        %v10138 = vadd.f32 %v10097, %v10137
        %v10139 = vpop.f32.mrb[0].mxu0
        %v10140 = vpop.f32.mrb[0].mxu0
        %10141 = vdwg.mxu0
        %10142 = vmatprep.subr.bf16.mxu0 %v8006
        %10143 = vmatpush1.bf16.msra.mxu0 %v8005
        %10144 = vmatprep.subr.bf16.mxu0 %v8014
        %10145 = vmatpush1.bf16.msra.mxu0 %v8013
        %10146 = vmatprep.subr.bf16.mxu0 %v8022
        %10147 = vmatpush1.bf16.msra.mxu0 %v8021
        %10148 = vmatprep.subr.bf16.mxu0 %v8030
        %10149 = vmatpush1.bf16.msra.mxu0 %v8029
        %10150 = vmatprep.subr.bf16.mxu0 %v8038
        %10151 = vmatpush1.bf16.msra.mxu0 %v8037
        %10152 = vmatprep.subr.bf16.mxu0 %v8046
        %10153 = vmatpush1.bf16.msra.mxu0 %v8045
        %10154 = vmatprep.subr.bf16.mxu0 %v8054
        %10155 = vmatpush1.bf16.msra.mxu0 %v8053
        %10156 = vmatprep.subr.bf16.mxu0 %v8062
        %10157 = vmatpush1.bf16.msra.mxu0 %v8061
        %10158 = vmatprep.subr.bf16.mxu0 %v8070
        %10159 = vmatpush1.bf16.msra.mxu0 %v8069
        %10160 = vmatprep.subr.bf16.mxu0 %v8078
        %10161 = vmatpush1.bf16.msra.mxu0 %v8077
        %10162 = vmatprep.subr.bf16.mxu0 %v8086
        %10163 = vmatpush1.bf16.msra.mxu0 %v8085
        %10164 = vmatprep.subr.bf16.mxu0 %v8094
        %10165 = vmatpush1.bf16.msra.mxu0 %v8093
        %10166 = vmatprep.subr.bf16.mxu0 %v8102
        %10167 = vmatpush1.bf16.msra.mxu0 %v8101
        %10168 = vmatprep.subr.bf16.mxu0 %v8110
        %10169 = vmatpush1.bf16.msra.mxu0 %v8109
        %10170 = vmatprep.subr.bf16.mxu0 %v8118
        %10171 = vmatpush1.bf16.msra.mxu0 %v8117
        %10172 = vmatprep.subr.bf16.mxu0 %v8126
        %10173 = vmatpush1.bf16.msra.mxu0 %v8125
        %10174 = vmatprep.mubr.bf16.mxu0 %v3475
        %10175 = vmatmul.mubr.bf16.gmra.mrb[0].mxu0 %v3474
        %v10176 = vpop.f32.mrb[0].mxu0
        %v10177 = vadd.f32 %v10136, %v10176
        %v10178 = vpop.f32.mrb[0].mxu0
        %v10179 = vadd.f32 %v10138, %v10178
        %v10180 = vpop.f32.mrb[0].mxu0
        %v10181 = vpop.f32.mrb[0].mxu0
        %10182 = vdwg.mxu0
        %10183 = vmatprep.subr.bf16.mxu0 %v8134
        %10184 = vmatpush1.bf16.msra.mxu0 %v8133
        %10185 = vmatprep.subr.bf16.mxu0 %v8142
        %10186 = vmatpush1.bf16.msra.mxu0 %v8141
        %10187 = vmatprep.subr.bf16.mxu0 %v8150
        %10188 = vmatpush1.bf16.msra.mxu0 %v8149
        %10189 = vmatprep.subr.bf16.mxu0 %v8158
        %10190 = vmatpush1.bf16.msra.mxu0 %v8157
        %10191 = vmatprep.subr.bf16.mxu0 %v8166
        %10192 = vmatpush1.bf16.msra.mxu0 %v8165
        %10193 = vmatprep.subr.bf16.mxu0 %v8174
        %10194 = vmatpush1.bf16.msra.mxu0 %v8173
        %10195 = vmatprep.subr.bf16.mxu0 %v8182
        %10196 = vmatpush1.bf16.msra.mxu0 %v8181
        %10197 = vmatprep.subr.bf16.mxu0 %v8190
        %10198 = vmatpush1.bf16.msra.mxu0 %v8189
        %10199 = vmatprep.subr.bf16.mxu0 %v8198
        %10200 = vmatpush1.bf16.msra.mxu0 %v8197
        %10201 = vmatprep.subr.bf16.mxu0 %v8206
        %10202 = vmatpush1.bf16.msra.mxu0 %v8205
        %10203 = vmatprep.subr.bf16.mxu0 %v8214
        %10204 = vmatpush1.bf16.msra.mxu0 %v8213
        %10205 = vmatprep.subr.bf16.mxu0 %v8222
        %10206 = vmatpush1.bf16.msra.mxu0 %v8221
        %10207 = vmatprep.subr.bf16.mxu0 %v8230
        %10208 = vmatpush1.bf16.msra.mxu0 %v8229
        %10209 = vmatprep.subr.bf16.mxu0 %v8238
        %10210 = vmatpush1.bf16.msra.mxu0 %v8237
        %10211 = vmatprep.subr.bf16.mxu0 %v8246
        %10212 = vmatpush1.bf16.msra.mxu0 %v8245
        %10213 = vmatprep.subr.bf16.mxu0 %v8254
        %10214 = vmatpush1.bf16.msra.mxu0 %v8253
        %10215 = vmatprep.mubr.bf16.mxu0 %v3477
        %10216 = vmatmul.mubr.bf16.gmra.mrb[0].mxu0 %v3476
        %v10217 = vpop.f32.mrb[0].mxu0
        %v10218 = vadd.f32 %v10177, %v10217
        %v10219 = vpop.f32.mrb[0].mxu0
        %v10220 = vadd.f32 %v10179, %v10219
        %v10221 = vpop.f32.mrb[0].mxu0
        %v10222 = vpop.f32.mrb[0].mxu0
        %10223 = vdwg.mxu0
        %10224 = vmatprep.subr.bf16.mxu0 %v8262
        %10225 = vmatpush1.bf16.msra.mxu0 %v8261
        %10226 = vmatprep.subr.bf16.mxu0 %v8270
        %10227 = vmatpush1.bf16.msra.mxu0 %v8269
        %10228 = vmatprep.subr.bf16.mxu0 %v8278
        %10229 = vmatpush1.bf16.msra.mxu0 %v8277
        %10230 = vmatprep.subr.bf16.mxu0 %v8286
        %10231 = vmatpush1.bf16.msra.mxu0 %v8285
        %10232 = vmatprep.subr.bf16.mxu0 %v8294
        %10233 = vmatpush1.bf16.msra.mxu0 %v8293
        %10234 = vmatprep.subr.bf16.mxu0 %v8302
        %10235 = vmatpush1.bf16.msra.mxu0 %v8301
        %10236 = vmatprep.subr.bf16.mxu0 %v8310
        %10237 = vmatpush1.bf16.msra.mxu0 %v8309
        %10238 = vmatprep.subr.bf16.mxu0 %v8318
        %10239 = vmatpush1.bf16.msra.mxu0 %v8317
        %10240 = vmatprep.subr.bf16.mxu0 0
        %10241 = vmatpush1.bf16.msra.mxu0 0
        %10242 = vmatprep.subr.bf16.mxu0 0
        %10243 = vmatpush1.bf16.msra.mxu0 0
        %10244 = vmatprep.subr.bf16.mxu0 0
        %10245 = vmatpush1.bf16.msra.mxu0 0
        %10246 = vmatprep.subr.bf16.mxu0 0
        %10247 = vmatpush1.bf16.msra.mxu0 0
        %10248 = vmatprep.subr.bf16.mxu0 0
        %10249 = vmatpush1.bf16.msra.mxu0 0
        %10250 = vmatprep.subr.bf16.mxu0 0
        %10251 = vmatpush1.bf16.msra.mxu0 0
        %10252 = vmatprep.subr.bf16.mxu0 0
        %10253 = vmatpush1.bf16.msra.mxu0 0
        %10254 = vmatprep.subr.bf16.mxu0 0
        %10255 = vmatpush1.bf16.msra.mxu0 0
        %10256 = vmatprep.mubr.bf16.mxu0 0
        %10257 = vmatmul.mubr.bf16.gmra.mrb[0].mxu0 %v3478
        %v10258 = vpop.f32.mrb[0].mxu0
        %v10259 = vadd.f32 %v10218, %v10258
        %v10260 = vpop.f32.mrb[0].mxu0
        %v10261 = vadd.f32 %v10220, %v10260
        %v10262 = vpop.f32.mrb[0].mxu0
        %v10263 = vpop.f32.mrb[0].mxu0
        %10264 = vdwg.mxu0
        %10265 = vmatprep.subr.bf16.mxu0 %v7368
        %10266 = vmatpush1.bf16.msra.mxu0 %v7367
        %10267 = vmatprep.subr.bf16.mxu0 %v7376
        %10268 = vmatpush1.bf16.msra.mxu0 %v7375
        %10269 = vmatprep.subr.bf16.mxu0 %v7384
        %10270 = vmatpush1.bf16.msra.mxu0 %v7383
        %10271 = vmatprep.subr.bf16.mxu0 %v7392
        %10272 = vmatpush1.bf16.msra.mxu0 %v7391
        %10273 = vmatprep.subr.bf16.mxu0 %v7400
        %10274 = vmatpush1.bf16.msra.mxu0 %v7399
        %10275 = vmatprep.subr.bf16.mxu0 %v7408
        %10276 = vmatpush1.bf16.msra.mxu0 %v7407
        %10277 = vmatprep.subr.bf16.mxu0 %v7416
        %10278 = vmatpush1.bf16.msra.mxu0 %v7415
        %10279 = vmatprep.subr.bf16.mxu0 %v7424
        %10280 = vmatpush1.bf16.msra.mxu0 %v7423
        %10281 = vmatprep.subr.bf16.mxu0 %v7432
        %10282 = vmatpush1.bf16.msra.mxu0 %v7431
        %10283 = vmatprep.subr.bf16.mxu0 %v7440
        %10284 = vmatpush1.bf16.msra.mxu0 %v7439
        %10285 = vmatprep.subr.bf16.mxu0 %v7448
        %10286 = vmatpush1.bf16.msra.mxu0 %v7447
        %10287 = vmatprep.subr.bf16.mxu0 %v7456
        %10288 = vmatpush1.bf16.msra.mxu0 %v7455
        %10289 = vmatprep.subr.bf16.mxu0 %v7464
        %10290 = vmatpush1.bf16.msra.mxu0 %v7463
        %10291 = vmatprep.subr.bf16.mxu0 %v7472
        %10292 = vmatpush1.bf16.msra.mxu0 %v7471
        %10293 = vmatprep.subr.bf16.mxu0 %v7480
        %10294 = vmatpush1.bf16.msra.mxu0 %v7479
        %10295 = vmatprep.subr.bf16.mxu0 %v7488
        %10296 = vmatpush1.bf16.msra.mxu0 %v7487
        %10297 = vmatprep.mubr.bf16.mxu0 %v3465
        %10298 = vmatmul.mubr.bf16.gmra.mrb[0].mxu0 %v3464
        %v10299 = vpop.f32.mrb[0].mxu0
        %v10300 = vadd.f32 %v4468, %v10299
        %v10301 = vpop.f32.mrb[0].mxu0
        %v10302 = vadd.f32 %v4472, %v10301
        %v10303 = vpop.f32.mrb[0].mxu0
        %v10304 = vpop.f32.mrb[0].mxu0
        %10305 = vdwg.mxu0
        %10306 = vmatprep.subr.bf16.mxu0 %v7496
        %10307 = vmatpush1.bf16.msra.mxu0 %v7495
        %10308 = vmatprep.subr.bf16.mxu0 %v7504
        %10309 = vmatpush1.bf16.msra.mxu0 %v7503
        %10310 = vmatprep.subr.bf16.mxu0 %v7512
        %10311 = vmatpush1.bf16.msra.mxu0 %v7511
        %10312 = vmatprep.subr.bf16.mxu0 %v7520
        %10313 = vmatpush1.bf16.msra.mxu0 %v7519
        %10314 = vmatprep.subr.bf16.mxu0 %v7528
        %10315 = vmatpush1.bf16.msra.mxu0 %v7527
        %10316 = vmatprep.subr.bf16.mxu0 %v7536
        %10317 = vmatpush1.bf16.msra.mxu0 %v7535
        %10318 = vmatprep.subr.bf16.mxu0 %v7544
        %10319 = vmatpush1.bf16.msra.mxu0 %v7543
        %10320 = vmatprep.subr.bf16.mxu0 %v7552
        %10321 = vmatpush1.bf16.msra.mxu0 %v7551
        %10322 = vmatprep.subr.bf16.mxu0 %v7560
        %10323 = vmatpush1.bf16.msra.mxu0 %v7559
        %10324 = vmatprep.subr.bf16.mxu0 %v7568
        %10325 = vmatpush1.bf16.msra.mxu0 %v7567
        %10326 = vmatprep.subr.bf16.mxu0 %v7576
        %10327 = vmatpush1.bf16.msra.mxu0 %v7575
        %10328 = vmatprep.subr.bf16.mxu0 %v7584
        %10329 = vmatpush1.bf16.msra.mxu0 %v7583
        %10330 = vmatprep.subr.bf16.mxu0 %v7592
        %10331 = vmatpush1.bf16.msra.mxu0 %v7591
        %10332 = vmatprep.subr.bf16.mxu0 %v7600
        %10333 = vmatpush1.bf16.msra.mxu0 %v7599
        %10334 = vmatprep.subr.bf16.mxu0 %v7608
        %10335 = vmatpush1.bf16.msra.mxu0 %v7607
        %10336 = vmatprep.subr.bf16.mxu0 %v7616
        %10337 = vmatpush1.bf16.msra.mxu0 %v7615
        %10338 = vmatprep.mubr.bf16.mxu0 %v3467
        %10339 = vmatmul.mubr.bf16.gmra.mrb[0].mxu0 %v3466
        %v10340 = vpop.f32.mrb[0].mxu0
        %v10341 = vadd.f32 %v10300, %v10340
        %v10342 = vpop.f32.mrb[0].mxu0
        %v10343 = vadd.f32 %v10302, %v10342
        %v10344 = vpop.f32.mrb[0].mxu0
        %v10345 = vpop.f32.mrb[0].mxu0
        %10346 = vdwg.mxu0
        %10347 = vmatprep.subr.bf16.mxu0 %v7624
        %10348 = vmatpush1.bf16.msra.mxu0 %v7623
        %10349 = vmatprep.subr.bf16.mxu0 %v7632
        %10350 = vmatpush1.bf16.msra.mxu0 %v7631
        %10351 = vmatprep.subr.bf16.mxu0 %v7640
        %10352 = vmatpush1.bf16.msra.mxu0 %v7639
        %10353 = vmatprep.subr.bf16.mxu0 %v7648
        %10354 = vmatpush1.bf16.msra.mxu0 %v7647
        %10355 = vmatprep.subr.bf16.mxu0 %v7656
        %10356 = vmatpush1.bf16.msra.mxu0 %v7655
        %10357 = vmatprep.subr.bf16.mxu0 %v7664
        %10358 = vmatpush1.bf16.msra.mxu0 %v7663
        %10359 = vmatprep.subr.bf16.mxu0 %v7672
        %10360 = vmatpush1.bf16.msra.mxu0 %v7671
        %10361 = vmatprep.subr.bf16.mxu0 %v7680
        %10362 = vmatpush1.bf16.msra.mxu0 %v7679
        %10363 = vmatprep.subr.bf16.mxu0 %v7688
        %10364 = vmatpush1.bf16.msra.mxu0 %v7687
        %10365 = vmatprep.subr.bf16.mxu0 %v7696
        %10366 = vmatpush1.bf16.msra.mxu0 %v7695
        %10367 = vmatprep.subr.bf16.mxu0 %v7704
        %10368 = vmatpush1.bf16.msra.mxu0 %v7703
        %10369 = vmatprep.subr.bf16.mxu0 %v7712
        %10370 = vmatpush1.bf16.msra.mxu0 %v7711
        %10371 = vmatprep.subr.bf16.mxu0 %v7720
        %10372 = vmatpush1.bf16.msra.mxu0 %v7719
        %10373 = vmatprep.subr.bf16.mxu0 %v7728
        %10374 = vmatpush1.bf16.msra.mxu0 %v7727
        %10375 = vmatprep.subr.bf16.mxu0 %v7736
        %10376 = vmatpush1.bf16.msra.mxu0 %v7735
        %10377 = vmatprep.subr.bf16.mxu0 %v7744
        %10378 = vmatpush1.bf16.msra.mxu0 %v7743
        %10379 = vmatprep.mubr.bf16.mxu0 %v3469
        %10380 = vmatmul.mubr.bf16.gmra.mrb[0].mxu0 %v3468
        %v10381 = vpop.f32.mrb[0].mxu0
        %v10382 = vadd.f32 %v10341, %v10381
        %v10383 = vpop.f32.mrb[0].mxu0
        %v10384 = vadd.f32 %v10343, %v10383
        %v10385 = vpop.f32.mrb[0].mxu0
        %v10386 = vpop.f32.mrb[0].mxu0
        %10387 = vdwg.mxu0
        %10388 = vmatprep.subr.bf16.mxu0 %v7752
        %10389 = vmatpush1.bf16.msra.mxu0 %v7751
        %10390 = vmatprep.subr.bf16.mxu0 %v7760
        %10391 = vmatpush1.bf16.msra.mxu0 %v7759
        %10392 = vmatprep.subr.bf16.mxu0 %v7768
        %10393 = vmatpush1.bf16.msra.mxu0 %v7767
        %10394 = vmatprep.subr.bf16.mxu0 %v7776
        %10395 = vmatpush1.bf16.msra.mxu0 %v7775
        %10396 = vmatprep.subr.bf16.mxu0 %v7784
        %10397 = vmatpush1.bf16.msra.mxu0 %v7783
        %10398 = vmatprep.subr.bf16.mxu0 %v7792
        %10399 = vmatpush1.bf16.msra.mxu0 %v7791
        %10400 = vmatprep.subr.bf16.mxu0 %v7800
        %10401 = vmatpush1.bf16.msra.mxu0 %v7799
        %10402 = vmatprep.subr.bf16.mxu0 %v7808
        %10403 = vmatpush1.bf16.msra.mxu0 %v7807
        %10404 = vmatprep.subr.bf16.mxu0 %v7816
        %10405 = vmatpush1.bf16.msra.mxu0 %v7815
        %10406 = vmatprep.subr.bf16.mxu0 %v7824
        %10407 = vmatpush1.bf16.msra.mxu0 %v7823
        %10408 = vmatprep.subr.bf16.mxu0 %v7832
        %10409 = vmatpush1.bf16.msra.mxu0 %v7831
        %10410 = vmatprep.subr.bf16.mxu0 %v7840
        %10411 = vmatpush1.bf16.msra.mxu0 %v7839
        %10412 = vmatprep.subr.bf16.mxu0 %v7848
        %10413 = vmatpush1.bf16.msra.mxu0 %v7847
        %10414 = vmatprep.subr.bf16.mxu0 %v7856
        %10415 = vmatpush1.bf16.msra.mxu0 %v7855
        %10416 = vmatprep.subr.bf16.mxu0 %v7864
        %10417 = vmatpush1.bf16.msra.mxu0 %v7863
        %10418 = vmatprep.subr.bf16.mxu0 %v7872
        %10419 = vmatpush1.bf16.msra.mxu0 %v7871
        %10420 = vmatprep.mubr.bf16.mxu0 %v3471
        %10421 = vmatmul.mubr.bf16.gmra.mrb[0].mxu0 %v3470
        %v10422 = vpop.f32.mrb[0].mxu0
        %v10423 = vadd.f32 %v10382, %v10422
        %v10424 = vpop.f32.mrb[0].mxu0
        %v10425 = vadd.f32 %v10384, %v10424
        %v10426 = vpop.f32.mrb[0].mxu0
        %v10427 = vpop.f32.mrb[0].mxu0
        %10428 = vdwg.mxu0
        %10429 = vmatprep.subr.bf16.mxu0 %v7880
        %10430 = vmatpush1.bf16.msra.mxu0 %v7879
        %10431 = vmatprep.subr.bf16.mxu0 %v7888
        %10432 = vmatpush1.bf16.msra.mxu0 %v7887
        %10433 = vmatprep.subr.bf16.mxu0 %v7896
        %10434 = vmatpush1.bf16.msra.mxu0 %v7895
        %10435 = vmatprep.subr.bf16.mxu0 %v7904
        %10436 = vmatpush1.bf16.msra.mxu0 %v7903
        %10437 = vmatprep.subr.bf16.mxu0 %v7912
        %10438 = vmatpush1.bf16.msra.mxu0 %v7911
        %10439 = vmatprep.subr.bf16.mxu0 %v7920
        %10440 = vmatpush1.bf16.msra.mxu0 %v7919
        %10441 = vmatprep.subr.bf16.mxu0 %v7928
        %10442 = vmatpush1.bf16.msra.mxu0 %v7927
        %10443 = vmatprep.subr.bf16.mxu0 %v7936
        %10444 = vmatpush1.bf16.msra.mxu0 %v7935
        %10445 = vmatprep.subr.bf16.mxu0 %v7944
        %10446 = vmatpush1.bf16.msra.mxu0 %v7943
        %10447 = vmatprep.subr.bf16.mxu0 %v7952
        %10448 = vmatpush1.bf16.msra.mxu0 %v7951
        %10449 = vmatprep.subr.bf16.mxu0 %v7960
        %10450 = vmatpush1.bf16.msra.mxu0 %v7959
        %10451 = vmatprep.subr.bf16.mxu0 %v7968
        %10452 = vmatpush1.bf16.msra.mxu0 %v7967
        %10453 = vmatprep.subr.bf16.mxu0 %v7976
        %10454 = vmatpush1.bf16.msra.mxu0 %v7975
        %10455 = vmatprep.subr.bf16.mxu0 %v7984
        %10456 = vmatpush1.bf16.msra.mxu0 %v7983
        %10457 = vmatprep.subr.bf16.mxu0 %v7992
        %10458 = vmatpush1.bf16.msra.mxu0 %v7991
        %10459 = vmatprep.subr.bf16.mxu0 %v8000
        %10460 = vmatpush1.bf16.msra.mxu0 %v7999
        %10461 = vmatprep.mubr.bf16.mxu0 %v3473
        %10462 = vmatmul.mubr.bf16.gmra.mrb[0].mxu0 %v3472
        %v10463 = vpop.f32.mrb[0].mxu0
        %v10464 = vadd.f32 %v10423, %v10463
        %v10465 = vpop.f32.mrb[0].mxu0
        %v10466 = vadd.f32 %v10425, %v10465
        %v10467 = vpop.f32.mrb[0].mxu0
        %v10468 = vpop.f32.mrb[0].mxu0
        %10469 = vdwg.mxu0
        %10470 = vmatprep.subr.bf16.mxu0 %v8008
        %10471 = vmatpush1.bf16.msra.mxu0 %v8007
        %10472 = vmatprep.subr.bf16.mxu0 %v8016
        %10473 = vmatpush1.bf16.msra.mxu0 %v8015
        %10474 = vmatprep.subr.bf16.mxu0 %v8024
        %10475 = vmatpush1.bf16.msra.mxu0 %v8023
        %10476 = vmatprep.subr.bf16.mxu0 %v8032
        %10477 = vmatpush1.bf16.msra.mxu0 %v8031
        %10478 = vmatprep.subr.bf16.mxu0 %v8040
        %10479 = vmatpush1.bf16.msra.mxu0 %v8039
        %10480 = vmatprep.subr.bf16.mxu0 %v8048
        %10481 = vmatpush1.bf16.msra.mxu0 %v8047
        %10482 = vmatprep.subr.bf16.mxu0 %v8056
        %10483 = vmatpush1.bf16.msra.mxu0 %v8055
        %10484 = vmatprep.subr.bf16.mxu0 %v8064
        %10485 = vmatpush1.bf16.msra.mxu0 %v8063
        %10486 = vmatprep.subr.bf16.mxu0 %v8072
        %10487 = vmatpush1.bf16.msra.mxu0 %v8071
        %10488 = vmatprep.subr.bf16.mxu0 %v8080
        %10489 = vmatpush1.bf16.msra.mxu0 %v8079
        %10490 = vmatprep.subr.bf16.mxu0 %v8088
        %10491 = vmatpush1.bf16.msra.mxu0 %v8087
        %10492 = vmatprep.subr.bf16.mxu0 %v8096
        %10493 = vmatpush1.bf16.msra.mxu0 %v8095
        %10494 = vmatprep.subr.bf16.mxu0 %v8104
        %10495 = vmatpush1.bf16.msra.mxu0 %v8103
        %10496 = vmatprep.subr.bf16.mxu0 %v8112
        %10497 = vmatpush1.bf16.msra.mxu0 %v8111
        %10498 = vmatprep.subr.bf16.mxu0 %v8120
        %10499 = vmatpush1.bf16.msra.mxu0 %v8119
        %10500 = vmatprep.subr.bf16.mxu0 %v8128
        %10501 = vmatpush1.bf16.msra.mxu0 %v8127
        %10502 = vmatprep.mubr.bf16.mxu0 %v3475
        %10503 = vmatmul.mubr.bf16.gmra.mrb[0].mxu0 %v3474
        %v10504 = vpop.f32.mrb[0].mxu0
        %v10505 = vadd.f32 %v10464, %v10504
        %v10506 = vpop.f32.mrb[0].mxu0
        %v10507 = vadd.f32 %v10466, %v10506
        %v10508 = vpop.f32.mrb[0].mxu0
        %v10509 = vpop.f32.mrb[0].mxu0
        %10510 = vdwg.mxu0
        %10511 = vmatprep.subr.bf16.mxu0 %v8136
        %10512 = vmatpush1.bf16.msra.mxu0 %v8135
        %10513 = vmatprep.subr.bf16.mxu0 %v8144
        %10514 = vmatpush1.bf16.msra.mxu0 %v8143
        %10515 = vmatprep.subr.bf16.mxu0 %v8152
        %10516 = vmatpush1.bf16.msra.mxu0 %v8151
        %10517 = vmatprep.subr.bf16.mxu0 %v8160
        %10518 = vmatpush1.bf16.msra.mxu0 %v8159
        %10519 = vmatprep.subr.bf16.mxu0 %v8168
        %10520 = vmatpush1.bf16.msra.mxu0 %v8167
        %10521 = vmatprep.subr.bf16.mxu0 %v8176
        %10522 = vmatpush1.bf16.msra.mxu0 %v8175
        %10523 = vmatprep.subr.bf16.mxu0 %v8184
        %10524 = vmatpush1.bf16.msra.mxu0 %v8183
        %10525 = vmatprep.subr.bf16.mxu0 %v8192
        %10526 = vmatpush1.bf16.msra.mxu0 %v8191
        %10527 = vmatprep.subr.bf16.mxu0 %v8200
        %10528 = vmatpush1.bf16.msra.mxu0 %v8199
        %10529 = vmatprep.subr.bf16.mxu0 %v8208
        %10530 = vmatpush1.bf16.msra.mxu0 %v8207
        %10531 = vmatprep.subr.bf16.mxu0 %v8216
        %10532 = vmatpush1.bf16.msra.mxu0 %v8215
        %10533 = vmatprep.subr.bf16.mxu0 %v8224
        %10534 = vmatpush1.bf16.msra.mxu0 %v8223
        %10535 = vmatprep.subr.bf16.mxu0 %v8232
        %10536 = vmatpush1.bf16.msra.mxu0 %v8231
        %10537 = vmatprep.subr.bf16.mxu0 %v8240
        %10538 = vmatpush1.bf16.msra.mxu0 %v8239
        %10539 = vmatprep.subr.bf16.mxu0 %v8248
        %10540 = vmatpush1.bf16.msra.mxu0 %v8247
        %10541 = vmatprep.subr.bf16.mxu0 %v8256
        %10542 = vmatpush1.bf16.msra.mxu0 %v8255
        %10543 = vmatprep.mubr.bf16.mxu0 %v3477
        %10544 = vmatmul.mubr.bf16.gmra.mrb[0].mxu0 %v3476
        %v10545 = vpop.f32.mrb[0].mxu0
        %v10546 = vadd.f32 %v10505, %v10545
        %v10547 = vpop.f32.mrb[0].mxu0
        %v10548 = vadd.f32 %v10507, %v10547
        %v10549 = vpop.f32.mrb[0].mxu0
        %v10550 = vpop.f32.mrb[0].mxu0
        %10551 = vdwg.mxu0
        %10552 = vmatprep.subr.bf16.mxu0 %v8264
        %10553 = vmatpush1.bf16.msra.mxu0 %v8263
        %10554 = vmatprep.subr.bf16.mxu0 %v8272
        %10555 = vmatpush1.bf16.msra.mxu0 %v8271
        %10556 = vmatprep.subr.bf16.mxu0 %v8280
        %10557 = vmatpush1.bf16.msra.mxu0 %v8279
        %10558 = vmatprep.subr.bf16.mxu0 %v8288
        %10559 = vmatpush1.bf16.msra.mxu0 %v8287
        %10560 = vmatprep.subr.bf16.mxu0 %v8296
        %10561 = vmatpush1.bf16.msra.mxu0 %v8295
        %10562 = vmatprep.subr.bf16.mxu0 %v8304
        %10563 = vmatpush1.bf16.msra.mxu0 %v8303
        %10564 = vmatprep.subr.bf16.mxu0 %v8312
        %10565 = vmatpush1.bf16.msra.mxu0 %v8311
        %10566 = vmatprep.subr.bf16.mxu0 %v8320
        %10567 = vmatpush1.bf16.msra.mxu0 %v8319
        %10568 = vmatprep.subr.bf16.mxu0 0
        %10569 = vmatpush1.bf16.msra.mxu0 0
        %10570 = vmatprep.subr.bf16.mxu0 0
        %10571 = vmatpush1.bf16.msra.mxu0 0
        %10572 = vmatprep.subr.bf16.mxu0 0
        %10573 = vmatpush1.bf16.msra.mxu0 0
        %10574 = vmatprep.subr.bf16.mxu0 0
        %10575 = vmatpush1.bf16.msra.mxu0 0
        %10576 = vmatprep.subr.bf16.mxu0 0
        %10577 = vmatpush1.bf16.msra.mxu0 0
        %10578 = vmatprep.subr.bf16.mxu0 0
        %10579 = vmatpush1.bf16.msra.mxu0 0
        %10580 = vmatprep.subr.bf16.mxu0 0
        %10581 = vmatpush1.bf16.msra.mxu0 0
        %10582 = vmatprep.subr.bf16.mxu0 0
        %10583 = vmatpush1.bf16.msra.mxu0 0
        %10584 = vmatprep.mubr.bf16.mxu0 0
        %10585 = vmatmul.mubr.bf16.gmra.mrb[0].mxu0 %v3478
        %v10586 = vpop.f32.mrb[0].mxu0
        %v10587 = vadd.f32 %v10546, %v10586
        %v10588 = vpop.f32.mrb[0].mxu0
        %v10589 = vadd.f32 %v10548, %v10588
        %v10590 = vpop.f32.mrb[0].mxu0
        %v10591 = vpop.f32.mrb[0].mxu0
        %10592 = vdwg.mxu0
        %v10593 = vmax.f32 %v9603, 0.0
        %v10594 = vmax.f32 %v9605, 0.0
        %v10595 = vmax.f32 %v9931, 0.0
        %v10596 = vmax.f32 %v9933, 0.0
        %v10597 = vmax.f32 %v10259, 0.0
        %v10598 = vmax.f32 %v10261, 0.0
        %v10599 = vmax.f32 %v10587, 0.0
        %v10600 = vmax.f32 %v10589, 0.0
        %v10601 = vld [vmem:[%s526] sm:$0xff]
        %v10603 = vlaneseq
        %v10604 = vshrl.u32 %v10603, 7
        %v10605 = vsub.s32 0, %v10604
        %v10606 = vrot.slane %v10601, %v10605
        %v10607 = vlaneseq
        %v10608 = vshrl.u32 %v10607, 7
        %v10609 = vsub.s32 1, %v10608
        %v10610 = vrot.slane %v10601, %v10609
        %v10611 = vlaneseq
        %v10612 = vshrl.u32 %v10611, 7
        %v10613 = vsub.s32 2, %v10612
        %v10614 = vrot.slane %v10601, %v10613
        %v10615 = vlaneseq
        %v10616 = vshrl.u32 %v10615, 7
        %v10617 = vsub.s32 3, %v10616
        %v10618 = vrot.slane %v10601, %v10617
        %v10619 = vlaneseq
        %v10620 = vshrl.u32 %v10619, 7
        %v10621 = vsub.s32 4, %v10620
        %v10622 = vrot.slane %v10601, %v10621
        %v10623 = vlaneseq
        %v10624 = vshrl.u32 %v10623, 7
        %v10625 = vsub.s32 5, %v10624
        %v10626 = vrot.slane %v10601, %v10625
        %v10627 = vlaneseq
        %v10628 = vshrl.u32 %v10627, 7
        %v10629 = vsub.s32 6, %v10628
        %v10630 = vrot.slane %v10601, %v10629
        %v10631 = vlaneseq
        %v10632 = vshrl.u32 %v10631, 7
        %v10633 = vsub.s32 7, %v10632
        %v10634 = vrot.slane %v10601, %v10633
        %v10643 = vmul.f32 %v10593, %v10606
        %v10644 = vmul.f32 %v10594, %v10610
        %v10645 = vmul.f32 %v10595, %v10614
        %v10646 = vmul.f32 %v10596, %v10618
        %v10647 = vmul.f32 %v10597, %v10622
        %v10648 = vmul.f32 %v10598, %v10626
        %v10649 = vmul.f32 %v10599, %v10630
        %v10650 = vmul.f32 %v10600, %v10634
        %v10651 = vsel %vm927, %v10643, 0.0
        %v10652 = vsel %vm927, %v10644, 0.0
        %v10653 = vadd.f32 %v10651, %v10652
        %v10654 = vsel %vm927, %v10645, 0.0
        %v10655 = vadd.f32 %v10653, %v10654
        %v10656 = vsel %vm927, %v10646, 0.0
        %v10657 = vadd.f32 %v10655, %v10656
        %v10658 = vsel %vm927, %v10647, 0.0
        %v10659 = vadd.f32 %v10657, %v10658
        %v10660 = vsel %vm927, %v10648, 0.0
        %v10661 = vadd.f32 %v10659, %v10660
        %v10662 = vsel %vm927, %v10649, 0.0
        %v10663 = vadd.f32 %v10661, %v10662
        %v10664 = vsel %vm927, %v10650, 0.0
        %v10665 = vadd.f32 %v10663, %v10664
        %10666 = vadd.xlane.f32.xlu0 %v10665
        %v10667 = vpop.xlane.xlu0 %10666
        %v10668 = vld [vmem:[%s581] sm:$0x1]
        %v10670 = vlaneseq
        %v10671 = vshrl.u32 %v10670, 7
        %v10672 = vsub.s32 0, %v10671
        %v10673 = vrot.slane %v10668, %v10672
        %v10675 = vadd.f32 %v10667, %v10673
        %vm10676 = vcmask 1024
        %10677 = vst.msk [vmem:[%s585] sm:$0x3] %vm10676, %v10675
        %p10678 = scmp.lt.s32.totalorder %s32, 1
        %s10679 = scalar_select %p10678, %s32, 1
        %s10680 = smul.addr %s10679, 2
        %s10681 = scalar_lea.vmem %s11, %s10680
        // Predicated region
        $region105: #{model_forward.1} parent=63 // pred_check
          %p10682 = pneg %p301
        $region106: #{model_forward.1} parent=63 // pred_check_branch
          %10684 = sbr.rel (%p10682) target = $region108
        $region107: #{model_forward.1} parent=63 // pred_region
          _
        $region108: #{model_forward.1} parent=63 // pred_fallthru
          _
      $region64: #{model_forward.1} parent=5 // pred_fallthru
        _
      %p10685 = scmp.le.s32.totalorder 2, %s27
      // Predicated region
      $region109: #{model_forward.1} parent=5 // pred_check
        %p10686 = pneg %p10685
      $region110: #{model_forward.1} parent=5 // pred_check_branch
        %10688 = sbr.rel (%p10686) target = $region112
      $region111: #{model_forward.1} parent=5 // pred_region
        %s10689 = ssub.s32 %s27, 2
        // Predicated region
        $region113: #{model_forward.1} parent=111 // pred_check
          %p10690 = pneg %p307
        $region114: #{model_forward.1} parent=111 // pred_check_branch
          %10692 = sbr.rel (%p10690) target = $region116
        $region115: #{model_forward.1} parent=111 // pred_region
          %p10693 = scmp.lt.s32.totalorder %s33, 1
          %s10694 = scalar_select %p10693, %s33, 1
          %s10695 = smul.addr %s10694, 2
          %s10696 = scalar_lea.vmem %s11, %s10695
        $region116: #{model_forward.1} parent=111 // pred_fallthru
          _
      $region112: #{model_forward.1} parent=5 // pred_fallthru
        _
    $region6: #{model_forward.1} parent=1 // loop_footer
      %s31 = sadd.s32 1, %s27
    $region7: #{model_forward.1} parent=1 // loop_footer_branch
      %26 = sbr.rel target = $region3
    $region8: #{model_forward.1} parent=1 // loop_exit
      _
    %10697 = vsyncpa [#allocation3], 1
    %s10698 = scalar_lea.sflag [#allocation3], 1
    %10699 = vsyncpa %s10698, 1
    %10700 = vsyncpa [#allocation5], 1
    %10701 = vsyncpa [#allocation8], 1
    %10702 = vsyncpa [#allocation11], 1
    %10703 = vsyncpa [#allocation14], 1
    %s10704 = scalar_lea.sflag [#allocation14], 1
    %10705 = vsyncpa %s10704, 1
    %10706 = vsyncpa [#allocation17], 1
    %s10707 = scalar_lea.sflag [#allocation17], 1
    %10708 = vsyncpa %s10707, 1

</llo_original>
